<compile_context>
chip_gen: v5e
topology: v5e:2x2
jax: 0.10.0
libtpu: 0.0.40
codegen_flags: <defaults>
</compile_context>

<pallas_src>
import jax
import jax.numpy as jnp
from jax.experimental import pallas as pl
from jax.experimental.pallas import tpu as pltpu

D = 768          # vision / text hidden size (module hard-codes 768)
GAT_OUT = 256    # dglnn.GATConv(768, 256, num_heads=1)
GAT_AUG = 384    # 256 feature lanes + lane 256 = a_l.(Wx), lane 257 = a_r.(Wx), zero pad
CLS_DIM = 128    # Classifier(256, 128) readout dim (feeds hard_proj: Linear(128, 768))
NUM_CLASSES = 2  # cls_head final Linear(768, 2)
PAD_OUT = 128    # lane-dense padded output width (logits live in lanes [0:2])


# -----------------------------------------------------------------------------
# Fused kernel: GATConv (fully-connected graph, no self loops, ELU) ->
# classifier readout -> fusion_hard (hard gumbel gating, noise passed in) ->
# cls_head MLP.  One grid step processes a TB-sample batch tile.
# -----------------------------------------------------------------------------
def albef_head_kernel(x_ref, cls_ref, noise_ref,
                      gat_w_ref, gat_b_ref,
                      read_w_ref, read_b_ref,
                      wproj_ref, bproj_ref,
                      wg_mul_ref, wg_graph_ref, bgate_ref,
                      w1_ref, b1_ref,
                      w2_ref, b2_ref,
                      out_ref):
    tb, n, d = x_ref.shape

    # ---------------- GATConv(768 -> 256, 1 head) over a fully-connected graph.
    # Attention vectors are folded into extra output columns of the weight, so a
    # single (tb*n, 768) @ (768, 384) matmul yields features + el + er.
    xf = x_ref[...].reshape(tb * n, d).astype(jnp.bfloat16)
    z_all = jnp.dot(xf, gat_w_ref[...], preferred_element_type=jnp.float32)  # (tb*n, 384)
    z_all = z_all.reshape(tb, n, GAT_AUG)
    z = z_all[:, :, :GAT_OUT]                                   # (tb, n, 256)
    el = z_all[:, :, GAT_OUT:GAT_OUT + 1]                       # (tb, n, 1) src score
    er = z_all[:, :, GAT_OUT + 1:GAT_OUT + 2]                   # (tb, n, 1) dst score

    e = er + jnp.swapaxes(el, 1, 2)                             # e[b,i,j] = er[b,i] + el[b,j]
    e = jnp.where(e > 0, e, 0.2 * e)                            # LeakyReLU(0.2)
    ii = jax.lax.broadcasted_iota(jnp.int32, (n, n), 0)
    jj = jax.lax.broadcasted_iota(jnp.int32, (n, n), 1)
    # finite mask value (instead of -inf) so padded / degenerate rows can't NaN
    e = jnp.where((ii == jj)[None, :, :], jnp.float32(-1e30), e)  # no self edges
    e = e - jnp.max(e, axis=-1, keepdims=True)
    p = jnp.exp(e)
    alpha = p / jnp.sum(p, axis=-1, keepdims=True)              # edge softmax (per dst)
    rst = jnp.einsum('bij,bjd->bid', alpha, z,
                     preferred_element_type=jnp.float32) + gat_b_ref[...]
    # F.elu; clamp the exp branch so it never overflows for large positive rst
    gat = jnp.where(rst > 0, rst, jnp.exp(jnp.minimum(rst, 0.0)) - 1.0)   # (tb, n, 256)

    # TODO(synk): Classifier(256, 128) class is undefined in the source snippet;
    # stand-in linear readout producing graph_embedding[:, 0, :] (dim 128).
    g0 = gat[:, 0, :].astype(jnp.bfloat16)                      # (tb, 256)
    graph_emb = (jnp.dot(g0, read_w_ref[...],
                         preferred_element_type=jnp.float32) + read_b_ref[...])  # (tb, 128)

    # ---------------- fusion_hard
    mul = jnp.maximum(cls_ref[...], 0.0)                        # relu(bert CLS)  (tb, 768)
    graph = jnp.maximum(graph_emb, 0.0)                         # relu
    graph = (jnp.dot(graph.astype(jnp.bfloat16), wproj_ref[...],
                     preferred_element_type=jnp.float32) + bproj_ref[...])        # (tb, 768)

    # hard_mul + hard_graph: fused gate matmul without materializing the lane-concat:
    # [mul, graph] @ W  ==  mul @ W_top + graph @ W_bot
    gates = (jnp.dot(mul.astype(jnp.bfloat16), wg_mul_ref[...],
                     preferred_element_type=jnp.float32)
             + jnp.dot(graph.astype(jnp.bfloat16), wg_graph_ref[...],
                       preferred_element_type=jnp.float32)
             + bgate_ref[...])                                  # (tb, 1536)
    s_mul = jax.nn.sigmoid(gates[:, :D])
    s_gr = jax.nn.sigmoid(gates[:, D:])

    # F.gumbel_softmax(ak, hard=True, dim=1), tau=1: forward value is the one-hot
    # argmax of (sigmoid gates + Gumbel noise) over the 2-way axis.  Noise is an
    # input (lane-dense (tb, 1536)); ties favor index 0 (the `mul` branch).
    gmb = noise_ref[...]
    sel0 = ((s_mul + gmb[:, :D]) >= (s_gr + gmb[:, D:])).astype(jnp.float32)
    pre = mul * sel0 + graph * (1.0 - sel0)                     # (tb, 768)

    # ---------------- cls_head: Linear(768,768) -> ReLU -> Linear(768,2) (padded to 128)
    h = jnp.maximum(jnp.dot(pre.astype(jnp.bfloat16), w1_ref[...],
                            preferred_element_type=jnp.float32) + b1_ref[...], 0.0)
    out_ref[...] = (jnp.dot(h.astype(jnp.bfloat16), w2_ref[...],
                            preferred_element_type=jnp.float32) + b2_ref[...])    # (tb, 128)


def albef_head_forward(bert_cls, node_feats, gumbel_noise, params, tb_max=64):
    """bert_cls: (B, 768) f32, node_feats: (B, N, 768) f32, gumbel_noise: (B, 1536) f32."""
    B, N, _ = node_feats.shape
    assert N >= 2, "fully-connected graph without self loops needs at least 2 nodes"

    # Batch tile: full batch in one step when small; otherwise 64-sample tiles
    # (multiple of 8 for sublane tiling).  >=2 grid steps lets v7x use both TCs.
    if B <= tb_max:
        TB = B
    else:
        TB = tb_max
        assert TB % 8 == 0
    B_pad = ((B + TB - 1) // TB) * TB
    if B_pad != B:
        pad = B_pad - B
        node_feats = jnp.pad(node_feats, ((0, pad), (0, 0), (0, 0)))
        bert_cls = jnp.pad(bert_cls, ((0, pad), (0, 0)))
        gumbel_noise = jnp.pad(gumbel_noise, ((0, pad), (0, 0)))
    steps = B_pad // TB

    # Constant-index weights: fetched once, single-buffered (halves resident VMEM).
    def wspec(shape):
        return pl.BlockSpec(shape, lambda i: (0, 0), pipeline_mode=pl.Buffered(1))

    in_specs = [
        pl.BlockSpec((TB, N, D), lambda i: (i, 0, 0)),        # node feats (f32)
        pl.BlockSpec((TB, D), lambda i: (i, 0)),              # bert CLS (f32)
        pl.BlockSpec((TB, 2 * D), lambda i: (i, 0)),          # Gumbel noise (f32)
        wspec((D, GAT_AUG)),                                  # gat_w (+folded al/ar) bf16
        wspec((1, GAT_OUT)),                                  # gat bias
        wspec((GAT_OUT, CLS_DIM)),                            # readout w (bf16)
        wspec((1, CLS_DIM)),                                  # readout b
        wspec((CLS_DIM, D)),                                  # hard_proj w (bf16)
        wspec((1, D)),                                        # hard_proj b
        wspec((D, 2 * D)),                                    # gate W_top (bf16)
        wspec((D, 2 * D)),                                    # gate W_bot (bf16)
        wspec((1, 2 * D)),                                    # gate bias
        wspec((D, D)),                                        # cls_head w1 (bf16)
        wspec((1, D)),                                        # cls_head b1
        wspec((D, PAD_OUT)),                                  # cls_head w2 padded (bf16)
        wspec((1, PAD_OUT)),                                  # cls_head b2 padded
    ]
    out = pl.pallas_call(
        albef_head_kernel,
        out_shape=jax.ShapeDtypeStruct((B_pad, PAD_OUT), jnp.float32),
        grid=(steps,),
        in_specs=in_specs,
        out_specs=pl.BlockSpec((TB, PAD_OUT), lambda i: (i, 0)),
        compiler_params=pltpu.CompilerParams(
            dimension_semantics=("parallel",),       # shards batch tiles over v7x's 2 TCs
            vmem_limit_bytes=48 * 1024 * 1024,       # ~6.6 MB weights + TB=64 activations
        ),
    )(node_feats, bert_cls, gumbel_noise,
      params['gat_w_aug'], params['gat_b'],
      params['cls_read_w'], params['cls_read_b'],
      params['wproj'], params['bproj'],
      params['wg_mul'], params['wg_graph'], params['bgate'],
      params['w1'], params['b1'],
      params['w2p'], params['b2p'])
    return out[:B, :NUM_CLASSES]                               # (B, 2) f32


# -----------------------------------------------------------------------------
# Deterministic parameter init (kaiming-normal style, matching __init__ shapes).
# Matmul weights are stored in bf16 (weight-DMA-bound head); biases stay f32.
# -----------------------------------------------------------------------------
def init_params(key):
    ks = jax.random.split(key, 16)

    def kaiming(k, shape):
        fan_in = shape[0]
        return jnp.sqrt(2.0 / fan_in) * jax.random.normal(k, shape, jnp.float32)

    p = {}
    # dglnn.GATConv(768, 256, num_heads=1): fc weight, attn_l/attn_r, bias.
    gat_w = kaiming(ks[0], (D, GAT_OUT))
    gat_al = 0.1 * jax.random.normal(ks[1], (1, GAT_OUT), jnp.float32)
    gat_ar = 0.1 * jax.random.normal(ks[2], (1, GAT_OUT), jnp.float32)
    # Fold attn_l/attn_r into two extra output columns (el = x @ (W a_l^T)), padded to
    # a full 128-lane group: zero extra MXU passes, removes two XLU reductions in-kernel.
    gw = jnp.zeros((D, GAT_AUG), jnp.float32)
    gw = gw.at[:, :GAT_OUT].set(gat_w)
    gw = gw.at[:, GAT_OUT].set((gat_w @ gat_al.T)[:, 0])
    gw = gw.at[:, GAT_OUT + 1].set((gat_w @ gat_ar.T)[:, 0])
    p['gat_w_aug'] = gw
    p['gat_b'] = jnp.zeros((1, GAT_OUT), jnp.float32)
    # TODO(synk): Classifier(256, 128) is undefined in the snippet; linear stand-in.
    p['cls_read_w'] = kaiming(ks[3], (GAT_OUT, CLS_DIM))
    p['cls_read_b'] = jnp.zeros((1, CLS_DIM), jnp.float32)
    # hard_proj: Linear(128, 768)
    p['wproj'] = kaiming(ks[4], (CLS_DIM, D))
    p['bproj'] = 0.01 * jax.random.normal(ks[5], (1, D), jnp.float32)
    # hard_mul / hard_graph: Linear(1536, 768) each.  Stored split by input half so the
    # kernel computes mul @ W_top + graph @ W_bot (no lane-concat of the activations).
    wmul = kaiming(ks[6], (2 * D, D))
    bmul = 0.01 * jax.random.normal(ks[7], (1, D), jnp.float32)
    wgr = kaiming(ks[8], (2 * D, D))
    bgr = 0.01 * jax.random.normal(ks[9], (1, D), jnp.float32)
    p['wg_mul'] = jnp.concatenate([wmul[:D], wgr[:D]], axis=1)     # (768, 1536)
    p['wg_graph'] = jnp.concatenate([wmul[D:], wgr[D:]], axis=1)   # (768, 1536)
    p['bgate'] = jnp.concatenate([bmul, bgr], axis=1)              # (1, 1536)
    # cls_head: Linear(768,768) + ReLU + Linear(768,2) (padded lane-dense to 128)
    p['w1'] = kaiming(ks[10], (D, D))
    p['b1'] = 0.01 * jax.random.normal(ks[11], (1, D), jnp.float32)
    w2 = kaiming(ks[12], (D, NUM_CLASSES))
    b2 = 0.01 * jax.random.normal(ks[13], (1, NUM_CLASSES), jnp.float32)
    p['w2p'] = jnp.zeros((D, PAD_OUT), jnp.float32).at[:, :NUM_CLASSES].set(w2)
    p['b2p'] = jnp.zeros((1, PAD_OUT), jnp.float32).at[:, :NUM_CLASSES].set(b2)

    # bf16 weight matrices (halves HBM weight bytes; native bf16 MXU path)
    for name in ('gat_w_aug', 'cls_read_w', 'wproj', 'wg_mul', 'wg_graph', 'w1', 'w2p'):
        p[name] = p[name].astype(jnp.bfloat16)
    return p


if __name__ == "__main__":
    key = jax.random.PRNGKey(0)
    k_bert, k_nodes, k_params, k_noise = jax.random.split(key, 4)

    B = 2
    N = 8   # e.g. 4 image patch nodes + 4 text token nodes, fully-connected fused graph
    # TODO(synk): VisionTransformer / pretrained BertModel / Classifier_proj / DGL graph
    # batching are external; their outputs are modeled as these inputs:
    #   bert_cls   = output.last_hidden_state[:, 0, :]
    #   node_feats = bg_f.ndata['x'] reshaped to [batch, nodes, 768]
    bert_cls = jax.random.normal(k_bert, (B, D), jnp.float32)
    node_feats = jax.random.normal(k_nodes, (B, N, D), jnp.float32)
    params = init_params(k_params)
    # Gumbel(0,1) noise for F.gumbel_softmax(..., hard=True) — generated host-side
    # (pltpu.prng_* has no CPU/interpret lowering), lane-dense as (B, 2*768).
    gumbel = jax.random.gumbel(k_noise, (B, 2 * D), jnp.float32)

    pred = albef_head_forward(bert_cls, node_feats, gumbel, params)
    pred = jax.block_until_ready(pred)
    assert pred.shape == (B, NUM_CLASSES) and pred.dtype == jnp.float32
    assert bool(jnp.all(jnp.isfinite(pred)))
    print("KERNEL_OK")
</pallas_src>

<mosaic_0001>
module attributes {stable_mosaic.version = 11 : i64} {
  func.func @albef_head_kernel(%arg0: i32, %arg1: memref<2x8x768xf32, #tpu.memory_space<vmem>>, %arg2: memref<2x768xf32, #tpu.memory_space<vmem>>, %arg3: memref<2x1536xf32, #tpu.memory_space<vmem>>, %arg4: memref<768x384xbf16, #tpu.memory_space<vmem>>, %arg5: memref<1x256xf32, #tpu.memory_space<vmem>>, %arg6: memref<256x128xbf16, #tpu.memory_space<vmem>>, %arg7: memref<1x128xf32, #tpu.memory_space<vmem>>, %arg8: memref<128x768xbf16, #tpu.memory_space<vmem>>, %arg9: memref<1x768xf32, #tpu.memory_space<vmem>>, %arg10: memref<768x1536xbf16, #tpu.memory_space<vmem>>, %arg11: memref<768x1536xbf16, #tpu.memory_space<vmem>>, %arg12: memref<1x1536xf32, #tpu.memory_space<vmem>>, %arg13: memref<768x768xbf16, #tpu.memory_space<vmem>>, %arg14: memref<1x768xf32, #tpu.memory_space<vmem>>, %arg15: memref<768x128xbf16, #tpu.memory_space<vmem>>, %arg16: memref<1x128xf32, #tpu.memory_space<vmem>>, %arg17: memref<2x128xf32, #tpu.memory_space<vmem>>) attributes {dimension_semantics = [#tpu.dimension_semantics<parallel>], iteration_bounds = array<i64: 1>, scalar_prefetch = 0 : i64, scratch_operands = 0 : i64, tpu.core_type = #tpu.core_type<tc>, window_params = [{transform_indices = @transform_0, window_bounds = array<i64: 2, 8, 768>}, {transform_indices = @transform_1, window_bounds = array<i64: 2, 768>}, {transform_indices = @transform_2, window_bounds = array<i64: 2, 1536>}, {pipeline_mode = #tpu.pipeline_mode<synchronous>, transform_indices = @transform_3, window_bounds = array<i64: 768, 384>}, {pipeline_mode = #tpu.pipeline_mode<synchronous>, transform_indices = @transform_4, window_bounds = array<i64: 1, 256>}, {pipeline_mode = #tpu.pipeline_mode<synchronous>, transform_indices = @transform_5, window_bounds = array<i64: 256, 128>}, {pipeline_mode = #tpu.pipeline_mode<synchronous>, transform_indices = @transform_6, window_bounds = array<i64: 1, 128>}, {pipeline_mode = #tpu.pipeline_mode<synchronous>, transform_indices = @transform_7, window_bounds = array<i64: 128, 768>}, {pipeline_mode = #tpu.pipeline_mode<synchronous>, transform_indices = @transform_8, window_bounds = array<i64: 1, 768>}, {pipeline_mode = #tpu.pipeline_mode<synchronous>, transform_indices = @transform_9, window_bounds = array<i64: 768, 1536>}, {pipeline_mode = #tpu.pipeline_mode<synchronous>, transform_indices = @transform_10, window_bounds = array<i64: 768, 1536>}, {pipeline_mode = #tpu.pipeline_mode<synchronous>, transform_indices = @transform_11, window_bounds = array<i64: 1, 1536>}, {pipeline_mode = #tpu.pipeline_mode<synchronous>, transform_indices = @transform_12, window_bounds = array<i64: 768, 768>}, {pipeline_mode = #tpu.pipeline_mode<synchronous>, transform_indices = @transform_13, window_bounds = array<i64: 1, 768>}, {pipeline_mode = #tpu.pipeline_mode<synchronous>, transform_indices = @transform_14, window_bounds = array<i64: 768, 128>}, {pipeline_mode = #tpu.pipeline_mode<synchronous>, transform_indices = @transform_15, window_bounds = array<i64: 1, 128>}, {transform_indices = @transform_16, window_bounds = array<i64: 2, 128>}]} {
    %c0 = arith.constant 0 : index
    %c0_0 = arith.constant 0 : index
    %c0_1 = arith.constant 0 : index
    %0 = vector.load %arg1[%c0, %c0_0, %c0_1] : memref<2x8x768xf32, #tpu.memory_space<vmem>>, vector<2x8x768xf32>
    %1 = vector.shape_cast %0 : vector<2x8x768xf32> to vector<16x768xf32>
    %2 = arith.truncf %1 : vector<16x768xf32> to vector<16x768xbf16>
    %c0_2 = arith.constant 0 : index
    %c0_3 = arith.constant 0 : index
    %3 = vector.load %arg4[%c0_2, %c0_3] : memref<768x384xbf16, #tpu.memory_space<vmem>>, vector<768x384xbf16>
    %cst = arith.constant dense<0.000000e+00> : vector<16x384xf32>
    %4 = tpu.matmul %2, %3, %cst {dimension_numbers = #tpu.dot_dimension_numbers<[1], [0], [0], [1], [0, 0, 1, 1], [], []>} : vector<16x768xbf16>, vector<768x384xbf16>, vector<16x384xf32> -> vector<16x384xf32>
    %5 = vector.shape_cast %4 : vector<16x384xf32> to vector<2x8x384xf32>
    %6 = vector.extract_strided_slice %5 {offsets = [0, 0, 0], sizes = [2, 8, 256], strides = [1, 1, 1]} : vector<2x8x384xf32> to vector<2x8x256xf32>
    %7 = vector.extract_strided_slice %5 {offsets = [0, 0, 256], sizes = [2, 8, 1], strides = [1, 1, 1]} : vector<2x8x384xf32> to vector<2x8x1xf32>
    %8 = vector.extract_strided_slice %5 {offsets = [0, 0, 257], sizes = [2, 8, 1], strides = [1, 1, 1]} : vector<2x8x384xf32> to vector<2x8x1xf32>
    %9 = tpu.transpose %7, [0, 2, 1] : vector<2x8x1xf32> -> vector<2x1x8xf32>
    %10 = vector.broadcast %8 : vector<2x8x1xf32> to vector<2x8x8xf32>
    %11 = vector.broadcast %9 : vector<2x1x8xf32> to vector<2x8x8xf32>
    %12 = arith.addf %10, %11 : vector<2x8x8xf32>
    %cst_4 = arith.constant 0.000000e+00 : f32
    %13 = vector.broadcast %cst_4 : f32 to vector<2x8x8xf32>
    %14 = arith.cmpf ogt, %12, %13 : vector<2x8x8xf32>
    %cst_5 = arith.constant 2.000000e-01 : f32
    %15 = vector.broadcast %cst_5 : f32 to vector<2x8x8xf32>
    %16 = arith.mulf %15, %12 : vector<2x8x8xf32>
    %17 = arith.select %14, %12, %16 : vector<2x8x8xi1>, vector<2x8x8xf32>
    %18 = tpu.iota {dimensions = array<i32: 0>} : vector<8x8xi32>
    %19 = tpu.iota {dimensions = array<i32: 1>} : vector<8x8xi32>
    %20 = arith.cmpi eq, %18, %19 : vector<8x8xi32>
    %21 = vector.shape_cast %20 : vector<8x8xi1> to vector<1x8x8xi1>
    %cst_6 = arith.constant -1.000000e+30 : f32
    %22 = vector.shape_cast %21 : vector<1x8x8xi1> to vector<1x8x8xi1>
    %23 = vector.broadcast %22 : vector<1x8x8xi1> to vector<2x8x8xi1>
    %24 = vector.broadcast %cst_6 : f32 to vector<2x8x8xf32>
    %25 = arith.select %23, %24, %17 : vector<2x8x8xi1>, vector<2x8x8xf32>
    %cst_7 = arith.constant dense<0xFF800000> : vector<2x8xf32>
    %26 = vector.multi_reduction <maximumf>, %25, %cst_7 [2] : vector<2x8x8xf32> to vector<2x8xf32>
    %27 = vector.shape_cast %26 : vector<2x8xf32> to vector<2x8x1xf32>
    %28 = vector.broadcast %27 : vector<2x8x1xf32> to vector<2x8x8xf32>
    %29 = arith.subf %25, %28 : vector<2x8x8xf32>
    %30 = math.exp %29 : vector<2x8x8xf32>
    %cst_8 = arith.constant dense<0.000000e+00> : vector<2x8xf32>
    %31 = vector.multi_reduction <add>, %30, %cst_8 [2] : vector<2x8x8xf32> to vector<2x8xf32>
    %32 = vector.shape_cast %31 : vector<2x8xf32> to vector<2x8x1xf32>
    %33 = vector.broadcast %32 : vector<2x8x1xf32> to vector<2x8x8xf32>
    %34 = arith.divf %30, %33 : vector<2x8x8xf32>
    "tpu.trace_start"() <{level = 10 : i32, message = "bij,bjd->bid"}> : () -> ()
    %cst_9 = arith.constant dense<0.000000e+00> : vector<2x8x256xf32>
    %35 = tpu.matmul %34, %6, %cst_9 {dimension_numbers = #tpu.dot_dimension_numbers<[2], [1], [1], [2], [0, 0, 0, 1, 1, 2], [0], [0]>} : vector<2x8x8xf32>, vector<2x8x256xf32>, vector<2x8x256xf32> -> vector<2x8x256xf32>
    "tpu.trace_stop"() : () -> ()
    %c0_10 = arith.constant 0 : index
    %c0_11 = arith.constant 0 : index
    %36 = vector.load %arg5[%c0_10, %c0_11] : memref<1x256xf32, #tpu.memory_space<vmem>>, vector<1x256xf32>
    %37 = vector.shape_cast %36 : vector<1x256xf32> to vector<1x1x256xf32>
    %38 = vector.broadcast %37 : vector<1x1x256xf32> to vector<2x8x256xf32>
    %39 = arith.addf %35, %38 : vector<2x8x256xf32>
    %cst_12 = arith.constant 0.000000e+00 : f32
    %40 = vector.broadcast %cst_12 : f32 to vector<2x8x256xf32>
    %41 = arith.cmpf ogt, %39, %40 : vector<2x8x256xf32>
    %cst_13 = arith.constant 0.000000e+00 : f32
    %42 = vector.broadcast %cst_13 : f32 to vector<2x8x256xf32>
    %43 = arith.minimumf %39, %42 : vector<2x8x256xf32>
    %44 = math.exp %43 : vector<2x8x256xf32>
    %cst_14 = arith.constant 1.000000e+00 : f32
    %45 = vector.broadcast %cst_14 : f32 to vector<2x8x256xf32>
    %46 = arith.subf %44, %45 : vector<2x8x256xf32>
    %47 = arith.select %41, %39, %46 : vector<2x8x256xi1>, vector<2x8x256xf32>
    %48 = vector.extract_strided_slice %47 {offsets = [0, 0, 0], sizes = [2, 1, 256], strides = [1, 1, 1]} : vector<2x8x256xf32> to vector<2x1x256xf32>
    %49 = vector.shape_cast %48 : vector<2x1x256xf32> to vector<2x256xf32>
    %50 = arith.truncf %49 : vector<2x256xf32> to vector<2x256xbf16>
    %c0_15 = arith.constant 0 : index
    %c0_16 = arith.constant 0 : index
    %51 = vector.load %arg6[%c0_15, %c0_16] : memref<256x128xbf16, #tpu.memory_space<vmem>>, vector<256x128xbf16>
    %cst_17 = arith.constant dense<0.000000e+00> : vector<2x128xf32>
    %52 = tpu.matmul %50, %51, %cst_17 {dimension_numbers = #tpu.dot_dimension_numbers<[1], [0], [0], [1], [0, 0, 1, 1], [], []>} : vector<2x256xbf16>, vector<256x128xbf16>, vector<2x128xf32> -> vector<2x128xf32>
    %c0_18 = arith.constant 0 : index
    %c0_19 = arith.constant 0 : index
    %53 = vector.load %arg7[%c0_18, %c0_19] : memref<1x128xf32, #tpu.memory_space<vmem>>, vector<1x128xf32>
    %54 = vector.broadcast %53 : vector<1x128xf32> to vector<2x128xf32>
    %55 = arith.addf %52, %54 : vector<2x128xf32>
    %c0_20 = arith.constant 0 : index
    %c0_21 = arith.constant 0 : index
    %56 = vector.load %arg2[%c0_20, %c0_21] : memref<2x768xf32, #tpu.memory_space<vmem>>, vector<2x768xf32>
    %cst_22 = arith.constant 0.000000e+00 : f32
    %57 = vector.broadcast %cst_22 : f32 to vector<2x768xf32>
    %58 = arith.maximumf %56, %57 : vector<2x768xf32>
    %cst_23 = arith.constant 0.000000e+00 : f32
    %59 = vector.broadcast %cst_23 : f32 to vector<2x128xf32>
    %60 = arith.maximumf %55, %59 : vector<2x128xf32>
    %61 = arith.truncf %60 : vector<2x128xf32> to vector<2x128xbf16>
    %c0_24 = arith.constant 0 : index
    %c0_25 = arith.constant 0 : index
    %62 = vector.load %arg8[%c0_24, %c0_25] : memref<128x768xbf16, #tpu.memory_space<vmem>>, vector<128x768xbf16>
    %cst_26 = arith.constant dense<0.000000e+00> : vector<2x768xf32>
    %63 = tpu.matmul %61, %62, %cst_26 {dimension_numbers = #tpu.dot_dimension_numbers<[1], [0], [0], [1], [0, 0, 1, 1], [], []>} : vector<2x128xbf16>, vector<128x768xbf16>, vector<2x768xf32> -> vector<2x768xf32>
    %c0_27 = arith.constant 0 : index
    %c0_28 = arith.constant 0 : index
    %64 = vector.load %arg9[%c0_27, %c0_28] : memref<1x768xf32, #tpu.memory_space<vmem>>, vector<1x768xf32>
    %65 = vector.broadcast %64 : vector<1x768xf32> to vector<2x768xf32>
    %66 = arith.addf %63, %65 : vector<2x768xf32>
    %67 = arith.truncf %58 : vector<2x768xf32> to vector<2x768xbf16>
    %c0_29 = arith.constant 0 : index
    %c0_30 = arith.constant 0 : index
    %68 = vector.load %arg10[%c0_29, %c0_30] : memref<768x1536xbf16, #tpu.memory_space<vmem>>, vector<768x1536xbf16>
    %cst_31 = arith.constant dense<0.000000e+00> : vector<2x1536xf32>
    %69 = tpu.matmul %67, %68, %cst_31 {dimension_numbers = #tpu.dot_dimension_numbers<[1], [0], [0], [1], [0, 0, 1, 1], [], []>} : vector<2x768xbf16>, vector<768x1536xbf16>, vector<2x1536xf32> -> vector<2x1536xf32>
    %70 = arith.truncf %66 : vector<2x768xf32> to vector<2x768xbf16>
    %c0_32 = arith.constant 0 : index
    %c0_33 = arith.constant 0 : index
    %71 = vector.load %arg11[%c0_32, %c0_33] : memref<768x1536xbf16, #tpu.memory_space<vmem>>, vector<768x1536xbf16>
    %cst_34 = arith.constant dense<0.000000e+00> : vector<2x1536xf32>
    %72 = tpu.matmul %70, %71, %cst_34 {dimension_numbers = #tpu.dot_dimension_numbers<[1], [0], [0], [1], [0, 0, 1, 1], [], []>} : vector<2x768xbf16>, vector<768x1536xbf16>, vector<2x1536xf32> -> vector<2x1536xf32>
    %73 = arith.addf %69, %72 : vector<2x1536xf32>
    %c0_35 = arith.constant 0 : index
    %c0_36 = arith.constant 0 : index
    %74 = vector.load %arg12[%c0_35, %c0_36] : memref<1x1536xf32, #tpu.memory_space<vmem>>, vector<1x1536xf32>
    %75 = vector.broadcast %74 : vector<1x1536xf32> to vector<2x1536xf32>
    %76 = arith.addf %73, %75 : vector<2x1536xf32>
    %77 = vector.extract_strided_slice %76 {offsets = [0, 0], sizes = [2, 768], strides = [1, 1]} : vector<2x1536xf32> to vector<2x768xf32>
    %78 = arith.negf %77 : vector<2x768xf32>
    %79 = math.exp %78 : vector<2x768xf32>
    %cst_37 = arith.constant 1.000000e+00 : f32
    %80 = vector.broadcast %cst_37 : f32 to vector<2x768xf32>
    %81 = arith.addf %80, %79 : vector<2x768xf32>
    %82 = arith.divf %80, %81 : vector<2x768xf32>
    %83 = vector.extract_strided_slice %76 {offsets = [0, 768], sizes = [2, 768], strides = [1, 1]} : vector<2x1536xf32> to vector<2x768xf32>
    %84 = arith.negf %83 : vector<2x768xf32>
    %85 = math.exp %84 : vector<2x768xf32>
    %cst_38 = arith.constant 1.000000e+00 : f32
    %86 = vector.broadcast %cst_38 : f32 to vector<2x768xf32>
    %87 = arith.addf %86, %85 : vector<2x768xf32>
    %88 = arith.divf %86, %87 : vector<2x768xf32>
    %c0_39 = arith.constant 0 : index
    %c0_40 = arith.constant 0 : index
    %89 = vector.load %arg3[%c0_39, %c0_40] : memref<2x1536xf32, #tpu.memory_space<vmem>>, vector<2x1536xf32>
    %90 = vector.extract_strided_slice %89 {offsets = [0, 0], sizes = [2, 768], strides = [1, 1]} : vector<2x1536xf32> to vector<2x768xf32>
    %91 = arith.addf %82, %90 : vector<2x768xf32>
    %92 = vector.extract_strided_slice %89 {offsets = [0, 768], sizes = [2, 768], strides = [1, 1]} : vector<2x1536xf32> to vector<2x768xf32>
    %93 = arith.addf %88, %92 : vector<2x768xf32>
    %94 = arith.cmpf oge, %91, %93 : vector<2x768xf32>
    %95 = arith.extui %94 : vector<2x768xi1> to vector<2x768xi32>
    %96 = arith.sitofp %95 : vector<2x768xi32> to vector<2x768xf32>
    %97 = arith.mulf %58, %96 : vector<2x768xf32>
    %cst_41 = arith.constant 1.000000e+00 : f32
    %98 = vector.broadcast %cst_41 : f32 to vector<2x768xf32>
    %99 = arith.subf %98, %96 : vector<2x768xf32>
    %100 = arith.mulf %66, %99 : vector<2x768xf32>
    %101 = arith.addf %97, %100 : vector<2x768xf32>
    %102 = arith.truncf %101 : vector<2x768xf32> to vector<2x768xbf16>
    %c0_42 = arith.constant 0 : index
    %c0_43 = arith.constant 0 : index
    %103 = vector.load %arg13[%c0_42, %c0_43] : memref<768x768xbf16, #tpu.memory_space<vmem>>, vector<768x768xbf16>
    %cst_44 = arith.constant dense<0.000000e+00> : vector<2x768xf32>
    %104 = tpu.matmul %102, %103, %cst_44 {dimension_numbers = #tpu.dot_dimension_numbers<[1], [0], [0], [1], [0, 0, 1, 1], [], []>} : vector<2x768xbf16>, vector<768x768xbf16>, vector<2x768xf32> -> vector<2x768xf32>
    %c0_45 = arith.constant 0 : index
    %c0_46 = arith.constant 0 : index
    %105 = vector.load %arg14[%c0_45, %c0_46] : memref<1x768xf32, #tpu.memory_space<vmem>>, vector<1x768xf32>
    %106 = vector.broadcast %105 : vector<1x768xf32> to vector<2x768xf32>
    %107 = arith.addf %104, %106 : vector<2x768xf32>
    %cst_47 = arith.constant 0.000000e+00 : f32
    %108 = vector.broadcast %cst_47 : f32 to vector<2x768xf32>
    %109 = arith.maximumf %107, %108 : vector<2x768xf32>
    %110 = arith.truncf %109 : vector<2x768xf32> to vector<2x768xbf16>
    %c0_48 = arith.constant 0 : index
    %c0_49 = arith.constant 0 : index
    %111 = vector.load %arg15[%c0_48, %c0_49] : memref<768x128xbf16, #tpu.memory_space<vmem>>, vector<768x128xbf16>
    %cst_50 = arith.constant dense<0.000000e+00> : vector<2x128xf32>
    %112 = tpu.matmul %110, %111, %cst_50 {dimension_numbers = #tpu.dot_dimension_numbers<[1], [0], [0], [1], [0, 0, 1, 1], [], []>} : vector<2x768xbf16>, vector<768x128xbf16>, vector<2x128xf32> -> vector<2x128xf32>
    %c0_51 = arith.constant 0 : index
    %c0_52 = arith.constant 0 : index
    %113 = vector.load %arg16[%c0_51, %c0_52] : memref<1x128xf32, #tpu.memory_space<vmem>>, vector<1x128xf32>
    %114 = vector.broadcast %113 : vector<1x128xf32> to vector<2x128xf32>
    %115 = arith.addf %112, %114 : vector<2x128xf32>
    %c0_53 = arith.constant 0 : index
    %c0_54 = arith.constant 0 : index
    %116 = vector.load %arg17[%c0_53, %c0_54] : memref<2x128xf32, #tpu.memory_space<vmem>>, vector<2x128xf32>
    tpu.vector_store %arg17[%c0_53, %c0_54], %115 {strides = array<i32>} : memref<2x128xf32, #tpu.memory_space<vmem>>, vector<2x128xf32>,
    return
  }
  func.func @transform_0(%arg0: i32) -> (i32, i32, i32) {
    %c0_i32 = arith.constant 0 : i32
    %c0_i32_0 = arith.constant 0 : i32
    %c0_i32_1 = arith.constant 0 : i32
    return %arg0, %c0_i32, %c0_i32_0 : i32, i32, i32
  }
  func.func @transform_1(%arg0: i32) -> (i32, i32) {
    %c0_i32 = arith.constant 0 : i32
    %c0_i32_0 = arith.constant 0 : i32
    return %arg0, %c0_i32 : i32, i32
  }
  func.func @transform_2(%arg0: i32) -> (i32, i32) {
    %c0_i32 = arith.constant 0 : i32
    %c0_i32_0 = arith.constant 0 : i32
    return %arg0, %c0_i32 : i32, i32
  }
  func.func @transform_3(%arg0: i32) -> (i32, i32) {
    %c0_i32 = arith.constant 0 : i32
    %c0_i32_0 = arith.constant 0 : i32
    %c0_i32_1 = arith.constant 0 : i32
    return %c0_i32, %c0_i32_0 : i32, i32
  }
  func.func @transform_4(%arg0: i32) -> (i32, i32) {
    %c0_i32 = arith.constant 0 : i32
    %c0_i32_0 = arith.constant 0 : i32
    %c0_i32_1 = arith.constant 0 : i32
    return %c0_i32, %c0_i32_0 : i32, i32
  }
  func.func @transform_5(%arg0: i32) -> (i32, i32) {
    %c0_i32 = arith.constant 0 : i32
    %c0_i32_0 = arith.constant 0 : i32
    %c0_i32_1 = arith.constant 0 : i32
    return %c0_i32, %c0_i32_0 : i32, i32
  }
  func.func @transform_6(%arg0: i32) -> (i32, i32) {
    %c0_i32 = arith.constant 0 : i32
    %c0_i32_0 = arith.constant 0 : i32
    %c0_i32_1 = arith.constant 0 : i32
    return %c0_i32, %c0_i32_0 : i32, i32
  }
  func.func @transform_7(%arg0: i32) -> (i32, i32) {
    %c0_i32 = arith.constant 0 : i32
    %c0_i32_0 = arith.constant 0 : i32
    %c0_i32_1 = arith.constant 0 : i32
    return %c0_i32, %c0_i32_0 : i32, i32
  }
  func.func @transform_8(%arg0: i32) -> (i32, i32) {
    %c0_i32 = arith.constant 0 : i32
    %c0_i32_0 = arith.constant 0 : i32
    %c0_i32_1 = arith.constant 0 : i32
    return %c0_i32, %c0_i32_0 : i32, i32
  }
  func.func @transform_9(%arg0: i32) -> (i32, i32) {
    %c0_i32 = arith.constant 0 : i32
    %c0_i32_0 = arith.constant 0 : i32
    %c0_i32_1 = arith.constant 0 : i32
    return %c0_i32, %c0_i32_0 : i32, i32
  }
  func.func @transform_10(%arg0: i32) -> (i32, i32) {
    %c0_i32 = arith.constant 0 : i32
    %c0_i32_0 = arith.constant 0 : i32
    %c0_i32_1 = arith.constant 0 : i32
    return %c0_i32, %c0_i32_0 : i32, i32
  }
  func.func @transform_11(%arg0: i32) -> (i32, i32) {
    %c0_i32 = arith.constant 0 : i32
    %c0_i32_0 = arith.constant 0 : i32
    %c0_i32_1 = arith.constant 0 : i32
    return %c0_i32, %c0_i32_0 : i32, i32
  }
  func.func @transform_12(%arg0: i32) -> (i32, i32) {
    %c0_i32 = arith.constant 0 : i32
    %c0_i32_0 = arith.constant 0 : i32
    %c0_i32_1 = arith.constant 0 : i32
    return %c0_i32, %c0_i32_0 : i32, i32
  }
  func.func @transform_13(%arg0: i32) -> (i32, i32) {
    %c0_i32 = arith.constant 0 : i32
    %c0_i32_0 = arith.constant 0 : i32
    %c0_i32_1 = arith.constant 0 : i32
    return %c0_i32, %c0_i32_0 : i32, i32
  }
  func.func @transform_14(%arg0: i32) -> (i32, i32) {
    %c0_i32 = arith.constant 0 : i32
    %c0_i32_0 = arith.constant 0 : i32
    %c0_i32_1 = arith.constant 0 : i32
    return %c0_i32, %c0_i32_0 : i32, i32
  }
  func.func @transform_15(%arg0: i32) -> (i32, i32) {
    %c0_i32 = arith.constant 0 : i32
    %c0_i32_0 = arith.constant 0 : i32
    %c0_i32_1 = arith.constant 0 : i32
    return %c0_i32, %c0_i32_0 : i32, i32
  }
  func.func @transform_16(%arg0: i32) -> (i32, i32) {
    %c0_i32 = arith.constant 0 : i32
    %c0_i32_0 = arith.constant 0 : i32
    return %arg0, %c0_i32 : i32, i32
  }
}

</mosaic_0001>

<llo_original>
// kernel: tpu_custom_call.1
$region0: #{tpu_custom_call.1}
  #allocation0 [shape = 'u32[]', space=smem, size = 0x4, offset = 0x4, fixed_abs, tag = 'smem constant byte address 0x4 - core index']
  #allocation1 [shape = 'u32[72,128]{1,0:T(1,128)}', space=vmem, size = 0x9000, scoped, tag = 'internal scratch']
  %s0 = inlined_call_operand.hbm [shape: f32[2,8,768], index: 0, kind: input, shape index: {}]
  %s1 = inlined_call_operand.hbm [shape: f32[2,768], index: 1, kind: input, shape index: {}]
  %s2 = inlined_call_operand.hbm [shape: f32[2,1536], index: 2, kind: input, shape index: {}]
  %s3 = inlined_call_operand.hbm [shape: bf16[768,384], index: 3, kind: input, shape index: {}]
  %s4 = inlined_call_operand.hbm [shape: f32[1,256], index: 4, kind: input, shape index: {}]
  %s5 = inlined_call_operand.hbm [shape: bf16[256,128], index: 5, kind: input, shape index: {}]
  %s6 = inlined_call_operand.hbm [shape: f32[1,128], index: 6, kind: input, shape index: {}]
  %s7 = inlined_call_operand.hbm [shape: bf16[128,768], index: 7, kind: input, shape index: {}]
  %s8 = inlined_call_operand.hbm [shape: f32[1,768], index: 8, kind: input, shape index: {}]
  %s9 = inlined_call_operand.hbm [shape: bf16[768,1536], index: 9, kind: input, shape index: {}]
  %s10 = inlined_call_operand.hbm [shape: bf16[768,1536], index: 10, kind: input, shape index: {}]
  %s11 = inlined_call_operand.hbm [shape: f32[1,1536], index: 11, kind: input, shape index: {}]
  %s12 = inlined_call_operand.hbm [shape: bf16[768,768], index: 12, kind: input, shape index: {}]
  %s13 = inlined_call_operand.hbm [shape: f32[1,768], index: 13, kind: input, shape index: {}]
  %s14 = inlined_call_operand.hbm [shape: bf16[768,128], index: 14, kind: input, shape index: {}]
  %s15 = inlined_call_operand.hbm [shape: f32[1,128], index: 15, kind: input, shape index: {}]
  %s16 = inlined_call_operand.hbm [shape: f32[2,128], index: 16, kind: output, shape index: {}]
  %s17 = sld [smem:[#allocation0]]
  $region138: #{tpu_custom_call.1} parent=0
    _
  %s19 = ssub.s32 1, %s17
  %s20 = scalar_select 0, %s19, %s17
  $region1: #{tpu_custom_call.1} parent=0
    #allocation2 [shape = 'u8[49152]{0}', space=vmem, size = 0xc000, scoped, tag = 'input window, operand 0, single buffered']
    #allocation3 [shape = 's32[1]{0}', space=sflag, size = 0x4, scoped, tag = 'scoped memory for tpu_custom_call.1']
    #allocation4 [shape = 's32[1]{0}', space=sflag, size = 0x4, scoped, tag = 'scoped memory for tpu_custom_call.1']
    #allocation5 [shape = 'u8[6144]{0}', space=vmem, size = 0x1800, scoped, tag = 'input window, operand 1, single buffered']
    #allocation6 [shape = 's32[1]{0}', space=sflag, size = 0x4, scoped, tag = 'scoped memory for tpu_custom_call.1']
    #allocation7 [shape = 'u8[12288]{0}', space=vmem, size = 0x3000, scoped, tag = 'input window, operand 2, single buffered']
    #allocation8 [shape = 'u8[589824]{0}', space=vmem, size = 0x90000, scoped, tag = 'input window, operand 3, single buffered']
    #allocation9 [shape = 's32[1]{0}', space=sflag, size = 0x4, scoped, tag = 'scoped memory for tpu_custom_call.1']
    #allocation10 [shape = 'u8[1024]{0}', space=vmem, size = 0x400, scoped, tag = 'input window, operand 4, single buffered']
    #allocation11 [shape = 'u8[65536]{0}', space=vmem, size = 0x10000, scoped, tag = 'input window, operand 5, single buffered']
    #allocation12 [shape = 's32[1]{0}', space=sflag, size = 0x4, scoped, tag = 'scoped memory for tpu_custom_call.1']
    #allocation13 [shape = 'u8[512]{0}', space=vmem, size = 0x400, scoped, tag = 'input window, operand 6, single buffered']
    #allocation14 [shape = 'u8[196608]{0}', space=vmem, size = 0x30000, scoped, tag = 'input window, operand 7, single buffered']
    #allocation15 [shape = 's32[1]{0}', space=sflag, size = 0x4, scoped, tag = 'scoped memory for tpu_custom_call.1']
    #allocation16 [shape = 'u8[3072]{0}', space=vmem, size = 0xc00, scoped, tag = 'input window, operand 8, single buffered']
    #allocation17 [shape = 'u8[2359296]{0}', space=vmem, size = 0x240000, scoped, tag = 'input window, operand 9, single buffered']
    #allocation18 [shape = 's32[1]{0}', space=sflag, size = 0x4, scoped, tag = 'scoped memory for tpu_custom_call.1']
    #allocation19 [shape = 'u8[2359296]{0}', space=vmem, size = 0x240000, scoped, tag = 'input window, operand 10, single buffered']
    #allocation20 [shape = 'u8[6144]{0}', space=vmem, size = 0x1800, scoped, tag = 'input window, operand 11, single buffered']
    #allocation21 [shape = 's32[1]{0}', space=sflag, size = 0x4, scoped, tag = 'scoped memory for tpu_custom_call.1']
    #allocation22 [shape = 'u8[1179648]{0}', space=vmem, size = 0x120000, scoped, tag = 'input window, operand 12, single buffered']
    #allocation23 [shape = 'u8[3072]{0}', space=vmem, size = 0xc00, scoped, tag = 'input window, operand 13, single buffered']
    #allocation24 [shape = 's32[1]{0}', space=sflag, size = 0x4, scoped, tag = 'scoped memory for tpu_custom_call.1']
    #allocation25 [shape = 'u8[196608]{0}', space=vmem, size = 0x30000, scoped, tag = 'input window, operand 14, single buffered']
    #allocation26 [shape = 'u8[512]{0}', space=vmem, size = 0x400, scoped, tag = 'input window, operand 15, single buffered']
    #allocation27 [shape = 's32[1]{0}', space=sflag, size = 0x4, scoped, tag = 'scoped memory for tpu_custom_call.1']
    #allocation28 [shape = 'u8[1024]{0}', space=vmem, size = 0x400, scoped, tag = 'output window, operand 0, single buffered']
    %21 = vsyncpa [#allocation3], 0
    %22 = vsyncpa [#allocation6], 0
    %23 = vsyncpa [#allocation9], 0
    %24 = vsyncpa [#allocation12], 0
    %25 = vsyncpa [#allocation15], 0
    %26 = vsyncpa [#allocation18], 0
    %27 = vsyncpa [#allocation21], 0
    %28 = vsyncpa [#allocation24], 0
    %29 = vsyncpa [#allocation27], 0
    %30 = vsyncpa [#allocation4], 0
    // Predicated region
    $region2: #{tpu_custom_call.1} parent=1 // pred_check
      _
    $region3: #{tpu_custom_call.1} parent=1 // pred_check_branch
      %32 = sbr.rel (0) target = $region5
    $region4: #{tpu_custom_call.1} parent=1 // pred_region
      %34 = vsyncadd [#allocation3], 0
      %s35 = sshll.u32 %s0, 4
      %s36 = int_to_ptr.hbm [resolvable:$true] %s35
      %s37 = sshll.u32 [#allocation2], 4
      %s38 = int_to_ptr.vmem [resolvable:$true] %s37
      %43 = dma.hbm_to_vmem [thread:$0]  %s36, 1536, %s38, [#allocation3], 768, 768, 48
    $region5: #{tpu_custom_call.1} parent=1 // pred_fallthru
      _
    // Predicated region
    $region6: #{tpu_custom_call.1} parent=1 // pred_check
      _
    $region7: #{tpu_custom_call.1} parent=1 // pred_check_branch
      %45 = sbr.rel (0) target = $region9
    $region8: #{tpu_custom_call.1} parent=1 // pred_region
      %47 = vsyncadd [#allocation6], 0
      %s49 = sshll.u32 %s1, 4
      %s50 = int_to_ptr.hbm [resolvable:$true] %s49
      %s51 = sshll.u32 [#allocation5], 4
      %s52 = int_to_ptr.vmem [resolvable:$true] %s51
      %54 = dma.hbm_to_vmem [thread:$0]  %s50, 192, %s52, [#allocation6]
    $region9: #{tpu_custom_call.1} parent=1 // pred_fallthru
      _
    // Predicated region
    $region10: #{tpu_custom_call.1} parent=1 // pred_check
      _
    $region11: #{tpu_custom_call.1} parent=1 // pred_check_branch
      %56 = sbr.rel (0) target = $region13
    $region12: #{tpu_custom_call.1} parent=1 // pred_region
      %58 = vsyncadd [#allocation6], 0
      %s60 = sshll.u32 %s2, 4
      %s61 = int_to_ptr.hbm [resolvable:$true] %s60
      %s62 = sshll.u32 [#allocation7], 4
      %s63 = int_to_ptr.vmem [resolvable:$true] %s62
      %65 = dma.hbm_to_vmem [thread:$0]  %s61, 384, %s63, [#allocation6]
    $region13: #{tpu_custom_call.1} parent=1 // pred_fallthru
      _
    // Predicated region
    $region14: #{tpu_custom_call.1} parent=1 // pred_check
      _
    $region15: #{tpu_custom_call.1} parent=1 // pred_check_branch
      %67 = sbr.rel (0) target = $region17
    $region16: #{tpu_custom_call.1} parent=1 // pred_region
      %69 = vsyncadd [#allocation9], 0
      %s70 = sshll.u32 %s3, 4
      %s71 = int_to_ptr.hbm [resolvable:$true] %s70
      %s72 = sshll.u32 [#allocation8], 4
      %s73 = int_to_ptr.vmem [resolvable:$true] %s72
      %78 = dma.hbm_to_vmem [thread:$0]  %s71, 18432, %s73, [#allocation9], 192, 192, 12
    $region17: #{tpu_custom_call.1} parent=1 // pred_fallthru
      _
    // Predicated region
    $region18: #{tpu_custom_call.1} parent=1 // pred_check
      _
    $region19: #{tpu_custom_call.1} parent=1 // pred_check_branch
      %80 = sbr.rel (0) target = $region21
    $region20: #{tpu_custom_call.1} parent=1 // pred_region
      %82 = vsyncadd [#allocation9], 0
      %s84 = sshll.u32 %s4, 4
      %s85 = int_to_ptr.hbm [resolvable:$true] %s84
      %s86 = sshll.u32 [#allocation10], 4
      %s87 = int_to_ptr.vmem [resolvable:$true] %s86
      %89 = dma.hbm_to_vmem [thread:$0]  %s85, 32, %s87, [#allocation9]
    $region21: #{tpu_custom_call.1} parent=1 // pred_fallthru
      _
    // Predicated region
    $region22: #{tpu_custom_call.1} parent=1 // pred_check
      _
    $region23: #{tpu_custom_call.1} parent=1 // pred_check_branch
      %91 = sbr.rel (0) target = $region25
    $region24: #{tpu_custom_call.1} parent=1 // pred_region
      %93 = vsyncadd [#allocation12], 0
      %s94 = sshll.u32 %s5, 4
      %s95 = int_to_ptr.hbm [resolvable:$true] %s94
      %s96 = sshll.u32 [#allocation11], 4
      %s97 = int_to_ptr.vmem [resolvable:$true] %s96
      %102 = dma.hbm_to_vmem [thread:$0]  %s95, 2048, %s97, [#allocation12], 64, 64, 4
    $region25: #{tpu_custom_call.1} parent=1 // pred_fallthru
      _
    // Predicated region
    $region26: #{tpu_custom_call.1} parent=1 // pred_check
      _
    $region27: #{tpu_custom_call.1} parent=1 // pred_check_branch
      %104 = sbr.rel (0) target = $region29
    $region28: #{tpu_custom_call.1} parent=1 // pred_region
      %106 = vsyncadd [#allocation12], 0
      %s108 = sshll.u32 %s6, 4
      %s109 = int_to_ptr.hbm [resolvable:$true] %s108
      %s110 = sshll.u32 [#allocation13], 4
      %s111 = int_to_ptr.vmem [resolvable:$true] %s110
      %113 = dma.hbm_to_vmem [thread:$0]  %s109, 16, %s111, [#allocation12]
    $region29: #{tpu_custom_call.1} parent=1 // pred_fallthru
      _
    // Predicated region
    $region30: #{tpu_custom_call.1} parent=1 // pred_check
      _
    $region31: #{tpu_custom_call.1} parent=1 // pred_check_branch
      %115 = sbr.rel (0) target = $region33
    $region32: #{tpu_custom_call.1} parent=1 // pred_region
      %117 = vsyncadd [#allocation15], 0
      %s118 = sshll.u32 %s7, 4
      %s119 = int_to_ptr.hbm [resolvable:$true] %s118
      %s120 = sshll.u32 [#allocation14], 4
      %s121 = int_to_ptr.vmem [resolvable:$true] %s120
      %126 = dma.hbm_to_vmem [thread:$0]  %s119, 6144, %s121, [#allocation15], 384, 384, 24
    $region33: #{tpu_custom_call.1} parent=1 // pred_fallthru
      _
    // Predicated region
    $region34: #{tpu_custom_call.1} parent=1 // pred_check
      _
    $region35: #{tpu_custom_call.1} parent=1 // pred_check_branch
      %128 = sbr.rel (0) target = $region37
    $region36: #{tpu_custom_call.1} parent=1 // pred_region
      %130 = vsyncadd [#allocation15], 0
      %s132 = sshll.u32 %s8, 4
      %s133 = int_to_ptr.hbm [resolvable:$true] %s132
      %s134 = sshll.u32 [#allocation16], 4
      %s135 = int_to_ptr.vmem [resolvable:$true] %s134
      %137 = dma.hbm_to_vmem [thread:$0]  %s133, 96, %s135, [#allocation15]
    $region37: #{tpu_custom_call.1} parent=1 // pred_fallthru
      _
    // Predicated region
    $region38: #{tpu_custom_call.1} parent=1 // pred_check
      _
    $region39: #{tpu_custom_call.1} parent=1 // pred_check_branch
      %139 = sbr.rel (0) target = $region41
    $region40: #{tpu_custom_call.1} parent=1 // pred_region
      %141 = vsyncadd [#allocation18], 0
      %s142 = sshll.u32 %s9, 4
      %s143 = int_to_ptr.hbm [resolvable:$true] %s142
      %s144 = sshll.u32 [#allocation17], 4
      %s145 = int_to_ptr.vmem [resolvable:$true] %s144
      %150 = dma.hbm_to_vmem [thread:$0]  %s143, 73728, %s145, [#allocation18], 768, 768, 48
    $region41: #{tpu_custom_call.1} parent=1 // pred_fallthru
      _
    // Predicated region
    $region42: #{tpu_custom_call.1} parent=1 // pred_check
      _
    $region43: #{tpu_custom_call.1} parent=1 // pred_check_branch
      %152 = sbr.rel (0) target = $region45
    $region44: #{tpu_custom_call.1} parent=1 // pred_region
      %154 = vsyncadd [#allocation18], 0
      %s155 = sshll.u32 %s10, 4
      %s156 = int_to_ptr.hbm [resolvable:$true] %s155
      %s157 = sshll.u32 [#allocation19], 4
      %s158 = int_to_ptr.vmem [resolvable:$true] %s157
      %163 = dma.hbm_to_vmem [thread:$0]  %s156, 73728, %s158, [#allocation18], 768, 768, 48
    $region45: #{tpu_custom_call.1} parent=1 // pred_fallthru
      _
    // Predicated region
    $region46: #{tpu_custom_call.1} parent=1 // pred_check
      _
    $region47: #{tpu_custom_call.1} parent=1 // pred_check_branch
      %165 = sbr.rel (0) target = $region49
    $region48: #{tpu_custom_call.1} parent=1 // pred_region
      %167 = vsyncadd [#allocation21], 0
      %s169 = sshll.u32 %s11, 4
      %s170 = int_to_ptr.hbm [resolvable:$true] %s169
      %s171 = sshll.u32 [#allocation20], 4
      %s172 = int_to_ptr.vmem [resolvable:$true] %s171
      %174 = dma.hbm_to_vmem [thread:$0]  %s170, 192, %s172, [#allocation21]
    $region49: #{tpu_custom_call.1} parent=1 // pred_fallthru
      _
    // Predicated region
    $region50: #{tpu_custom_call.1} parent=1 // pred_check
      _
    $region51: #{tpu_custom_call.1} parent=1 // pred_check_branch
      %176 = sbr.rel (0) target = $region53
    $region52: #{tpu_custom_call.1} parent=1 // pred_region
      %178 = vsyncadd [#allocation21], 0
      %s179 = sshll.u32 %s12, 4
      %s180 = int_to_ptr.hbm [resolvable:$true] %s179
      %s181 = sshll.u32 [#allocation22], 4
      %s182 = int_to_ptr.vmem [resolvable:$true] %s181
      %187 = dma.hbm_to_vmem [thread:$0]  %s180, 36864, %s182, [#allocation21], 384, 384, 24
    $region53: #{tpu_custom_call.1} parent=1 // pred_fallthru
      _
    // Predicated region
    $region54: #{tpu_custom_call.1} parent=1 // pred_check
      _
    $region55: #{tpu_custom_call.1} parent=1 // pred_check_branch
      %189 = sbr.rel (0) target = $region57
    $region56: #{tpu_custom_call.1} parent=1 // pred_region
      %191 = vsyncadd [#allocation24], 0
      %s193 = sshll.u32 %s13, 4
      %s194 = int_to_ptr.hbm [resolvable:$true] %s193
      %s195 = sshll.u32 [#allocation23], 4
      %s196 = int_to_ptr.vmem [resolvable:$true] %s195
      %198 = dma.hbm_to_vmem [thread:$0]  %s194, 96, %s196, [#allocation24]
    $region57: #{tpu_custom_call.1} parent=1 // pred_fallthru
      _
    // Predicated region
    $region58: #{tpu_custom_call.1} parent=1 // pred_check
      _
    $region59: #{tpu_custom_call.1} parent=1 // pred_check_branch
      %200 = sbr.rel (0) target = $region61
    $region60: #{tpu_custom_call.1} parent=1 // pred_region
      %202 = vsyncadd [#allocation24], 0
      %s203 = sshll.u32 %s14, 4
      %s204 = int_to_ptr.hbm [resolvable:$true] %s203
      %s205 = sshll.u32 [#allocation25], 4
      %s206 = int_to_ptr.vmem [resolvable:$true] %s205
      %211 = dma.hbm_to_vmem [thread:$0]  %s204, 6144, %s206, [#allocation24], 64, 64, 4
    $region61: #{tpu_custom_call.1} parent=1 // pred_fallthru
      _
    // Predicated region
    $region62: #{tpu_custom_call.1} parent=1 // pred_check
      _
    $region63: #{tpu_custom_call.1} parent=1 // pred_check_branch
      %213 = sbr.rel (0) target = $region65
    $region64: #{tpu_custom_call.1} parent=1 // pred_region
      %215 = vsyncadd [#allocation27], 0
      %s217 = sshll.u32 %s15, 4
      %s218 = int_to_ptr.hbm [resolvable:$true] %s217
      %s219 = sshll.u32 [#allocation26], 4
      %s220 = int_to_ptr.vmem [resolvable:$true] %s219
      %222 = dma.hbm_to_vmem [thread:$0]  %s218, 16, %s220, [#allocation27]
    $region65: #{tpu_custom_call.1} parent=1 // pred_fallthru
      _
    // Predicated region
    $region66: #{tpu_custom_call.1} parent=1 // pred_check
      _
    $region67: #{tpu_custom_call.1} parent=1 // pred_check_branch
      %224 = sbr.rel (0) target = $region69
    $region68: #{tpu_custom_call.1} parent=1 // pred_region
      %226 = dma.done [#allocation3], 1536
    $region69: #{tpu_custom_call.1} parent=1 // pred_fallthru
      _
    // Predicated region
    $region70: #{tpu_custom_call.1} parent=1 // pred_check
      _
    $region71: #{tpu_custom_call.1} parent=1 // pred_check_branch
      %228 = sbr.rel (0) target = $region73
    $region72: #{tpu_custom_call.1} parent=1 // pred_region
      %230 = dma.done [#allocation6], 192
    $region73: #{tpu_custom_call.1} parent=1 // pred_fallthru
      _
    // Predicated region
    $region74: #{tpu_custom_call.1} parent=1 // pred_check
      _
    $region75: #{tpu_custom_call.1} parent=1 // pred_check_branch
      %232 = sbr.rel (0) target = $region77
    $region76: #{tpu_custom_call.1} parent=1 // pred_region
      %234 = dma.done [#allocation6], 384
    $region77: #{tpu_custom_call.1} parent=1 // pred_fallthru
      _
    // Predicated region
    $region78: #{tpu_custom_call.1} parent=1 // pred_check
      _
    $region79: #{tpu_custom_call.1} parent=1 // pred_check_branch
      %236 = sbr.rel (0) target = $region81
    $region80: #{tpu_custom_call.1} parent=1 // pred_region
      %238 = dma.done [#allocation9], 18432
    $region81: #{tpu_custom_call.1} parent=1 // pred_fallthru
      _
    // Predicated region
    $region82: #{tpu_custom_call.1} parent=1 // pred_check
      _
    $region83: #{tpu_custom_call.1} parent=1 // pred_check_branch
      %240 = sbr.rel (0) target = $region85
    $region84: #{tpu_custom_call.1} parent=1 // pred_region
      %242 = dma.done [#allocation9], 32
    $region85: #{tpu_custom_call.1} parent=1 // pred_fallthru
      _
    // Predicated region
    $region86: #{tpu_custom_call.1} parent=1 // pred_check
      _
    $region87: #{tpu_custom_call.1} parent=1 // pred_check_branch
      %244 = sbr.rel (0) target = $region89
    $region88: #{tpu_custom_call.1} parent=1 // pred_region
      %246 = dma.done [#allocation12], 2048
    $region89: #{tpu_custom_call.1} parent=1 // pred_fallthru
      _
    // Predicated region
    $region90: #{tpu_custom_call.1} parent=1 // pred_check
      _
    $region91: #{tpu_custom_call.1} parent=1 // pred_check_branch
      %248 = sbr.rel (0) target = $region93
    $region92: #{tpu_custom_call.1} parent=1 // pred_region
      %250 = dma.done [#allocation12], 16
    $region93: #{tpu_custom_call.1} parent=1 // pred_fallthru
      _
    // Predicated region
    $region94: #{tpu_custom_call.1} parent=1 // pred_check
      _
    $region95: #{tpu_custom_call.1} parent=1 // pred_check_branch
      %252 = sbr.rel (0) target = $region97
    $region96: #{tpu_custom_call.1} parent=1 // pred_region
      %254 = dma.done [#allocation15], 6144
    $region97: #{tpu_custom_call.1} parent=1 // pred_fallthru
      _
    // Predicated region
    $region98: #{tpu_custom_call.1} parent=1 // pred_check
      _
    $region99: #{tpu_custom_call.1} parent=1 // pred_check_branch
      %256 = sbr.rel (0) target = $region101
    $region100: #{tpu_custom_call.1} parent=1 // pred_region
      %258 = dma.done [#allocation15], 96
    $region101: #{tpu_custom_call.1} parent=1 // pred_fallthru
      _
    // Predicated region
    $region102: #{tpu_custom_call.1} parent=1 // pred_check
      _
    $region103: #{tpu_custom_call.1} parent=1 // pred_check_branch
      %260 = sbr.rel (0) target = $region105
    $region104: #{tpu_custom_call.1} parent=1 // pred_region
      %262 = dma.done [#allocation18], 73728
    $region105: #{tpu_custom_call.1} parent=1 // pred_fallthru
      _
    // Predicated region
    $region106: #{tpu_custom_call.1} parent=1 // pred_check
      _
    $region107: #{tpu_custom_call.1} parent=1 // pred_check_branch
      %264 = sbr.rel (0) target = $region109
    $region108: #{tpu_custom_call.1} parent=1 // pred_region
      %266 = dma.done [#allocation18], 73728
    $region109: #{tpu_custom_call.1} parent=1 // pred_fallthru
      _
    // Predicated region
    $region110: #{tpu_custom_call.1} parent=1 // pred_check
      _
    $region111: #{tpu_custom_call.1} parent=1 // pred_check_branch
      %268 = sbr.rel (0) target = $region113
    $region112: #{tpu_custom_call.1} parent=1 // pred_region
      %270 = dma.done [#allocation21], 192
    $region113: #{tpu_custom_call.1} parent=1 // pred_fallthru
      _
    // Predicated region
    $region114: #{tpu_custom_call.1} parent=1 // pred_check
      _
    $region115: #{tpu_custom_call.1} parent=1 // pred_check_branch
      %272 = sbr.rel (0) target = $region117
    $region116: #{tpu_custom_call.1} parent=1 // pred_region
      %274 = dma.done [#allocation21], 36864
    $region117: #{tpu_custom_call.1} parent=1 // pred_fallthru
      _
    // Predicated region
    $region118: #{tpu_custom_call.1} parent=1 // pred_check
      _
    $region119: #{tpu_custom_call.1} parent=1 // pred_check_branch
      %276 = sbr.rel (0) target = $region121
    $region120: #{tpu_custom_call.1} parent=1 // pred_region
      %278 = dma.done [#allocation24], 96
    $region121: #{tpu_custom_call.1} parent=1 // pred_fallthru
      _
    // Predicated region
    $region122: #{tpu_custom_call.1} parent=1 // pred_check
      _
    $region123: #{tpu_custom_call.1} parent=1 // pred_check_branch
      %280 = sbr.rel (0) target = $region125
    $region124: #{tpu_custom_call.1} parent=1 // pred_region
      %282 = dma.done [#allocation24], 6144
    $region125: #{tpu_custom_call.1} parent=1 // pred_fallthru
      _
    // Predicated region
    $region126: #{tpu_custom_call.1} parent=1 // pred_check
      _
    $region127: #{tpu_custom_call.1} parent=1 // pred_check_branch
      %284 = sbr.rel (0) target = $region129
    $region128: #{tpu_custom_call.1} parent=1 // pred_region
      %286 = dma.done [#allocation27], 16
    $region129: #{tpu_custom_call.1} parent=1 // pred_fallthru
      _
    %v287 = vld [vmem:[#allocation2] sm:$0xff]
    %v288 = vld [vmem:[#allocation2 + $0x8] sm:$0xff]
    %v289 = vld [vmem:[#allocation2 + $0x10] sm:$0xff]
    %v290 = vld [vmem:[#allocation2 + $0x18] sm:$0xff]
    %v291 = vld [vmem:[#allocation2 + $0x20] sm:$0xff]
    %v292 = vld [vmem:[#allocation2 + $0x28] sm:$0xff]
    %v293 = vld [vmem:[#allocation2 + $0x30] sm:$0xff]
    %v294 = vld [vmem:[#allocation2 + $0x38] sm:$0xff]
    %v295 = vld [vmem:[#allocation2 + $0x40] sm:$0xff]
    %v296 = vld [vmem:[#allocation2 + $0x48] sm:$0xff]
    %v297 = vld [vmem:[#allocation2 + $0x50] sm:$0xff]
    %v298 = vld [vmem:[#allocation2 + $0x58] sm:$0xff]
    %v299 = vpack.c.bf16 %v293, %v287
    %v300 = vpack.c.bf16 %v294, %v288
    %v301 = vpack.c.bf16 %v295, %v289
    %v302 = vpack.c.bf16 %v296, %v290
    %v303 = vpack.c.bf16 %v297, %v291
    %v304 = vpack.c.bf16 %v298, %v292
    %v305 = vld [vmem:[#allocation8] sm:$0xff]
    %v306 = vld [vmem:[#allocation8 + $0x8] sm:$0xf]
    %v307 = vld [vmem:[#allocation8 + $0xc] sm:$0xff]
    %v308 = vld [vmem:[#allocation8 + $0x14] sm:$0xf]
    %v309 = vld [vmem:[#allocation8 + $0x18] sm:$0xff]
    %v310 = vld [vmem:[#allocation8 + $0x20] sm:$0xf]
    %v311 = vld [vmem:[#allocation8 + $0x24] sm:$0xff]
    %v312 = vld [vmem:[#allocation8 + $0x2c] sm:$0xf]
    %v313 = vld [vmem:[#allocation8 + $0x30] sm:$0xff]
    %v314 = vld [vmem:[#allocation8 + $0x38] sm:$0xf]
    %v315 = vld [vmem:[#allocation8 + $0x3c] sm:$0xff]
    %v316 = vld [vmem:[#allocation8 + $0x44] sm:$0xf]
    %v317 = vld [vmem:[#allocation8 + $0x48] sm:$0xff]
    %v318 = vld [vmem:[#allocation8 + $0x50] sm:$0xf]
    %v319 = vld [vmem:[#allocation8 + $0x54] sm:$0xff]
    %v320 = vld [vmem:[#allocation8 + $0x5c] sm:$0xf]
    %v321 = vld [vmem:[#allocation8 + $0x60] sm:$0xff]
    %v322 = vld [vmem:[#allocation8 + $0x68] sm:$0xf]
    %v323 = vld [vmem:[#allocation8 + $0x6c] sm:$0xff]
    %v324 = vld [vmem:[#allocation8 + $0x74] sm:$0xf]
    %v325 = vld [vmem:[#allocation8 + $0x78] sm:$0xff]
    %v326 = vld [vmem:[#allocation8 + $0x80] sm:$0xf]
    %v327 = vld [vmem:[#allocation8 + $0x84] sm:$0xff]
    %v328 = vld [vmem:[#allocation8 + $0x8c] sm:$0xf]
    %v329 = vld [vmem:[#allocation8 + $0x90] sm:$0xff]
    %v330 = vld [vmem:[#allocation8 + $0x98] sm:$0xf]
    %v331 = vld [vmem:[#allocation8 + $0x9c] sm:$0xff]
    %v332 = vld [vmem:[#allocation8 + $0xa4] sm:$0xf]
    %v333 = vld [vmem:[#allocation8 + $0xa8] sm:$0xff]
    %v334 = vld [vmem:[#allocation8 + $0xb0] sm:$0xf]
    %v335 = vld [vmem:[#allocation8 + $0xb4] sm:$0xff]
    %v336 = vld [vmem:[#allocation8 + $0xbc] sm:$0xf]
    %v337 = vld [vmem:[#allocation8 + $0xc0] sm:$0xff]
    %v338 = vld [vmem:[#allocation8 + $0xc8] sm:$0xf]
    %v339 = vld [vmem:[#allocation8 + $0xcc] sm:$0xff]
    %v340 = vld [vmem:[#allocation8 + $0xd4] sm:$0xf]
    %v341 = vld [vmem:[#allocation8 + $0xd8] sm:$0xff]
    %v342 = vld [vmem:[#allocation8 + $0xe0] sm:$0xf]
    %v343 = vld [vmem:[#allocation8 + $0xe4] sm:$0xff]
    %v344 = vld [vmem:[#allocation8 + $0xec] sm:$0xf]
    %v345 = vld [vmem:[#allocation8 + $0xf0] sm:$0xff]
    %v346 = vld [vmem:[#allocation8 + $0xf8] sm:$0xf]
    %v347 = vld [vmem:[#allocation8 + $0xfc] sm:$0xff]
    %v348 = vld [vmem:[#allocation8 + $0x104] sm:$0xf]
    %v349 = vld [vmem:[#allocation8 + $0x108] sm:$0xff]
    %v350 = vld [vmem:[#allocation8 + $0x110] sm:$0xf]
    %v351 = vld [vmem:[#allocation8 + $0x114] sm:$0xff]
    %v352 = vld [vmem:[#allocation8 + $0x11c] sm:$0xf]
    %v353 = vld [vmem:[#allocation8 + $0x120] sm:$0xff]
    %v354 = vld [vmem:[#allocation8 + $0x128] sm:$0xf]
    %v355 = vld [vmem:[#allocation8 + $0x12c] sm:$0xff]
    %v356 = vld [vmem:[#allocation8 + $0x134] sm:$0xf]
    %v357 = vld [vmem:[#allocation8 + $0x138] sm:$0xff]
    %v358 = vld [vmem:[#allocation8 + $0x140] sm:$0xf]
    %v359 = vld [vmem:[#allocation8 + $0x144] sm:$0xff]
    %v360 = vld [vmem:[#allocation8 + $0x14c] sm:$0xf]
    %v361 = vld [vmem:[#allocation8 + $0x150] sm:$0xff]
    %v362 = vld [vmem:[#allocation8 + $0x158] sm:$0xf]
    %v363 = vld [vmem:[#allocation8 + $0x15c] sm:$0xff]
    %v364 = vld [vmem:[#allocation8 + $0x164] sm:$0xf]
    %v365 = vld [vmem:[#allocation8 + $0x168] sm:$0xff]
    %v366 = vld [vmem:[#allocation8 + $0x170] sm:$0xf]
    %v367 = vld [vmem:[#allocation8 + $0x174] sm:$0xff]
    %v368 = vld [vmem:[#allocation8 + $0x17c] sm:$0xf]
    %v369 = vld [vmem:[#allocation8 + $0x180] sm:$0xff]
    %v370 = vld [vmem:[#allocation8 + $0x188] sm:$0xf]
    %v371 = vld [vmem:[#allocation8 + $0x18c] sm:$0xff]
    %v372 = vld [vmem:[#allocation8 + $0x194] sm:$0xf]
    %v373 = vld [vmem:[#allocation8 + $0x198] sm:$0xff]
    %v374 = vld [vmem:[#allocation8 + $0x1a0] sm:$0xf]
    %v375 = vld [vmem:[#allocation8 + $0x1a4] sm:$0xff]
    %v376 = vld [vmem:[#allocation8 + $0x1ac] sm:$0xf]
    %v377 = vld [vmem:[#allocation8 + $0x1b0] sm:$0xff]
    %v378 = vld [vmem:[#allocation8 + $0x1b8] sm:$0xf]
    %v379 = vld [vmem:[#allocation8 + $0x1bc] sm:$0xff]
    %v380 = vld [vmem:[#allocation8 + $0x1c4] sm:$0xf]
    %v381 = vld [vmem:[#allocation8 + $0x1c8] sm:$0xff]
    %v382 = vld [vmem:[#allocation8 + $0x1d0] sm:$0xf]
    %v383 = vld [vmem:[#allocation8 + $0x1d4] sm:$0xff]
    %v384 = vld [vmem:[#allocation8 + $0x1dc] sm:$0xf]
    %v385 = vld [vmem:[#allocation8 + $0x1e0] sm:$0xff]
    %v386 = vld [vmem:[#allocation8 + $0x1e8] sm:$0xf]
    %v387 = vld [vmem:[#allocation8 + $0x1ec] sm:$0xff]
    %v388 = vld [vmem:[#allocation8 + $0x1f4] sm:$0xf]
    %v389 = vld [vmem:[#allocation8 + $0x1f8] sm:$0xff]
    %v390 = vld [vmem:[#allocation8 + $0x200] sm:$0xf]
    %v391 = vld [vmem:[#allocation8 + $0x204] sm:$0xff]
    %v392 = vld [vmem:[#allocation8 + $0x20c] sm:$0xf]
    %v393 = vld [vmem:[#allocation8 + $0x210] sm:$0xff]
    %v394 = vld [vmem:[#allocation8 + $0x218] sm:$0xf]
    %v395 = vld [vmem:[#allocation8 + $0x21c] sm:$0xff]
    %v396 = vld [vmem:[#allocation8 + $0x224] sm:$0xf]
    %v397 = vld [vmem:[#allocation8 + $0x228] sm:$0xff]
    %v398 = vld [vmem:[#allocation8 + $0x230] sm:$0xf]
    %v399 = vld [vmem:[#allocation8 + $0x234] sm:$0xff]
    %v400 = vld [vmem:[#allocation8 + $0x23c] sm:$0xf]
    %v401 = vld [vmem:[#allocation8 + $0x240] sm:$0xff]
    %v402 = vld [vmem:[#allocation8 + $0x248] sm:$0xf]
    %v403 = vld [vmem:[#allocation8 + $0x24c] sm:$0xff]
    %v404 = vld [vmem:[#allocation8 + $0x254] sm:$0xf]
    %v405 = vld [vmem:[#allocation8 + $0x258] sm:$0xff]
    %v406 = vld [vmem:[#allocation8 + $0x260] sm:$0xf]
    %v407 = vld [vmem:[#allocation8 + $0x264] sm:$0xff]
    %v408 = vld [vmem:[#allocation8 + $0x26c] sm:$0xf]
    %v409 = vld [vmem:[#allocation8 + $0x270] sm:$0xff]
    %v410 = vld [vmem:[#allocation8 + $0x278] sm:$0xf]
    %v411 = vld [vmem:[#allocation8 + $0x27c] sm:$0xff]
    %v412 = vld [vmem:[#allocation8 + $0x284] sm:$0xf]
    %v413 = vld [vmem:[#allocation8 + $0x288] sm:$0xff]
    %v414 = vld [vmem:[#allocation8 + $0x290] sm:$0xf]
    %v415 = vld [vmem:[#allocation8 + $0x294] sm:$0xff]
    %v416 = vld [vmem:[#allocation8 + $0x29c] sm:$0xf]
    %v417 = vld [vmem:[#allocation8 + $0x2a0] sm:$0xff]
    %v418 = vld [vmem:[#allocation8 + $0x2a8] sm:$0xf]
    %v419 = vld [vmem:[#allocation8 + $0x2ac] sm:$0xff]
    %v420 = vld [vmem:[#allocation8 + $0x2b4] sm:$0xf]
    %v421 = vld [vmem:[#allocation8 + $0x2b8] sm:$0xff]
    %v422 = vld [vmem:[#allocation8 + $0x2c0] sm:$0xf]
    %v423 = vld [vmem:[#allocation8 + $0x2c4] sm:$0xff]
    %v424 = vld [vmem:[#allocation8 + $0x2cc] sm:$0xf]
    %v425 = vld [vmem:[#allocation8 + $0x2d0] sm:$0xff]
    %v426 = vld [vmem:[#allocation8 + $0x2d8] sm:$0xf]
    %v427 = vld [vmem:[#allocation8 + $0x2dc] sm:$0xff]
    %v428 = vld [vmem:[#allocation8 + $0x2e4] sm:$0xf]
    %v429 = vld [vmem:[#allocation8 + $0x2e8] sm:$0xff]
    %v430 = vld [vmem:[#allocation8 + $0x2f0] sm:$0xf]
    %v431 = vld [vmem:[#allocation8 + $0x2f4] sm:$0xff]
    %v432 = vld [vmem:[#allocation8 + $0x2fc] sm:$0xf]
    %v433 = vld [vmem:[#allocation8 + $0x300] sm:$0xff]
    %v434 = vld [vmem:[#allocation8 + $0x308] sm:$0xf]
    %v435 = vld [vmem:[#allocation8 + $0x30c] sm:$0xff]
    %v436 = vld [vmem:[#allocation8 + $0x314] sm:$0xf]
    %v437 = vld [vmem:[#allocation8 + $0x318] sm:$0xff]
    %v438 = vld [vmem:[#allocation8 + $0x320] sm:$0xf]
    %v439 = vld [vmem:[#allocation8 + $0x324] sm:$0xff]
    %v440 = vld [vmem:[#allocation8 + $0x32c] sm:$0xf]
    %v441 = vld [vmem:[#allocation8 + $0x330] sm:$0xff]
    %v442 = vld [vmem:[#allocation8 + $0x338] sm:$0xf]
    %v443 = vld [vmem:[#allocation8 + $0x33c] sm:$0xff]
    %v444 = vld [vmem:[#allocation8 + $0x344] sm:$0xf]
    %v445 = vld [vmem:[#allocation8 + $0x348] sm:$0xff]
    %v446 = vld [vmem:[#allocation8 + $0x350] sm:$0xf]
    %v447 = vld [vmem:[#allocation8 + $0x354] sm:$0xff]
    %v448 = vld [vmem:[#allocation8 + $0x35c] sm:$0xf]
    %v449 = vld [vmem:[#allocation8 + $0x360] sm:$0xff]
    %v450 = vld [vmem:[#allocation8 + $0x368] sm:$0xf]
    %v451 = vld [vmem:[#allocation8 + $0x36c] sm:$0xff]
    %v452 = vld [vmem:[#allocation8 + $0x374] sm:$0xf]
    %v453 = vld [vmem:[#allocation8 + $0x378] sm:$0xff]
    %v454 = vld [vmem:[#allocation8 + $0x380] sm:$0xf]
    %v455 = vld [vmem:[#allocation8 + $0x384] sm:$0xff]
    %v456 = vld [vmem:[#allocation8 + $0x38c] sm:$0xf]
    %v457 = vld [vmem:[#allocation8 + $0x390] sm:$0xff]
    %v458 = vld [vmem:[#allocation8 + $0x398] sm:$0xf]
    %v459 = vld [vmem:[#allocation8 + $0x39c] sm:$0xff]
    %v460 = vld [vmem:[#allocation8 + $0x3a4] sm:$0xf]
    %v461 = vld [vmem:[#allocation8 + $0x3a8] sm:$0xff]
    %v462 = vld [vmem:[#allocation8 + $0x3b0] sm:$0xf]
    %v463 = vld [vmem:[#allocation8 + $0x3b4] sm:$0xff]
    %v464 = vld [vmem:[#allocation8 + $0x3bc] sm:$0xf]
    %v465 = vld [vmem:[#allocation8 + $0x3c0] sm:$0xff]
    %v466 = vld [vmem:[#allocation8 + $0x3c8] sm:$0xf]
    %v467 = vld [vmem:[#allocation8 + $0x3cc] sm:$0xff]
    %v468 = vld [vmem:[#allocation8 + $0x3d4] sm:$0xf]
    %v469 = vld [vmem:[#allocation8 + $0x3d8] sm:$0xff]
    %v470 = vld [vmem:[#allocation8 + $0x3e0] sm:$0xf]
    %v471 = vld [vmem:[#allocation8 + $0x3e4] sm:$0xff]
    %v472 = vld [vmem:[#allocation8 + $0x3ec] sm:$0xf]
    %v473 = vld [vmem:[#allocation8 + $0x3f0] sm:$0xff]
    %v474 = vld [vmem:[#allocation8 + $0x3f8] sm:$0xf]
    %v475 = vld [vmem:[#allocation8 + $0x3fc] sm:$0xff]
    %v476 = vld [vmem:[#allocation8 + $0x404] sm:$0xf]
    %v477 = vld [vmem:[#allocation8 + $0x408] sm:$0xff]
    %v478 = vld [vmem:[#allocation8 + $0x410] sm:$0xf]
    %v479 = vld [vmem:[#allocation8 + $0x414] sm:$0xff]
    %v480 = vld [vmem:[#allocation8 + $0x41c] sm:$0xf]
    %v481 = vld [vmem:[#allocation8 + $0x420] sm:$0xff]
    %v482 = vld [vmem:[#allocation8 + $0x428] sm:$0xf]
    %v483 = vld [vmem:[#allocation8 + $0x42c] sm:$0xff]
    %v484 = vld [vmem:[#allocation8 + $0x434] sm:$0xf]
    %v485 = vld [vmem:[#allocation8 + $0x438] sm:$0xff]
    %v486 = vld [vmem:[#allocation8 + $0x440] sm:$0xf]
    %v487 = vld [vmem:[#allocation8 + $0x444] sm:$0xff]
    %v488 = vld [vmem:[#allocation8 + $0x44c] sm:$0xf]
    %v489 = vld [vmem:[#allocation8 + $0x450] sm:$0xff]
    %v490 = vld [vmem:[#allocation8 + $0x458] sm:$0xf]
    %v491 = vld [vmem:[#allocation8 + $0x45c] sm:$0xff]
    %v492 = vld [vmem:[#allocation8 + $0x464] sm:$0xf]
    %v493 = vld [vmem:[#allocation8 + $0x468] sm:$0xff]
    %v494 = vld [vmem:[#allocation8 + $0x470] sm:$0xf]
    %v495 = vld [vmem:[#allocation8 + $0x474] sm:$0xff]
    %v496 = vld [vmem:[#allocation8 + $0x47c] sm:$0xf]
    %v689 = vunpack.c.l.b16 %v305
    %v690 = vunpack.c.h.b16 %v305
    %v691 = vunpack.c.l.b16 %v306
    %v692 = vunpack.c.l.b16 %v307
    %v693 = vunpack.c.h.b16 %v307
    %v694 = vunpack.c.l.b16 %v308
    %v695 = vunpack.c.l.b16 %v309
    %v696 = vunpack.c.h.b16 %v309
    %v697 = vunpack.c.l.b16 %v310
    %v698 = vunpack.c.l.b16 %v311
    %v699 = vunpack.c.h.b16 %v311
    %v700 = vunpack.c.l.b16 %v312
    %v701 = vunpack.c.l.b16 %v313
    %v702 = vunpack.c.h.b16 %v313
    %v703 = vunpack.c.l.b16 %v314
    %v704 = vunpack.c.l.b16 %v315
    %v705 = vunpack.c.h.b16 %v315
    %v706 = vunpack.c.l.b16 %v316
    %v707 = vunpack.c.l.b16 %v317
    %v708 = vunpack.c.h.b16 %v317
    %v709 = vunpack.c.l.b16 %v318
    %v710 = vunpack.c.l.b16 %v319
    %v711 = vunpack.c.h.b16 %v319
    %v712 = vunpack.c.l.b16 %v320
    %v713 = vunpack.c.l.b16 %v321
    %v714 = vunpack.c.h.b16 %v321
    %v715 = vunpack.c.l.b16 %v322
    %v716 = vunpack.c.l.b16 %v323
    %v717 = vunpack.c.h.b16 %v323
    %v718 = vunpack.c.l.b16 %v324
    %v719 = vunpack.c.l.b16 %v325
    %v720 = vunpack.c.h.b16 %v325
    %v721 = vunpack.c.l.b16 %v326
    %v722 = vunpack.c.l.b16 %v327
    %v723 = vunpack.c.h.b16 %v327
    %v724 = vunpack.c.l.b16 %v328
    %v725 = vunpack.c.l.b16 %v329
    %v726 = vunpack.c.h.b16 %v329
    %v727 = vunpack.c.l.b16 %v330
    %v728 = vunpack.c.l.b16 %v331
    %v729 = vunpack.c.h.b16 %v331
    %v730 = vunpack.c.l.b16 %v332
    %v731 = vunpack.c.l.b16 %v333
    %v732 = vunpack.c.h.b16 %v333
    %v733 = vunpack.c.l.b16 %v334
    %v734 = vunpack.c.l.b16 %v335
    %v735 = vunpack.c.h.b16 %v335
    %v736 = vunpack.c.l.b16 %v336
    %v737 = vunpack.c.l.b16 %v337
    %v738 = vunpack.c.h.b16 %v337
    %v739 = vunpack.c.l.b16 %v338
    %v740 = vunpack.c.l.b16 %v339
    %v741 = vunpack.c.h.b16 %v339
    %v742 = vunpack.c.l.b16 %v340
    %v743 = vunpack.c.l.b16 %v341
    %v744 = vunpack.c.h.b16 %v341
    %v745 = vunpack.c.l.b16 %v342
    %v746 = vunpack.c.l.b16 %v343
    %v747 = vunpack.c.h.b16 %v343
    %v748 = vunpack.c.l.b16 %v344
    %v749 = vunpack.c.l.b16 %v345
    %v750 = vunpack.c.h.b16 %v345
    %v751 = vunpack.c.l.b16 %v346
    %v752 = vunpack.c.l.b16 %v347
    %v753 = vunpack.c.h.b16 %v347
    %v754 = vunpack.c.l.b16 %v348
    %v755 = vunpack.c.l.b16 %v349
    %v756 = vunpack.c.h.b16 %v349
    %v757 = vunpack.c.l.b16 %v350
    %v758 = vunpack.c.l.b16 %v351
    %v759 = vunpack.c.h.b16 %v351
    %v760 = vunpack.c.l.b16 %v352
    %v761 = vunpack.c.l.b16 %v353
    %v762 = vunpack.c.h.b16 %v353
    %v763 = vunpack.c.l.b16 %v354
    %v764 = vunpack.c.l.b16 %v355
    %v765 = vunpack.c.h.b16 %v355
    %v766 = vunpack.c.l.b16 %v356
    %v767 = vunpack.c.l.b16 %v357
    %v768 = vunpack.c.h.b16 %v357
    %v769 = vunpack.c.l.b16 %v358
    %v770 = vunpack.c.l.b16 %v359
    %v771 = vunpack.c.h.b16 %v359
    %v772 = vunpack.c.l.b16 %v360
    %v773 = vunpack.c.l.b16 %v361
    %v774 = vunpack.c.h.b16 %v361
    %v775 = vunpack.c.l.b16 %v362
    %v776 = vunpack.c.l.b16 %v363
    %v777 = vunpack.c.h.b16 %v363
    %v778 = vunpack.c.l.b16 %v364
    %v779 = vunpack.c.l.b16 %v365
    %v780 = vunpack.c.h.b16 %v365
    %v781 = vunpack.c.l.b16 %v366
    %v782 = vunpack.c.l.b16 %v367
    %v783 = vunpack.c.h.b16 %v367
    %v784 = vunpack.c.l.b16 %v368
    %v785 = vunpack.c.l.b16 %v369
    %v786 = vunpack.c.h.b16 %v369
    %v787 = vunpack.c.l.b16 %v370
    %v788 = vunpack.c.l.b16 %v371
    %v789 = vunpack.c.h.b16 %v371
    %v790 = vunpack.c.l.b16 %v372
    %v791 = vunpack.c.l.b16 %v373
    %v792 = vunpack.c.h.b16 %v373
    %v793 = vunpack.c.l.b16 %v374
    %v794 = vunpack.c.l.b16 %v375
    %v795 = vunpack.c.h.b16 %v375
    %v796 = vunpack.c.l.b16 %v376
    %v797 = vunpack.c.l.b16 %v377
    %v798 = vunpack.c.h.b16 %v377
    %v799 = vunpack.c.l.b16 %v378
    %v800 = vunpack.c.l.b16 %v379
    %v801 = vunpack.c.h.b16 %v379
    %v802 = vunpack.c.l.b16 %v380
    %v803 = vunpack.c.l.b16 %v381
    %v804 = vunpack.c.h.b16 %v381
    %v805 = vunpack.c.l.b16 %v382
    %v806 = vunpack.c.l.b16 %v383
    %v807 = vunpack.c.h.b16 %v383
    %v808 = vunpack.c.l.b16 %v384
    %v809 = vunpack.c.l.b16 %v385
    %v810 = vunpack.c.h.b16 %v385
    %v811 = vunpack.c.l.b16 %v386
    %v812 = vunpack.c.l.b16 %v387
    %v813 = vunpack.c.h.b16 %v387
    %v814 = vunpack.c.l.b16 %v388
    %v815 = vunpack.c.l.b16 %v389
    %v816 = vunpack.c.h.b16 %v389
    %v817 = vunpack.c.l.b16 %v390
    %v818 = vunpack.c.l.b16 %v391
    %v819 = vunpack.c.h.b16 %v391
    %v820 = vunpack.c.l.b16 %v392
    %v821 = vunpack.c.l.b16 %v393
    %v822 = vunpack.c.h.b16 %v393
    %v823 = vunpack.c.l.b16 %v394
    %v824 = vunpack.c.l.b16 %v395
    %v825 = vunpack.c.h.b16 %v395
    %v826 = vunpack.c.l.b16 %v396
    %v827 = vunpack.c.l.b16 %v397
    %v828 = vunpack.c.h.b16 %v397
    %v829 = vunpack.c.l.b16 %v398
    %v830 = vunpack.c.l.b16 %v399
    %v831 = vunpack.c.h.b16 %v399
    %v832 = vunpack.c.l.b16 %v400
    %v833 = vunpack.c.l.b16 %v401
    %v834 = vunpack.c.h.b16 %v401
    %v835 = vunpack.c.l.b16 %v402
    %v836 = vunpack.c.l.b16 %v403
    %v837 = vunpack.c.h.b16 %v403
    %v838 = vunpack.c.l.b16 %v404
    %v839 = vunpack.c.l.b16 %v405
    %v840 = vunpack.c.h.b16 %v405
    %v841 = vunpack.c.l.b16 %v406
    %v842 = vunpack.c.l.b16 %v407
    %v843 = vunpack.c.h.b16 %v407
    %v844 = vunpack.c.l.b16 %v408
    %v845 = vunpack.c.l.b16 %v409
    %v846 = vunpack.c.h.b16 %v409
    %v847 = vunpack.c.l.b16 %v410
    %v848 = vunpack.c.l.b16 %v411
    %v849 = vunpack.c.h.b16 %v411
    %v850 = vunpack.c.l.b16 %v412
    %v851 = vunpack.c.l.b16 %v413
    %v852 = vunpack.c.h.b16 %v413
    %v853 = vunpack.c.l.b16 %v414
    %v854 = vunpack.c.l.b16 %v415
    %v855 = vunpack.c.h.b16 %v415
    %v856 = vunpack.c.l.b16 %v416
    %v857 = vunpack.c.l.b16 %v417
    %v858 = vunpack.c.h.b16 %v417
    %v859 = vunpack.c.l.b16 %v418
    %v860 = vunpack.c.l.b16 %v419
    %v861 = vunpack.c.h.b16 %v419
    %v862 = vunpack.c.l.b16 %v420
    %v863 = vunpack.c.l.b16 %v421
    %v864 = vunpack.c.h.b16 %v421
    %v865 = vunpack.c.l.b16 %v422
    %v866 = vunpack.c.l.b16 %v423
    %v867 = vunpack.c.h.b16 %v423
    %v868 = vunpack.c.l.b16 %v424
    %v869 = vunpack.c.l.b16 %v425
    %v870 = vunpack.c.h.b16 %v425
    %v871 = vunpack.c.l.b16 %v426
    %v872 = vunpack.c.l.b16 %v427
    %v873 = vunpack.c.h.b16 %v427
    %v874 = vunpack.c.l.b16 %v428
    %v875 = vunpack.c.l.b16 %v429
    %v876 = vunpack.c.h.b16 %v429
    %v877 = vunpack.c.l.b16 %v430
    %v878 = vunpack.c.l.b16 %v431
    %v879 = vunpack.c.h.b16 %v431
    %v880 = vunpack.c.l.b16 %v432
    %v881 = vunpack.c.l.b16 %v433
    %v882 = vunpack.c.h.b16 %v433
    %v883 = vunpack.c.l.b16 %v434
    %v884 = vunpack.c.l.b16 %v435
    %v885 = vunpack.c.h.b16 %v435
    %v886 = vunpack.c.l.b16 %v436
    %v887 = vunpack.c.l.b16 %v437
    %v888 = vunpack.c.h.b16 %v437
    %v889 = vunpack.c.l.b16 %v438
    %v890 = vunpack.c.l.b16 %v439
    %v891 = vunpack.c.h.b16 %v439
    %v892 = vunpack.c.l.b16 %v440
    %v893 = vunpack.c.l.b16 %v441
    %v894 = vunpack.c.h.b16 %v441
    %v895 = vunpack.c.l.b16 %v442
    %v896 = vunpack.c.l.b16 %v443
    %v897 = vunpack.c.h.b16 %v443
    %v898 = vunpack.c.l.b16 %v444
    %v899 = vunpack.c.l.b16 %v445
    %v900 = vunpack.c.h.b16 %v445
    %v901 = vunpack.c.l.b16 %v446
    %v902 = vunpack.c.l.b16 %v447
    %v903 = vunpack.c.h.b16 %v447
    %v904 = vunpack.c.l.b16 %v448
    %v905 = vunpack.c.l.b16 %v449
    %v906 = vunpack.c.h.b16 %v449
    %v907 = vunpack.c.l.b16 %v450
    %v908 = vunpack.c.l.b16 %v451
    %v909 = vunpack.c.h.b16 %v451
    %v910 = vunpack.c.l.b16 %v452
    %v911 = vunpack.c.l.b16 %v453
    %v912 = vunpack.c.h.b16 %v453
    %v913 = vunpack.c.l.b16 %v454
    %v914 = vunpack.c.l.b16 %v455
    %v915 = vunpack.c.h.b16 %v455
    %v916 = vunpack.c.l.b16 %v456
    %v917 = vunpack.c.l.b16 %v457
    %v918 = vunpack.c.h.b16 %v457
    %v919 = vunpack.c.l.b16 %v458
    %v920 = vunpack.c.l.b16 %v459
    %v921 = vunpack.c.h.b16 %v459
    %v922 = vunpack.c.l.b16 %v460
    %v923 = vunpack.c.l.b16 %v461
    %v924 = vunpack.c.h.b16 %v461
    %v925 = vunpack.c.l.b16 %v462
    %v926 = vunpack.c.l.b16 %v463
    %v927 = vunpack.c.h.b16 %v463
    %v928 = vunpack.c.l.b16 %v464
    %v929 = vunpack.c.l.b16 %v465
    %v930 = vunpack.c.h.b16 %v465
    %v931 = vunpack.c.l.b16 %v466
    %v932 = vunpack.c.l.b16 %v467
    %v933 = vunpack.c.h.b16 %v467
    %v934 = vunpack.c.l.b16 %v468
    %v935 = vunpack.c.l.b16 %v469
    %v936 = vunpack.c.h.b16 %v469
    %v937 = vunpack.c.l.b16 %v470
    %v938 = vunpack.c.l.b16 %v471
    %v939 = vunpack.c.h.b16 %v471
    %v940 = vunpack.c.l.b16 %v472
    %v941 = vunpack.c.l.b16 %v473
    %v942 = vunpack.c.h.b16 %v473
    %v943 = vunpack.c.l.b16 %v474
    %v944 = vunpack.c.l.b16 %v475
    %v945 = vunpack.c.h.b16 %v475
    %v946 = vunpack.c.l.b16 %v476
    %v947 = vunpack.c.l.b16 %v477
    %v948 = vunpack.c.h.b16 %v477
    %v949 = vunpack.c.l.b16 %v478
    %v950 = vunpack.c.l.b16 %v479
    %v951 = vunpack.c.h.b16 %v479
    %v952 = vunpack.c.l.b16 %v480
    %v953 = vunpack.c.l.b16 %v481
    %v954 = vunpack.c.h.b16 %v481
    %v955 = vunpack.c.l.b16 %v482
    %v956 = vunpack.c.l.b16 %v483
    %v957 = vunpack.c.h.b16 %v483
    %v958 = vunpack.c.l.b16 %v484
    %v959 = vunpack.c.l.b16 %v485
    %v960 = vunpack.c.h.b16 %v485
    %v961 = vunpack.c.l.b16 %v486
    %v962 = vunpack.c.l.b16 %v487
    %v963 = vunpack.c.h.b16 %v487
    %v964 = vunpack.c.l.b16 %v488
    %v965 = vunpack.c.l.b16 %v489
    %v966 = vunpack.c.h.b16 %v489
    %v967 = vunpack.c.l.b16 %v490
    %v968 = vunpack.c.l.b16 %v491
    %v969 = vunpack.c.h.b16 %v491
    %v970 = vunpack.c.l.b16 %v492
    %v971 = vunpack.c.l.b16 %v493
    %v972 = vunpack.c.h.b16 %v493
    %v973 = vunpack.c.l.b16 %v494
    %v974 = vunpack.c.l.b16 %v495
    %v975 = vunpack.c.h.b16 %v495
    %v976 = vunpack.c.l.b16 %v496
    %v977 = vpack.c.b16 %v692, %v689
    %v978 = vpack.c.b16 %v693, %v690
    %v979 = vpack.c.b16 %v694, %v691
    %v980 = vpack.c.b16 %v698, %v695
    %v981 = vpack.c.b16 %v699, %v696
    %v982 = vpack.c.b16 %v700, %v697
    %v983 = vpack.c.b16 %v704, %v701
    %v984 = vpack.c.b16 %v705, %v702
    %v985 = vpack.c.b16 %v706, %v703
    %v986 = vpack.c.b16 %v710, %v707
    %v987 = vpack.c.b16 %v711, %v708
    %v988 = vpack.c.b16 %v712, %v709
    %v989 = vpack.c.b16 %v716, %v713
    %v990 = vpack.c.b16 %v717, %v714
    %v991 = vpack.c.b16 %v718, %v715
    %v992 = vpack.c.b16 %v722, %v719
    %v993 = vpack.c.b16 %v723, %v720
    %v994 = vpack.c.b16 %v724, %v721
    %v995 = vpack.c.b16 %v728, %v725
    %v996 = vpack.c.b16 %v729, %v726
    %v997 = vpack.c.b16 %v730, %v727
    %v998 = vpack.c.b16 %v734, %v731
    %v999 = vpack.c.b16 %v735, %v732
    %v1000 = vpack.c.b16 %v736, %v733
    %v1001 = vpack.c.b16 %v740, %v737
    %v1002 = vpack.c.b16 %v741, %v738
    %v1003 = vpack.c.b16 %v742, %v739
    %v1004 = vpack.c.b16 %v746, %v743
    %v1005 = vpack.c.b16 %v747, %v744
    %v1006 = vpack.c.b16 %v748, %v745
    %v1007 = vpack.c.b16 %v752, %v749
    %v1008 = vpack.c.b16 %v753, %v750
    %v1009 = vpack.c.b16 %v754, %v751
    %v1010 = vpack.c.b16 %v758, %v755
    %v1011 = vpack.c.b16 %v759, %v756
    %v1012 = vpack.c.b16 %v760, %v757
    %v1013 = vpack.c.b16 %v764, %v761
    %v1014 = vpack.c.b16 %v765, %v762
    %v1015 = vpack.c.b16 %v766, %v763
    %v1016 = vpack.c.b16 %v770, %v767
    %v1017 = vpack.c.b16 %v771, %v768
    %v1018 = vpack.c.b16 %v772, %v769
    %v1019 = vpack.c.b16 %v776, %v773
    %v1020 = vpack.c.b16 %v777, %v774
    %v1021 = vpack.c.b16 %v778, %v775
    %v1022 = vpack.c.b16 %v782, %v779
    %v1023 = vpack.c.b16 %v783, %v780
    %v1024 = vpack.c.b16 %v784, %v781
    %v1025 = vpack.c.b16 %v788, %v785
    %v1026 = vpack.c.b16 %v789, %v786
    %v1027 = vpack.c.b16 %v790, %v787
    %v1028 = vpack.c.b16 %v794, %v791
    %v1029 = vpack.c.b16 %v795, %v792
    %v1030 = vpack.c.b16 %v796, %v793
    %v1031 = vpack.c.b16 %v800, %v797
    %v1032 = vpack.c.b16 %v801, %v798
    %v1033 = vpack.c.b16 %v802, %v799
    %v1034 = vpack.c.b16 %v806, %v803
    %v1035 = vpack.c.b16 %v807, %v804
    %v1036 = vpack.c.b16 %v808, %v805
    %v1037 = vpack.c.b16 %v812, %v809
    %v1038 = vpack.c.b16 %v813, %v810
    %v1039 = vpack.c.b16 %v814, %v811
    %v1040 = vpack.c.b16 %v818, %v815
    %v1041 = vpack.c.b16 %v819, %v816
    %v1042 = vpack.c.b16 %v820, %v817
    %v1043 = vpack.c.b16 %v824, %v821
    %v1044 = vpack.c.b16 %v825, %v822
    %v1045 = vpack.c.b16 %v826, %v823
    %v1046 = vpack.c.b16 %v830, %v827
    %v1047 = vpack.c.b16 %v831, %v828
    %v1048 = vpack.c.b16 %v832, %v829
    %v1049 = vpack.c.b16 %v836, %v833
    %v1050 = vpack.c.b16 %v837, %v834
    %v1051 = vpack.c.b16 %v838, %v835
    %v1052 = vpack.c.b16 %v842, %v839
    %v1053 = vpack.c.b16 %v843, %v840
    %v1054 = vpack.c.b16 %v844, %v841
    %v1055 = vpack.c.b16 %v848, %v845
    %v1056 = vpack.c.b16 %v849, %v846
    %v1057 = vpack.c.b16 %v850, %v847
    %v1058 = vpack.c.b16 %v854, %v851
    %v1059 = vpack.c.b16 %v855, %v852
    %v1060 = vpack.c.b16 %v856, %v853
    %v1061 = vpack.c.b16 %v860, %v857
    %v1062 = vpack.c.b16 %v861, %v858
    %v1063 = vpack.c.b16 %v862, %v859
    %v1064 = vpack.c.b16 %v866, %v863
    %v1065 = vpack.c.b16 %v867, %v864
    %v1066 = vpack.c.b16 %v868, %v865
    %v1067 = vpack.c.b16 %v872, %v869
    %v1068 = vpack.c.b16 %v873, %v870
    %v1069 = vpack.c.b16 %v874, %v871
    %v1070 = vpack.c.b16 %v878, %v875
    %v1071 = vpack.c.b16 %v879, %v876
    %v1072 = vpack.c.b16 %v880, %v877
    %v1073 = vpack.c.b16 %v884, %v881
    %v1074 = vpack.c.b16 %v885, %v882
    %v1075 = vpack.c.b16 %v886, %v883
    %v1076 = vpack.c.b16 %v890, %v887
    %v1077 = vpack.c.b16 %v891, %v888
    %v1078 = vpack.c.b16 %v892, %v889
    %v1079 = vpack.c.b16 %v896, %v893
    %v1080 = vpack.c.b16 %v897, %v894
    %v1081 = vpack.c.b16 %v898, %v895
    %v1082 = vpack.c.b16 %v902, %v899
    %v1083 = vpack.c.b16 %v903, %v900
    %v1084 = vpack.c.b16 %v904, %v901
    %v1085 = vpack.c.b16 %v908, %v905
    %v1086 = vpack.c.b16 %v909, %v906
    %v1087 = vpack.c.b16 %v910, %v907
    %v1088 = vpack.c.b16 %v914, %v911
    %v1089 = vpack.c.b16 %v915, %v912
    %v1090 = vpack.c.b16 %v916, %v913
    %v1091 = vpack.c.b16 %v920, %v917
    %v1092 = vpack.c.b16 %v921, %v918
    %v1093 = vpack.c.b16 %v922, %v919
    %v1094 = vpack.c.b16 %v926, %v923
    %v1095 = vpack.c.b16 %v927, %v924
    %v1096 = vpack.c.b16 %v928, %v925
    %v1097 = vpack.c.b16 %v932, %v929
    %v1098 = vpack.c.b16 %v933, %v930
    %v1099 = vpack.c.b16 %v934, %v931
    %v1100 = vpack.c.b16 %v938, %v935
    %v1101 = vpack.c.b16 %v939, %v936
    %v1102 = vpack.c.b16 %v940, %v937
    %v1103 = vpack.c.b16 %v944, %v941
    %v1104 = vpack.c.b16 %v945, %v942
    %v1105 = vpack.c.b16 %v946, %v943
    %v1106 = vpack.c.b16 %v950, %v947
    %v1107 = vpack.c.b16 %v951, %v948
    %v1108 = vpack.c.b16 %v952, %v949
    %v1109 = vpack.c.b16 %v956, %v953
    %v1110 = vpack.c.b16 %v957, %v954
    %v1111 = vpack.c.b16 %v958, %v955
    %v1112 = vpack.c.b16 %v962, %v959
    %v1113 = vpack.c.b16 %v963, %v960
    %v1114 = vpack.c.b16 %v964, %v961
    %v1115 = vpack.c.b16 %v968, %v965
    %v1116 = vpack.c.b16 %v969, %v966
    %v1117 = vpack.c.b16 %v970, %v967
    %v1118 = vpack.c.b16 %v974, %v971
    %v1119 = vpack.c.b16 %v975, %v972
    %v1120 = vpack.c.b16 %v976, %v973
    %1265 = vmatpush.bf16.msra.mxu0 %v998
    %1266 = vmatpush.bf16.msra.mxu0 %v995
    %1267 = vmatpush.bf16.msra.mxu0 %v992
    %1268 = vmatpush.bf16.msra.mxu0 %v989
    %1269 = vmatpush.bf16.msra.mxu0 %v986
    %1270 = vmatpush.bf16.msra.mxu0 %v983
    %1271 = vmatpush.bf16.msra.mxu0 %v980
    %1272 = vmatpush.bf16.msra.mxu0 %v977
    %1273 = vmatmul.bf16.gmra.mxu0 %v299
    %v1274 = vpop.f32.mrf.mxu0
    %v1275 = vadd.f32 0.0, %v1274
    %v1276 = vpop.f32.mrf.mxu0
    %v1277 = vadd.f32 0.0, %v1276
    %1278 = vdwg.mxu0
    %1279 = vmatpush.bf16.msra.mxu0 %v1022
    %1280 = vmatpush.bf16.msra.mxu0 %v1019
    %1281 = vmatpush.bf16.msra.mxu0 %v1016
    %1282 = vmatpush.bf16.msra.mxu0 %v1013
    %1283 = vmatpush.bf16.msra.mxu0 %v1010
    %1284 = vmatpush.bf16.msra.mxu0 %v1007
    %1285 = vmatpush.bf16.msra.mxu0 %v1004
    %1286 = vmatpush.bf16.msra.mxu0 %v1001
    %1287 = vmatmul.bf16.gmra.mxu0 %v300
    %v1288 = vpop.f32.mrf.mxu0
    %v1289 = vadd.f32 %v1275, %v1288
    %v1290 = vpop.f32.mrf.mxu0
    %v1291 = vadd.f32 %v1277, %v1290
    %1292 = vdwg.mxu0
    %1293 = vmatpush.bf16.msra.mxu0 %v1046
    %1294 = vmatpush.bf16.msra.mxu0 %v1043
    %1295 = vmatpush.bf16.msra.mxu0 %v1040
    %1296 = vmatpush.bf16.msra.mxu0 %v1037
    %1297 = vmatpush.bf16.msra.mxu0 %v1034
    %1298 = vmatpush.bf16.msra.mxu0 %v1031
    %1299 = vmatpush.bf16.msra.mxu0 %v1028
    %1300 = vmatpush.bf16.msra.mxu0 %v1025
    %1301 = vmatmul.bf16.gmra.mxu0 %v301
    %v1302 = vpop.f32.mrf.mxu0
    %v1303 = vadd.f32 %v1289, %v1302
    %v1304 = vpop.f32.mrf.mxu0
    %v1305 = vadd.f32 %v1291, %v1304
    %1306 = vdwg.mxu0
    %1307 = vmatpush.bf16.msra.mxu0 %v1070
    %1308 = vmatpush.bf16.msra.mxu0 %v1067
    %1309 = vmatpush.bf16.msra.mxu0 %v1064
    %1310 = vmatpush.bf16.msra.mxu0 %v1061
    %1311 = vmatpush.bf16.msra.mxu0 %v1058
    %1312 = vmatpush.bf16.msra.mxu0 %v1055
    %1313 = vmatpush.bf16.msra.mxu0 %v1052
    %1314 = vmatpush.bf16.msra.mxu0 %v1049
    %1315 = vmatmul.bf16.gmra.mxu0 %v302
    %v1316 = vpop.f32.mrf.mxu0
    %v1317 = vadd.f32 %v1303, %v1316
    %v1318 = vpop.f32.mrf.mxu0
    %v1319 = vadd.f32 %v1305, %v1318
    %1320 = vdwg.mxu0
    %1321 = vmatpush.bf16.msra.mxu0 %v1094
    %1322 = vmatpush.bf16.msra.mxu0 %v1091
    %1323 = vmatpush.bf16.msra.mxu0 %v1088
    %1324 = vmatpush.bf16.msra.mxu0 %v1085
    %1325 = vmatpush.bf16.msra.mxu0 %v1082
    %1326 = vmatpush.bf16.msra.mxu0 %v1079
    %1327 = vmatpush.bf16.msra.mxu0 %v1076
    %1328 = vmatpush.bf16.msra.mxu0 %v1073
    %1329 = vmatmul.bf16.gmra.mxu0 %v303
    %v1330 = vpop.f32.mrf.mxu0
    %v1331 = vadd.f32 %v1317, %v1330
    %v1332 = vpop.f32.mrf.mxu0
    %v1333 = vadd.f32 %v1319, %v1332
    %1334 = vdwg.mxu0
    %1335 = vmatpush.bf16.msra.mxu0 %v1118
    %1336 = vmatpush.bf16.msra.mxu0 %v1115
    %1337 = vmatpush.bf16.msra.mxu0 %v1112
    %1338 = vmatpush.bf16.msra.mxu0 %v1109
    %1339 = vmatpush.bf16.msra.mxu0 %v1106
    %1340 = vmatpush.bf16.msra.mxu0 %v1103
    %1341 = vmatpush.bf16.msra.mxu0 %v1100
    %1342 = vmatpush.bf16.msra.mxu0 %v1097
    %1343 = vmatmul.bf16.gmra.mxu0 %v304
    %v1344 = vpop.f32.mrf.mxu0
    %v1345 = vadd.f32 %v1331, %v1344
    %v1346 = vpop.f32.mrf.mxu0
    %v1347 = vadd.f32 %v1333, %v1346
    %1348 = vdwg.mxu0
    %1349 = vmatpush.bf16.msra.mxu0 %v999
    %1350 = vmatpush.bf16.msra.mxu0 %v996
    %1351 = vmatpush.bf16.msra.mxu0 %v993
    %1352 = vmatpush.bf16.msra.mxu0 %v990
    %1353 = vmatpush.bf16.msra.mxu0 %v987
    %1354 = vmatpush.bf16.msra.mxu0 %v984
    %1355 = vmatpush.bf16.msra.mxu0 %v981
    %1356 = vmatpush.bf16.msra.mxu0 %v978
    %1357 = vmatmul.bf16.gmra.mxu0 %v299
    %v1358 = vpop.f32.mrf.mxu0
    %v1359 = vadd.f32 0.0, %v1358
    %v1360 = vpop.f32.mrf.mxu0
    %v1361 = vadd.f32 0.0, %v1360
    %1362 = vdwg.mxu0
    %1363 = vmatpush.bf16.msra.mxu0 %v1023
    %1364 = vmatpush.bf16.msra.mxu0 %v1020
    %1365 = vmatpush.bf16.msra.mxu0 %v1017
    %1366 = vmatpush.bf16.msra.mxu0 %v1014
    %1367 = vmatpush.bf16.msra.mxu0 %v1011
    %1368 = vmatpush.bf16.msra.mxu0 %v1008
    %1369 = vmatpush.bf16.msra.mxu0 %v1005
    %1370 = vmatpush.bf16.msra.mxu0 %v1002
    %1371 = vmatmul.bf16.gmra.mxu0 %v300
    %v1372 = vpop.f32.mrf.mxu0
    %v1373 = vadd.f32 %v1359, %v1372
    %v1374 = vpop.f32.mrf.mxu0
    %v1375 = vadd.f32 %v1361, %v1374
    %1376 = vdwg.mxu0
    %1377 = vmatpush.bf16.msra.mxu0 %v1047
    %1378 = vmatpush.bf16.msra.mxu0 %v1044
    %1379 = vmatpush.bf16.msra.mxu0 %v1041
    %1380 = vmatpush.bf16.msra.mxu0 %v1038
    %1381 = vmatpush.bf16.msra.mxu0 %v1035
    %1382 = vmatpush.bf16.msra.mxu0 %v1032
    %1383 = vmatpush.bf16.msra.mxu0 %v1029
    %1384 = vmatpush.bf16.msra.mxu0 %v1026
    %1385 = vmatmul.bf16.gmra.mxu0 %v301
    %v1386 = vpop.f32.mrf.mxu0
    %v1387 = vadd.f32 %v1373, %v1386
    %v1388 = vpop.f32.mrf.mxu0
    %v1389 = vadd.f32 %v1375, %v1388
    %1390 = vdwg.mxu0
    %1391 = vmatpush.bf16.msra.mxu0 %v1071
    %1392 = vmatpush.bf16.msra.mxu0 %v1068
    %1393 = vmatpush.bf16.msra.mxu0 %v1065
    %1394 = vmatpush.bf16.msra.mxu0 %v1062
    %1395 = vmatpush.bf16.msra.mxu0 %v1059
    %1396 = vmatpush.bf16.msra.mxu0 %v1056
    %1397 = vmatpush.bf16.msra.mxu0 %v1053
    %1398 = vmatpush.bf16.msra.mxu0 %v1050
    %1399 = vmatmul.bf16.gmra.mxu0 %v302
    %v1400 = vpop.f32.mrf.mxu0
    %v1401 = vadd.f32 %v1387, %v1400
    %v1402 = vpop.f32.mrf.mxu0
    %v1403 = vadd.f32 %v1389, %v1402
    %1404 = vdwg.mxu0
    %1405 = vmatpush.bf16.msra.mxu0 %v1095
    %1406 = vmatpush.bf16.msra.mxu0 %v1092
    %1407 = vmatpush.bf16.msra.mxu0 %v1089
    %1408 = vmatpush.bf16.msra.mxu0 %v1086
    %1409 = vmatpush.bf16.msra.mxu0 %v1083
    %1410 = vmatpush.bf16.msra.mxu0 %v1080
    %1411 = vmatpush.bf16.msra.mxu0 %v1077
    %1412 = vmatpush.bf16.msra.mxu0 %v1074
    %1413 = vmatmul.bf16.gmra.mxu0 %v303
    %v1414 = vpop.f32.mrf.mxu0
    %v1415 = vadd.f32 %v1401, %v1414
    %v1416 = vpop.f32.mrf.mxu0
    %v1417 = vadd.f32 %v1403, %v1416
    %1418 = vdwg.mxu0
    %1419 = vmatpush.bf16.msra.mxu0 %v1119
    %1420 = vmatpush.bf16.msra.mxu0 %v1116
    %1421 = vmatpush.bf16.msra.mxu0 %v1113
    %1422 = vmatpush.bf16.msra.mxu0 %v1110
    %1423 = vmatpush.bf16.msra.mxu0 %v1107
    %1424 = vmatpush.bf16.msra.mxu0 %v1104
    %1425 = vmatpush.bf16.msra.mxu0 %v1101
    %1426 = vmatpush.bf16.msra.mxu0 %v1098
    %1427 = vmatmul.bf16.gmra.mxu0 %v304
    %v1428 = vpop.f32.mrf.mxu0
    %v1429 = vadd.f32 %v1415, %v1428
    %v1430 = vpop.f32.mrf.mxu0
    %v1431 = vadd.f32 %v1417, %v1430
    %1432 = vdwg.mxu0
    %1433 = vmatpush.bf16.msra.mxu0 %v1000
    %1434 = vmatpush.bf16.msra.mxu0 %v997
    %1435 = vmatpush.bf16.msra.mxu0 %v994
    %1436 = vmatpush.bf16.msra.mxu0 %v991
    %1437 = vmatpush.bf16.msra.mxu0 %v988
    %1438 = vmatpush.bf16.msra.mxu0 %v985
    %1439 = vmatpush.bf16.msra.mxu0 %v982
    %1440 = vmatpush.bf16.msra.mxu0 %v979
    %1441 = vmatmul.bf16.gmra.mxu0 %v299
    %v1442 = vpop.f32.mrf.mxu0
    %v1443 = vadd.f32 0.0, %v1442
    %v1444 = vpop.f32.mrf.mxu0
    %v1445 = vadd.f32 0.0, %v1444
    %1446 = vdwg.mxu0
    %1447 = vmatpush.bf16.msra.mxu0 %v1024
    %1448 = vmatpush.bf16.msra.mxu0 %v1021
    %1449 = vmatpush.bf16.msra.mxu0 %v1018
    %1450 = vmatpush.bf16.msra.mxu0 %v1015
    %1451 = vmatpush.bf16.msra.mxu0 %v1012
    %1452 = vmatpush.bf16.msra.mxu0 %v1009
    %1453 = vmatpush.bf16.msra.mxu0 %v1006
    %1454 = vmatpush.bf16.msra.mxu0 %v1003
    %1455 = vmatmul.bf16.gmra.mxu0 %v300
    %v1456 = vpop.f32.mrf.mxu0
    %v1457 = vadd.f32 %v1443, %v1456
    %v1458 = vpop.f32.mrf.mxu0
    %v1459 = vadd.f32 %v1445, %v1458
    %1460 = vdwg.mxu0
    %1461 = vmatpush.bf16.msra.mxu0 %v1048
    %1462 = vmatpush.bf16.msra.mxu0 %v1045
    %1463 = vmatpush.bf16.msra.mxu0 %v1042
    %1464 = vmatpush.bf16.msra.mxu0 %v1039
    %1465 = vmatpush.bf16.msra.mxu0 %v1036
    %1466 = vmatpush.bf16.msra.mxu0 %v1033
    %1467 = vmatpush.bf16.msra.mxu0 %v1030
    %1468 = vmatpush.bf16.msra.mxu0 %v1027
    %1469 = vmatmul.bf16.gmra.mxu0 %v301
    %v1470 = vpop.f32.mrf.mxu0
    %v1471 = vadd.f32 %v1457, %v1470
    %v1472 = vpop.f32.mrf.mxu0
    %v1473 = vadd.f32 %v1459, %v1472
    %1474 = vdwg.mxu0
    %1475 = vmatpush.bf16.msra.mxu0 %v1072
    %1476 = vmatpush.bf16.msra.mxu0 %v1069
    %1477 = vmatpush.bf16.msra.mxu0 %v1066
    %1478 = vmatpush.bf16.msra.mxu0 %v1063
    %1479 = vmatpush.bf16.msra.mxu0 %v1060
    %1480 = vmatpush.bf16.msra.mxu0 %v1057
    %1481 = vmatpush.bf16.msra.mxu0 %v1054
    %1482 = vmatpush.bf16.msra.mxu0 %v1051
    %1483 = vmatmul.bf16.gmra.mxu0 %v302
    %v1484 = vpop.f32.mrf.mxu0
    %v1485 = vadd.f32 %v1471, %v1484
    %v1486 = vpop.f32.mrf.mxu0
    %v1487 = vadd.f32 %v1473, %v1486
    %1488 = vdwg.mxu0
    %1489 = vmatpush.bf16.msra.mxu0 %v1096
    %1490 = vmatpush.bf16.msra.mxu0 %v1093
    %1491 = vmatpush.bf16.msra.mxu0 %v1090
    %1492 = vmatpush.bf16.msra.mxu0 %v1087
    %1493 = vmatpush.bf16.msra.mxu0 %v1084
    %1494 = vmatpush.bf16.msra.mxu0 %v1081
    %1495 = vmatpush.bf16.msra.mxu0 %v1078
    %1496 = vmatpush.bf16.msra.mxu0 %v1075
    %1497 = vmatmul.bf16.gmra.mxu0 %v303
    %v1498 = vpop.f32.mrf.mxu0
    %v1499 = vadd.f32 %v1485, %v1498
    %v1500 = vpop.f32.mrf.mxu0
    %v1501 = vadd.f32 %v1487, %v1500
    %1502 = vdwg.mxu0
    %1503 = vmatpush.bf16.msra.mxu0 %v1120
    %1504 = vmatpush.bf16.msra.mxu0 %v1117
    %1505 = vmatpush.bf16.msra.mxu0 %v1114
    %1506 = vmatpush.bf16.msra.mxu0 %v1111
    %1507 = vmatpush.bf16.msra.mxu0 %v1108
    %1508 = vmatpush.bf16.msra.mxu0 %v1105
    %1509 = vmatpush.bf16.msra.mxu0 %v1102
    %1510 = vmatpush.bf16.msra.mxu0 %v1099
    %1511 = vmatmul.bf16.gmra.mxu0 %v304
    %v1512 = vpop.f32.mrf.mxu0
    %v1513 = vadd.f32 %v1499, %v1512
    %v1514 = vpop.f32.mrf.mxu0
    %v1515 = vadd.f32 %v1501, %v1514
    %1516 = vdwg.mxu0
    %1517 = vxpose.xlu0.b32.start [1/16] %v1513, 128
    %1518 = vxpose.xlu0.b32.cont [2/16] 0.0, 128
    %1519 = vxpose.xlu0.b32.cont [3/16] 0.0, 128
    %1520 = vxpose.xlu0.b32.cont [4/16] 0.0, 128
    %1521 = vxpose.xlu0.b32.cont [5/16] 0.0, 128
    %1522 = vxpose.xlu0.b32.cont [6/16] 0.0, 128
    %1523 = vxpose.xlu0.b32.cont [7/16] 0.0, 128
    %1524 = vxpose.xlu0.b32.cont [8/16] 0.0, 128
    %1525 = vxpose.xlu0.b32.cont [9/16] 0.0, 128
    %1526 = vxpose.xlu0.b32.cont [10/16] 0.0, 128
    %1527 = vxpose.xlu0.b32.cont [11/16] 0.0, 128
    %1528 = vxpose.xlu0.b32.cont [12/16] 0.0, 128
    %1529 = vxpose.xlu0.b32.cont [13/16] 0.0, 128
    %1530 = vxpose.xlu0.b32.cont [14/16] 0.0, 128
    %1531 = vxpose.xlu0.b32.cont [15/16] 0.0, 128
    %1532 = vxpose.xlu0.b32.end [16/16] 0.0, 128
    %v1533 = vpop.trf.xlu0
    %v1534 = vpop.trf.xlu0
    %v1535 = vpop.trf.xlu0
    %v1536 = vpop.trf.xlu0
    %v1537 = vpop.trf.xlu0
    %v1538 = vpop.trf.xlu0
    %v1539 = vpop.trf.xlu0
    %v1540 = vpop.trf.xlu0
    %v1541 = vpop.trf.xlu0
    %v1542 = vpop.trf.xlu0
    %v1543 = vpop.trf.xlu0
    %v1544 = vpop.trf.xlu0
    %v1545 = vpop.trf.xlu0
    %v1546 = vpop.trf.xlu0
    %v1547 = vpop.trf.xlu0
    %v1548 = vpop.trf.xlu0
    %1549 = vxpose.xlu0.b32.start [1/16] %v1515, 128
    %1550 = vxpose.xlu0.b32.cont [2/16] 0.0, 128
    %1551 = vxpose.xlu0.b32.cont [3/16] 0.0, 128
    %1552 = vxpose.xlu0.b32.cont [4/16] 0.0, 128
    %1553 = vxpose.xlu0.b32.cont [5/16] 0.0, 128
    %1554 = vxpose.xlu0.b32.cont [6/16] 0.0, 128
    %1555 = vxpose.xlu0.b32.cont [7/16] 0.0, 128
    %1556 = vxpose.xlu0.b32.cont [8/16] 0.0, 128
    %1557 = vxpose.xlu0.b32.cont [9/16] 0.0, 128
    %1558 = vxpose.xlu0.b32.cont [10/16] 0.0, 128
    %1559 = vxpose.xlu0.b32.cont [11/16] 0.0, 128
    %1560 = vxpose.xlu0.b32.cont [12/16] 0.0, 128
    %1561 = vxpose.xlu0.b32.cont [13/16] 0.0, 128
    %1562 = vxpose.xlu0.b32.cont [14/16] 0.0, 128
    %1563 = vxpose.xlu0.b32.cont [15/16] 0.0, 128
    %1564 = vxpose.xlu0.b32.end [16/16] 0.0, 128
    %v1565 = vpop.trf.xlu0
    %v1566 = vpop.trf.xlu0
    %v1567 = vpop.trf.xlu0
    %v1568 = vpop.trf.xlu0
    %v1569 = vpop.trf.xlu0
    %v1570 = vpop.trf.xlu0
    %v1571 = vpop.trf.xlu0
    %v1572 = vpop.trf.xlu0
    %v1573 = vpop.trf.xlu0
    %v1574 = vpop.trf.xlu0
    %v1575 = vpop.trf.xlu0
    %v1576 = vpop.trf.xlu0
    %v1577 = vpop.trf.xlu0
    %v1578 = vpop.trf.xlu0
    %v1579 = vpop.trf.xlu0
    %v1580 = vpop.trf.xlu0
    %1582 = vset.pattern.permute.xlu0 1
    %1583 = vperm.xlu0 %1582, %v1513
    %v1584 = vpop.permute.xlu0 %1583
    %1587 = vset.pattern.permute.xlu0 1
    %1588 = vperm.xlu0 %1587, %v1515
    %v1589 = vpop.permute.xlu0 %1588
    %v1591 = vperm.slane %v1533, 0
    %v1592 = vperm.slane %v1565, 0
    %v1593 = vadd.f32 %v1584, %v1591
    %v1594 = vadd.f32 %v1589, %v1592
    %vm1595 = vcmp.gt.f32.partialorder %v1593, 0.0
    %vm1596 = vcmp.gt.f32.partialorder %v1594, 0.0
    %v1597 = vmul.f32 %v1593, 0.2
    %v1598 = vmul.f32 %v1594, 0.2
    %v1599 = vsel %vm1595, %v1593, %v1597
    %v1600 = vsel %vm1596, %v1594, %v1598
    %v1601 = vlaneseq
    %v1602 = vshrl.u32 %v1601, 7
    %v1603 = vlaneseq
    %v1604 = vand.u32 %v1603, 127
    %vm1605 = vcmp.eq.s32.totalorder %v1602, %v1604
    %v1606 = vsel %vm1605, 1, 0
    %vm1607 = vcmp.eq.s32.totalorder %v1606, 1
    %v1608 = vsel %vm1607, -1e+30, %v1599
    %v1609 = vsel %vm1607, -1e+30, %v1600
    %vm1610 = vcmask 64512
    %v1611 = vsel %vm1610, %v1608, -inf
    %1612 = vmax.xlane.f32.xlu0 %v1611
    %v1613 = vpop.xlane.xlu0 %1612
    %v1614 = vsel %vm1610, %v1609, -inf
    %1615 = vmax.xlane.f32.xlu0 %v1614
    %v1616 = vpop.xlane.xlu0 %1615
    %v1617 = vsub.f32 %v1608, %v1613
    %v1618 = vsub.f32 %v1609, %v1616
    %v1619 = vmul.f32 %v1617, 1.442695
    %v1620 = vpow.pop %v1619
    %v1621 = vmul.f32 %v1618, 1.442695
    %v1622 = vpow.pop %v1621
    %v1623 = vsel %vm1610, %v1620, 0.0
    %1624 = vadd.xlane.f32.xlu0 %v1623
    %v1625 = vpop.xlane.xlu0 %1624
    %v1626 = vsel %vm1610, %v1622, 0.0
    %1627 = vadd.xlane.f32.xlu0 %v1626
    %v1628 = vpop.xlane.xlu0 %1627
    %v1629 = vrcp.pop %v1625
    %v1630 = vmul.f32 %v1625, %v1629
    %v1631 = vsub.f32 1.0, %v1630
    %v1632 = vmul.f32 %v1629, %v1631
    %v1633 = vadd.f32 %v1629, %v1632
    %vm1634 = vweird.f32 %v1625
    %vm1635 = vweird.f32 %v1629
    %vm1636 = vmor %vm1634, %vm1635
    %v1637 = vsel %vm1636, %v1629, %v1633
    %v1638 = vand.u32 2147483647, %v1625
    %vm1639 = vcmp.eq.f32.partialorder %v1638, 8.507059e+37
    %v1640 = vand.u32 %v1625, 2147483648
    %v1641 = vor.u32 1.1754944e-38, %v1640
    %v1642 = vsel %vm1639, %v1641, %v1637
    %v1643 = vmul.f32 %v1620, %v1642
    %v1644 = vrcp.pop %v1628
    %v1645 = vmul.f32 %v1628, %v1644
    %v1646 = vsub.f32 1.0, %v1645
    %v1647 = vmul.f32 %v1644, %v1646
    %v1648 = vadd.f32 %v1644, %v1647
    %vm1649 = vweird.f32 %v1628
    %vm1650 = vweird.f32 %v1644
    %vm1651 = vmor %vm1649, %vm1650
    %v1652 = vsel %vm1651, %v1644, %v1648
    %v1653 = vand.u32 2147483647, %v1628
    %vm1654 = vcmp.eq.f32.partialorder %v1653, 8.507059e+37
    %v1655 = vand.u32 %v1628, 2147483648
    %v1656 = vor.u32 1.1754944e-38, %v1655
    %v1657 = vsel %vm1654, %v1656, %v1652
    %v1658 = vmul.f32 %v1622, %v1657
    %v1659 = vld [vmem:[#allocation10] sm:$0x3]
    %v1661 = vperm.slane %v1659, 0
    %v1662 = vperm.slane %v1659, 1
    %v1666 = vsel %vm1610, %v1643, 0
    %1668 = vmatpush.msra.mxu0 0.0
    %1669 = vmatpush.msra.mxu0 0.0
    %1670 = vmatpush.msra.mxu0 0.0
    %1671 = vmatpush.msra.mxu0 0.0
    %1672 = vmatpush.msra.mxu0 0.0
    %1673 = vmatpush.msra.mxu0 0.0
    %1674 = vmatpush.msra.mxu0 0.0
    %1675 = vmatpush.msra.mxu0 0.0
    %1676 = vmatpush.msra.mxu0 0.0
    %1677 = vmatpush.msra.mxu0 0.0
    %1678 = vmatpush.msra.mxu0 0.0
    %1679 = vmatpush.msra.mxu0 0.0
    %1680 = vmatpush.msra.mxu0 0.0
    %1681 = vmatpush.msra.mxu0 0.0
    %1682 = vmatpush.msra.mxu0 0.0
    %1683 = vmatpush.msra.mxu0 %v1345
    %1684 = vmatmul.f32.gmra.mxu0 %v1666
    %v1685 = vpop.f32.mrf.mxu0
    %v1686 = vadd.f32 %v1661, %v1685
    %1687 = vdwg.mxu0
    %1688 = vmatpush.msra.mxu0 0.0
    %1689 = vmatpush.msra.mxu0 0.0
    %1690 = vmatpush.msra.mxu0 0.0
    %1691 = vmatpush.msra.mxu0 0.0
    %1692 = vmatpush.msra.mxu0 0.0
    %1693 = vmatpush.msra.mxu0 0.0
    %1694 = vmatpush.msra.mxu0 0.0
    %1695 = vmatpush.msra.mxu0 0.0
    %1696 = vmatpush.msra.mxu0 0.0
    %1697 = vmatpush.msra.mxu0 0.0
    %1698 = vmatpush.msra.mxu0 0.0
    %1699 = vmatpush.msra.mxu0 0.0
    %1700 = vmatpush.msra.mxu0 0.0
    %1701 = vmatpush.msra.mxu0 0.0
    %1702 = vmatpush.msra.mxu0 0.0
    %1703 = vmatpush.msra.mxu0 %v1429
    %1704 = vmatmul.f32.gmra.mxu0 %v1666
    %v1705 = vpop.f32.mrf.mxu0
    %v1706 = vadd.f32 %v1662, %v1705
    %1707 = vdwg.mxu0
    %v1709 = vsel %vm1610, %v1658, 0
    %1711 = vmatpush.msra.mxu0 0.0
    %1712 = vmatpush.msra.mxu0 0.0
    %1713 = vmatpush.msra.mxu0 0.0
    %1714 = vmatpush.msra.mxu0 0.0
    %1715 = vmatpush.msra.mxu0 0.0
    %1716 = vmatpush.msra.mxu0 0.0
    %1717 = vmatpush.msra.mxu0 0.0
    %1718 = vmatpush.msra.mxu0 0.0
    %1719 = vmatpush.msra.mxu0 0.0
    %1720 = vmatpush.msra.mxu0 0.0
    %1721 = vmatpush.msra.mxu0 0.0
    %1722 = vmatpush.msra.mxu0 0.0
    %1723 = vmatpush.msra.mxu0 0.0
    %1724 = vmatpush.msra.mxu0 0.0
    %1725 = vmatpush.msra.mxu0 0.0
    %1726 = vmatpush.msra.mxu0 %v1347
    %1727 = vmatmul.f32.gmra.mxu0 %v1709
    %v1728 = vpop.f32.mrf.mxu0
    %v1729 = vadd.f32 %v1661, %v1728
    %1730 = vdwg.mxu0
    %1731 = vmatpush.msra.mxu0 0.0
    %1732 = vmatpush.msra.mxu0 0.0
    %1733 = vmatpush.msra.mxu0 0.0
    %1734 = vmatpush.msra.mxu0 0.0
    %1735 = vmatpush.msra.mxu0 0.0
    %1736 = vmatpush.msra.mxu0 0.0
    %1737 = vmatpush.msra.mxu0 0.0
    %1738 = vmatpush.msra.mxu0 0.0
    %1739 = vmatpush.msra.mxu0 0.0
    %1740 = vmatpush.msra.mxu0 0.0
    %1741 = vmatpush.msra.mxu0 0.0
    %1742 = vmatpush.msra.mxu0 0.0
    %1743 = vmatpush.msra.mxu0 0.0
    %1744 = vmatpush.msra.mxu0 0.0
    %1745 = vmatpush.msra.mxu0 0.0
    %1746 = vmatpush.msra.mxu0 %v1431
    %1747 = vmatmul.f32.gmra.mxu0 %v1709
    %v1748 = vpop.f32.mrf.mxu0
    %v1749 = vadd.f32 %v1662, %v1748
    %1750 = vdwg.mxu0
    %vm1751 = vcmp.gt.f32.partialorder %v1686, 0.0
    %vm1752 = vcmp.gt.f32.partialorder %v1706, 0.0
    %vm1753 = vcmp.gt.f32.partialorder %v1729, 0.0
    %vm1754 = vcmp.gt.f32.partialorder %v1749, 0.0
    %v1755 = vmin.f32 %v1686, 0.0
    %v1756 = vmin.f32 %v1706, 0.0
    %v1757 = vmin.f32 %v1729, 0.0
    %v1758 = vmin.f32 %v1749, 0.0
    %v1759 = vmul.f32 %v1755, 1.442695
    %v1760 = vpow.pop %v1759
    %v1761 = vmul.f32 %v1756, 1.442695
    %v1762 = vpow.pop %v1761
    %v1763 = vmul.f32 %v1757, 1.442695
    %v1764 = vpow.pop %v1763
    %v1765 = vmul.f32 %v1758, 1.442695
    %v1766 = vpow.pop %v1765
    %v1767 = vsub.f32 %v1760, 1.0
    %v1768 = vsub.f32 %v1762, 1.0
    %v1769 = vsub.f32 %v1764, 1.0
    %v1770 = vsub.f32 %v1766, 1.0
    %v1771 = vsel %vm1751, %v1686, %v1767
    %v1772 = vsel %vm1752, %v1706, %v1768
    %v1773 = vsel %vm1753, %v1729, %v1769
    %v1774 = vsel %vm1754, %v1749, %v1770
    %v1775 = vpack.c.bf16 %v1771, %v1771
    %v1776 = vpack.c.bf16 %v1772, %v1772
    %v1777 = vpack.c.bf16 %v1773, %v1773
    %v1778 = vpack.c.bf16 %v1774, %v1774
    %v1779 = vld [vmem:[#allocation11] sm:$0xf]
    %v1780 = vld [vmem:[#allocation11 + $0x4] sm:$0xf]
    %v1781 = vld [vmem:[#allocation11 + $0x8] sm:$0xf]
    %v1782 = vld [vmem:[#allocation11 + $0xc] sm:$0xf]
    %v1783 = vld [vmem:[#allocation11 + $0x10] sm:$0xf]
    %v1784 = vld [vmem:[#allocation11 + $0x14] sm:$0xf]
    %v1785 = vld [vmem:[#allocation11 + $0x18] sm:$0xf]
    %v1786 = vld [vmem:[#allocation11 + $0x1c] sm:$0xf]
    %v1787 = vld [vmem:[#allocation11 + $0x20] sm:$0xf]
    %v1788 = vld [vmem:[#allocation11 + $0x24] sm:$0xf]
    %v1789 = vld [vmem:[#allocation11 + $0x28] sm:$0xf]
    %v1790 = vld [vmem:[#allocation11 + $0x2c] sm:$0xf]
    %v1791 = vld [vmem:[#allocation11 + $0x30] sm:$0xf]
    %v1792 = vld [vmem:[#allocation11 + $0x34] sm:$0xf]
    %v1793 = vld [vmem:[#allocation11 + $0x38] sm:$0xf]
    %v1794 = vld [vmem:[#allocation11 + $0x3c] sm:$0xf]
    %v1795 = vld [vmem:[#allocation11 + $0x40] sm:$0xf]
    %v1796 = vld [vmem:[#allocation11 + $0x44] sm:$0xf]
    %v1797 = vld [vmem:[#allocation11 + $0x48] sm:$0xf]
    %v1798 = vld [vmem:[#allocation11 + $0x4c] sm:$0xf]
    %v1799 = vld [vmem:[#allocation11 + $0x50] sm:$0xf]
    %v1800 = vld [vmem:[#allocation11 + $0x54] sm:$0xf]
    %v1801 = vld [vmem:[#allocation11 + $0x58] sm:$0xf]
    %v1802 = vld [vmem:[#allocation11 + $0x5c] sm:$0xf]
    %v1803 = vld [vmem:[#allocation11 + $0x60] sm:$0xf]
    %v1804 = vld [vmem:[#allocation11 + $0x64] sm:$0xf]
    %v1805 = vld [vmem:[#allocation11 + $0x68] sm:$0xf]
    %v1806 = vld [vmem:[#allocation11 + $0x6c] sm:$0xf]
    %v1807 = vld [vmem:[#allocation11 + $0x70] sm:$0xf]
    %v1808 = vld [vmem:[#allocation11 + $0x74] sm:$0xf]
    %v1809 = vld [vmem:[#allocation11 + $0x78] sm:$0xf]
    %v1810 = vld [vmem:[#allocation11 + $0x7c] sm:$0xf]
    %v1811 = vld [vmem:[#allocation13] sm:$0x1]
    %v1813 = vperm.slane %v1811, 0
    %v1819 = vunpack.c.l.b16 %v1775
    %v1820 = vunpack.c.l.b16 %v1776
    %v1821 = vunpack.c.l.b16 %v1777
    %v1822 = vunpack.c.l.b16 %v1778
    %v1823 = vrot.slane %v1821, 7
    %vm1824 = vcmask 1041409
    %v1825 = vsel %vm1824, %v1823, %v1819
    %v1826 = vrot.slane %v1822, 7
    %v1827 = vsel %vm1824, %v1826, %v1820
    %v1828 = vpack.c.b16 %v1825, %v1825
    %v1829 = vpack.c.b16 %v1827, %v1827
    %v1864 = vunpack.c.l.b16 %v1779
    %v1865 = vunpack.c.l.b16 %v1780
    %v1866 = vunpack.c.l.b16 %v1781
    %v1867 = vunpack.c.l.b16 %v1782
    %v1868 = vunpack.c.l.b16 %v1783
    %v1869 = vunpack.c.l.b16 %v1784
    %v1870 = vunpack.c.l.b16 %v1785
    %v1871 = vunpack.c.l.b16 %v1786
    %v1872 = vunpack.c.l.b16 %v1787
    %v1873 = vunpack.c.l.b16 %v1788
    %v1874 = vunpack.c.l.b16 %v1789
    %v1875 = vunpack.c.l.b16 %v1790
    %v1876 = vunpack.c.l.b16 %v1791
    %v1877 = vunpack.c.l.b16 %v1792
    %v1878 = vunpack.c.l.b16 %v1793
    %v1879 = vunpack.c.l.b16 %v1794
    %v1880 = vunpack.c.l.b16 %v1795
    %v1881 = vunpack.c.l.b16 %v1796
    %v1882 = vunpack.c.l.b16 %v1797
    %v1883 = vunpack.c.l.b16 %v1798
    %v1884 = vunpack.c.l.b16 %v1799
    %v1885 = vunpack.c.l.b16 %v1800
    %v1886 = vunpack.c.l.b16 %v1801
    %v1887 = vunpack.c.l.b16 %v1802
    %v1888 = vunpack.c.l.b16 %v1803
    %v1889 = vunpack.c.l.b16 %v1804
    %v1890 = vunpack.c.l.b16 %v1805
    %v1891 = vunpack.c.l.b16 %v1806
    %v1892 = vunpack.c.l.b16 %v1807
    %v1893 = vunpack.c.l.b16 %v1808
    %v1894 = vunpack.c.l.b16 %v1809
    %v1895 = vunpack.c.l.b16 %v1810
    %v1896 = vpack.c.b16 %v1865, %v1864
    %v1897 = vpack.c.b16 %v1867, %v1866
    %v1898 = vpack.c.b16 %v1869, %v1868
    %v1899 = vpack.c.b16 %v1871, %v1870
    %v1900 = vpack.c.b16 %v1873, %v1872
    %v1901 = vpack.c.b16 %v1875, %v1874
    %v1902 = vpack.c.b16 %v1877, %v1876
    %v1903 = vpack.c.b16 %v1879, %v1878
    %v1904 = vpack.c.b16 %v1881, %v1880
    %v1905 = vpack.c.b16 %v1883, %v1882
    %v1906 = vpack.c.b16 %v1885, %v1884
    %v1907 = vpack.c.b16 %v1887, %v1886
    %v1908 = vpack.c.b16 %v1889, %v1888
    %v1909 = vpack.c.b16 %v1891, %v1890
    %v1910 = vpack.c.b16 %v1893, %v1892
    %v1911 = vpack.c.b16 %v1895, %v1894
    %1928 = vmatpush.bf16.msra.mxu0 %v1903
    %1929 = vmatpush.bf16.msra.mxu0 %v1902
    %1930 = vmatpush.bf16.msra.mxu0 %v1901
    %1931 = vmatpush.bf16.msra.mxu0 %v1900
    %1932 = vmatpush.bf16.msra.mxu0 %v1899
    %1933 = vmatpush.bf16.msra.mxu0 %v1898
    %1934 = vmatpush.bf16.msra.mxu0 %v1897
    %1935 = vmatpush.bf16.msra.mxu0 %v1896
    %1936 = vmatmul.bf16.gmra.mxu0 %v1828
    %v1937 = vpop.f32.mrf.mxu0
    %v1938 = vadd.f32 %v1813, %v1937
    %v1939 = vpop.f32.mrf.mxu0
    %1940 = vdwg.mxu0
    %1941 = vmatpush.bf16.msra.mxu0 %v1911
    %1942 = vmatpush.bf16.msra.mxu0 %v1910
    %1943 = vmatpush.bf16.msra.mxu0 %v1909
    %1944 = vmatpush.bf16.msra.mxu0 %v1908
    %1945 = vmatpush.bf16.msra.mxu0 %v1907
    %1946 = vmatpush.bf16.msra.mxu0 %v1906
    %1947 = vmatpush.bf16.msra.mxu0 %v1905
    %1948 = vmatpush.bf16.msra.mxu0 %v1904
    %1949 = vmatmul.bf16.gmra.mxu0 %v1829
    %v1950 = vpop.f32.mrf.mxu0
    %v1951 = vadd.f32 %v1938, %v1950
    %v1952 = vpop.f32.mrf.mxu0
    %1953 = vdwg.mxu0
    %v1954 = vld [vmem:[#allocation5] sm:$0xff]
    %v1955 = vld [vmem:[#allocation5 + $0x8] sm:$0xf]
    %v1956 = vmax.f32 %v1954, 0.0
    %v1957 = vmax.f32 %v1955, 0.0
    %v1958 = vmax.f32 %v1951, 0.0
    %v1959 = vpack.c.bf16 %v1958, %v1958
    %v1960 = vld [vmem:[#allocation14] sm:$0xff]
    %v1961 = vld [vmem:[#allocation14 + $0x8] sm:$0xff]
    %v1962 = vld [vmem:[#allocation14 + $0x10] sm:$0xff]
    %v1963 = vld [vmem:[#allocation14 + $0x18] sm:$0xff]
    %v1964 = vld [vmem:[#allocation14 + $0x20] sm:$0xff]
    %v1965 = vld [vmem:[#allocation14 + $0x28] sm:$0xff]
    %v1966 = vld [vmem:[#allocation14 + $0x30] sm:$0xff]
    %v1967 = vld [vmem:[#allocation14 + $0x38] sm:$0xff]
    %v1968 = vld [vmem:[#allocation14 + $0x40] sm:$0xff]
    %v1969 = vld [vmem:[#allocation14 + $0x48] sm:$0xff]
    %v1970 = vld [vmem:[#allocation14 + $0x50] sm:$0xff]
    %v1971 = vld [vmem:[#allocation14 + $0x58] sm:$0xff]
    %v1972 = vld [vmem:[#allocation14 + $0x60] sm:$0xff]
    %v1973 = vld [vmem:[#allocation14 + $0x68] sm:$0xff]
    %v1974 = vld [vmem:[#allocation14 + $0x70] sm:$0xff]
    %v1975 = vld [vmem:[#allocation14 + $0x78] sm:$0xff]
    %v1976 = vld [vmem:[#allocation14 + $0x80] sm:$0xff]
    %v1977 = vld [vmem:[#allocation14 + $0x88] sm:$0xff]
    %v1978 = vld [vmem:[#allocation14 + $0x90] sm:$0xff]
    %v1979 = vld [vmem:[#allocation14 + $0x98] sm:$0xff]
    %v1980 = vld [vmem:[#allocation14 + $0xa0] sm:$0xff]
    %v1981 = vld [vmem:[#allocation14 + $0xa8] sm:$0xff]
    %v1982 = vld [vmem:[#allocation14 + $0xb0] sm:$0xff]
    %v1983 = vld [vmem:[#allocation14 + $0xb8] sm:$0xff]
    %v1984 = vld [vmem:[#allocation14 + $0xc0] sm:$0xff]
    %v1985 = vld [vmem:[#allocation14 + $0xc8] sm:$0xff]
    %v1986 = vld [vmem:[#allocation14 + $0xd0] sm:$0xff]
    %v1987 = vld [vmem:[#allocation14 + $0xd8] sm:$0xff]
    %v1988 = vld [vmem:[#allocation14 + $0xe0] sm:$0xff]
    %v1989 = vld [vmem:[#allocation14 + $0xe8] sm:$0xff]
    %v1990 = vld [vmem:[#allocation14 + $0xf0] sm:$0xff]
    %v1991 = vld [vmem:[#allocation14 + $0xf8] sm:$0xff]
    %v1992 = vld [vmem:[#allocation14 + $0x100] sm:$0xff]
    %v1993 = vld [vmem:[#allocation14 + $0x108] sm:$0xff]
    %v1994 = vld [vmem:[#allocation14 + $0x110] sm:$0xff]
    %v1995 = vld [vmem:[#allocation14 + $0x118] sm:$0xff]
    %v1996 = vld [vmem:[#allocation14 + $0x120] sm:$0xff]
    %v1997 = vld [vmem:[#allocation14 + $0x128] sm:$0xff]
    %v1998 = vld [vmem:[#allocation14 + $0x130] sm:$0xff]
    %v1999 = vld [vmem:[#allocation14 + $0x138] sm:$0xff]
    %v2000 = vld [vmem:[#allocation14 + $0x140] sm:$0xff]
    %v2001 = vld [vmem:[#allocation14 + $0x148] sm:$0xff]
    %v2002 = vld [vmem:[#allocation14 + $0x150] sm:$0xff]
    %v2003 = vld [vmem:[#allocation14 + $0x158] sm:$0xff]
    %v2004 = vld [vmem:[#allocation14 + $0x160] sm:$0xff]
    %v2005 = vld [vmem:[#allocation14 + $0x168] sm:$0xff]
    %v2006 = vld [vmem:[#allocation14 + $0x170] sm:$0xff]
    %v2007 = vld [vmem:[#allocation14 + $0x178] sm:$0xff]
    %v2008 = vld [vmem:[#allocation16] sm:$0x3f]
    %v2010 = vperm.slane %v2008, 0
    %v2011 = vperm.slane %v2008, 1
    %v2012 = vperm.slane %v2008, 2
    %v2013 = vperm.slane %v2008, 3
    %v2014 = vperm.slane %v2008, 4
    %v2015 = vperm.slane %v2008, 5
    %v2070 = vunpack.c.l.b16 %v1960
    %v2071 = vunpack.c.h.b16 %v1960
    %v2072 = vunpack.c.l.b16 %v1961
    %v2073 = vunpack.c.h.b16 %v1961
    %v2074 = vunpack.c.l.b16 %v1962
    %v2075 = vunpack.c.h.b16 %v1962
    %v2076 = vunpack.c.l.b16 %v1963
    %v2077 = vunpack.c.h.b16 %v1963
    %v2078 = vunpack.c.l.b16 %v1964
    %v2079 = vunpack.c.h.b16 %v1964
    %v2080 = vunpack.c.l.b16 %v1965
    %v2081 = vunpack.c.h.b16 %v1965
    %v2082 = vunpack.c.l.b16 %v1966
    %v2083 = vunpack.c.h.b16 %v1966
    %v2084 = vunpack.c.l.b16 %v1967
    %v2085 = vunpack.c.h.b16 %v1967
    %v2086 = vunpack.c.l.b16 %v1968
    %v2087 = vunpack.c.h.b16 %v1968
    %v2088 = vunpack.c.l.b16 %v1969
    %v2089 = vunpack.c.h.b16 %v1969
    %v2090 = vunpack.c.l.b16 %v1970
    %v2091 = vunpack.c.h.b16 %v1970
    %v2092 = vunpack.c.l.b16 %v1971
    %v2093 = vunpack.c.h.b16 %v1971
    %v2094 = vunpack.c.l.b16 %v1972
    %v2095 = vunpack.c.h.b16 %v1972
    %v2096 = vunpack.c.l.b16 %v1973
    %v2097 = vunpack.c.h.b16 %v1973
    %v2098 = vunpack.c.l.b16 %v1974
    %v2099 = vunpack.c.h.b16 %v1974
    %v2100 = vunpack.c.l.b16 %v1975
    %v2101 = vunpack.c.h.b16 %v1975
    %v2102 = vunpack.c.l.b16 %v1976
    %v2103 = vunpack.c.h.b16 %v1976
    %v2104 = vunpack.c.l.b16 %v1977
    %v2105 = vunpack.c.h.b16 %v1977
    %v2106 = vunpack.c.l.b16 %v1978
    %v2107 = vunpack.c.h.b16 %v1978
    %v2108 = vunpack.c.l.b16 %v1979
    %v2109 = vunpack.c.h.b16 %v1979
    %v2110 = vunpack.c.l.b16 %v1980
    %v2111 = vunpack.c.h.b16 %v1980
    %v2112 = vunpack.c.l.b16 %v1981
    %v2113 = vunpack.c.h.b16 %v1981
    %v2114 = vunpack.c.l.b16 %v1982
    %v2115 = vunpack.c.h.b16 %v1982
    %v2116 = vunpack.c.l.b16 %v1983
    %v2117 = vunpack.c.h.b16 %v1983
    %v2118 = vunpack.c.l.b16 %v1984
    %v2119 = vunpack.c.h.b16 %v1984
    %v2120 = vunpack.c.l.b16 %v1985
    %v2121 = vunpack.c.h.b16 %v1985
    %v2122 = vunpack.c.l.b16 %v1986
    %v2123 = vunpack.c.h.b16 %v1986
    %v2124 = vunpack.c.l.b16 %v1987
    %v2125 = vunpack.c.h.b16 %v1987
    %v2126 = vunpack.c.l.b16 %v1988
    %v2127 = vunpack.c.h.b16 %v1988
    %v2128 = vunpack.c.l.b16 %v1989
    %v2129 = vunpack.c.h.b16 %v1989
    %v2130 = vunpack.c.l.b16 %v1990
    %v2131 = vunpack.c.h.b16 %v1990
    %v2132 = vunpack.c.l.b16 %v1991
    %v2133 = vunpack.c.h.b16 %v1991
    %v2134 = vunpack.c.l.b16 %v1992
    %v2135 = vunpack.c.h.b16 %v1992
    %v2136 = vunpack.c.l.b16 %v1993
    %v2137 = vunpack.c.h.b16 %v1993
    %v2138 = vunpack.c.l.b16 %v1994
    %v2139 = vunpack.c.h.b16 %v1994
    %v2140 = vunpack.c.l.b16 %v1995
    %v2141 = vunpack.c.h.b16 %v1995
    %v2142 = vunpack.c.l.b16 %v1996
    %v2143 = vunpack.c.h.b16 %v1996
    %v2144 = vunpack.c.l.b16 %v1997
    %v2145 = vunpack.c.h.b16 %v1997
    %v2146 = vunpack.c.l.b16 %v1998
    %v2147 = vunpack.c.h.b16 %v1998
    %v2148 = vunpack.c.l.b16 %v1999
    %v2149 = vunpack.c.h.b16 %v1999
    %v2150 = vunpack.c.l.b16 %v2000
    %v2151 = vunpack.c.h.b16 %v2000
    %v2152 = vunpack.c.l.b16 %v2001
    %v2153 = vunpack.c.h.b16 %v2001
    %v2154 = vunpack.c.l.b16 %v2002
    %v2155 = vunpack.c.h.b16 %v2002
    %v2156 = vunpack.c.l.b16 %v2003
    %v2157 = vunpack.c.h.b16 %v2003
    %v2158 = vunpack.c.l.b16 %v2004
    %v2159 = vunpack.c.h.b16 %v2004
    %v2160 = vunpack.c.l.b16 %v2005
    %v2161 = vunpack.c.h.b16 %v2005
    %v2162 = vunpack.c.l.b16 %v2006
    %v2163 = vunpack.c.h.b16 %v2006
    %v2164 = vunpack.c.l.b16 %v2007
    %v2165 = vunpack.c.h.b16 %v2007
    %v2166 = vpack.c.b16 %v2076, %v2070
    %v2167 = vpack.c.b16 %v2077, %v2071
    %v2168 = vpack.c.b16 %v2078, %v2072
    %v2169 = vpack.c.b16 %v2079, %v2073
    %v2170 = vpack.c.b16 %v2080, %v2074
    %v2171 = vpack.c.b16 %v2081, %v2075
    %v2172 = vpack.c.b16 %v2088, %v2082
    %v2173 = vpack.c.b16 %v2089, %v2083
    %v2174 = vpack.c.b16 %v2090, %v2084
    %v2175 = vpack.c.b16 %v2091, %v2085
    %v2176 = vpack.c.b16 %v2092, %v2086
    %v2177 = vpack.c.b16 %v2093, %v2087
    %v2178 = vpack.c.b16 %v2100, %v2094
    %v2179 = vpack.c.b16 %v2101, %v2095
    %v2180 = vpack.c.b16 %v2102, %v2096
    %v2181 = vpack.c.b16 %v2103, %v2097
    %v2182 = vpack.c.b16 %v2104, %v2098
    %v2183 = vpack.c.b16 %v2105, %v2099
    %v2184 = vpack.c.b16 %v2112, %v2106
    %v2185 = vpack.c.b16 %v2113, %v2107
    %v2186 = vpack.c.b16 %v2114, %v2108
    %v2187 = vpack.c.b16 %v2115, %v2109
    %v2188 = vpack.c.b16 %v2116, %v2110
    %v2189 = vpack.c.b16 %v2117, %v2111
    %v2190 = vpack.c.b16 %v2124, %v2118
    %v2191 = vpack.c.b16 %v2125, %v2119
    %v2192 = vpack.c.b16 %v2126, %v2120
    %v2193 = vpack.c.b16 %v2127, %v2121
    %v2194 = vpack.c.b16 %v2128, %v2122
    %v2195 = vpack.c.b16 %v2129, %v2123
    %v2196 = vpack.c.b16 %v2136, %v2130
    %v2197 = vpack.c.b16 %v2137, %v2131
    %v2198 = vpack.c.b16 %v2138, %v2132
    %v2199 = vpack.c.b16 %v2139, %v2133
    %v2200 = vpack.c.b16 %v2140, %v2134
    %v2201 = vpack.c.b16 %v2141, %v2135
    %v2202 = vpack.c.b16 %v2148, %v2142
    %v2203 = vpack.c.b16 %v2149, %v2143
    %v2204 = vpack.c.b16 %v2150, %v2144
    %v2205 = vpack.c.b16 %v2151, %v2145
    %v2206 = vpack.c.b16 %v2152, %v2146
    %v2207 = vpack.c.b16 %v2153, %v2147
    %v2208 = vpack.c.b16 %v2160, %v2154
    %v2209 = vpack.c.b16 %v2161, %v2155
    %v2210 = vpack.c.b16 %v2162, %v2156
    %v2211 = vpack.c.b16 %v2163, %v2157
    %v2212 = vpack.c.b16 %v2164, %v2158
    %v2213 = vpack.c.b16 %v2165, %v2159
    %2262 = vmatpush.bf16.msra.mxu0 %v2208
    %2263 = vmatpush.bf16.msra.mxu0 %v2202
    %2264 = vmatpush.bf16.msra.mxu0 %v2196
    %2265 = vmatpush.bf16.msra.mxu0 %v2190
    %2266 = vmatpush.bf16.msra.mxu0 %v2184
    %2267 = vmatpush.bf16.msra.mxu0 %v2178
    %2268 = vmatpush.bf16.msra.mxu0 %v2172
    %2269 = vmatpush.bf16.msra.mxu0 %v2166
    %2270 = vmatmul.bf16.gmra.mxu0 %v1959
    %v2271 = vpop.f32.mrf.mxu0
    %v2272 = vadd.f32 %v2010, %v2271
    %v2273 = vpop.f32.mrf.mxu0
    %2274 = vdwg.mxu0
    %2275 = vmatpush.bf16.msra.mxu0 %v2209
    %2276 = vmatpush.bf16.msra.mxu0 %v2203
    %2277 = vmatpush.bf16.msra.mxu0 %v2197
    %2278 = vmatpush.bf16.msra.mxu0 %v2191
    %2279 = vmatpush.bf16.msra.mxu0 %v2185
    %2280 = vmatpush.bf16.msra.mxu0 %v2179
    %2281 = vmatpush.bf16.msra.mxu0 %v2173
    %2282 = vmatpush.bf16.msra.mxu0 %v2167
    %2283 = vmatmul.bf16.gmra.mxu0 %v1959
    %v2284 = vpop.f32.mrf.mxu0
    %v2285 = vadd.f32 %v2011, %v2284
    %v2286 = vpop.f32.mrf.mxu0
    %2287 = vdwg.mxu0
    %2288 = vmatpush.bf16.msra.mxu0 %v2210
    %2289 = vmatpush.bf16.msra.mxu0 %v2204
    %2290 = vmatpush.bf16.msra.mxu0 %v2198
    %2291 = vmatpush.bf16.msra.mxu0 %v2192
    %2292 = vmatpush.bf16.msra.mxu0 %v2186
    %2293 = vmatpush.bf16.msra.mxu0 %v2180
    %2294 = vmatpush.bf16.msra.mxu0 %v2174
    %2295 = vmatpush.bf16.msra.mxu0 %v2168
    %2296 = vmatmul.bf16.gmra.mxu0 %v1959
    %v2297 = vpop.f32.mrf.mxu0
    %v2298 = vadd.f32 %v2012, %v2297
    %v2299 = vpop.f32.mrf.mxu0
    %2300 = vdwg.mxu0
    %2301 = vmatpush.bf16.msra.mxu0 %v2211
    %2302 = vmatpush.bf16.msra.mxu0 %v2205
    %2303 = vmatpush.bf16.msra.mxu0 %v2199
    %2304 = vmatpush.bf16.msra.mxu0 %v2193
    %2305 = vmatpush.bf16.msra.mxu0 %v2187
    %2306 = vmatpush.bf16.msra.mxu0 %v2181
    %2307 = vmatpush.bf16.msra.mxu0 %v2175
    %2308 = vmatpush.bf16.msra.mxu0 %v2169
    %2309 = vmatmul.bf16.gmra.mxu0 %v1959
    %v2310 = vpop.f32.mrf.mxu0
    %v2311 = vadd.f32 %v2013, %v2310
    %v2312 = vpop.f32.mrf.mxu0
    %2313 = vdwg.mxu0
    %2314 = vmatpush.bf16.msra.mxu0 %v2212
    %2315 = vmatpush.bf16.msra.mxu0 %v2206
    %2316 = vmatpush.bf16.msra.mxu0 %v2200
    %2317 = vmatpush.bf16.msra.mxu0 %v2194
    %2318 = vmatpush.bf16.msra.mxu0 %v2188
    %2319 = vmatpush.bf16.msra.mxu0 %v2182
    %2320 = vmatpush.bf16.msra.mxu0 %v2176
    %2321 = vmatpush.bf16.msra.mxu0 %v2170
    %2322 = vmatmul.bf16.gmra.mxu0 %v1959
    %v2323 = vpop.f32.mrf.mxu0
    %v2324 = vadd.f32 %v2014, %v2323
    %v2325 = vpop.f32.mrf.mxu0
    %2326 = vdwg.mxu0
    %2327 = vmatpush.bf16.msra.mxu0 %v2213
    %2328 = vmatpush.bf16.msra.mxu0 %v2207
    %2329 = vmatpush.bf16.msra.mxu0 %v2201
    %2330 = vmatpush.bf16.msra.mxu0 %v2195
    %2331 = vmatpush.bf16.msra.mxu0 %v2189
    %2332 = vmatpush.bf16.msra.mxu0 %v2183
    %2333 = vmatpush.bf16.msra.mxu0 %v2177
    %2334 = vmatpush.bf16.msra.mxu0 %v2171
    %2335 = vmatmul.bf16.gmra.mxu0 %v1959
    %v2336 = vpop.f32.mrf.mxu0
    %v2337 = vadd.f32 %v2015, %v2336
    %v2338 = vpop.f32.mrf.mxu0
    %2339 = vdwg.mxu0
    %2342 = vst [vmem:[#allocation1] ss:$4 sm:$0xff] %v1956
    %s2343 = scalar_lea.vmem [#allocation1], 32
    %2344 = vst [vmem:[%s2343] ss:$4 sm:$0xff] %v1957
    %v2345 = vld.sshfl [vmem:[#allocation1] sm:$0xff pattern:$0x73625140]
    %v2346 = vld.sshfl [vmem:[#allocation1 + $0x8] sm:$0xff pattern:$0x73625140]
    %v2347 = vld.sshfl [vmem:[#allocation1 + $0x10] sm:$0xff pattern:$0x73625140]
    %v2348 = vld.sshfl [vmem:[#allocation1 + $0x18] sm:$0xff pattern:$0x73625140]
    %v2349 = vld.sshfl [vmem:[#allocation1 + $0x20] sm:$0xff pattern:$0x73625140]
    %v2350 = vld.sshfl [vmem:[#allocation1 + $0x28] sm:$0xff pattern:$0x73625140]
    %v2357 = vpack.c.bf16 %v2345, %v2345
    %v2358 = vpack.c.bf16 %v2346, %v2346
    %v2359 = vpack.c.bf16 %v2347, %v2347
    %v2360 = vpack.c.bf16 %v2348, %v2348
    %v2361 = vpack.c.bf16 %v2349, %v2349
    %v2362 = vpack.c.bf16 %v2350, %v2350
    %v2363 = vld [vmem:[#allocation17] sm:$0xff]
    %v2364 = vld [vmem:[#allocation17 + $0x8] sm:$0xff]
    %v2365 = vld [vmem:[#allocation17 + $0x10] sm:$0xff]
    %v2366 = vld [vmem:[#allocation17 + $0x18] sm:$0xff]
    %v2367 = vld [vmem:[#allocation17 + $0x20] sm:$0xff]
    %v2368 = vld [vmem:[#allocation17 + $0x28] sm:$0xff]
    %v2369 = vld [vmem:[#allocation17 + $0x30] sm:$0xff]
    %v2370 = vld [vmem:[#allocation17 + $0x38] sm:$0xff]
    %v2371 = vld [vmem:[#allocation17 + $0x40] sm:$0xff]
    %v2372 = vld [vmem:[#allocation17 + $0x48] sm:$0xff]
    %v2373 = vld [vmem:[#allocation17 + $0x50] sm:$0xff]
    %v2374 = vld [vmem:[#allocation17 + $0x58] sm:$0xff]
    %v2375 = vld [vmem:[#allocation17 + $0x60] sm:$0xff]
    %v2376 = vld [vmem:[#allocation17 + $0x68] sm:$0xff]
    %v2377 = vld [vmem:[#allocation17 + $0x70] sm:$0xff]
    %v2378 = vld [vmem:[#allocation17 + $0x78] sm:$0xff]
    %v2379 = vld [vmem:[#allocation17 + $0x80] sm:$0xff]
    %v2380 = vld [vmem:[#allocation17 + $0x88] sm:$0xff]
    %v2381 = vld [vmem:[#allocation17 + $0x90] sm:$0xff]
    %v2382 = vld [vmem:[#allocation17 + $0x98] sm:$0xff]
    %v2383 = vld [vmem:[#allocation17 + $0xa0] sm:$0xff]
    %v2384 = vld [vmem:[#allocation17 + $0xa8] sm:$0xff]
    %v2385 = vld [vmem:[#allocation17 + $0xb0] sm:$0xff]
    %v2386 = vld [vmem:[#allocation17 + $0xb8] sm:$0xff]
    %v2387 = vld [vmem:[#allocation17 + $0xc0] sm:$0xff]
    %v2388 = vld [vmem:[#allocation17 + $0xc8] sm:$0xff]
    %v2389 = vld [vmem:[#allocation17 + $0xd0] sm:$0xff]
    %v2390 = vld [vmem:[#allocation17 + $0xd8] sm:$0xff]
    %v2391 = vld [vmem:[#allocation17 + $0xe0] sm:$0xff]
    %v2392 = vld [vmem:[#allocation17 + $0xe8] sm:$0xff]
    %v2393 = vld [vmem:[#allocation17 + $0xf0] sm:$0xff]
    %v2394 = vld [vmem:[#allocation17 + $0xf8] sm:$0xff]
    %v2395 = vld [vmem:[#allocation17 + $0x100] sm:$0xff]
    %v2396 = vld [vmem:[#allocation17 + $0x108] sm:$0xff]
    %v2397 = vld [vmem:[#allocation17 + $0x110] sm:$0xff]
    %v2398 = vld [vmem:[#allocation17 + $0x118] sm:$0xff]
    %v2399 = vld [vmem:[#allocation17 + $0x120] sm:$0xff]
    %v2400 = vld [vmem:[#allocation17 + $0x128] sm:$0xff]
    %v2401 = vld [vmem:[#allocation17 + $0x130] sm:$0xff]
    %v2402 = vld [vmem:[#allocation17 + $0x138] sm:$0xff]
    %v2403 = vld [vmem:[#allocation17 + $0x140] sm:$0xff]
    %v2404 = vld [vmem:[#allocation17 + $0x148] sm:$0xff]
    %v2405 = vld [vmem:[#allocation17 + $0x150] sm:$0xff]
    %v2406 = vld [vmem:[#allocation17 + $0x158] sm:$0xff]
    %v2407 = vld [vmem:[#allocation17 + $0x160] sm:$0xff]
    %v2408 = vld [vmem:[#allocation17 + $0x168] sm:$0xff]
    %v2409 = vld [vmem:[#allocation17 + $0x170] sm:$0xff]
    %v2410 = vld [vmem:[#allocation17 + $0x178] sm:$0xff]
    %v2411 = vld [vmem:[#allocation17 + $0x180] sm:$0xff]
    %v2412 = vld [vmem:[#allocation17 + $0x188] sm:$0xff]
    %v2413 = vld [vmem:[#allocation17 + $0x190] sm:$0xff]
    %v2414 = vld [vmem:[#allocation17 + $0x198] sm:$0xff]
    %v2415 = vld [vmem:[#allocation17 + $0x1a0] sm:$0xff]
    %v2416 = vld [vmem:[#allocation17 + $0x1a8] sm:$0xff]
    %v2417 = vld [vmem:[#allocation17 + $0x1b0] sm:$0xff]
    %v2418 = vld [vmem:[#allocation17 + $0x1b8] sm:$0xff]
    %v2419 = vld [vmem:[#allocation17 + $0x1c0] sm:$0xff]
    %v2420 = vld [vmem:[#allocation17 + $0x1c8] sm:$0xff]
    %v2421 = vld [vmem:[#allocation17 + $0x1d0] sm:$0xff]
    %v2422 = vld [vmem:[#allocation17 + $0x1d8] sm:$0xff]
    %v2423 = vld [vmem:[#allocation17 + $0x1e0] sm:$0xff]
    %v2424 = vld [vmem:[#allocation17 + $0x1e8] sm:$0xff]
    %v2425 = vld [vmem:[#allocation17 + $0x1f0] sm:$0xff]
    %v2426 = vld [vmem:[#allocation17 + $0x1f8] sm:$0xff]
    %v2427 = vld [vmem:[#allocation17 + $0x200] sm:$0xff]
    %v2428 = vld [vmem:[#allocation17 + $0x208] sm:$0xff]
    %v2429 = vld [vmem:[#allocation17 + $0x210] sm:$0xff]
    %v2430 = vld [vmem:[#allocation17 + $0x218] sm:$0xff]
    %v2431 = vld [vmem:[#allocation17 + $0x220] sm:$0xff]
    %v2432 = vld [vmem:[#allocation17 + $0x228] sm:$0xff]
    %v2433 = vld [vmem:[#allocation17 + $0x230] sm:$0xff]
    %v2434 = vld [vmem:[#allocation17 + $0x238] sm:$0xff]
    %v2435 = vld [vmem:[#allocation17 + $0x240] sm:$0xff]
    %v2436 = vld [vmem:[#allocation17 + $0x248] sm:$0xff]
    %v2437 = vld [vmem:[#allocation17 + $0x250] sm:$0xff]
    %v2438 = vld [vmem:[#allocation17 + $0x258] sm:$0xff]
    %v2439 = vld [vmem:[#allocation17 + $0x260] sm:$0xff]
    %v2440 = vld [vmem:[#allocation17 + $0x268] sm:$0xff]
    %v2441 = vld [vmem:[#allocation17 + $0x270] sm:$0xff]
    %v2442 = vld [vmem:[#allocation17 + $0x278] sm:$0xff]
    %v2443 = vld [vmem:[#allocation17 + $0x280] sm:$0xff]
    %v2444 = vld [vmem:[#allocation17 + $0x288] sm:$0xff]
    %v2445 = vld [vmem:[#allocation17 + $0x290] sm:$0xff]
    %v2446 = vld [vmem:[#allocation17 + $0x298] sm:$0xff]
    %v2447 = vld [vmem:[#allocation17 + $0x2a0] sm:$0xff]
    %v2448 = vld [vmem:[#allocation17 + $0x2a8] sm:$0xff]
    %v2449 = vld [vmem:[#allocation17 + $0x2b0] sm:$0xff]
    %v2450 = vld [vmem:[#allocation17 + $0x2b8] sm:$0xff]
    %v2451 = vld [vmem:[#allocation17 + $0x2c0] sm:$0xff]
    %v2452 = vld [vmem:[#allocation17 + $0x2c8] sm:$0xff]
    %v2453 = vld [vmem:[#allocation17 + $0x2d0] sm:$0xff]
    %v2454 = vld [vmem:[#allocation17 + $0x2d8] sm:$0xff]
    %v2455 = vld [vmem:[#allocation17 + $0x2e0] sm:$0xff]
    %v2456 = vld [vmem:[#allocation17 + $0x2e8] sm:$0xff]
    %v2457 = vld [vmem:[#allocation17 + $0x2f0] sm:$0xff]
    %v2458 = vld [vmem:[#allocation17 + $0x2f8] sm:$0xff]
    %v2459 = vld [vmem:[#allocation17 + $0x300] sm:$0xff]
    %v2460 = vld [vmem:[#allocation17 + $0x308] sm:$0xff]
    %v2461 = vld [vmem:[#allocation17 + $0x310] sm:$0xff]
    %v2462 = vld [vmem:[#allocation17 + $0x318] sm:$0xff]
    %v2463 = vld [vmem:[#allocation17 + $0x320] sm:$0xff]
    %v2464 = vld [vmem:[#allocation17 + $0x328] sm:$0xff]
    %v2465 = vld [vmem:[#allocation17 + $0x330] sm:$0xff]
    %v2466 = vld [vmem:[#allocation17 + $0x338] sm:$0xff]
    %v2467 = vld [vmem:[#allocation17 + $0x340] sm:$0xff]
    %v2468 = vld [vmem:[#allocation17 + $0x348] sm:$0xff]
    %v2469 = vld [vmem:[#allocation17 + $0x350] sm:$0xff]
    %v2470 = vld [vmem:[#allocation17 + $0x358] sm:$0xff]
    %v2471 = vld [vmem:[#allocation17 + $0x360] sm:$0xff]
    %v2472 = vld [vmem:[#allocation17 + $0x368] sm:$0xff]
    %v2473 = vld [vmem:[#allocation17 + $0x370] sm:$0xff]
    %v2474 = vld [vmem:[#allocation17 + $0x378] sm:$0xff]
    %v2475 = vld [vmem:[#allocation17 + $0x380] sm:$0xff]
    %v2476 = vld [vmem:[#allocation17 + $0x388] sm:$0xff]
    %v2477 = vld [vmem:[#allocation17 + $0x390] sm:$0xff]
    %v2478 = vld [vmem:[#allocation17 + $0x398] sm:$0xff]
    %v2479 = vld [vmem:[#allocation17 + $0x3a0] sm:$0xff]
    %v2480 = vld [vmem:[#allocation17 + $0x3a8] sm:$0xff]
    %v2481 = vld [vmem:[#allocation17 + $0x3b0] sm:$0xff]
    %v2482 = vld [vmem:[#allocation17 + $0x3b8] sm:$0xff]
    %v2483 = vld [vmem:[#allocation17 + $0x3c0] sm:$0xff]
    %v2484 = vld [vmem:[#allocation17 + $0x3c8] sm:$0xff]
    %v2485 = vld [vmem:[#allocation17 + $0x3d0] sm:$0xff]
    %v2486 = vld [vmem:[#allocation17 + $0x3d8] sm:$0xff]
    %v2487 = vld [vmem:[#allocation17 + $0x3e0] sm:$0xff]
    %v2488 = vld [vmem:[#allocation17 + $0x3e8] sm:$0xff]
    %v2489 = vld [vmem:[#allocation17 + $0x3f0] sm:$0xff]
    %v2490 = vld [vmem:[#allocation17 + $0x3f8] sm:$0xff]
    %v2491 = vld [vmem:[#allocation17 + $0x400] sm:$0xff]
    %v2492 = vld [vmem:[#allocation17 + $0x408] sm:$0xff]
    %v2493 = vld [vmem:[#allocation17 + $0x410] sm:$0xff]
    %v2494 = vld [vmem:[#allocation17 + $0x418] sm:$0xff]
    %v2495 = vld [vmem:[#allocation17 + $0x420] sm:$0xff]
    %v2496 = vld [vmem:[#allocation17 + $0x428] sm:$0xff]
    %v2497 = vld [vmem:[#allocation17 + $0x430] sm:$0xff]
    %v2498 = vld [vmem:[#allocation17 + $0x438] sm:$0xff]
    %v2499 = vld [vmem:[#allocation17 + $0x440] sm:$0xff]
    %v2500 = vld [vmem:[#allocation17 + $0x448] sm:$0xff]
    %v2501 = vld [vmem:[#allocation17 + $0x450] sm:$0xff]
    %v2502 = vld [vmem:[#allocation17 + $0x458] sm:$0xff]
    %v2503 = vld [vmem:[#allocation17 + $0x460] sm:$0xff]
    %v2504 = vld [vmem:[#allocation17 + $0x468] sm:$0xff]
    %v2505 = vld [vmem:[#allocation17 + $0x470] sm:$0xff]
    %v2506 = vld [vmem:[#allocation17 + $0x478] sm:$0xff]
    %v2507 = vld [vmem:[#allocation17 + $0x480] sm:$0xff]
    %v2508 = vld [vmem:[#allocation17 + $0x488] sm:$0xff]
    %v2509 = vld [vmem:[#allocation17 + $0x490] sm:$0xff]
    %v2510 = vld [vmem:[#allocation17 + $0x498] sm:$0xff]
    %v2511 = vld [vmem:[#allocation17 + $0x4a0] sm:$0xff]
    %v2512 = vld [vmem:[#allocation17 + $0x4a8] sm:$0xff]
    %v2513 = vld [vmem:[#allocation17 + $0x4b0] sm:$0xff]
    %v2514 = vld [vmem:[#allocation17 + $0x4b8] sm:$0xff]
    %v2515 = vld [vmem:[#allocation17 + $0x4c0] sm:$0xff]
    %v2516 = vld [vmem:[#allocation17 + $0x4c8] sm:$0xff]
    %v2517 = vld [vmem:[#allocation17 + $0x4d0] sm:$0xff]
    %v2518 = vld [vmem:[#allocation17 + $0x4d8] sm:$0xff]
    %v2519 = vld [vmem:[#allocation17 + $0x4e0] sm:$0xff]
    %v2520 = vld [vmem:[#allocation17 + $0x4e8] sm:$0xff]
    %v2521 = vld [vmem:[#allocation17 + $0x4f0] sm:$0xff]
    %v2522 = vld [vmem:[#allocation17 + $0x4f8] sm:$0xff]
    %v2523 = vld [vmem:[#allocation17 + $0x500] sm:$0xff]
    %v2524 = vld [vmem:[#allocation17 + $0x508] sm:$0xff]
    %v2525 = vld [vmem:[#allocation17 + $0x510] sm:$0xff]
    %v2526 = vld [vmem:[#allocation17 + $0x518] sm:$0xff]
    %v2527 = vld [vmem:[#allocation17 + $0x520] sm:$0xff]
    %v2528 = vld [vmem:[#allocation17 + $0x528] sm:$0xff]
    %v2529 = vld [vmem:[#allocation17 + $0x530] sm:$0xff]
    %v2530 = vld [vmem:[#allocation17 + $0x538] sm:$0xff]
    %v2531 = vld [vmem:[#allocation17 + $0x540] sm:$0xff]
    %v2532 = vld [vmem:[#allocation17 + $0x548] sm:$0xff]
    %v2533 = vld [vmem:[#allocation17 + $0x550] sm:$0xff]
    %v2534 = vld [vmem:[#allocation17 + $0x558] sm:$0xff]
    %v2535 = vld [vmem:[#allocation17 + $0x560] sm:$0xff]
    %v2536 = vld [vmem:[#allocation17 + $0x568] sm:$0xff]
    %v2537 = vld [vmem:[#allocation17 + $0x570] sm:$0xff]
    %v2538 = vld [vmem:[#allocation17 + $0x578] sm:$0xff]
    %v2539 = vld [vmem:[#allocation17 + $0x580] sm:$0xff]
    %v2540 = vld [vmem:[#allocation17 + $0x588] sm:$0xff]
    %v2541 = vld [vmem:[#allocation17 + $0x590] sm:$0xff]
    %v2542 = vld [vmem:[#allocation17 + $0x598] sm:$0xff]
    %v2543 = vld [vmem:[#allocation17 + $0x5a0] sm:$0xff]
    %v2544 = vld [vmem:[#allocation17 + $0x5a8] sm:$0xff]
    %v2545 = vld [vmem:[#allocation17 + $0x5b0] sm:$0xff]
    %v2546 = vld [vmem:[#allocation17 + $0x5b8] sm:$0xff]
    %v2547 = vld [vmem:[#allocation17 + $0x5c0] sm:$0xff]
    %v2548 = vld [vmem:[#allocation17 + $0x5c8] sm:$0xff]
    %v2549 = vld [vmem:[#allocation17 + $0x5d0] sm:$0xff]
    %v2550 = vld [vmem:[#allocation17 + $0x5d8] sm:$0xff]
    %v2551 = vld [vmem:[#allocation17 + $0x5e0] sm:$0xff]
    %v2552 = vld [vmem:[#allocation17 + $0x5e8] sm:$0xff]
    %v2553 = vld [vmem:[#allocation17 + $0x5f0] sm:$0xff]
    %v2554 = vld [vmem:[#allocation17 + $0x5f8] sm:$0xff]
    %v2555 = vld [vmem:[#allocation17 + $0x600] sm:$0xff]
    %v2556 = vld [vmem:[#allocation17 + $0x608] sm:$0xff]
    %v2557 = vld [vmem:[#allocation17 + $0x610] sm:$0xff]
    %v2558 = vld [vmem:[#allocation17 + $0x618] sm:$0xff]
    %v2559 = vld [vmem:[#allocation17 + $0x620] sm:$0xff]
    %v2560 = vld [vmem:[#allocation17 + $0x628] sm:$0xff]
    %v2561 = vld [vmem:[#allocation17 + $0x630] sm:$0xff]
    %v2562 = vld [vmem:[#allocation17 + $0x638] sm:$0xff]
    %v2563 = vld [vmem:[#allocation17 + $0x640] sm:$0xff]
    %v2564 = vld [vmem:[#allocation17 + $0x648] sm:$0xff]
    %v2565 = vld [vmem:[#allocation17 + $0x650] sm:$0xff]
    %v2566 = vld [vmem:[#allocation17 + $0x658] sm:$0xff]
    %v2567 = vld [vmem:[#allocation17 + $0x660] sm:$0xff]
    %v2568 = vld [vmem:[#allocation17 + $0x668] sm:$0xff]
    %v2569 = vld [vmem:[#allocation17 + $0x670] sm:$0xff]
    %v2570 = vld [vmem:[#allocation17 + $0x678] sm:$0xff]
    %v2571 = vld [vmem:[#allocation17 + $0x680] sm:$0xff]
    %v2572 = vld [vmem:[#allocation17 + $0x688] sm:$0xff]
    %v2573 = vld [vmem:[#allocation17 + $0x690] sm:$0xff]
    %v2574 = vld [vmem:[#allocation17 + $0x698] sm:$0xff]
    %v2575 = vld [vmem:[#allocation17 + $0x6a0] sm:$0xff]
    %v2576 = vld [vmem:[#allocation17 + $0x6a8] sm:$0xff]
    %v2577 = vld [vmem:[#allocation17 + $0x6b0] sm:$0xff]
    %v2578 = vld [vmem:[#allocation17 + $0x6b8] sm:$0xff]
    %v2579 = vld [vmem:[#allocation17 + $0x6c0] sm:$0xff]
    %v2580 = vld [vmem:[#allocation17 + $0x6c8] sm:$0xff]
    %v2581 = vld [vmem:[#allocation17 + $0x6d0] sm:$0xff]
    %v2582 = vld [vmem:[#allocation17 + $0x6d8] sm:$0xff]
    %v2583 = vld [vmem:[#allocation17 + $0x6e0] sm:$0xff]
    %v2584 = vld [vmem:[#allocation17 + $0x6e8] sm:$0xff]
    %v2585 = vld [vmem:[#allocation17 + $0x6f0] sm:$0xff]
    %v2586 = vld [vmem:[#allocation17 + $0x6f8] sm:$0xff]
    %v2587 = vld [vmem:[#allocation17 + $0x700] sm:$0xff]
    %v2588 = vld [vmem:[#allocation17 + $0x708] sm:$0xff]
    %v2589 = vld [vmem:[#allocation17 + $0x710] sm:$0xff]
    %v2590 = vld [vmem:[#allocation17 + $0x718] sm:$0xff]
    %v2591 = vld [vmem:[#allocation17 + $0x720] sm:$0xff]
    %v2592 = vld [vmem:[#allocation17 + $0x728] sm:$0xff]
    %v2593 = vld [vmem:[#allocation17 + $0x730] sm:$0xff]
    %v2594 = vld [vmem:[#allocation17 + $0x738] sm:$0xff]
    %v2595 = vld [vmem:[#allocation17 + $0x740] sm:$0xff]
    %v2596 = vld [vmem:[#allocation17 + $0x748] sm:$0xff]
    %v2597 = vld [vmem:[#allocation17 + $0x750] sm:$0xff]
    %v2598 = vld [vmem:[#allocation17 + $0x758] sm:$0xff]
    %v2599 = vld [vmem:[#allocation17 + $0x760] sm:$0xff]
    %v2600 = vld [vmem:[#allocation17 + $0x768] sm:$0xff]
    %v2601 = vld [vmem:[#allocation17 + $0x770] sm:$0xff]
    %v2602 = vld [vmem:[#allocation17 + $0x778] sm:$0xff]
    %v2603 = vld [vmem:[#allocation17 + $0x780] sm:$0xff]
    %v2604 = vld [vmem:[#allocation17 + $0x788] sm:$0xff]
    %v2605 = vld [vmem:[#allocation17 + $0x790] sm:$0xff]
    %v2606 = vld [vmem:[#allocation17 + $0x798] sm:$0xff]
    %v2607 = vld [vmem:[#allocation17 + $0x7a0] sm:$0xff]
    %v2608 = vld [vmem:[#allocation17 + $0x7a8] sm:$0xff]
    %v2609 = vld [vmem:[#allocation17 + $0x7b0] sm:$0xff]
    %v2610 = vld [vmem:[#allocation17 + $0x7b8] sm:$0xff]
    %v2611 = vld [vmem:[#allocation17 + $0x7c0] sm:$0xff]
    %v2612 = vld [vmem:[#allocation17 + $0x7c8] sm:$0xff]
    %v2613 = vld [vmem:[#allocation17 + $0x7d0] sm:$0xff]
    %v2614 = vld [vmem:[#allocation17 + $0x7d8] sm:$0xff]
    %v2615 = vld [vmem:[#allocation17 + $0x7e0] sm:$0xff]
    %v2616 = vld [vmem:[#allocation17 + $0x7e8] sm:$0xff]
    %v2617 = vld [vmem:[#allocation17 + $0x7f0] sm:$0xff]
    %v2618 = vld [vmem:[#allocation17 + $0x7f8] sm:$0xff]
    %v2619 = vld [vmem:[#allocation17 + $0x800] sm:$0xff]
    %v2620 = vld [vmem:[#allocation17 + $0x808] sm:$0xff]
    %v2621 = vld [vmem:[#allocation17 + $0x810] sm:$0xff]
    %v2622 = vld [vmem:[#allocation17 + $0x818] sm:$0xff]
    %v2623 = vld [vmem:[#allocation17 + $0x820] sm:$0xff]
    %v2624 = vld [vmem:[#allocation17 + $0x828] sm:$0xff]
    %v2625 = vld [vmem:[#allocation17 + $0x830] sm:$0xff]
    %v2626 = vld [vmem:[#allocation17 + $0x838] sm:$0xff]
    %v2627 = vld [vmem:[#allocation17 + $0x840] sm:$0xff]
    %v2628 = vld [vmem:[#allocation17 + $0x848] sm:$0xff]
    %v2629 = vld [vmem:[#allocation17 + $0x850] sm:$0xff]
    %v2630 = vld [vmem:[#allocation17 + $0x858] sm:$0xff]
    %v2631 = vld [vmem:[#allocation17 + $0x860] sm:$0xff]
    %v2632 = vld [vmem:[#allocation17 + $0x868] sm:$0xff]
    %v2633 = vld [vmem:[#allocation17 + $0x870] sm:$0xff]
    %v2634 = vld [vmem:[#allocation17 + $0x878] sm:$0xff]
    %v2635 = vld [vmem:[#allocation17 + $0x880] sm:$0xff]
    %v2636 = vld [vmem:[#allocation17 + $0x888] sm:$0xff]
    %v2637 = vld [vmem:[#allocation17 + $0x890] sm:$0xff]
    %v2638 = vld [vmem:[#allocation17 + $0x898] sm:$0xff]
    %v2639 = vld [vmem:[#allocation17 + $0x8a0] sm:$0xff]
    %v2640 = vld [vmem:[#allocation17 + $0x8a8] sm:$0xff]
    %v2641 = vld [vmem:[#allocation17 + $0x8b0] sm:$0xff]
    %v2642 = vld [vmem:[#allocation17 + $0x8b8] sm:$0xff]
    %v2643 = vld [vmem:[#allocation17 + $0x8c0] sm:$0xff]
    %v2644 = vld [vmem:[#allocation17 + $0x8c8] sm:$0xff]
    %v2645 = vld [vmem:[#allocation17 + $0x8d0] sm:$0xff]
    %v2646 = vld [vmem:[#allocation17 + $0x8d8] sm:$0xff]
    %v2647 = vld [vmem:[#allocation17 + $0x8e0] sm:$0xff]
    %v2648 = vld [vmem:[#allocation17 + $0x8e8] sm:$0xff]
    %v2649 = vld [vmem:[#allocation17 + $0x8f0] sm:$0xff]
    %v2650 = vld [vmem:[#allocation17 + $0x8f8] sm:$0xff]
    %v2651 = vld [vmem:[#allocation17 + $0x900] sm:$0xff]
    %v2652 = vld [vmem:[#allocation17 + $0x908] sm:$0xff]
    %v2653 = vld [vmem:[#allocation17 + $0x910] sm:$0xff]
    %v2654 = vld [vmem:[#allocation17 + $0x918] sm:$0xff]
    %v2655 = vld [vmem:[#allocation17 + $0x920] sm:$0xff]
    %v2656 = vld [vmem:[#allocation17 + $0x928] sm:$0xff]
    %v2657 = vld [vmem:[#allocation17 + $0x930] sm:$0xff]
    %v2658 = vld [vmem:[#allocation17 + $0x938] sm:$0xff]
    %v2659 = vld [vmem:[#allocation17 + $0x940] sm:$0xff]
    %v2660 = vld [vmem:[#allocation17 + $0x948] sm:$0xff]
    %v2661 = vld [vmem:[#allocation17 + $0x950] sm:$0xff]
    %v2662 = vld [vmem:[#allocation17 + $0x958] sm:$0xff]
    %v2663 = vld [vmem:[#allocation17 + $0x960] sm:$0xff]
    %v2664 = vld [vmem:[#allocation17 + $0x968] sm:$0xff]
    %v2665 = vld [vmem:[#allocation17 + $0x970] sm:$0xff]
    %v2666 = vld [vmem:[#allocation17 + $0x978] sm:$0xff]
    %v2667 = vld [vmem:[#allocation17 + $0x980] sm:$0xff]
    %v2668 = vld [vmem:[#allocation17 + $0x988] sm:$0xff]
    %v2669 = vld [vmem:[#allocation17 + $0x990] sm:$0xff]
    %v2670 = vld [vmem:[#allocation17 + $0x998] sm:$0xff]
    %v2671 = vld [vmem:[#allocation17 + $0x9a0] sm:$0xff]
    %v2672 = vld [vmem:[#allocation17 + $0x9a8] sm:$0xff]
    %v2673 = vld [vmem:[#allocation17 + $0x9b0] sm:$0xff]
    %v2674 = vld [vmem:[#allocation17 + $0x9b8] sm:$0xff]
    %v2675 = vld [vmem:[#allocation17 + $0x9c0] sm:$0xff]
    %v2676 = vld [vmem:[#allocation17 + $0x9c8] sm:$0xff]
    %v2677 = vld [vmem:[#allocation17 + $0x9d0] sm:$0xff]
    %v2678 = vld [vmem:[#allocation17 + $0x9d8] sm:$0xff]
    %v2679 = vld [vmem:[#allocation17 + $0x9e0] sm:$0xff]
    %v2680 = vld [vmem:[#allocation17 + $0x9e8] sm:$0xff]
    %v2681 = vld [vmem:[#allocation17 + $0x9f0] sm:$0xff]
    %v2682 = vld [vmem:[#allocation17 + $0x9f8] sm:$0xff]
    %v2683 = vld [vmem:[#allocation17 + $0xa00] sm:$0xff]
    %v2684 = vld [vmem:[#allocation17 + $0xa08] sm:$0xff]
    %v2685 = vld [vmem:[#allocation17 + $0xa10] sm:$0xff]
    %v2686 = vld [vmem:[#allocation17 + $0xa18] sm:$0xff]
    %v2687 = vld [vmem:[#allocation17 + $0xa20] sm:$0xff]
    %v2688 = vld [vmem:[#allocation17 + $0xa28] sm:$0xff]
    %v2689 = vld [vmem:[#allocation17 + $0xa30] sm:$0xff]
    %v2690 = vld [vmem:[#allocation17 + $0xa38] sm:$0xff]
    %v2691 = vld [vmem:[#allocation17 + $0xa40] sm:$0xff]
    %v2692 = vld [vmem:[#allocation17 + $0xa48] sm:$0xff]
    %v2693 = vld [vmem:[#allocation17 + $0xa50] sm:$0xff]
    %v2694 = vld [vmem:[#allocation17 + $0xa58] sm:$0xff]
    %v2695 = vld [vmem:[#allocation17 + $0xa60] sm:$0xff]
    %v2696 = vld [vmem:[#allocation17 + $0xa68] sm:$0xff]
    %v2697 = vld [vmem:[#allocation17 + $0xa70] sm:$0xff]
    %v2698 = vld [vmem:[#allocation17 + $0xa78] sm:$0xff]
    %v2699 = vld [vmem:[#allocation17 + $0xa80] sm:$0xff]
    %v2700 = vld [vmem:[#allocation17 + $0xa88] sm:$0xff]
    %v2701 = vld [vmem:[#allocation17 + $0xa90] sm:$0xff]
    %v2702 = vld [vmem:[#allocation17 + $0xa98] sm:$0xff]
    %v2703 = vld [vmem:[#allocation17 + $0xaa0] sm:$0xff]
    %v2704 = vld [vmem:[#allocation17 + $0xaa8] sm:$0xff]
    %v2705 = vld [vmem:[#allocation17 + $0xab0] sm:$0xff]
    %v2706 = vld [vmem:[#allocation17 + $0xab8] sm:$0xff]
    %v2707 = vld [vmem:[#allocation17 + $0xac0] sm:$0xff]
    %v2708 = vld [vmem:[#allocation17 + $0xac8] sm:$0xff]
    %v2709 = vld [vmem:[#allocation17 + $0xad0] sm:$0xff]
    %v2710 = vld [vmem:[#allocation17 + $0xad8] sm:$0xff]
    %v2711 = vld [vmem:[#allocation17 + $0xae0] sm:$0xff]
    %v2712 = vld [vmem:[#allocation17 + $0xae8] sm:$0xff]
    %v2713 = vld [vmem:[#allocation17 + $0xaf0] sm:$0xff]
    %v2714 = vld [vmem:[#allocation17 + $0xaf8] sm:$0xff]
    %v2715 = vld [vmem:[#allocation17 + $0xb00] sm:$0xff]
    %v2716 = vld [vmem:[#allocation17 + $0xb08] sm:$0xff]
    %v2717 = vld [vmem:[#allocation17 + $0xb10] sm:$0xff]
    %v2718 = vld [vmem:[#allocation17 + $0xb18] sm:$0xff]
    %v2719 = vld [vmem:[#allocation17 + $0xb20] sm:$0xff]
    %v2720 = vld [vmem:[#allocation17 + $0xb28] sm:$0xff]
    %v2721 = vld [vmem:[#allocation17 + $0xb30] sm:$0xff]
    %v2722 = vld [vmem:[#allocation17 + $0xb38] sm:$0xff]
    %v2723 = vld [vmem:[#allocation17 + $0xb40] sm:$0xff]
    %v2724 = vld [vmem:[#allocation17 + $0xb48] sm:$0xff]
    %v2725 = vld [vmem:[#allocation17 + $0xb50] sm:$0xff]
    %v2726 = vld [vmem:[#allocation17 + $0xb58] sm:$0xff]
    %v2727 = vld [vmem:[#allocation17 + $0xb60] sm:$0xff]
    %v2728 = vld [vmem:[#allocation17 + $0xb68] sm:$0xff]
    %v2729 = vld [vmem:[#allocation17 + $0xb70] sm:$0xff]
    %v2730 = vld [vmem:[#allocation17 + $0xb78] sm:$0xff]
    %v2731 = vld [vmem:[#allocation17 + $0xb80] sm:$0xff]
    %v2732 = vld [vmem:[#allocation17 + $0xb88] sm:$0xff]
    %v2733 = vld [vmem:[#allocation17 + $0xb90] sm:$0xff]
    %v2734 = vld [vmem:[#allocation17 + $0xb98] sm:$0xff]
    %v2735 = vld [vmem:[#allocation17 + $0xba0] sm:$0xff]
    %v2736 = vld [vmem:[#allocation17 + $0xba8] sm:$0xff]
    %v2737 = vld [vmem:[#allocation17 + $0xbb0] sm:$0xff]
    %v2738 = vld [vmem:[#allocation17 + $0xbb8] sm:$0xff]
    %v2739 = vld [vmem:[#allocation17 + $0xbc0] sm:$0xff]
    %v2740 = vld [vmem:[#allocation17 + $0xbc8] sm:$0xff]
    %v2741 = vld [vmem:[#allocation17 + $0xbd0] sm:$0xff]
    %v2742 = vld [vmem:[#allocation17 + $0xbd8] sm:$0xff]
    %v2743 = vld [vmem:[#allocation17 + $0xbe0] sm:$0xff]
    %v2744 = vld [vmem:[#allocation17 + $0xbe8] sm:$0xff]
    %v2745 = vld [vmem:[#allocation17 + $0xbf0] sm:$0xff]
    %v2746 = vld [vmem:[#allocation17 + $0xbf8] sm:$0xff]
    %v2747 = vld [vmem:[#allocation17 + $0xc00] sm:$0xff]
    %v2748 = vld [vmem:[#allocation17 + $0xc08] sm:$0xff]
    %v2749 = vld [vmem:[#allocation17 + $0xc10] sm:$0xff]
    %v2750 = vld [vmem:[#allocation17 + $0xc18] sm:$0xff]
    %v2751 = vld [vmem:[#allocation17 + $0xc20] sm:$0xff]
    %v2752 = vld [vmem:[#allocation17 + $0xc28] sm:$0xff]
    %v2753 = vld [vmem:[#allocation17 + $0xc30] sm:$0xff]
    %v2754 = vld [vmem:[#allocation17 + $0xc38] sm:$0xff]
    %v2755 = vld [vmem:[#allocation17 + $0xc40] sm:$0xff]
    %v2756 = vld [vmem:[#allocation17 + $0xc48] sm:$0xff]
    %v2757 = vld [vmem:[#allocation17 + $0xc50] sm:$0xff]
    %v2758 = vld [vmem:[#allocation17 + $0xc58] sm:$0xff]
    %v2759 = vld [vmem:[#allocation17 + $0xc60] sm:$0xff]
    %v2760 = vld [vmem:[#allocation17 + $0xc68] sm:$0xff]
    %v2761 = vld [vmem:[#allocation17 + $0xc70] sm:$0xff]
    %v2762 = vld [vmem:[#allocation17 + $0xc78] sm:$0xff]
    %v2763 = vld [vmem:[#allocation17 + $0xc80] sm:$0xff]
    %v2764 = vld [vmem:[#allocation17 + $0xc88] sm:$0xff]
    %v2765 = vld [vmem:[#allocation17 + $0xc90] sm:$0xff]
    %v2766 = vld [vmem:[#allocation17 + $0xc98] sm:$0xff]
    %v2767 = vld [vmem:[#allocation17 + $0xca0] sm:$0xff]
    %v2768 = vld [vmem:[#allocation17 + $0xca8] sm:$0xff]
    %v2769 = vld [vmem:[#allocation17 + $0xcb0] sm:$0xff]
    %v2770 = vld [vmem:[#allocation17 + $0xcb8] sm:$0xff]
    %v2771 = vld [vmem:[#allocation17 + $0xcc0] sm:$0xff]
    %v2772 = vld [vmem:[#allocation17 + $0xcc8] sm:$0xff]
    %v2773 = vld [vmem:[#allocation17 + $0xcd0] sm:$0xff]
    %v2774 = vld [vmem:[#allocation17 + $0xcd8] sm:$0xff]
    %v2775 = vld [vmem:[#allocation17 + $0xce0] sm:$0xff]
    %v2776 = vld [vmem:[#allocation17 + $0xce8] sm:$0xff]
    %v2777 = vld [vmem:[#allocation17 + $0xcf0] sm:$0xff]
    %v2778 = vld [vmem:[#allocation17 + $0xcf8] sm:$0xff]
    %v2779 = vld [vmem:[#allocation17 + $0xd00] sm:$0xff]
    %v2780 = vld [vmem:[#allocation17 + $0xd08] sm:$0xff]
    %v2781 = vld [vmem:[#allocation17 + $0xd10] sm:$0xff]
    %v2782 = vld [vmem:[#allocation17 + $0xd18] sm:$0xff]
    %v2783 = vld [vmem:[#allocation17 + $0xd20] sm:$0xff]
    %v2784 = vld [vmem:[#allocation17 + $0xd28] sm:$0xff]
    %v2785 = vld [vmem:[#allocation17 + $0xd30] sm:$0xff]
    %v2786 = vld [vmem:[#allocation17 + $0xd38] sm:$0xff]
    %v2787 = vld [vmem:[#allocation17 + $0xd40] sm:$0xff]
    %v2788 = vld [vmem:[#allocation17 + $0xd48] sm:$0xff]
    %v2789 = vld [vmem:[#allocation17 + $0xd50] sm:$0xff]
    %v2790 = vld [vmem:[#allocation17 + $0xd58] sm:$0xff]
    %v2791 = vld [vmem:[#allocation17 + $0xd60] sm:$0xff]
    %v2792 = vld [vmem:[#allocation17 + $0xd68] sm:$0xff]
    %v2793 = vld [vmem:[#allocation17 + $0xd70] sm:$0xff]
    %v2794 = vld [vmem:[#allocation17 + $0xd78] sm:$0xff]
    %v2795 = vld [vmem:[#allocation17 + $0xd80] sm:$0xff]
    %v2796 = vld [vmem:[#allocation17 + $0xd88] sm:$0xff]
    %v2797 = vld [vmem:[#allocation17 + $0xd90] sm:$0xff]
    %v2798 = vld [vmem:[#allocation17 + $0xd98] sm:$0xff]
    %v2799 = vld [vmem:[#allocation17 + $0xda0] sm:$0xff]
    %v2800 = vld [vmem:[#allocation17 + $0xda8] sm:$0xff]
    %v2801 = vld [vmem:[#allocation17 + $0xdb0] sm:$0xff]
    %v2802 = vld [vmem:[#allocation17 + $0xdb8] sm:$0xff]
    %v2803 = vld [vmem:[#allocation17 + $0xdc0] sm:$0xff]
    %v2804 = vld [vmem:[#allocation17 + $0xdc8] sm:$0xff]
    %v2805 = vld [vmem:[#allocation17 + $0xdd0] sm:$0xff]
    %v2806 = vld [vmem:[#allocation17 + $0xdd8] sm:$0xff]
    %v2807 = vld [vmem:[#allocation17 + $0xde0] sm:$0xff]
    %v2808 = vld [vmem:[#allocation17 + $0xde8] sm:$0xff]
    %v2809 = vld [vmem:[#allocation17 + $0xdf0] sm:$0xff]
    %v2810 = vld [vmem:[#allocation17 + $0xdf8] sm:$0xff]
    %v2811 = vld [vmem:[#allocation17 + $0xe00] sm:$0xff]
    %v2812 = vld [vmem:[#allocation17 + $0xe08] sm:$0xff]
    %v2813 = vld [vmem:[#allocation17 + $0xe10] sm:$0xff]
    %v2814 = vld [vmem:[#allocation17 + $0xe18] sm:$0xff]
    %v2815 = vld [vmem:[#allocation17 + $0xe20] sm:$0xff]
    %v2816 = vld [vmem:[#allocation17 + $0xe28] sm:$0xff]
    %v2817 = vld [vmem:[#allocation17 + $0xe30] sm:$0xff]
    %v2818 = vld [vmem:[#allocation17 + $0xe38] sm:$0xff]
    %v2819 = vld [vmem:[#allocation17 + $0xe40] sm:$0xff]
    %v2820 = vld [vmem:[#allocation17 + $0xe48] sm:$0xff]
    %v2821 = vld [vmem:[#allocation17 + $0xe50] sm:$0xff]
    %v2822 = vld [vmem:[#allocation17 + $0xe58] sm:$0xff]
    %v2823 = vld [vmem:[#allocation17 + $0xe60] sm:$0xff]
    %v2824 = vld [vmem:[#allocation17 + $0xe68] sm:$0xff]
    %v2825 = vld [vmem:[#allocation17 + $0xe70] sm:$0xff]
    %v2826 = vld [vmem:[#allocation17 + $0xe78] sm:$0xff]
    %v2827 = vld [vmem:[#allocation17 + $0xe80] sm:$0xff]
    %v2828 = vld [vmem:[#allocation17 + $0xe88] sm:$0xff]
    %v2829 = vld [vmem:[#allocation17 + $0xe90] sm:$0xff]
    %v2830 = vld [vmem:[#allocation17 + $0xe98] sm:$0xff]
    %v2831 = vld [vmem:[#allocation17 + $0xea0] sm:$0xff]
    %v2832 = vld [vmem:[#allocation17 + $0xea8] sm:$0xff]
    %v2833 = vld [vmem:[#allocation17 + $0xeb0] sm:$0xff]
    %v2834 = vld [vmem:[#allocation17 + $0xeb8] sm:$0xff]
    %v2835 = vld [vmem:[#allocation17 + $0xec0] sm:$0xff]
    %v2836 = vld [vmem:[#allocation17 + $0xec8] sm:$0xff]
    %v2837 = vld [vmem:[#allocation17 + $0xed0] sm:$0xff]
    %v2838 = vld [vmem:[#allocation17 + $0xed8] sm:$0xff]
    %v2839 = vld [vmem:[#allocation17 + $0xee0] sm:$0xff]
    %v2840 = vld [vmem:[#allocation17 + $0xee8] sm:$0xff]
    %v2841 = vld [vmem:[#allocation17 + $0xef0] sm:$0xff]
    %v2842 = vld [vmem:[#allocation17 + $0xef8] sm:$0xff]
    %v2843 = vld [vmem:[#allocation17 + $0xf00] sm:$0xff]
    %v2844 = vld [vmem:[#allocation17 + $0xf08] sm:$0xff]
    %v2845 = vld [vmem:[#allocation17 + $0xf10] sm:$0xff]
    %v2846 = vld [vmem:[#allocation17 + $0xf18] sm:$0xff]
    %v2847 = vld [vmem:[#allocation17 + $0xf20] sm:$0xff]
    %v2848 = vld [vmem:[#allocation17 + $0xf28] sm:$0xff]
    %v2849 = vld [vmem:[#allocation17 + $0xf30] sm:$0xff]
    %v2850 = vld [vmem:[#allocation17 + $0xf38] sm:$0xff]
    %v2851 = vld [vmem:[#allocation17 + $0xf40] sm:$0xff]
    %v2852 = vld [vmem:[#allocation17 + $0xf48] sm:$0xff]
    %v2853 = vld [vmem:[#allocation17 + $0xf50] sm:$0xff]
    %v2854 = vld [vmem:[#allocation17 + $0xf58] sm:$0xff]
    %v2855 = vld [vmem:[#allocation17 + $0xf60] sm:$0xff]
    %v2856 = vld [vmem:[#allocation17 + $0xf68] sm:$0xff]
    %v2857 = vld [vmem:[#allocation17 + $0xf70] sm:$0xff]
    %v2858 = vld [vmem:[#allocation17 + $0xf78] sm:$0xff]
    %v2859 = vld [vmem:[#allocation17 + $0xf80] sm:$0xff]
    %v2860 = vld [vmem:[#allocation17 + $0xf88] sm:$0xff]
    %v2861 = vld [vmem:[#allocation17 + $0xf90] sm:$0xff]
    %v2862 = vld [vmem:[#allocation17 + $0xf98] sm:$0xff]
    %v2863 = vld [vmem:[#allocation17 + $0xfa0] sm:$0xff]
    %v2864 = vld [vmem:[#allocation17 + $0xfa8] sm:$0xff]
    %v2865 = vld [vmem:[#allocation17 + $0xfb0] sm:$0xff]
    %v2866 = vld [vmem:[#allocation17 + $0xfb8] sm:$0xff]
    %v2867 = vld [vmem:[#allocation17 + $0xfc0] sm:$0xff]
    %v2868 = vld [vmem:[#allocation17 + $0xfc8] sm:$0xff]
    %v2869 = vld [vmem:[#allocation17 + $0xfd0] sm:$0xff]
    %v2870 = vld [vmem:[#allocation17 + $0xfd8] sm:$0xff]
    %v2871 = vld [vmem:[#allocation17 + $0xfe0] sm:$0xff]
    %v2872 = vld [vmem:[#allocation17 + $0xfe8] sm:$0xff]
    %v2873 = vld [vmem:[#allocation17 + $0xff0] sm:$0xff]
    %v2874 = vld [vmem:[#allocation17 + $0xff8] sm:$0xff]
    %v2875 = vld [vmem:[#allocation17 + $0x1000] sm:$0xff]
    %v2876 = vld [vmem:[#allocation17 + $0x1008] sm:$0xff]
    %v2877 = vld [vmem:[#allocation17 + $0x1010] sm:$0xff]
    %v2878 = vld [vmem:[#allocation17 + $0x1018] sm:$0xff]
    %v2879 = vld [vmem:[#allocation17 + $0x1020] sm:$0xff]
    %v2880 = vld [vmem:[#allocation17 + $0x1028] sm:$0xff]
    %v2881 = vld [vmem:[#allocation17 + $0x1030] sm:$0xff]
    %v2882 = vld [vmem:[#allocation17 + $0x1038] sm:$0xff]
    %v2883 = vld [vmem:[#allocation17 + $0x1040] sm:$0xff]
    %v2884 = vld [vmem:[#allocation17 + $0x1048] sm:$0xff]
    %v2885 = vld [vmem:[#allocation17 + $0x1050] sm:$0xff]
    %v2886 = vld [vmem:[#allocation17 + $0x1058] sm:$0xff]
    %v2887 = vld [vmem:[#allocation17 + $0x1060] sm:$0xff]
    %v2888 = vld [vmem:[#allocation17 + $0x1068] sm:$0xff]
    %v2889 = vld [vmem:[#allocation17 + $0x1070] sm:$0xff]
    %v2890 = vld [vmem:[#allocation17 + $0x1078] sm:$0xff]
    %v2891 = vld [vmem:[#allocation17 + $0x1080] sm:$0xff]
    %v2892 = vld [vmem:[#allocation17 + $0x1088] sm:$0xff]
    %v2893 = vld [vmem:[#allocation17 + $0x1090] sm:$0xff]
    %v2894 = vld [vmem:[#allocation17 + $0x1098] sm:$0xff]
    %v2895 = vld [vmem:[#allocation17 + $0x10a0] sm:$0xff]
    %v2896 = vld [vmem:[#allocation17 + $0x10a8] sm:$0xff]
    %v2897 = vld [vmem:[#allocation17 + $0x10b0] sm:$0xff]
    %v2898 = vld [vmem:[#allocation17 + $0x10b8] sm:$0xff]
    %v2899 = vld [vmem:[#allocation17 + $0x10c0] sm:$0xff]
    %v2900 = vld [vmem:[#allocation17 + $0x10c8] sm:$0xff]
    %v2901 = vld [vmem:[#allocation17 + $0x10d0] sm:$0xff]
    %v2902 = vld [vmem:[#allocation17 + $0x10d8] sm:$0xff]
    %v2903 = vld [vmem:[#allocation17 + $0x10e0] sm:$0xff]
    %v2904 = vld [vmem:[#allocation17 + $0x10e8] sm:$0xff]
    %v2905 = vld [vmem:[#allocation17 + $0x10f0] sm:$0xff]
    %v2906 = vld [vmem:[#allocation17 + $0x10f8] sm:$0xff]
    %v2907 = vld [vmem:[#allocation17 + $0x1100] sm:$0xff]
    %v2908 = vld [vmem:[#allocation17 + $0x1108] sm:$0xff]
    %v2909 = vld [vmem:[#allocation17 + $0x1110] sm:$0xff]
    %v2910 = vld [vmem:[#allocation17 + $0x1118] sm:$0xff]
    %v2911 = vld [vmem:[#allocation17 + $0x1120] sm:$0xff]
    %v2912 = vld [vmem:[#allocation17 + $0x1128] sm:$0xff]
    %v2913 = vld [vmem:[#allocation17 + $0x1130] sm:$0xff]
    %v2914 = vld [vmem:[#allocation17 + $0x1138] sm:$0xff]
    %v2915 = vld [vmem:[#allocation17 + $0x1140] sm:$0xff]
    %v2916 = vld [vmem:[#allocation17 + $0x1148] sm:$0xff]
    %v2917 = vld [vmem:[#allocation17 + $0x1150] sm:$0xff]
    %v2918 = vld [vmem:[#allocation17 + $0x1158] sm:$0xff]
    %v2919 = vld [vmem:[#allocation17 + $0x1160] sm:$0xff]
    %v2920 = vld [vmem:[#allocation17 + $0x1168] sm:$0xff]
    %v2921 = vld [vmem:[#allocation17 + $0x1170] sm:$0xff]
    %v2922 = vld [vmem:[#allocation17 + $0x1178] sm:$0xff]
    %v2923 = vld [vmem:[#allocation17 + $0x1180] sm:$0xff]
    %v2924 = vld [vmem:[#allocation17 + $0x1188] sm:$0xff]
    %v2925 = vld [vmem:[#allocation17 + $0x1190] sm:$0xff]
    %v2926 = vld [vmem:[#allocation17 + $0x1198] sm:$0xff]
    %v2927 = vld [vmem:[#allocation17 + $0x11a0] sm:$0xff]
    %v2928 = vld [vmem:[#allocation17 + $0x11a8] sm:$0xff]
    %v2929 = vld [vmem:[#allocation17 + $0x11b0] sm:$0xff]
    %v2930 = vld [vmem:[#allocation17 + $0x11b8] sm:$0xff]
    %v2931 = vld [vmem:[#allocation17 + $0x11c0] sm:$0xff]
    %v2932 = vld [vmem:[#allocation17 + $0x11c8] sm:$0xff]
    %v2933 = vld [vmem:[#allocation17 + $0x11d0] sm:$0xff]
    %v2934 = vld [vmem:[#allocation17 + $0x11d8] sm:$0xff]
    %v2935 = vld [vmem:[#allocation17 + $0x11e0] sm:$0xff]
    %v2936 = vld [vmem:[#allocation17 + $0x11e8] sm:$0xff]
    %v2937 = vld [vmem:[#allocation17 + $0x11f0] sm:$0xff]
    %v2938 = vld [vmem:[#allocation17 + $0x11f8] sm:$0xff]
    %v2939 = vpack.c.bf16 %v2272, %v2272
    %v2940 = vpack.c.bf16 %v2285, %v2285
    %v2941 = vpack.c.bf16 %v2298, %v2298
    %v2942 = vpack.c.bf16 %v2311, %v2311
    %v2943 = vpack.c.bf16 %v2324, %v2324
    %v2944 = vpack.c.bf16 %v2337, %v2337
    %v2945 = vld [vmem:[#allocation19] sm:$0xff]
    %v2946 = vld [vmem:[#allocation19 + $0x8] sm:$0xff]
    %v2947 = vld [vmem:[#allocation19 + $0x10] sm:$0xff]
    %v2948 = vld [vmem:[#allocation19 + $0x18] sm:$0xff]
    %v2949 = vld [vmem:[#allocation19 + $0x20] sm:$0xff]
    %v2950 = vld [vmem:[#allocation19 + $0x28] sm:$0xff]
    %v2951 = vld [vmem:[#allocation19 + $0x30] sm:$0xff]
    %v2952 = vld [vmem:[#allocation19 + $0x38] sm:$0xff]
    %v2953 = vld [vmem:[#allocation19 + $0x40] sm:$0xff]
    %v2954 = vld [vmem:[#allocation19 + $0x48] sm:$0xff]
    %v2955 = vld [vmem:[#allocation19 + $0x50] sm:$0xff]
    %v2956 = vld [vmem:[#allocation19 + $0x58] sm:$0xff]
    %v2957 = vld [vmem:[#allocation19 + $0x60] sm:$0xff]
    %v2958 = vld [vmem:[#allocation19 + $0x68] sm:$0xff]
    %v2959 = vld [vmem:[#allocation19 + $0x70] sm:$0xff]
    %v2960 = vld [vmem:[#allocation19 + $0x78] sm:$0xff]
    %v2961 = vld [vmem:[#allocation19 + $0x80] sm:$0xff]
    %v2962 = vld [vmem:[#allocation19 + $0x88] sm:$0xff]
    %v2963 = vld [vmem:[#allocation19 + $0x90] sm:$0xff]
    %v2964 = vld [vmem:[#allocation19 + $0x98] sm:$0xff]
    %v2965 = vld [vmem:[#allocation19 + $0xa0] sm:$0xff]
    %v2966 = vld [vmem:[#allocation19 + $0xa8] sm:$0xff]
    %v2967 = vld [vmem:[#allocation19 + $0xb0] sm:$0xff]
    %v2968 = vld [vmem:[#allocation19 + $0xb8] sm:$0xff]
    %v2969 = vld [vmem:[#allocation19 + $0xc0] sm:$0xff]
    %v2970 = vld [vmem:[#allocation19 + $0xc8] sm:$0xff]
    %v2971 = vld [vmem:[#allocation19 + $0xd0] sm:$0xff]
    %v2972 = vld [vmem:[#allocation19 + $0xd8] sm:$0xff]
    %v2973 = vld [vmem:[#allocation19 + $0xe0] sm:$0xff]
    %v2974 = vld [vmem:[#allocation19 + $0xe8] sm:$0xff]
    %v2975 = vld [vmem:[#allocation19 + $0xf0] sm:$0xff]
    %v2976 = vld [vmem:[#allocation19 + $0xf8] sm:$0xff]
    %v2977 = vld [vmem:[#allocation19 + $0x100] sm:$0xff]
    %v2978 = vld [vmem:[#allocation19 + $0x108] sm:$0xff]
    %v2979 = vld [vmem:[#allocation19 + $0x110] sm:$0xff]
    %v2980 = vld [vmem:[#allocation19 + $0x118] sm:$0xff]
    %v2981 = vld [vmem:[#allocation19 + $0x120] sm:$0xff]
    %v2982 = vld [vmem:[#allocation19 + $0x128] sm:$0xff]
    %v2983 = vld [vmem:[#allocation19 + $0x130] sm:$0xff]
    %v2984 = vld [vmem:[#allocation19 + $0x138] sm:$0xff]
    %v2985 = vld [vmem:[#allocation19 + $0x140] sm:$0xff]
    %v2986 = vld [vmem:[#allocation19 + $0x148] sm:$0xff]
    %v2987 = vld [vmem:[#allocation19 + $0x150] sm:$0xff]
    %v2988 = vld [vmem:[#allocation19 + $0x158] sm:$0xff]
    %v2989 = vld [vmem:[#allocation19 + $0x160] sm:$0xff]
    %v2990 = vld [vmem:[#allocation19 + $0x168] sm:$0xff]
    %v2991 = vld [vmem:[#allocation19 + $0x170] sm:$0xff]
    %v2992 = vld [vmem:[#allocation19 + $0x178] sm:$0xff]
    %v2993 = vld [vmem:[#allocation19 + $0x180] sm:$0xff]
    %v2994 = vld [vmem:[#allocation19 + $0x188] sm:$0xff]
    %v2995 = vld [vmem:[#allocation19 + $0x190] sm:$0xff]
    %v2996 = vld [vmem:[#allocation19 + $0x198] sm:$0xff]
    %v2997 = vld [vmem:[#allocation19 + $0x1a0] sm:$0xff]
    %v2998 = vld [vmem:[#allocation19 + $0x1a8] sm:$0xff]
    %v2999 = vld [vmem:[#allocation19 + $0x1b0] sm:$0xff]
    %v3000 = vld [vmem:[#allocation19 + $0x1b8] sm:$0xff]
    %v3001 = vld [vmem:[#allocation19 + $0x1c0] sm:$0xff]
    %v3002 = vld [vmem:[#allocation19 + $0x1c8] sm:$0xff]
    %v3003 = vld [vmem:[#allocation19 + $0x1d0] sm:$0xff]
    %v3004 = vld [vmem:[#allocation19 + $0x1d8] sm:$0xff]
    %v3005 = vld [vmem:[#allocation19 + $0x1e0] sm:$0xff]
    %v3006 = vld [vmem:[#allocation19 + $0x1e8] sm:$0xff]
    %v3007 = vld [vmem:[#allocation19 + $0x1f0] sm:$0xff]
    %v3008 = vld [vmem:[#allocation19 + $0x1f8] sm:$0xff]
    %v3009 = vld [vmem:[#allocation19 + $0x200] sm:$0xff]
    %v3010 = vld [vmem:[#allocation19 + $0x208] sm:$0xff]
    %v3011 = vld [vmem:[#allocation19 + $0x210] sm:$0xff]
    %v3012 = vld [vmem:[#allocation19 + $0x218] sm:$0xff]
    %v3013 = vld [vmem:[#allocation19 + $0x220] sm:$0xff]
    %v3014 = vld [vmem:[#allocation19 + $0x228] sm:$0xff]
    %v3015 = vld [vmem:[#allocation19 + $0x230] sm:$0xff]
    %v3016 = vld [vmem:[#allocation19 + $0x238] sm:$0xff]
    %v3017 = vld [vmem:[#allocation19 + $0x240] sm:$0xff]
    %v3018 = vld [vmem:[#allocation19 + $0x248] sm:$0xff]
    %v3019 = vld [vmem:[#allocation19 + $0x250] sm:$0xff]
    %v3020 = vld [vmem:[#allocation19 + $0x258] sm:$0xff]
    %v3021 = vld [vmem:[#allocation19 + $0x260] sm:$0xff]
    %v3022 = vld [vmem:[#allocation19 + $0x268] sm:$0xff]
    %v3023 = vld [vmem:[#allocation19 + $0x270] sm:$0xff]
    %v3024 = vld [vmem:[#allocation19 + $0x278] sm:$0xff]
    %v3025 = vld [vmem:[#allocation19 + $0x280] sm:$0xff]
    %v3026 = vld [vmem:[#allocation19 + $0x288] sm:$0xff]
    %v3027 = vld [vmem:[#allocation19 + $0x290] sm:$0xff]
    %v3028 = vld [vmem:[#allocation19 + $0x298] sm:$0xff]
    %v3029 = vld [vmem:[#allocation19 + $0x2a0] sm:$0xff]
    %v3030 = vld [vmem:[#allocation19 + $0x2a8] sm:$0xff]
    %v3031 = vld [vmem:[#allocation19 + $0x2b0] sm:$0xff]
    %v3032 = vld [vmem:[#allocation19 + $0x2b8] sm:$0xff]
    %v3033 = vld [vmem:[#allocation19 + $0x2c0] sm:$0xff]
    %v3034 = vld [vmem:[#allocation19 + $0x2c8] sm:$0xff]
    %v3035 = vld [vmem:[#allocation19 + $0x2d0] sm:$0xff]
    %v3036 = vld [vmem:[#allocation19 + $0x2d8] sm:$0xff]
    %v3037 = vld [vmem:[#allocation19 + $0x2e0] sm:$0xff]
    %v3038 = vld [vmem:[#allocation19 + $0x2e8] sm:$0xff]
    %v3039 = vld [vmem:[#allocation19 + $0x2f0] sm:$0xff]
    %v3040 = vld [vmem:[#allocation19 + $0x2f8] sm:$0xff]
    %v3041 = vld [vmem:[#allocation19 + $0x300] sm:$0xff]
    %v3042 = vld [vmem:[#allocation19 + $0x308] sm:$0xff]
    %v3043 = vld [vmem:[#allocation19 + $0x310] sm:$0xff]
    %v3044 = vld [vmem:[#allocation19 + $0x318] sm:$0xff]
    %v3045 = vld [vmem:[#allocation19 + $0x320] sm:$0xff]
    %v3046 = vld [vmem:[#allocation19 + $0x328] sm:$0xff]
    %v3047 = vld [vmem:[#allocation19 + $0x330] sm:$0xff]
    %v3048 = vld [vmem:[#allocation19 + $0x338] sm:$0xff]
    %v3049 = vld [vmem:[#allocation19 + $0x340] sm:$0xff]
    %v3050 = vld [vmem:[#allocation19 + $0x348] sm:$0xff]
    %v3051 = vld [vmem:[#allocation19 + $0x350] sm:$0xff]
    %v3052 = vld [vmem:[#allocation19 + $0x358] sm:$0xff]
    %v3053 = vld [vmem:[#allocation19 + $0x360] sm:$0xff]
    %v3054 = vld [vmem:[#allocation19 + $0x368] sm:$0xff]
    %v3055 = vld [vmem:[#allocation19 + $0x370] sm:$0xff]
    %v3056 = vld [vmem:[#allocation19 + $0x378] sm:$0xff]
    %v3057 = vld [vmem:[#allocation19 + $0x380] sm:$0xff]
    %v3058 = vld [vmem:[#allocation19 + $0x388] sm:$0xff]
    %v3059 = vld [vmem:[#allocation19 + $0x390] sm:$0xff]
    %v3060 = vld [vmem:[#allocation19 + $0x398] sm:$0xff]
    %v3061 = vld [vmem:[#allocation19 + $0x3a0] sm:$0xff]
    %v3062 = vld [vmem:[#allocation19 + $0x3a8] sm:$0xff]
    %v3063 = vld [vmem:[#allocation19 + $0x3b0] sm:$0xff]
    %v3064 = vld [vmem:[#allocation19 + $0x3b8] sm:$0xff]
    %v3065 = vld [vmem:[#allocation19 + $0x3c0] sm:$0xff]
    %v3066 = vld [vmem:[#allocation19 + $0x3c8] sm:$0xff]
    %v3067 = vld [vmem:[#allocation19 + $0x3d0] sm:$0xff]
    %v3068 = vld [vmem:[#allocation19 + $0x3d8] sm:$0xff]
    %v3069 = vld [vmem:[#allocation19 + $0x3e0] sm:$0xff]
    %v3070 = vld [vmem:[#allocation19 + $0x3e8] sm:$0xff]
    %v3071 = vld [vmem:[#allocation19 + $0x3f0] sm:$0xff]
    %v3072 = vld [vmem:[#allocation19 + $0x3f8] sm:$0xff]
    %v3073 = vld [vmem:[#allocation19 + $0x400] sm:$0xff]
    %v3074 = vld [vmem:[#allocation19 + $0x408] sm:$0xff]
    %v3075 = vld [vmem:[#allocation19 + $0x410] sm:$0xff]
    %v3076 = vld [vmem:[#allocation19 + $0x418] sm:$0xff]
    %v3077 = vld [vmem:[#allocation19 + $0x420] sm:$0xff]
    %v3078 = vld [vmem:[#allocation19 + $0x428] sm:$0xff]
    %v3079 = vld [vmem:[#allocation19 + $0x430] sm:$0xff]
    %v3080 = vld [vmem:[#allocation19 + $0x438] sm:$0xff]
    %v3081 = vld [vmem:[#allocation19 + $0x440] sm:$0xff]
    %v3082 = vld [vmem:[#allocation19 + $0x448] sm:$0xff]
    %v3083 = vld [vmem:[#allocation19 + $0x450] sm:$0xff]
    %v3084 = vld [vmem:[#allocation19 + $0x458] sm:$0xff]
    %v3085 = vld [vmem:[#allocation19 + $0x460] sm:$0xff]
    %v3086 = vld [vmem:[#allocation19 + $0x468] sm:$0xff]
    %v3087 = vld [vmem:[#allocation19 + $0x470] sm:$0xff]
    %v3088 = vld [vmem:[#allocation19 + $0x478] sm:$0xff]
    %v3089 = vld [vmem:[#allocation19 + $0x480] sm:$0xff]
    %v3090 = vld [vmem:[#allocation19 + $0x488] sm:$0xff]
    %v3091 = vld [vmem:[#allocation19 + $0x490] sm:$0xff]
    %v3092 = vld [vmem:[#allocation19 + $0x498] sm:$0xff]
    %v3093 = vld [vmem:[#allocation19 + $0x4a0] sm:$0xff]
    %v3094 = vld [vmem:[#allocation19 + $0x4a8] sm:$0xff]
    %v3095 = vld [vmem:[#allocation19 + $0x4b0] sm:$0xff]
    %v3096 = vld [vmem:[#allocation19 + $0x4b8] sm:$0xff]
    %v3097 = vld [vmem:[#allocation19 + $0x4c0] sm:$0xff]
    %v3098 = vld [vmem:[#allocation19 + $0x4c8] sm:$0xff]
    %v3099 = vld [vmem:[#allocation19 + $0x4d0] sm:$0xff]
    %v3100 = vld [vmem:[#allocation19 + $0x4d8] sm:$0xff]
    %v3101 = vld [vmem:[#allocation19 + $0x4e0] sm:$0xff]
    %v3102 = vld [vmem:[#allocation19 + $0x4e8] sm:$0xff]
    %v3103 = vld [vmem:[#allocation19 + $0x4f0] sm:$0xff]
    %v3104 = vld [vmem:[#allocation19 + $0x4f8] sm:$0xff]
    %v3105 = vld [vmem:[#allocation19 + $0x500] sm:$0xff]
    %v3106 = vld [vmem:[#allocation19 + $0x508] sm:$0xff]
    %v3107 = vld [vmem:[#allocation19 + $0x510] sm:$0xff]
    %v3108 = vld [vmem:[#allocation19 + $0x518] sm:$0xff]
    %v3109 = vld [vmem:[#allocation19 + $0x520] sm:$0xff]
    %v3110 = vld [vmem:[#allocation19 + $0x528] sm:$0xff]
    %v3111 = vld [vmem:[#allocation19 + $0x530] sm:$0xff]
    %v3112 = vld [vmem:[#allocation19 + $0x538] sm:$0xff]
    %v3113 = vld [vmem:[#allocation19 + $0x540] sm:$0xff]
    %v3114 = vld [vmem:[#allocation19 + $0x548] sm:$0xff]
    %v3115 = vld [vmem:[#allocation19 + $0x550] sm:$0xff]
    %v3116 = vld [vmem:[#allocation19 + $0x558] sm:$0xff]
    %v3117 = vld [vmem:[#allocation19 + $0x560] sm:$0xff]
    %v3118 = vld [vmem:[#allocation19 + $0x568] sm:$0xff]
    %v3119 = vld [vmem:[#allocation19 + $0x570] sm:$0xff]
    %v3120 = vld [vmem:[#allocation19 + $0x578] sm:$0xff]
    %v3121 = vld [vmem:[#allocation19 + $0x580] sm:$0xff]
    %v3122 = vld [vmem:[#allocation19 + $0x588] sm:$0xff]
    %v3123 = vld [vmem:[#allocation19 + $0x590] sm:$0xff]
    %v3124 = vld [vmem:[#allocation19 + $0x598] sm:$0xff]
    %v3125 = vld [vmem:[#allocation19 + $0x5a0] sm:$0xff]
    %v3126 = vld [vmem:[#allocation19 + $0x5a8] sm:$0xff]
    %v3127 = vld [vmem:[#allocation19 + $0x5b0] sm:$0xff]
    %v3128 = vld [vmem:[#allocation19 + $0x5b8] sm:$0xff]
    %v3129 = vld [vmem:[#allocation19 + $0x5c0] sm:$0xff]
    %v3130 = vld [vmem:[#allocation19 + $0x5c8] sm:$0xff]
    %v3131 = vld [vmem:[#allocation19 + $0x5d0] sm:$0xff]
    %v3132 = vld [vmem:[#allocation19 + $0x5d8] sm:$0xff]
    %v3133 = vld [vmem:[#allocation19 + $0x5e0] sm:$0xff]
    %v3134 = vld [vmem:[#allocation19 + $0x5e8] sm:$0xff]
    %v3135 = vld [vmem:[#allocation19 + $0x5f0] sm:$0xff]
    %v3136 = vld [vmem:[#allocation19 + $0x5f8] sm:$0xff]
    %v3137 = vld [vmem:[#allocation19 + $0x600] sm:$0xff]
    %v3138 = vld [vmem:[#allocation19 + $0x608] sm:$0xff]
    %v3139 = vld [vmem:[#allocation19 + $0x610] sm:$0xff]
    %v3140 = vld [vmem:[#allocation19 + $0x618] sm:$0xff]
    %v3141 = vld [vmem:[#allocation19 + $0x620] sm:$0xff]
    %v3142 = vld [vmem:[#allocation19 + $0x628] sm:$0xff]
    %v3143 = vld [vmem:[#allocation19 + $0x630] sm:$0xff]
    %v3144 = vld [vmem:[#allocation19 + $0x638] sm:$0xff]
    %v3145 = vld [vmem:[#allocation19 + $0x640] sm:$0xff]
    %v3146 = vld [vmem:[#allocation19 + $0x648] sm:$0xff]
    %v3147 = vld [vmem:[#allocation19 + $0x650] sm:$0xff]
    %v3148 = vld [vmem:[#allocation19 + $0x658] sm:$0xff]
    %v3149 = vld [vmem:[#allocation19 + $0x660] sm:$0xff]
    %v3150 = vld [vmem:[#allocation19 + $0x668] sm:$0xff]
    %v3151 = vld [vmem:[#allocation19 + $0x670] sm:$0xff]
    %v3152 = vld [vmem:[#allocation19 + $0x678] sm:$0xff]
    %v3153 = vld [vmem:[#allocation19 + $0x680] sm:$0xff]
    %v3154 = vld [vmem:[#allocation19 + $0x688] sm:$0xff]
    %v3155 = vld [vmem:[#allocation19 + $0x690] sm:$0xff]
    %v3156 = vld [vmem:[#allocation19 + $0x698] sm:$0xff]
    %v3157 = vld [vmem:[#allocation19 + $0x6a0] sm:$0xff]
    %v3158 = vld [vmem:[#allocation19 + $0x6a8] sm:$0xff]
    %v3159 = vld [vmem:[#allocation19 + $0x6b0] sm:$0xff]
    %v3160 = vld [vmem:[#allocation19 + $0x6b8] sm:$0xff]
    %v3161 = vld [vmem:[#allocation19 + $0x6c0] sm:$0xff]
    %v3162 = vld [vmem:[#allocation19 + $0x6c8] sm:$0xff]
    %v3163 = vld [vmem:[#allocation19 + $0x6d0] sm:$0xff]
    %v3164 = vld [vmem:[#allocation19 + $0x6d8] sm:$0xff]
    %v3165 = vld [vmem:[#allocation19 + $0x6e0] sm:$0xff]
    %v3166 = vld [vmem:[#allocation19 + $0x6e8] sm:$0xff]
    %v3167 = vld [vmem:[#allocation19 + $0x6f0] sm:$0xff]
    %v3168 = vld [vmem:[#allocation19 + $0x6f8] sm:$0xff]
    %v3169 = vld [vmem:[#allocation19 + $0x700] sm:$0xff]
    %v3170 = vld [vmem:[#allocation19 + $0x708] sm:$0xff]
    %v3171 = vld [vmem:[#allocation19 + $0x710] sm:$0xff]
    %v3172 = vld [vmem:[#allocation19 + $0x718] sm:$0xff]
    %v3173 = vld [vmem:[#allocation19 + $0x720] sm:$0xff]
    %v3174 = vld [vmem:[#allocation19 + $0x728] sm:$0xff]
    %v3175 = vld [vmem:[#allocation19 + $0x730] sm:$0xff]
    %v3176 = vld [vmem:[#allocation19 + $0x738] sm:$0xff]
    %v3177 = vld [vmem:[#allocation19 + $0x740] sm:$0xff]
    %v3178 = vld [vmem:[#allocation19 + $0x748] sm:$0xff]
    %v3179 = vld [vmem:[#allocation19 + $0x750] sm:$0xff]
    %v3180 = vld [vmem:[#allocation19 + $0x758] sm:$0xff]
    %v3181 = vld [vmem:[#allocation19 + $0x760] sm:$0xff]
    %v3182 = vld [vmem:[#allocation19 + $0x768] sm:$0xff]
    %v3183 = vld [vmem:[#allocation19 + $0x770] sm:$0xff]
    %v3184 = vld [vmem:[#allocation19 + $0x778] sm:$0xff]
    %v3185 = vld [vmem:[#allocation19 + $0x780] sm:$0xff]
    %v3186 = vld [vmem:[#allocation19 + $0x788] sm:$0xff]
    %v3187 = vld [vmem:[#allocation19 + $0x790] sm:$0xff]
    %v3188 = vld [vmem:[#allocation19 + $0x798] sm:$0xff]
    %v3189 = vld [vmem:[#allocation19 + $0x7a0] sm:$0xff]
    %v3190 = vld [vmem:[#allocation19 + $0x7a8] sm:$0xff]
    %v3191 = vld [vmem:[#allocation19 + $0x7b0] sm:$0xff]
    %v3192 = vld [vmem:[#allocation19 + $0x7b8] sm:$0xff]
    %v3193 = vld [vmem:[#allocation19 + $0x7c0] sm:$0xff]
    %v3194 = vld [vmem:[#allocation19 + $0x7c8] sm:$0xff]
    %v3195 = vld [vmem:[#allocation19 + $0x7d0] sm:$0xff]
    %v3196 = vld [vmem:[#allocation19 + $0x7d8] sm:$0xff]
    %v3197 = vld [vmem:[#allocation19 + $0x7e0] sm:$0xff]
    %v3198 = vld [vmem:[#allocation19 + $0x7e8] sm:$0xff]
    %v3199 = vld [vmem:[#allocation19 + $0x7f0] sm:$0xff]
    %v3200 = vld [vmem:[#allocation19 + $0x7f8] sm:$0xff]
    %v3201 = vld [vmem:[#allocation19 + $0x800] sm:$0xff]
    %v3202 = vld [vmem:[#allocation19 + $0x808] sm:$0xff]
    %v3203 = vld [vmem:[#allocation19 + $0x810] sm:$0xff]
    %v3204 = vld [vmem:[#allocation19 + $0x818] sm:$0xff]
    %v3205 = vld [vmem:[#allocation19 + $0x820] sm:$0xff]
    %v3206 = vld [vmem:[#allocation19 + $0x828] sm:$0xff]
    %v3207 = vld [vmem:[#allocation19 + $0x830] sm:$0xff]
    %v3208 = vld [vmem:[#allocation19 + $0x838] sm:$0xff]
    %v3209 = vld [vmem:[#allocation19 + $0x840] sm:$0xff]
    %v3210 = vld [vmem:[#allocation19 + $0x848] sm:$0xff]
    %v3211 = vld [vmem:[#allocation19 + $0x850] sm:$0xff]
    %v3212 = vld [vmem:[#allocation19 + $0x858] sm:$0xff]
    %v3213 = vld [vmem:[#allocation19 + $0x860] sm:$0xff]
    %v3214 = vld [vmem:[#allocation19 + $0x868] sm:$0xff]
    %v3215 = vld [vmem:[#allocation19 + $0x870] sm:$0xff]
    %v3216 = vld [vmem:[#allocation19 + $0x878] sm:$0xff]
    %v3217 = vld [vmem:[#allocation19 + $0x880] sm:$0xff]
    %v3218 = vld [vmem:[#allocation19 + $0x888] sm:$0xff]
    %v3219 = vld [vmem:[#allocation19 + $0x890] sm:$0xff]
    %v3220 = vld [vmem:[#allocation19 + $0x898] sm:$0xff]
    %v3221 = vld [vmem:[#allocation19 + $0x8a0] sm:$0xff]
    %v3222 = vld [vmem:[#allocation19 + $0x8a8] sm:$0xff]
    %v3223 = vld [vmem:[#allocation19 + $0x8b0] sm:$0xff]
    %v3224 = vld [vmem:[#allocation19 + $0x8b8] sm:$0xff]
    %v3225 = vld [vmem:[#allocation19 + $0x8c0] sm:$0xff]
    %v3226 = vld [vmem:[#allocation19 + $0x8c8] sm:$0xff]
    %v3227 = vld [vmem:[#allocation19 + $0x8d0] sm:$0xff]
    %v3228 = vld [vmem:[#allocation19 + $0x8d8] sm:$0xff]
    %v3229 = vld [vmem:[#allocation19 + $0x8e0] sm:$0xff]
    %v3230 = vld [vmem:[#allocation19 + $0x8e8] sm:$0xff]
    %v3231 = vld [vmem:[#allocation19 + $0x8f0] sm:$0xff]
    %v3232 = vld [vmem:[#allocation19 + $0x8f8] sm:$0xff]
    %v3233 = vld [vmem:[#allocation19 + $0x900] sm:$0xff]
    %v3234 = vld [vmem:[#allocation19 + $0x908] sm:$0xff]
    %v3235 = vld [vmem:[#allocation19 + $0x910] sm:$0xff]
    %v3236 = vld [vmem:[#allocation19 + $0x918] sm:$0xff]
    %v3237 = vld [vmem:[#allocation19 + $0x920] sm:$0xff]
    %v3238 = vld [vmem:[#allocation19 + $0x928] sm:$0xff]
    %v3239 = vld [vmem:[#allocation19 + $0x930] sm:$0xff]
    %v3240 = vld [vmem:[#allocation19 + $0x938] sm:$0xff]
    %v3241 = vld [vmem:[#allocation19 + $0x940] sm:$0xff]
    %v3242 = vld [vmem:[#allocation19 + $0x948] sm:$0xff]
    %v3243 = vld [vmem:[#allocation19 + $0x950] sm:$0xff]
    %v3244 = vld [vmem:[#allocation19 + $0x958] sm:$0xff]
    %v3245 = vld [vmem:[#allocation19 + $0x960] sm:$0xff]
    %v3246 = vld [vmem:[#allocation19 + $0x968] sm:$0xff]
    %v3247 = vld [vmem:[#allocation19 + $0x970] sm:$0xff]
    %v3248 = vld [vmem:[#allocation19 + $0x978] sm:$0xff]
    %v3249 = vld [vmem:[#allocation19 + $0x980] sm:$0xff]
    %v3250 = vld [vmem:[#allocation19 + $0x988] sm:$0xff]
    %v3251 = vld [vmem:[#allocation19 + $0x990] sm:$0xff]
    %v3252 = vld [vmem:[#allocation19 + $0x998] sm:$0xff]
    %v3253 = vld [vmem:[#allocation19 + $0x9a0] sm:$0xff]
    %v3254 = vld [vmem:[#allocation19 + $0x9a8] sm:$0xff]
    %v3255 = vld [vmem:[#allocation19 + $0x9b0] sm:$0xff]
    %v3256 = vld [vmem:[#allocation19 + $0x9b8] sm:$0xff]
    %v3257 = vld [vmem:[#allocation19 + $0x9c0] sm:$0xff]
    %v3258 = vld [vmem:[#allocation19 + $0x9c8] sm:$0xff]
    %v3259 = vld [vmem:[#allocation19 + $0x9d0] sm:$0xff]
    %v3260 = vld [vmem:[#allocation19 + $0x9d8] sm:$0xff]
    %v3261 = vld [vmem:[#allocation19 + $0x9e0] sm:$0xff]
    %v3262 = vld [vmem:[#allocation19 + $0x9e8] sm:$0xff]
    %v3263 = vld [vmem:[#allocation19 + $0x9f0] sm:$0xff]
    %v3264 = vld [vmem:[#allocation19 + $0x9f8] sm:$0xff]
    %v3265 = vld [vmem:[#allocation19 + $0xa00] sm:$0xff]
    %v3266 = vld [vmem:[#allocation19 + $0xa08] sm:$0xff]
    %v3267 = vld [vmem:[#allocation19 + $0xa10] sm:$0xff]
    %v3268 = vld [vmem:[#allocation19 + $0xa18] sm:$0xff]
    %v3269 = vld [vmem:[#allocation19 + $0xa20] sm:$0xff]
    %v3270 = vld [vmem:[#allocation19 + $0xa28] sm:$0xff]
    %v3271 = vld [vmem:[#allocation19 + $0xa30] sm:$0xff]
    %v3272 = vld [vmem:[#allocation19 + $0xa38] sm:$0xff]
    %v3273 = vld [vmem:[#allocation19 + $0xa40] sm:$0xff]
    %v3274 = vld [vmem:[#allocation19 + $0xa48] sm:$0xff]
    %v3275 = vld [vmem:[#allocation19 + $0xa50] sm:$0xff]
    %v3276 = vld [vmem:[#allocation19 + $0xa58] sm:$0xff]
    %v3277 = vld [vmem:[#allocation19 + $0xa60] sm:$0xff]
    %v3278 = vld [vmem:[#allocation19 + $0xa68] sm:$0xff]
    %v3279 = vld [vmem:[#allocation19 + $0xa70] sm:$0xff]
    %v3280 = vld [vmem:[#allocation19 + $0xa78] sm:$0xff]
    %v3281 = vld [vmem:[#allocation19 + $0xa80] sm:$0xff]
    %v3282 = vld [vmem:[#allocation19 + $0xa88] sm:$0xff]
    %v3283 = vld [vmem:[#allocation19 + $0xa90] sm:$0xff]
    %v3284 = vld [vmem:[#allocation19 + $0xa98] sm:$0xff]
    %v3285 = vld [vmem:[#allocation19 + $0xaa0] sm:$0xff]
    %v3286 = vld [vmem:[#allocation19 + $0xaa8] sm:$0xff]
    %v3287 = vld [vmem:[#allocation19 + $0xab0] sm:$0xff]
    %v3288 = vld [vmem:[#allocation19 + $0xab8] sm:$0xff]
    %v3289 = vld [vmem:[#allocation19 + $0xac0] sm:$0xff]
    %v3290 = vld [vmem:[#allocation19 + $0xac8] sm:$0xff]
    %v3291 = vld [vmem:[#allocation19 + $0xad0] sm:$0xff]
    %v3292 = vld [vmem:[#allocation19 + $0xad8] sm:$0xff]
    %v3293 = vld [vmem:[#allocation19 + $0xae0] sm:$0xff]
    %v3294 = vld [vmem:[#allocation19 + $0xae8] sm:$0xff]
    %v3295 = vld [vmem:[#allocation19 + $0xaf0] sm:$0xff]
    %v3296 = vld [vmem:[#allocation19 + $0xaf8] sm:$0xff]
    %v3297 = vld [vmem:[#allocation19 + $0xb00] sm:$0xff]
    %v3298 = vld [vmem:[#allocation19 + $0xb08] sm:$0xff]
    %v3299 = vld [vmem:[#allocation19 + $0xb10] sm:$0xff]
    %v3300 = vld [vmem:[#allocation19 + $0xb18] sm:$0xff]
    %v3301 = vld [vmem:[#allocation19 + $0xb20] sm:$0xff]
    %v3302 = vld [vmem:[#allocation19 + $0xb28] sm:$0xff]
    %v3303 = vld [vmem:[#allocation19 + $0xb30] sm:$0xff]
    %v3304 = vld [vmem:[#allocation19 + $0xb38] sm:$0xff]
    %v3305 = vld [vmem:[#allocation19 + $0xb40] sm:$0xff]
    %v3306 = vld [vmem:[#allocation19 + $0xb48] sm:$0xff]
    %v3307 = vld [vmem:[#allocation19 + $0xb50] sm:$0xff]
    %v3308 = vld [vmem:[#allocation19 + $0xb58] sm:$0xff]
    %v3309 = vld [vmem:[#allocation19 + $0xb60] sm:$0xff]
    %v3310 = vld [vmem:[#allocation19 + $0xb68] sm:$0xff]
    %v3311 = vld [vmem:[#allocation19 + $0xb70] sm:$0xff]
    %v3312 = vld [vmem:[#allocation19 + $0xb78] sm:$0xff]
    %v3313 = vld [vmem:[#allocation19 + $0xb80] sm:$0xff]
    %v3314 = vld [vmem:[#allocation19 + $0xb88] sm:$0xff]
    %v3315 = vld [vmem:[#allocation19 + $0xb90] sm:$0xff]
    %v3316 = vld [vmem:[#allocation19 + $0xb98] sm:$0xff]
    %v3317 = vld [vmem:[#allocation19 + $0xba0] sm:$0xff]
    %v3318 = vld [vmem:[#allocation19 + $0xba8] sm:$0xff]
    %v3319 = vld [vmem:[#allocation19 + $0xbb0] sm:$0xff]
    %v3320 = vld [vmem:[#allocation19 + $0xbb8] sm:$0xff]
    %v3321 = vld [vmem:[#allocation19 + $0xbc0] sm:$0xff]
    %v3322 = vld [vmem:[#allocation19 + $0xbc8] sm:$0xff]
    %v3323 = vld [vmem:[#allocation19 + $0xbd0] sm:$0xff]
    %v3324 = vld [vmem:[#allocation19 + $0xbd8] sm:$0xff]
    %v3325 = vld [vmem:[#allocation19 + $0xbe0] sm:$0xff]
    %v3326 = vld [vmem:[#allocation19 + $0xbe8] sm:$0xff]
    %v3327 = vld [vmem:[#allocation19 + $0xbf0] sm:$0xff]
    %v3328 = vld [vmem:[#allocation19 + $0xbf8] sm:$0xff]
    %v3329 = vld [vmem:[#allocation19 + $0xc00] sm:$0xff]
    %v3330 = vld [vmem:[#allocation19 + $0xc08] sm:$0xff]
    %v3331 = vld [vmem:[#allocation19 + $0xc10] sm:$0xff]
    %v3332 = vld [vmem:[#allocation19 + $0xc18] sm:$0xff]
    %v3333 = vld [vmem:[#allocation19 + $0xc20] sm:$0xff]
    %v3334 = vld [vmem:[#allocation19 + $0xc28] sm:$0xff]
    %v3335 = vld [vmem:[#allocation19 + $0xc30] sm:$0xff]
    %v3336 = vld [vmem:[#allocation19 + $0xc38] sm:$0xff]
    %v3337 = vld [vmem:[#allocation19 + $0xc40] sm:$0xff]
    %v3338 = vld [vmem:[#allocation19 + $0xc48] sm:$0xff]
    %v3339 = vld [vmem:[#allocation19 + $0xc50] sm:$0xff]
    %v3340 = vld [vmem:[#allocation19 + $0xc58] sm:$0xff]
    %v3341 = vld [vmem:[#allocation19 + $0xc60] sm:$0xff]
    %v3342 = vld [vmem:[#allocation19 + $0xc68] sm:$0xff]
    %v3343 = vld [vmem:[#allocation19 + $0xc70] sm:$0xff]
    %v3344 = vld [vmem:[#allocation19 + $0xc78] sm:$0xff]
    %v3345 = vld [vmem:[#allocation19 + $0xc80] sm:$0xff]
    %v3346 = vld [vmem:[#allocation19 + $0xc88] sm:$0xff]
    %v3347 = vld [vmem:[#allocation19 + $0xc90] sm:$0xff]
    %v3348 = vld [vmem:[#allocation19 + $0xc98] sm:$0xff]
    %v3349 = vld [vmem:[#allocation19 + $0xca0] sm:$0xff]
    %v3350 = vld [vmem:[#allocation19 + $0xca8] sm:$0xff]
    %v3351 = vld [vmem:[#allocation19 + $0xcb0] sm:$0xff]
    %v3352 = vld [vmem:[#allocation19 + $0xcb8] sm:$0xff]
    %v3353 = vld [vmem:[#allocation19 + $0xcc0] sm:$0xff]
    %v3354 = vld [vmem:[#allocation19 + $0xcc8] sm:$0xff]
    %v3355 = vld [vmem:[#allocation19 + $0xcd0] sm:$0xff]
    %v3356 = vld [vmem:[#allocation19 + $0xcd8] sm:$0xff]
    %v3357 = vld [vmem:[#allocation19 + $0xce0] sm:$0xff]
    %v3358 = vld [vmem:[#allocation19 + $0xce8] sm:$0xff]
    %v3359 = vld [vmem:[#allocation19 + $0xcf0] sm:$0xff]
    %v3360 = vld [vmem:[#allocation19 + $0xcf8] sm:$0xff]
    %v3361 = vld [vmem:[#allocation19 + $0xd00] sm:$0xff]
    %v3362 = vld [vmem:[#allocation19 + $0xd08] sm:$0xff]
    %v3363 = vld [vmem:[#allocation19 + $0xd10] sm:$0xff]
    %v3364 = vld [vmem:[#allocation19 + $0xd18] sm:$0xff]
    %v3365 = vld [vmem:[#allocation19 + $0xd20] sm:$0xff]
    %v3366 = vld [vmem:[#allocation19 + $0xd28] sm:$0xff]
    %v3367 = vld [vmem:[#allocation19 + $0xd30] sm:$0xff]
    %v3368 = vld [vmem:[#allocation19 + $0xd38] sm:$0xff]
    %v3369 = vld [vmem:[#allocation19 + $0xd40] sm:$0xff]
    %v3370 = vld [vmem:[#allocation19 + $0xd48] sm:$0xff]
    %v3371 = vld [vmem:[#allocation19 + $0xd50] sm:$0xff]
    %v3372 = vld [vmem:[#allocation19 + $0xd58] sm:$0xff]
    %v3373 = vld [vmem:[#allocation19 + $0xd60] sm:$0xff]
    %v3374 = vld [vmem:[#allocation19 + $0xd68] sm:$0xff]
    %v3375 = vld [vmem:[#allocation19 + $0xd70] sm:$0xff]
    %v3376 = vld [vmem:[#allocation19 + $0xd78] sm:$0xff]
    %v3377 = vld [vmem:[#allocation19 + $0xd80] sm:$0xff]
    %v3378 = vld [vmem:[#allocation19 + $0xd88] sm:$0xff]
    %v3379 = vld [vmem:[#allocation19 + $0xd90] sm:$0xff]
    %v3380 = vld [vmem:[#allocation19 + $0xd98] sm:$0xff]
    %v3381 = vld [vmem:[#allocation19 + $0xda0] sm:$0xff]
    %v3382 = vld [vmem:[#allocation19 + $0xda8] sm:$0xff]
    %v3383 = vld [vmem:[#allocation19 + $0xdb0] sm:$0xff]
    %v3384 = vld [vmem:[#allocation19 + $0xdb8] sm:$0xff]
    %v3385 = vld [vmem:[#allocation19 + $0xdc0] sm:$0xff]
    %v3386 = vld [vmem:[#allocation19 + $0xdc8] sm:$0xff]
    %v3387 = vld [vmem:[#allocation19 + $0xdd0] sm:$0xff]
    %v3388 = vld [vmem:[#allocation19 + $0xdd8] sm:$0xff]
    %v3389 = vld [vmem:[#allocation19 + $0xde0] sm:$0xff]
    %v3390 = vld [vmem:[#allocation19 + $0xde8] sm:$0xff]
    %v3391 = vld [vmem:[#allocation19 + $0xdf0] sm:$0xff]
    %v3392 = vld [vmem:[#allocation19 + $0xdf8] sm:$0xff]
    %v3393 = vld [vmem:[#allocation19 + $0xe00] sm:$0xff]
    %v3394 = vld [vmem:[#allocation19 + $0xe08] sm:$0xff]
    %v3395 = vld [vmem:[#allocation19 + $0xe10] sm:$0xff]
    %v3396 = vld [vmem:[#allocation19 + $0xe18] sm:$0xff]
    %v3397 = vld [vmem:[#allocation19 + $0xe20] sm:$0xff]
    %v3398 = vld [vmem:[#allocation19 + $0xe28] sm:$0xff]
    %v3399 = vld [vmem:[#allocation19 + $0xe30] sm:$0xff]
    %v3400 = vld [vmem:[#allocation19 + $0xe38] sm:$0xff]
    %v3401 = vld [vmem:[#allocation19 + $0xe40] sm:$0xff]
    %v3402 = vld [vmem:[#allocation19 + $0xe48] sm:$0xff]
    %v3403 = vld [vmem:[#allocation19 + $0xe50] sm:$0xff]
    %v3404 = vld [vmem:[#allocation19 + $0xe58] sm:$0xff]
    %v3405 = vld [vmem:[#allocation19 + $0xe60] sm:$0xff]
    %v3406 = vld [vmem:[#allocation19 + $0xe68] sm:$0xff]
    %v3407 = vld [vmem:[#allocation19 + $0xe70] sm:$0xff]
    %v3408 = vld [vmem:[#allocation19 + $0xe78] sm:$0xff]
    %v3409 = vld [vmem:[#allocation19 + $0xe80] sm:$0xff]
    %v3410 = vld [vmem:[#allocation19 + $0xe88] sm:$0xff]
    %v3411 = vld [vmem:[#allocation19 + $0xe90] sm:$0xff]
    %v3412 = vld [vmem:[#allocation19 + $0xe98] sm:$0xff]
    %v3413 = vld [vmem:[#allocation19 + $0xea0] sm:$0xff]
    %v3414 = vld [vmem:[#allocation19 + $0xea8] sm:$0xff]
    %v3415 = vld [vmem:[#allocation19 + $0xeb0] sm:$0xff]
    %v3416 = vld [vmem:[#allocation19 + $0xeb8] sm:$0xff]
    %v3417 = vld [vmem:[#allocation19 + $0xec0] sm:$0xff]
    %v3418 = vld [vmem:[#allocation19 + $0xec8] sm:$0xff]
    %v3419 = vld [vmem:[#allocation19 + $0xed0] sm:$0xff]
    %v3420 = vld [vmem:[#allocation19 + $0xed8] sm:$0xff]
    %v3421 = vld [vmem:[#allocation19 + $0xee0] sm:$0xff]
    %v3422 = vld [vmem:[#allocation19 + $0xee8] sm:$0xff]
    %v3423 = vld [vmem:[#allocation19 + $0xef0] sm:$0xff]
    %v3424 = vld [vmem:[#allocation19 + $0xef8] sm:$0xff]
    %v3425 = vld [vmem:[#allocation19 + $0xf00] sm:$0xff]
    %v3426 = vld [vmem:[#allocation19 + $0xf08] sm:$0xff]
    %v3427 = vld [vmem:[#allocation19 + $0xf10] sm:$0xff]
    %v3428 = vld [vmem:[#allocation19 + $0xf18] sm:$0xff]
    %v3429 = vld [vmem:[#allocation19 + $0xf20] sm:$0xff]
    %v3430 = vld [vmem:[#allocation19 + $0xf28] sm:$0xff]
    %v3431 = vld [vmem:[#allocation19 + $0xf30] sm:$0xff]
    %v3432 = vld [vmem:[#allocation19 + $0xf38] sm:$0xff]
    %v3433 = vld [vmem:[#allocation19 + $0xf40] sm:$0xff]
    %v3434 = vld [vmem:[#allocation19 + $0xf48] sm:$0xff]
    %v3435 = vld [vmem:[#allocation19 + $0xf50] sm:$0xff]
    %v3436 = vld [vmem:[#allocation19 + $0xf58] sm:$0xff]
    %v3437 = vld [vmem:[#allocation19 + $0xf60] sm:$0xff]
    %v3438 = vld [vmem:[#allocation19 + $0xf68] sm:$0xff]
    %v3439 = vld [vmem:[#allocation19 + $0xf70] sm:$0xff]
    %v3440 = vld [vmem:[#allocation19 + $0xf78] sm:$0xff]
    %v3441 = vld [vmem:[#allocation19 + $0xf80] sm:$0xff]
    %v3442 = vld [vmem:[#allocation19 + $0xf88] sm:$0xff]
    %v3443 = vld [vmem:[#allocation19 + $0xf90] sm:$0xff]
    %v3444 = vld [vmem:[#allocation19 + $0xf98] sm:$0xff]
    %v3445 = vld [vmem:[#allocation19 + $0xfa0] sm:$0xff]
    %v3446 = vld [vmem:[#allocation19 + $0xfa8] sm:$0xff]
    %v3447 = vld [vmem:[#allocation19 + $0xfb0] sm:$0xff]
    %v3448 = vld [vmem:[#allocation19 + $0xfb8] sm:$0xff]
    %v3449 = vld [vmem:[#allocation19 + $0xfc0] sm:$0xff]
    %v3450 = vld [vmem:[#allocation19 + $0xfc8] sm:$0xff]
    %v3451 = vld [vmem:[#allocation19 + $0xfd0] sm:$0xff]
    %v3452 = vld [vmem:[#allocation19 + $0xfd8] sm:$0xff]
    %v3453 = vld [vmem:[#allocation19 + $0xfe0] sm:$0xff]
    %v3454 = vld [vmem:[#allocation19 + $0xfe8] sm:$0xff]
    %v3455 = vld [vmem:[#allocation19 + $0xff0] sm:$0xff]
    %v3456 = vld [vmem:[#allocation19 + $0xff8] sm:$0xff]
    %v3457 = vld [vmem:[#allocation19 + $0x1000] sm:$0xff]
    %v3458 = vld [vmem:[#allocation19 + $0x1008] sm:$0xff]
    %v3459 = vld [vmem:[#allocation19 + $0x1010] sm:$0xff]
    %v3460 = vld [vmem:[#allocation19 + $0x1018] sm:$0xff]
    %v3461 = vld [vmem:[#allocation19 + $0x1020] sm:$0xff]
    %v3462 = vld [vmem:[#allocation19 + $0x1028] sm:$0xff]
    %v3463 = vld [vmem:[#allocation19 + $0x1030] sm:$0xff]
    %v3464 = vld [vmem:[#allocation19 + $0x1038] sm:$0xff]
    %v3465 = vld [vmem:[#allocation19 + $0x1040] sm:$0xff]
    %v3466 = vld [vmem:[#allocation19 + $0x1048] sm:$0xff]
    %v3467 = vld [vmem:[#allocation19 + $0x1050] sm:$0xff]
    %v3468 = vld [vmem:[#allocation19 + $0x1058] sm:$0xff]
    %v3469 = vld [vmem:[#allocation19 + $0x1060] sm:$0xff]
    %v3470 = vld [vmem:[#allocation19 + $0x1068] sm:$0xff]
    %v3471 = vld [vmem:[#allocation19 + $0x1070] sm:$0xff]
    %v3472 = vld [vmem:[#allocation19 + $0x1078] sm:$0xff]
    %v3473 = vld [vmem:[#allocation19 + $0x1080] sm:$0xff]
    %v3474 = vld [vmem:[#allocation19 + $0x1088] sm:$0xff]
    %v3475 = vld [vmem:[#allocation19 + $0x1090] sm:$0xff]
    %v3476 = vld [vmem:[#allocation19 + $0x1098] sm:$0xff]
    %v3477 = vld [vmem:[#allocation19 + $0x10a0] sm:$0xff]
    %v3478 = vld [vmem:[#allocation19 + $0x10a8] sm:$0xff]
    %v3479 = vld [vmem:[#allocation19 + $0x10b0] sm:$0xff]
    %v3480 = vld [vmem:[#allocation19 + $0x10b8] sm:$0xff]
    %v3481 = vld [vmem:[#allocation19 + $0x10c0] sm:$0xff]
    %v3482 = vld [vmem:[#allocation19 + $0x10c8] sm:$0xff]
    %v3483 = vld [vmem:[#allocation19 + $0x10d0] sm:$0xff]
    %v3484 = vld [vmem:[#allocation19 + $0x10d8] sm:$0xff]
    %v3485 = vld [vmem:[#allocation19 + $0x10e0] sm:$0xff]
    %v3486 = vld [vmem:[#allocation19 + $0x10e8] sm:$0xff]
    %v3487 = vld [vmem:[#allocation19 + $0x10f0] sm:$0xff]
    %v3488 = vld [vmem:[#allocation19 + $0x10f8] sm:$0xff]
    %v3489 = vld [vmem:[#allocation19 + $0x1100] sm:$0xff]
    %v3490 = vld [vmem:[#allocation19 + $0x1108] sm:$0xff]
    %v3491 = vld [vmem:[#allocation19 + $0x1110] sm:$0xff]
    %v3492 = vld [vmem:[#allocation19 + $0x1118] sm:$0xff]
    %v3493 = vld [vmem:[#allocation19 + $0x1120] sm:$0xff]
    %v3494 = vld [vmem:[#allocation19 + $0x1128] sm:$0xff]
    %v3495 = vld [vmem:[#allocation19 + $0x1130] sm:$0xff]
    %v3496 = vld [vmem:[#allocation19 + $0x1138] sm:$0xff]
    %v3497 = vld [vmem:[#allocation19 + $0x1140] sm:$0xff]
    %v3498 = vld [vmem:[#allocation19 + $0x1148] sm:$0xff]
    %v3499 = vld [vmem:[#allocation19 + $0x1150] sm:$0xff]
    %v3500 = vld [vmem:[#allocation19 + $0x1158] sm:$0xff]
    %v3501 = vld [vmem:[#allocation19 + $0x1160] sm:$0xff]
    %v3502 = vld [vmem:[#allocation19 + $0x1168] sm:$0xff]
    %v3503 = vld [vmem:[#allocation19 + $0x1170] sm:$0xff]
    %v3504 = vld [vmem:[#allocation19 + $0x1178] sm:$0xff]
    %v3505 = vld [vmem:[#allocation19 + $0x1180] sm:$0xff]
    %v3506 = vld [vmem:[#allocation19 + $0x1188] sm:$0xff]
    %v3507 = vld [vmem:[#allocation19 + $0x1190] sm:$0xff]
    %v3508 = vld [vmem:[#allocation19 + $0x1198] sm:$0xff]
    %v3509 = vld [vmem:[#allocation19 + $0x11a0] sm:$0xff]
    %v3510 = vld [vmem:[#allocation19 + $0x11a8] sm:$0xff]
    %v3511 = vld [vmem:[#allocation19 + $0x11b0] sm:$0xff]
    %v3512 = vld [vmem:[#allocation19 + $0x11b8] sm:$0xff]
    %v3513 = vld [vmem:[#allocation19 + $0x11c0] sm:$0xff]
    %v3514 = vld [vmem:[#allocation19 + $0x11c8] sm:$0xff]
    %v3515 = vld [vmem:[#allocation19 + $0x11d0] sm:$0xff]
    %v3516 = vld [vmem:[#allocation19 + $0x11d8] sm:$0xff]
    %v3517 = vld [vmem:[#allocation19 + $0x11e0] sm:$0xff]
    %v3518 = vld [vmem:[#allocation19 + $0x11e8] sm:$0xff]
    %v3519 = vld [vmem:[#allocation19 + $0x11f0] sm:$0xff]
    %v3520 = vld [vmem:[#allocation19 + $0x11f8] sm:$0xff]
    %v4097 = vunpack.c.l.b16 %v2945
    %v4098 = vunpack.c.h.b16 %v2945
    %v4099 = vunpack.c.l.b16 %v2946
    %v4100 = vunpack.c.h.b16 %v2946
    %v4101 = vunpack.c.l.b16 %v2947
    %v4102 = vunpack.c.h.b16 %v2947
    %v4103 = vunpack.c.l.b16 %v2948
    %v4104 = vunpack.c.h.b16 %v2948
    %v4105 = vunpack.c.l.b16 %v2949
    %v4106 = vunpack.c.h.b16 %v2949
    %v4107 = vunpack.c.l.b16 %v2950
    %v4108 = vunpack.c.h.b16 %v2950
    %v4109 = vunpack.c.l.b16 %v2951
    %v4110 = vunpack.c.h.b16 %v2951
    %v4111 = vunpack.c.l.b16 %v2952
    %v4112 = vunpack.c.h.b16 %v2952
    %v4113 = vunpack.c.l.b16 %v2953
    %v4114 = vunpack.c.h.b16 %v2953
    %v4115 = vunpack.c.l.b16 %v2954
    %v4116 = vunpack.c.h.b16 %v2954
    %v4117 = vunpack.c.l.b16 %v2955
    %v4118 = vunpack.c.h.b16 %v2955
    %v4119 = vunpack.c.l.b16 %v2956
    %v4120 = vunpack.c.h.b16 %v2956
    %v4121 = vunpack.c.l.b16 %v2957
    %v4122 = vunpack.c.h.b16 %v2957
    %v4123 = vunpack.c.l.b16 %v2958
    %v4124 = vunpack.c.h.b16 %v2958
    %v4125 = vunpack.c.l.b16 %v2959
    %v4126 = vunpack.c.h.b16 %v2959
    %v4127 = vunpack.c.l.b16 %v2960
    %v4128 = vunpack.c.h.b16 %v2960
    %v4129 = vunpack.c.l.b16 %v2961
    %v4130 = vunpack.c.h.b16 %v2961
    %v4131 = vunpack.c.l.b16 %v2962
    %v4132 = vunpack.c.h.b16 %v2962
    %v4133 = vunpack.c.l.b16 %v2963
    %v4134 = vunpack.c.h.b16 %v2963
    %v4135 = vunpack.c.l.b16 %v2964
    %v4136 = vunpack.c.h.b16 %v2964
    %v4137 = vunpack.c.l.b16 %v2965
    %v4138 = vunpack.c.h.b16 %v2965
    %v4139 = vunpack.c.l.b16 %v2966
    %v4140 = vunpack.c.h.b16 %v2966
    %v4141 = vunpack.c.l.b16 %v2967
    %v4142 = vunpack.c.h.b16 %v2967
    %v4143 = vunpack.c.l.b16 %v2968
    %v4144 = vunpack.c.h.b16 %v2968
    %v4145 = vunpack.c.l.b16 %v2969
    %v4146 = vunpack.c.h.b16 %v2969
    %v4147 = vunpack.c.l.b16 %v2970
    %v4148 = vunpack.c.h.b16 %v2970
    %v4149 = vunpack.c.l.b16 %v2971
    %v4150 = vunpack.c.h.b16 %v2971
    %v4151 = vunpack.c.l.b16 %v2972
    %v4152 = vunpack.c.h.b16 %v2972
    %v4153 = vunpack.c.l.b16 %v2973
    %v4154 = vunpack.c.h.b16 %v2973
    %v4155 = vunpack.c.l.b16 %v2974
    %v4156 = vunpack.c.h.b16 %v2974
    %v4157 = vunpack.c.l.b16 %v2975
    %v4158 = vunpack.c.h.b16 %v2975
    %v4159 = vunpack.c.l.b16 %v2976
    %v4160 = vunpack.c.h.b16 %v2976
    %v4161 = vunpack.c.l.b16 %v2977
    %v4162 = vunpack.c.h.b16 %v2977
    %v4163 = vunpack.c.l.b16 %v2978
    %v4164 = vunpack.c.h.b16 %v2978
    %v4165 = vunpack.c.l.b16 %v2979
    %v4166 = vunpack.c.h.b16 %v2979
    %v4167 = vunpack.c.l.b16 %v2980
    %v4168 = vunpack.c.h.b16 %v2980
    %v4169 = vunpack.c.l.b16 %v2981
    %v4170 = vunpack.c.h.b16 %v2981
    %v4171 = vunpack.c.l.b16 %v2982
    %v4172 = vunpack.c.h.b16 %v2982
    %v4173 = vunpack.c.l.b16 %v2983
    %v4174 = vunpack.c.h.b16 %v2983
    %v4175 = vunpack.c.l.b16 %v2984
    %v4176 = vunpack.c.h.b16 %v2984
    %v4177 = vunpack.c.l.b16 %v2985
    %v4178 = vunpack.c.h.b16 %v2985
    %v4179 = vunpack.c.l.b16 %v2986
    %v4180 = vunpack.c.h.b16 %v2986
    %v4181 = vunpack.c.l.b16 %v2987
    %v4182 = vunpack.c.h.b16 %v2987
    %v4183 = vunpack.c.l.b16 %v2988
    %v4184 = vunpack.c.h.b16 %v2988
    %v4185 = vunpack.c.l.b16 %v2989
    %v4186 = vunpack.c.h.b16 %v2989
    %v4187 = vunpack.c.l.b16 %v2990
    %v4188 = vunpack.c.h.b16 %v2990
    %v4189 = vunpack.c.l.b16 %v2991
    %v4190 = vunpack.c.h.b16 %v2991
    %v4191 = vunpack.c.l.b16 %v2992
    %v4192 = vunpack.c.h.b16 %v2992
    %v4193 = vunpack.c.l.b16 %v2993
    %v4194 = vunpack.c.h.b16 %v2993
    %v4195 = vunpack.c.l.b16 %v2994
    %v4196 = vunpack.c.h.b16 %v2994
    %v4197 = vunpack.c.l.b16 %v2995
    %v4198 = vunpack.c.h.b16 %v2995
    %v4199 = vunpack.c.l.b16 %v2996
    %v4200 = vunpack.c.h.b16 %v2996
    %v4201 = vunpack.c.l.b16 %v2997
    %v4202 = vunpack.c.h.b16 %v2997
    %v4203 = vunpack.c.l.b16 %v2998
    %v4204 = vunpack.c.h.b16 %v2998
    %v4205 = vunpack.c.l.b16 %v2999
    %v4206 = vunpack.c.h.b16 %v2999
    %v4207 = vunpack.c.l.b16 %v3000
    %v4208 = vunpack.c.h.b16 %v3000
    %v4209 = vunpack.c.l.b16 %v3001
    %v4210 = vunpack.c.h.b16 %v3001
    %v4211 = vunpack.c.l.b16 %v3002
    %v4212 = vunpack.c.h.b16 %v3002
    %v4213 = vunpack.c.l.b16 %v3003
    %v4214 = vunpack.c.h.b16 %v3003
    %v4215 = vunpack.c.l.b16 %v3004
    %v4216 = vunpack.c.h.b16 %v3004
    %v4217 = vunpack.c.l.b16 %v3005
    %v4218 = vunpack.c.h.b16 %v3005
    %v4219 = vunpack.c.l.b16 %v3006
    %v4220 = vunpack.c.h.b16 %v3006
    %v4221 = vunpack.c.l.b16 %v3007
    %v4222 = vunpack.c.h.b16 %v3007
    %v4223 = vunpack.c.l.b16 %v3008
    %v4224 = vunpack.c.h.b16 %v3008
    %v4225 = vunpack.c.l.b16 %v3009
    %v4226 = vunpack.c.h.b16 %v3009
    %v4227 = vunpack.c.l.b16 %v3010
    %v4228 = vunpack.c.h.b16 %v3010
    %v4229 = vunpack.c.l.b16 %v3011
    %v4230 = vunpack.c.h.b16 %v3011
    %v4231 = vunpack.c.l.b16 %v3012
    %v4232 = vunpack.c.h.b16 %v3012
    %v4233 = vunpack.c.l.b16 %v3013
    %v4234 = vunpack.c.h.b16 %v3013
    %v4235 = vunpack.c.l.b16 %v3014
    %v4236 = vunpack.c.h.b16 %v3014
    %v4237 = vunpack.c.l.b16 %v3015
    %v4238 = vunpack.c.h.b16 %v3015
    %v4239 = vunpack.c.l.b16 %v3016
    %v4240 = vunpack.c.h.b16 %v3016
    %v4241 = vunpack.c.l.b16 %v3017
    %v4242 = vunpack.c.h.b16 %v3017
    %v4243 = vunpack.c.l.b16 %v3018
    %v4244 = vunpack.c.h.b16 %v3018
    %v4245 = vunpack.c.l.b16 %v3019
    %v4246 = vunpack.c.h.b16 %v3019
    %v4247 = vunpack.c.l.b16 %v3020
    %v4248 = vunpack.c.h.b16 %v3020
    %v4249 = vunpack.c.l.b16 %v3021
    %v4250 = vunpack.c.h.b16 %v3021
    %v4251 = vunpack.c.l.b16 %v3022
    %v4252 = vunpack.c.h.b16 %v3022
    %v4253 = vunpack.c.l.b16 %v3023
    %v4254 = vunpack.c.h.b16 %v3023
    %v4255 = vunpack.c.l.b16 %v3024
    %v4256 = vunpack.c.h.b16 %v3024
    %v4257 = vunpack.c.l.b16 %v3025
    %v4258 = vunpack.c.h.b16 %v3025
    %v4259 = vunpack.c.l.b16 %v3026
    %v4260 = vunpack.c.h.b16 %v3026
    %v4261 = vunpack.c.l.b16 %v3027
    %v4262 = vunpack.c.h.b16 %v3027
    %v4263 = vunpack.c.l.b16 %v3028
    %v4264 = vunpack.c.h.b16 %v3028
    %v4265 = vunpack.c.l.b16 %v3029
    %v4266 = vunpack.c.h.b16 %v3029
    %v4267 = vunpack.c.l.b16 %v3030
    %v4268 = vunpack.c.h.b16 %v3030
    %v4269 = vunpack.c.l.b16 %v3031
    %v4270 = vunpack.c.h.b16 %v3031
    %v4271 = vunpack.c.l.b16 %v3032
    %v4272 = vunpack.c.h.b16 %v3032
    %v4273 = vunpack.c.l.b16 %v3033
    %v4274 = vunpack.c.h.b16 %v3033
    %v4275 = vunpack.c.l.b16 %v3034
    %v4276 = vunpack.c.h.b16 %v3034
    %v4277 = vunpack.c.l.b16 %v3035
    %v4278 = vunpack.c.h.b16 %v3035
    %v4279 = vunpack.c.l.b16 %v3036
    %v4280 = vunpack.c.h.b16 %v3036
    %v4281 = vunpack.c.l.b16 %v3037
    %v4282 = vunpack.c.h.b16 %v3037
    %v4283 = vunpack.c.l.b16 %v3038
    %v4284 = vunpack.c.h.b16 %v3038
    %v4285 = vunpack.c.l.b16 %v3039
    %v4286 = vunpack.c.h.b16 %v3039
    %v4287 = vunpack.c.l.b16 %v3040
    %v4288 = vunpack.c.h.b16 %v3040
    %v4289 = vunpack.c.l.b16 %v3041
    %v4290 = vunpack.c.h.b16 %v3041
    %v4291 = vunpack.c.l.b16 %v3042
    %v4292 = vunpack.c.h.b16 %v3042
    %v4293 = vunpack.c.l.b16 %v3043
    %v4294 = vunpack.c.h.b16 %v3043
    %v4295 = vunpack.c.l.b16 %v3044
    %v4296 = vunpack.c.h.b16 %v3044
    %v4297 = vunpack.c.l.b16 %v3045
    %v4298 = vunpack.c.h.b16 %v3045
    %v4299 = vunpack.c.l.b16 %v3046
    %v4300 = vunpack.c.h.b16 %v3046
    %v4301 = vunpack.c.l.b16 %v3047
    %v4302 = vunpack.c.h.b16 %v3047
    %v4303 = vunpack.c.l.b16 %v3048
    %v4304 = vunpack.c.h.b16 %v3048
    %v4305 = vunpack.c.l.b16 %v3049
    %v4306 = vunpack.c.h.b16 %v3049
    %v4307 = vunpack.c.l.b16 %v3050
    %v4308 = vunpack.c.h.b16 %v3050
    %v4309 = vunpack.c.l.b16 %v3051
    %v4310 = vunpack.c.h.b16 %v3051
    %v4311 = vunpack.c.l.b16 %v3052
    %v4312 = vunpack.c.h.b16 %v3052
    %v4313 = vunpack.c.l.b16 %v3053
    %v4314 = vunpack.c.h.b16 %v3053
    %v4315 = vunpack.c.l.b16 %v3054
    %v4316 = vunpack.c.h.b16 %v3054
    %v4317 = vunpack.c.l.b16 %v3055
    %v4318 = vunpack.c.h.b16 %v3055
    %v4319 = vunpack.c.l.b16 %v3056
    %v4320 = vunpack.c.h.b16 %v3056
    %v4321 = vunpack.c.l.b16 %v3057
    %v4322 = vunpack.c.h.b16 %v3057
    %v4323 = vunpack.c.l.b16 %v3058
    %v4324 = vunpack.c.h.b16 %v3058
    %v4325 = vunpack.c.l.b16 %v3059
    %v4326 = vunpack.c.h.b16 %v3059
    %v4327 = vunpack.c.l.b16 %v3060
    %v4328 = vunpack.c.h.b16 %v3060
    %v4329 = vunpack.c.l.b16 %v3061
    %v4330 = vunpack.c.h.b16 %v3061
    %v4331 = vunpack.c.l.b16 %v3062
    %v4332 = vunpack.c.h.b16 %v3062
    %v4333 = vunpack.c.l.b16 %v3063
    %v4334 = vunpack.c.h.b16 %v3063
    %v4335 = vunpack.c.l.b16 %v3064
    %v4336 = vunpack.c.h.b16 %v3064
    %v4337 = vunpack.c.l.b16 %v3065
    %v4338 = vunpack.c.h.b16 %v3065
    %v4339 = vunpack.c.l.b16 %v3066
    %v4340 = vunpack.c.h.b16 %v3066
    %v4341 = vunpack.c.l.b16 %v3067
    %v4342 = vunpack.c.h.b16 %v3067
    %v4343 = vunpack.c.l.b16 %v3068
    %v4344 = vunpack.c.h.b16 %v3068
    %v4345 = vunpack.c.l.b16 %v3069
    %v4346 = vunpack.c.h.b16 %v3069
    %v4347 = vunpack.c.l.b16 %v3070
    %v4348 = vunpack.c.h.b16 %v3070
    %v4349 = vunpack.c.l.b16 %v3071
    %v4350 = vunpack.c.h.b16 %v3071
    %v4351 = vunpack.c.l.b16 %v3072
    %v4352 = vunpack.c.h.b16 %v3072
    %v4353 = vunpack.c.l.b16 %v3073
    %v4354 = vunpack.c.h.b16 %v3073
    %v4355 = vunpack.c.l.b16 %v3074
    %v4356 = vunpack.c.h.b16 %v3074
    %v4357 = vunpack.c.l.b16 %v3075
    %v4358 = vunpack.c.h.b16 %v3075
    %v4359 = vunpack.c.l.b16 %v3076
    %v4360 = vunpack.c.h.b16 %v3076
    %v4361 = vunpack.c.l.b16 %v3077
    %v4362 = vunpack.c.h.b16 %v3077
    %v4363 = vunpack.c.l.b16 %v3078
    %v4364 = vunpack.c.h.b16 %v3078
    %v4365 = vunpack.c.l.b16 %v3079
    %v4366 = vunpack.c.h.b16 %v3079
    %v4367 = vunpack.c.l.b16 %v3080
    %v4368 = vunpack.c.h.b16 %v3080
    %v4369 = vunpack.c.l.b16 %v3081
    %v4370 = vunpack.c.h.b16 %v3081
    %v4371 = vunpack.c.l.b16 %v3082
    %v4372 = vunpack.c.h.b16 %v3082
    %v4373 = vunpack.c.l.b16 %v3083
    %v4374 = vunpack.c.h.b16 %v3083
    %v4375 = vunpack.c.l.b16 %v3084
    %v4376 = vunpack.c.h.b16 %v3084
    %v4377 = vunpack.c.l.b16 %v3085
    %v4378 = vunpack.c.h.b16 %v3085
    %v4379 = vunpack.c.l.b16 %v3086
    %v4380 = vunpack.c.h.b16 %v3086
    %v4381 = vunpack.c.l.b16 %v3087
    %v4382 = vunpack.c.h.b16 %v3087
    %v4383 = vunpack.c.l.b16 %v3088
    %v4384 = vunpack.c.h.b16 %v3088
    %v4385 = vunpack.c.l.b16 %v3089
    %v4386 = vunpack.c.h.b16 %v3089
    %v4387 = vunpack.c.l.b16 %v3090
    %v4388 = vunpack.c.h.b16 %v3090
    %v4389 = vunpack.c.l.b16 %v3091
    %v4390 = vunpack.c.h.b16 %v3091
    %v4391 = vunpack.c.l.b16 %v3092
    %v4392 = vunpack.c.h.b16 %v3092
    %v4393 = vunpack.c.l.b16 %v3093
    %v4394 = vunpack.c.h.b16 %v3093
    %v4395 = vunpack.c.l.b16 %v3094
    %v4396 = vunpack.c.h.b16 %v3094
    %v4397 = vunpack.c.l.b16 %v3095
    %v4398 = vunpack.c.h.b16 %v3095
    %v4399 = vunpack.c.l.b16 %v3096
    %v4400 = vunpack.c.h.b16 %v3096
    %v4401 = vunpack.c.l.b16 %v3097
    %v4402 = vunpack.c.h.b16 %v3097
    %v4403 = vunpack.c.l.b16 %v3098
    %v4404 = vunpack.c.h.b16 %v3098
    %v4405 = vunpack.c.l.b16 %v3099
    %v4406 = vunpack.c.h.b16 %v3099
    %v4407 = vunpack.c.l.b16 %v3100
    %v4408 = vunpack.c.h.b16 %v3100
    %v4409 = vunpack.c.l.b16 %v3101
    %v4410 = vunpack.c.h.b16 %v3101
    %v4411 = vunpack.c.l.b16 %v3102
    %v4412 = vunpack.c.h.b16 %v3102
    %v4413 = vunpack.c.l.b16 %v3103
    %v4414 = vunpack.c.h.b16 %v3103
    %v4415 = vunpack.c.l.b16 %v3104
    %v4416 = vunpack.c.h.b16 %v3104
    %v4417 = vunpack.c.l.b16 %v3105
    %v4418 = vunpack.c.h.b16 %v3105
    %v4419 = vunpack.c.l.b16 %v3106
    %v4420 = vunpack.c.h.b16 %v3106
    %v4421 = vunpack.c.l.b16 %v3107
    %v4422 = vunpack.c.h.b16 %v3107
    %v4423 = vunpack.c.l.b16 %v3108
    %v4424 = vunpack.c.h.b16 %v3108
    %v4425 = vunpack.c.l.b16 %v3109
    %v4426 = vunpack.c.h.b16 %v3109
    %v4427 = vunpack.c.l.b16 %v3110
    %v4428 = vunpack.c.h.b16 %v3110
    %v4429 = vunpack.c.l.b16 %v3111
    %v4430 = vunpack.c.h.b16 %v3111
    %v4431 = vunpack.c.l.b16 %v3112
    %v4432 = vunpack.c.h.b16 %v3112
    %v4433 = vunpack.c.l.b16 %v3113
    %v4434 = vunpack.c.h.b16 %v3113
    %v4435 = vunpack.c.l.b16 %v3114
    %v4436 = vunpack.c.h.b16 %v3114
    %v4437 = vunpack.c.l.b16 %v3115
    %v4438 = vunpack.c.h.b16 %v3115
    %v4439 = vunpack.c.l.b16 %v3116
    %v4440 = vunpack.c.h.b16 %v3116
    %v4441 = vunpack.c.l.b16 %v3117
    %v4442 = vunpack.c.h.b16 %v3117
    %v4443 = vunpack.c.l.b16 %v3118
    %v4444 = vunpack.c.h.b16 %v3118
    %v4445 = vunpack.c.l.b16 %v3119
    %v4446 = vunpack.c.h.b16 %v3119
    %v4447 = vunpack.c.l.b16 %v3120
    %v4448 = vunpack.c.h.b16 %v3120
    %v4449 = vunpack.c.l.b16 %v3121
    %v4450 = vunpack.c.h.b16 %v3121
    %v4451 = vunpack.c.l.b16 %v3122
    %v4452 = vunpack.c.h.b16 %v3122
    %v4453 = vunpack.c.l.b16 %v3123
    %v4454 = vunpack.c.h.b16 %v3123
    %v4455 = vunpack.c.l.b16 %v3124
    %v4456 = vunpack.c.h.b16 %v3124
    %v4457 = vunpack.c.l.b16 %v3125
    %v4458 = vunpack.c.h.b16 %v3125
    %v4459 = vunpack.c.l.b16 %v3126
    %v4460 = vunpack.c.h.b16 %v3126
    %v4461 = vunpack.c.l.b16 %v3127
    %v4462 = vunpack.c.h.b16 %v3127
    %v4463 = vunpack.c.l.b16 %v3128
    %v4464 = vunpack.c.h.b16 %v3128
    %v4465 = vunpack.c.l.b16 %v3129
    %v4466 = vunpack.c.h.b16 %v3129
    %v4467 = vunpack.c.l.b16 %v3130
    %v4468 = vunpack.c.h.b16 %v3130
    %v4469 = vunpack.c.l.b16 %v3131
    %v4470 = vunpack.c.h.b16 %v3131
    %v4471 = vunpack.c.l.b16 %v3132
    %v4472 = vunpack.c.h.b16 %v3132
    %v4473 = vunpack.c.l.b16 %v3133
    %v4474 = vunpack.c.h.b16 %v3133
    %v4475 = vunpack.c.l.b16 %v3134
    %v4476 = vunpack.c.h.b16 %v3134
    %v4477 = vunpack.c.l.b16 %v3135
    %v4478 = vunpack.c.h.b16 %v3135
    %v4479 = vunpack.c.l.b16 %v3136
    %v4480 = vunpack.c.h.b16 %v3136
    %v4481 = vunpack.c.l.b16 %v3137
    %v4482 = vunpack.c.h.b16 %v3137
    %v4483 = vunpack.c.l.b16 %v3138
    %v4484 = vunpack.c.h.b16 %v3138
    %v4485 = vunpack.c.l.b16 %v3139
    %v4486 = vunpack.c.h.b16 %v3139
    %v4487 = vunpack.c.l.b16 %v3140
    %v4488 = vunpack.c.h.b16 %v3140
    %v4489 = vunpack.c.l.b16 %v3141
    %v4490 = vunpack.c.h.b16 %v3141
    %v4491 = vunpack.c.l.b16 %v3142
    %v4492 = vunpack.c.h.b16 %v3142
    %v4493 = vunpack.c.l.b16 %v3143
    %v4494 = vunpack.c.h.b16 %v3143
    %v4495 = vunpack.c.l.b16 %v3144
    %v4496 = vunpack.c.h.b16 %v3144
    %v4497 = vunpack.c.l.b16 %v3145
    %v4498 = vunpack.c.h.b16 %v3145
    %v4499 = vunpack.c.l.b16 %v3146
    %v4500 = vunpack.c.h.b16 %v3146
    %v4501 = vunpack.c.l.b16 %v3147
    %v4502 = vunpack.c.h.b16 %v3147
    %v4503 = vunpack.c.l.b16 %v3148
    %v4504 = vunpack.c.h.b16 %v3148
    %v4505 = vunpack.c.l.b16 %v3149
    %v4506 = vunpack.c.h.b16 %v3149
    %v4507 = vunpack.c.l.b16 %v3150
    %v4508 = vunpack.c.h.b16 %v3150
    %v4509 = vunpack.c.l.b16 %v3151
    %v4510 = vunpack.c.h.b16 %v3151
    %v4511 = vunpack.c.l.b16 %v3152
    %v4512 = vunpack.c.h.b16 %v3152
    %v4513 = vunpack.c.l.b16 %v3153
    %v4514 = vunpack.c.h.b16 %v3153
    %v4515 = vunpack.c.l.b16 %v3154
    %v4516 = vunpack.c.h.b16 %v3154
    %v4517 = vunpack.c.l.b16 %v3155
    %v4518 = vunpack.c.h.b16 %v3155
    %v4519 = vunpack.c.l.b16 %v3156
    %v4520 = vunpack.c.h.b16 %v3156
    %v4521 = vunpack.c.l.b16 %v3157
    %v4522 = vunpack.c.h.b16 %v3157
    %v4523 = vunpack.c.l.b16 %v3158
    %v4524 = vunpack.c.h.b16 %v3158
    %v4525 = vunpack.c.l.b16 %v3159
    %v4526 = vunpack.c.h.b16 %v3159
    %v4527 = vunpack.c.l.b16 %v3160
    %v4528 = vunpack.c.h.b16 %v3160
    %v4529 = vunpack.c.l.b16 %v3161
    %v4530 = vunpack.c.h.b16 %v3161
    %v4531 = vunpack.c.l.b16 %v3162
    %v4532 = vunpack.c.h.b16 %v3162
    %v4533 = vunpack.c.l.b16 %v3163
    %v4534 = vunpack.c.h.b16 %v3163
    %v4535 = vunpack.c.l.b16 %v3164
    %v4536 = vunpack.c.h.b16 %v3164
    %v4537 = vunpack.c.l.b16 %v3165
    %v4538 = vunpack.c.h.b16 %v3165
    %v4539 = vunpack.c.l.b16 %v3166
    %v4540 = vunpack.c.h.b16 %v3166
    %v4541 = vunpack.c.l.b16 %v3167
    %v4542 = vunpack.c.h.b16 %v3167
    %v4543 = vunpack.c.l.b16 %v3168
    %v4544 = vunpack.c.h.b16 %v3168
    %v4545 = vunpack.c.l.b16 %v3169
    %v4546 = vunpack.c.h.b16 %v3169
    %v4547 = vunpack.c.l.b16 %v3170
    %v4548 = vunpack.c.h.b16 %v3170
    %v4549 = vunpack.c.l.b16 %v3171
    %v4550 = vunpack.c.h.b16 %v3171
    %v4551 = vunpack.c.l.b16 %v3172
    %v4552 = vunpack.c.h.b16 %v3172
    %v4553 = vunpack.c.l.b16 %v3173
    %v4554 = vunpack.c.h.b16 %v3173
    %v4555 = vunpack.c.l.b16 %v3174
    %v4556 = vunpack.c.h.b16 %v3174
    %v4557 = vunpack.c.l.b16 %v3175
    %v4558 = vunpack.c.h.b16 %v3175
    %v4559 = vunpack.c.l.b16 %v3176
    %v4560 = vunpack.c.h.b16 %v3176
    %v4561 = vunpack.c.l.b16 %v3177
    %v4562 = vunpack.c.h.b16 %v3177
    %v4563 = vunpack.c.l.b16 %v3178
    %v4564 = vunpack.c.h.b16 %v3178
    %v4565 = vunpack.c.l.b16 %v3179
    %v4566 = vunpack.c.h.b16 %v3179
    %v4567 = vunpack.c.l.b16 %v3180
    %v4568 = vunpack.c.h.b16 %v3180
    %v4569 = vunpack.c.l.b16 %v3181
    %v4570 = vunpack.c.h.b16 %v3181
    %v4571 = vunpack.c.l.b16 %v3182
    %v4572 = vunpack.c.h.b16 %v3182
    %v4573 = vunpack.c.l.b16 %v3183
    %v4574 = vunpack.c.h.b16 %v3183
    %v4575 = vunpack.c.l.b16 %v3184
    %v4576 = vunpack.c.h.b16 %v3184
    %v4577 = vunpack.c.l.b16 %v3185
    %v4578 = vunpack.c.h.b16 %v3185
    %v4579 = vunpack.c.l.b16 %v3186
    %v4580 = vunpack.c.h.b16 %v3186
    %v4581 = vunpack.c.l.b16 %v3187
    %v4582 = vunpack.c.h.b16 %v3187
    %v4583 = vunpack.c.l.b16 %v3188
    %v4584 = vunpack.c.h.b16 %v3188
    %v4585 = vunpack.c.l.b16 %v3189
    %v4586 = vunpack.c.h.b16 %v3189
    %v4587 = vunpack.c.l.b16 %v3190
    %v4588 = vunpack.c.h.b16 %v3190
    %v4589 = vunpack.c.l.b16 %v3191
    %v4590 = vunpack.c.h.b16 %v3191
    %v4591 = vunpack.c.l.b16 %v3192
    %v4592 = vunpack.c.h.b16 %v3192
    %v4593 = vunpack.c.l.b16 %v3193
    %v4594 = vunpack.c.h.b16 %v3193
    %v4595 = vunpack.c.l.b16 %v3194
    %v4596 = vunpack.c.h.b16 %v3194
    %v4597 = vunpack.c.l.b16 %v3195
    %v4598 = vunpack.c.h.b16 %v3195
    %v4599 = vunpack.c.l.b16 %v3196
    %v4600 = vunpack.c.h.b16 %v3196
    %v4601 = vunpack.c.l.b16 %v3197
    %v4602 = vunpack.c.h.b16 %v3197
    %v4603 = vunpack.c.l.b16 %v3198
    %v4604 = vunpack.c.h.b16 %v3198
    %v4605 = vunpack.c.l.b16 %v3199
    %v4606 = vunpack.c.h.b16 %v3199
    %v4607 = vunpack.c.l.b16 %v3200
    %v4608 = vunpack.c.h.b16 %v3200
    %v4609 = vunpack.c.l.b16 %v3201
    %v4610 = vunpack.c.h.b16 %v3201
    %v4611 = vunpack.c.l.b16 %v3202
    %v4612 = vunpack.c.h.b16 %v3202
    %v4613 = vunpack.c.l.b16 %v3203
    %v4614 = vunpack.c.h.b16 %v3203
    %v4615 = vunpack.c.l.b16 %v3204
    %v4616 = vunpack.c.h.b16 %v3204
    %v4617 = vunpack.c.l.b16 %v3205
    %v4618 = vunpack.c.h.b16 %v3205
    %v4619 = vunpack.c.l.b16 %v3206
    %v4620 = vunpack.c.h.b16 %v3206
    %v4621 = vunpack.c.l.b16 %v3207
    %v4622 = vunpack.c.h.b16 %v3207
    %v4623 = vunpack.c.l.b16 %v3208
    %v4624 = vunpack.c.h.b16 %v3208
    %v4625 = vunpack.c.l.b16 %v3209
    %v4626 = vunpack.c.h.b16 %v3209
    %v4627 = vunpack.c.l.b16 %v3210
    %v4628 = vunpack.c.h.b16 %v3210
    %v4629 = vunpack.c.l.b16 %v3211
    %v4630 = vunpack.c.h.b16 %v3211
    %v4631 = vunpack.c.l.b16 %v3212
    %v4632 = vunpack.c.h.b16 %v3212
    %v4633 = vunpack.c.l.b16 %v3213
    %v4634 = vunpack.c.h.b16 %v3213
    %v4635 = vunpack.c.l.b16 %v3214
    %v4636 = vunpack.c.h.b16 %v3214
    %v4637 = vunpack.c.l.b16 %v3215
    %v4638 = vunpack.c.h.b16 %v3215
    %v4639 = vunpack.c.l.b16 %v3216
    %v4640 = vunpack.c.h.b16 %v3216
    %v4641 = vunpack.c.l.b16 %v3217
    %v4642 = vunpack.c.h.b16 %v3217
    %v4643 = vunpack.c.l.b16 %v3218
    %v4644 = vunpack.c.h.b16 %v3218
    %v4645 = vunpack.c.l.b16 %v3219
    %v4646 = vunpack.c.h.b16 %v3219
    %v4647 = vunpack.c.l.b16 %v3220
    %v4648 = vunpack.c.h.b16 %v3220
    %v4649 = vunpack.c.l.b16 %v3221
    %v4650 = vunpack.c.h.b16 %v3221
    %v4651 = vunpack.c.l.b16 %v3222
    %v4652 = vunpack.c.h.b16 %v3222
    %v4653 = vunpack.c.l.b16 %v3223
    %v4654 = vunpack.c.h.b16 %v3223
    %v4655 = vunpack.c.l.b16 %v3224
    %v4656 = vunpack.c.h.b16 %v3224
    %v4657 = vunpack.c.l.b16 %v3225
    %v4658 = vunpack.c.h.b16 %v3225
    %v4659 = vunpack.c.l.b16 %v3226
    %v4660 = vunpack.c.h.b16 %v3226
    %v4661 = vunpack.c.l.b16 %v3227
    %v4662 = vunpack.c.h.b16 %v3227
    %v4663 = vunpack.c.l.b16 %v3228
    %v4664 = vunpack.c.h.b16 %v3228
    %v4665 = vunpack.c.l.b16 %v3229
    %v4666 = vunpack.c.h.b16 %v3229
    %v4667 = vunpack.c.l.b16 %v3230
    %v4668 = vunpack.c.h.b16 %v3230
    %v4669 = vunpack.c.l.b16 %v3231
    %v4670 = vunpack.c.h.b16 %v3231
    %v4671 = vunpack.c.l.b16 %v3232
    %v4672 = vunpack.c.h.b16 %v3232
    %v4673 = vunpack.c.l.b16 %v3233
    %v4674 = vunpack.c.h.b16 %v3233
    %v4675 = vunpack.c.l.b16 %v3234
    %v4676 = vunpack.c.h.b16 %v3234
    %v4677 = vunpack.c.l.b16 %v3235
    %v4678 = vunpack.c.h.b16 %v3235
    %v4679 = vunpack.c.l.b16 %v3236
    %v4680 = vunpack.c.h.b16 %v3236
    %v4681 = vunpack.c.l.b16 %v3237
    %v4682 = vunpack.c.h.b16 %v3237
    %v4683 = vunpack.c.l.b16 %v3238
    %v4684 = vunpack.c.h.b16 %v3238
    %v4685 = vunpack.c.l.b16 %v3239
    %v4686 = vunpack.c.h.b16 %v3239
    %v4687 = vunpack.c.l.b16 %v3240
    %v4688 = vunpack.c.h.b16 %v3240
    %v4689 = vunpack.c.l.b16 %v3241
    %v4690 = vunpack.c.h.b16 %v3241
    %v4691 = vunpack.c.l.b16 %v3242
    %v4692 = vunpack.c.h.b16 %v3242
    %v4693 = vunpack.c.l.b16 %v3243
    %v4694 = vunpack.c.h.b16 %v3243
    %v4695 = vunpack.c.l.b16 %v3244
    %v4696 = vunpack.c.h.b16 %v3244
    %v4697 = vunpack.c.l.b16 %v3245
    %v4698 = vunpack.c.h.b16 %v3245
    %v4699 = vunpack.c.l.b16 %v3246
    %v4700 = vunpack.c.h.b16 %v3246
    %v4701 = vunpack.c.l.b16 %v3247
    %v4702 = vunpack.c.h.b16 %v3247
    %v4703 = vunpack.c.l.b16 %v3248
    %v4704 = vunpack.c.h.b16 %v3248
    %v4705 = vunpack.c.l.b16 %v3249
    %v4706 = vunpack.c.h.b16 %v3249
    %v4707 = vunpack.c.l.b16 %v3250
    %v4708 = vunpack.c.h.b16 %v3250
    %v4709 = vunpack.c.l.b16 %v3251
    %v4710 = vunpack.c.h.b16 %v3251
    %v4711 = vunpack.c.l.b16 %v3252
    %v4712 = vunpack.c.h.b16 %v3252
    %v4713 = vunpack.c.l.b16 %v3253
    %v4714 = vunpack.c.h.b16 %v3253
    %v4715 = vunpack.c.l.b16 %v3254
    %v4716 = vunpack.c.h.b16 %v3254
    %v4717 = vunpack.c.l.b16 %v3255
    %v4718 = vunpack.c.h.b16 %v3255
    %v4719 = vunpack.c.l.b16 %v3256
    %v4720 = vunpack.c.h.b16 %v3256
    %v4721 = vunpack.c.l.b16 %v3257
    %v4722 = vunpack.c.h.b16 %v3257
    %v4723 = vunpack.c.l.b16 %v3258
    %v4724 = vunpack.c.h.b16 %v3258
    %v4725 = vunpack.c.l.b16 %v3259
    %v4726 = vunpack.c.h.b16 %v3259
    %v4727 = vunpack.c.l.b16 %v3260
    %v4728 = vunpack.c.h.b16 %v3260
    %v4729 = vunpack.c.l.b16 %v3261
    %v4730 = vunpack.c.h.b16 %v3261
    %v4731 = vunpack.c.l.b16 %v3262
    %v4732 = vunpack.c.h.b16 %v3262
    %v4733 = vunpack.c.l.b16 %v3263
    %v4734 = vunpack.c.h.b16 %v3263
    %v4735 = vunpack.c.l.b16 %v3264
    %v4736 = vunpack.c.h.b16 %v3264
    %v4737 = vunpack.c.l.b16 %v3265
    %v4738 = vunpack.c.h.b16 %v3265
    %v4739 = vunpack.c.l.b16 %v3266
    %v4740 = vunpack.c.h.b16 %v3266
    %v4741 = vunpack.c.l.b16 %v3267
    %v4742 = vunpack.c.h.b16 %v3267
    %v4743 = vunpack.c.l.b16 %v3268
    %v4744 = vunpack.c.h.b16 %v3268
    %v4745 = vunpack.c.l.b16 %v3269
    %v4746 = vunpack.c.h.b16 %v3269
    %v4747 = vunpack.c.l.b16 %v3270
    %v4748 = vunpack.c.h.b16 %v3270
    %v4749 = vunpack.c.l.b16 %v3271
    %v4750 = vunpack.c.h.b16 %v3271
    %v4751 = vunpack.c.l.b16 %v3272
    %v4752 = vunpack.c.h.b16 %v3272
    %v4753 = vunpack.c.l.b16 %v3273
    %v4754 = vunpack.c.h.b16 %v3273
    %v4755 = vunpack.c.l.b16 %v3274
    %v4756 = vunpack.c.h.b16 %v3274
    %v4757 = vunpack.c.l.b16 %v3275
    %v4758 = vunpack.c.h.b16 %v3275
    %v4759 = vunpack.c.l.b16 %v3276
    %v4760 = vunpack.c.h.b16 %v3276
    %v4761 = vunpack.c.l.b16 %v3277
    %v4762 = vunpack.c.h.b16 %v3277
    %v4763 = vunpack.c.l.b16 %v3278
    %v4764 = vunpack.c.h.b16 %v3278
    %v4765 = vunpack.c.l.b16 %v3279
    %v4766 = vunpack.c.h.b16 %v3279
    %v4767 = vunpack.c.l.b16 %v3280
    %v4768 = vunpack.c.h.b16 %v3280
    %v4769 = vunpack.c.l.b16 %v3281
    %v4770 = vunpack.c.h.b16 %v3281
    %v4771 = vunpack.c.l.b16 %v3282
    %v4772 = vunpack.c.h.b16 %v3282
    %v4773 = vunpack.c.l.b16 %v3283
    %v4774 = vunpack.c.h.b16 %v3283
    %v4775 = vunpack.c.l.b16 %v3284
    %v4776 = vunpack.c.h.b16 %v3284
    %v4777 = vunpack.c.l.b16 %v3285
    %v4778 = vunpack.c.h.b16 %v3285
    %v4779 = vunpack.c.l.b16 %v3286
    %v4780 = vunpack.c.h.b16 %v3286
    %v4781 = vunpack.c.l.b16 %v3287
    %v4782 = vunpack.c.h.b16 %v3287
    %v4783 = vunpack.c.l.b16 %v3288
    %v4784 = vunpack.c.h.b16 %v3288
    %v4785 = vunpack.c.l.b16 %v3289
    %v4786 = vunpack.c.h.b16 %v3289
    %v4787 = vunpack.c.l.b16 %v3290
    %v4788 = vunpack.c.h.b16 %v3290
    %v4789 = vunpack.c.l.b16 %v3291
    %v4790 = vunpack.c.h.b16 %v3291
    %v4791 = vunpack.c.l.b16 %v3292
    %v4792 = vunpack.c.h.b16 %v3292
    %v4793 = vunpack.c.l.b16 %v3293
    %v4794 = vunpack.c.h.b16 %v3293
    %v4795 = vunpack.c.l.b16 %v3294
    %v4796 = vunpack.c.h.b16 %v3294
    %v4797 = vunpack.c.l.b16 %v3295
    %v4798 = vunpack.c.h.b16 %v3295
    %v4799 = vunpack.c.l.b16 %v3296
    %v4800 = vunpack.c.h.b16 %v3296
    %v4801 = vunpack.c.l.b16 %v3297
    %v4802 = vunpack.c.h.b16 %v3297
    %v4803 = vunpack.c.l.b16 %v3298
    %v4804 = vunpack.c.h.b16 %v3298
    %v4805 = vunpack.c.l.b16 %v3299
    %v4806 = vunpack.c.h.b16 %v3299
    %v4807 = vunpack.c.l.b16 %v3300
    %v4808 = vunpack.c.h.b16 %v3300
    %v4809 = vunpack.c.l.b16 %v3301
    %v4810 = vunpack.c.h.b16 %v3301
    %v4811 = vunpack.c.l.b16 %v3302
    %v4812 = vunpack.c.h.b16 %v3302
    %v4813 = vunpack.c.l.b16 %v3303
    %v4814 = vunpack.c.h.b16 %v3303
    %v4815 = vunpack.c.l.b16 %v3304
    %v4816 = vunpack.c.h.b16 %v3304
    %v4817 = vunpack.c.l.b16 %v3305
    %v4818 = vunpack.c.h.b16 %v3305
    %v4819 = vunpack.c.l.b16 %v3306
    %v4820 = vunpack.c.h.b16 %v3306
    %v4821 = vunpack.c.l.b16 %v3307
    %v4822 = vunpack.c.h.b16 %v3307
    %v4823 = vunpack.c.l.b16 %v3308
    %v4824 = vunpack.c.h.b16 %v3308
    %v4825 = vunpack.c.l.b16 %v3309
    %v4826 = vunpack.c.h.b16 %v3309
    %v4827 = vunpack.c.l.b16 %v3310
    %v4828 = vunpack.c.h.b16 %v3310
    %v4829 = vunpack.c.l.b16 %v3311
    %v4830 = vunpack.c.h.b16 %v3311
    %v4831 = vunpack.c.l.b16 %v3312
    %v4832 = vunpack.c.h.b16 %v3312
    %v4833 = vunpack.c.l.b16 %v3313
    %v4834 = vunpack.c.h.b16 %v3313
    %v4835 = vunpack.c.l.b16 %v3314
    %v4836 = vunpack.c.h.b16 %v3314
    %v4837 = vunpack.c.l.b16 %v3315
    %v4838 = vunpack.c.h.b16 %v3315
    %v4839 = vunpack.c.l.b16 %v3316
    %v4840 = vunpack.c.h.b16 %v3316
    %v4841 = vunpack.c.l.b16 %v3317
    %v4842 = vunpack.c.h.b16 %v3317
    %v4843 = vunpack.c.l.b16 %v3318
    %v4844 = vunpack.c.h.b16 %v3318
    %v4845 = vunpack.c.l.b16 %v3319
    %v4846 = vunpack.c.h.b16 %v3319
    %v4847 = vunpack.c.l.b16 %v3320
    %v4848 = vunpack.c.h.b16 %v3320
    %v4849 = vunpack.c.l.b16 %v3321
    %v4850 = vunpack.c.h.b16 %v3321
    %v4851 = vunpack.c.l.b16 %v3322
    %v4852 = vunpack.c.h.b16 %v3322
    %v4853 = vunpack.c.l.b16 %v3323
    %v4854 = vunpack.c.h.b16 %v3323
    %v4855 = vunpack.c.l.b16 %v3324
    %v4856 = vunpack.c.h.b16 %v3324
    %v4857 = vunpack.c.l.b16 %v3325
    %v4858 = vunpack.c.h.b16 %v3325
    %v4859 = vunpack.c.l.b16 %v3326
    %v4860 = vunpack.c.h.b16 %v3326
    %v4861 = vunpack.c.l.b16 %v3327
    %v4862 = vunpack.c.h.b16 %v3327
    %v4863 = vunpack.c.l.b16 %v3328
    %v4864 = vunpack.c.h.b16 %v3328
    %v4865 = vunpack.c.l.b16 %v3329
    %v4866 = vunpack.c.h.b16 %v3329
    %v4867 = vunpack.c.l.b16 %v3330
    %v4868 = vunpack.c.h.b16 %v3330
    %v4869 = vunpack.c.l.b16 %v3331
    %v4870 = vunpack.c.h.b16 %v3331
    %v4871 = vunpack.c.l.b16 %v3332
    %v4872 = vunpack.c.h.b16 %v3332
    %v4873 = vunpack.c.l.b16 %v3333
    %v4874 = vunpack.c.h.b16 %v3333
    %v4875 = vunpack.c.l.b16 %v3334
    %v4876 = vunpack.c.h.b16 %v3334
    %v4877 = vunpack.c.l.b16 %v3335
    %v4878 = vunpack.c.h.b16 %v3335
    %v4879 = vunpack.c.l.b16 %v3336
    %v4880 = vunpack.c.h.b16 %v3336
    %v4881 = vunpack.c.l.b16 %v3337
    %v4882 = vunpack.c.h.b16 %v3337
    %v4883 = vunpack.c.l.b16 %v3338
    %v4884 = vunpack.c.h.b16 %v3338
    %v4885 = vunpack.c.l.b16 %v3339
    %v4886 = vunpack.c.h.b16 %v3339
    %v4887 = vunpack.c.l.b16 %v3340
    %v4888 = vunpack.c.h.b16 %v3340
    %v4889 = vunpack.c.l.b16 %v3341
    %v4890 = vunpack.c.h.b16 %v3341
    %v4891 = vunpack.c.l.b16 %v3342
    %v4892 = vunpack.c.h.b16 %v3342
    %v4893 = vunpack.c.l.b16 %v3343
    %v4894 = vunpack.c.h.b16 %v3343
    %v4895 = vunpack.c.l.b16 %v3344
    %v4896 = vunpack.c.h.b16 %v3344
    %v4897 = vunpack.c.l.b16 %v3345
    %v4898 = vunpack.c.h.b16 %v3345
    %v4899 = vunpack.c.l.b16 %v3346
    %v4900 = vunpack.c.h.b16 %v3346
    %v4901 = vunpack.c.l.b16 %v3347
    %v4902 = vunpack.c.h.b16 %v3347
    %v4903 = vunpack.c.l.b16 %v3348
    %v4904 = vunpack.c.h.b16 %v3348
    %v4905 = vunpack.c.l.b16 %v3349
    %v4906 = vunpack.c.h.b16 %v3349
    %v4907 = vunpack.c.l.b16 %v3350
    %v4908 = vunpack.c.h.b16 %v3350
    %v4909 = vunpack.c.l.b16 %v3351
    %v4910 = vunpack.c.h.b16 %v3351
    %v4911 = vunpack.c.l.b16 %v3352
    %v4912 = vunpack.c.h.b16 %v3352
    %v4913 = vunpack.c.l.b16 %v3353
    %v4914 = vunpack.c.h.b16 %v3353
    %v4915 = vunpack.c.l.b16 %v3354
    %v4916 = vunpack.c.h.b16 %v3354
    %v4917 = vunpack.c.l.b16 %v3355
    %v4918 = vunpack.c.h.b16 %v3355
    %v4919 = vunpack.c.l.b16 %v3356
    %v4920 = vunpack.c.h.b16 %v3356
    %v4921 = vunpack.c.l.b16 %v3357
    %v4922 = vunpack.c.h.b16 %v3357
    %v4923 = vunpack.c.l.b16 %v3358
    %v4924 = vunpack.c.h.b16 %v3358
    %v4925 = vunpack.c.l.b16 %v3359
    %v4926 = vunpack.c.h.b16 %v3359
    %v4927 = vunpack.c.l.b16 %v3360
    %v4928 = vunpack.c.h.b16 %v3360
    %v4929 = vunpack.c.l.b16 %v3361
    %v4930 = vunpack.c.h.b16 %v3361
    %v4931 = vunpack.c.l.b16 %v3362
    %v4932 = vunpack.c.h.b16 %v3362
    %v4933 = vunpack.c.l.b16 %v3363
    %v4934 = vunpack.c.h.b16 %v3363
    %v4935 = vunpack.c.l.b16 %v3364
    %v4936 = vunpack.c.h.b16 %v3364
    %v4937 = vunpack.c.l.b16 %v3365
    %v4938 = vunpack.c.h.b16 %v3365
    %v4939 = vunpack.c.l.b16 %v3366
    %v4940 = vunpack.c.h.b16 %v3366
    %v4941 = vunpack.c.l.b16 %v3367
    %v4942 = vunpack.c.h.b16 %v3367
    %v4943 = vunpack.c.l.b16 %v3368
    %v4944 = vunpack.c.h.b16 %v3368
    %v4945 = vunpack.c.l.b16 %v3369
    %v4946 = vunpack.c.h.b16 %v3369
    %v4947 = vunpack.c.l.b16 %v3370
    %v4948 = vunpack.c.h.b16 %v3370
    %v4949 = vunpack.c.l.b16 %v3371
    %v4950 = vunpack.c.h.b16 %v3371
    %v4951 = vunpack.c.l.b16 %v3372
    %v4952 = vunpack.c.h.b16 %v3372
    %v4953 = vunpack.c.l.b16 %v3373
    %v4954 = vunpack.c.h.b16 %v3373
    %v4955 = vunpack.c.l.b16 %v3374
    %v4956 = vunpack.c.h.b16 %v3374
    %v4957 = vunpack.c.l.b16 %v3375
    %v4958 = vunpack.c.h.b16 %v3375
    %v4959 = vunpack.c.l.b16 %v3376
    %v4960 = vunpack.c.h.b16 %v3376
    %v4961 = vunpack.c.l.b16 %v3377
    %v4962 = vunpack.c.h.b16 %v3377
    %v4963 = vunpack.c.l.b16 %v3378
    %v4964 = vunpack.c.h.b16 %v3378
    %v4965 = vunpack.c.l.b16 %v3379
    %v4966 = vunpack.c.h.b16 %v3379
    %v4967 = vunpack.c.l.b16 %v3380
    %v4968 = vunpack.c.h.b16 %v3380
    %v4969 = vunpack.c.l.b16 %v3381
    %v4970 = vunpack.c.h.b16 %v3381
    %v4971 = vunpack.c.l.b16 %v3382
    %v4972 = vunpack.c.h.b16 %v3382
    %v4973 = vunpack.c.l.b16 %v3383
    %v4974 = vunpack.c.h.b16 %v3383
    %v4975 = vunpack.c.l.b16 %v3384
    %v4976 = vunpack.c.h.b16 %v3384
    %v4977 = vunpack.c.l.b16 %v3385
    %v4978 = vunpack.c.h.b16 %v3385
    %v4979 = vunpack.c.l.b16 %v3386
    %v4980 = vunpack.c.h.b16 %v3386
    %v4981 = vunpack.c.l.b16 %v3387
    %v4982 = vunpack.c.h.b16 %v3387
    %v4983 = vunpack.c.l.b16 %v3388
    %v4984 = vunpack.c.h.b16 %v3388
    %v4985 = vunpack.c.l.b16 %v3389
    %v4986 = vunpack.c.h.b16 %v3389
    %v4987 = vunpack.c.l.b16 %v3390
    %v4988 = vunpack.c.h.b16 %v3390
    %v4989 = vunpack.c.l.b16 %v3391
    %v4990 = vunpack.c.h.b16 %v3391
    %v4991 = vunpack.c.l.b16 %v3392
    %v4992 = vunpack.c.h.b16 %v3392
    %v4993 = vunpack.c.l.b16 %v3393
    %v4994 = vunpack.c.h.b16 %v3393
    %v4995 = vunpack.c.l.b16 %v3394
    %v4996 = vunpack.c.h.b16 %v3394
    %v4997 = vunpack.c.l.b16 %v3395
    %v4998 = vunpack.c.h.b16 %v3395
    %v4999 = vunpack.c.l.b16 %v3396
    %v5000 = vunpack.c.h.b16 %v3396
    %v5001 = vunpack.c.l.b16 %v3397
    %v5002 = vunpack.c.h.b16 %v3397
    %v5003 = vunpack.c.l.b16 %v3398
    %v5004 = vunpack.c.h.b16 %v3398
    %v5005 = vunpack.c.l.b16 %v3399
    %v5006 = vunpack.c.h.b16 %v3399
    %v5007 = vunpack.c.l.b16 %v3400
    %v5008 = vunpack.c.h.b16 %v3400
    %v5009 = vunpack.c.l.b16 %v3401
    %v5010 = vunpack.c.h.b16 %v3401
    %v5011 = vunpack.c.l.b16 %v3402
    %v5012 = vunpack.c.h.b16 %v3402
    %v5013 = vunpack.c.l.b16 %v3403
    %v5014 = vunpack.c.h.b16 %v3403
    %v5015 = vunpack.c.l.b16 %v3404
    %v5016 = vunpack.c.h.b16 %v3404
    %v5017 = vunpack.c.l.b16 %v3405
    %v5018 = vunpack.c.h.b16 %v3405
    %v5019 = vunpack.c.l.b16 %v3406
    %v5020 = vunpack.c.h.b16 %v3406
    %v5021 = vunpack.c.l.b16 %v3407
    %v5022 = vunpack.c.h.b16 %v3407
    %v5023 = vunpack.c.l.b16 %v3408
    %v5024 = vunpack.c.h.b16 %v3408
    %v5025 = vunpack.c.l.b16 %v3409
    %v5026 = vunpack.c.h.b16 %v3409
    %v5027 = vunpack.c.l.b16 %v3410
    %v5028 = vunpack.c.h.b16 %v3410
    %v5029 = vunpack.c.l.b16 %v3411
    %v5030 = vunpack.c.h.b16 %v3411
    %v5031 = vunpack.c.l.b16 %v3412
    %v5032 = vunpack.c.h.b16 %v3412
    %v5033 = vunpack.c.l.b16 %v3413
    %v5034 = vunpack.c.h.b16 %v3413
    %v5035 = vunpack.c.l.b16 %v3414
    %v5036 = vunpack.c.h.b16 %v3414
    %v5037 = vunpack.c.l.b16 %v3415
    %v5038 = vunpack.c.h.b16 %v3415
    %v5039 = vunpack.c.l.b16 %v3416
    %v5040 = vunpack.c.h.b16 %v3416
    %v5041 = vunpack.c.l.b16 %v3417
    %v5042 = vunpack.c.h.b16 %v3417
    %v5043 = vunpack.c.l.b16 %v3418
    %v5044 = vunpack.c.h.b16 %v3418
    %v5045 = vunpack.c.l.b16 %v3419
    %v5046 = vunpack.c.h.b16 %v3419
    %v5047 = vunpack.c.l.b16 %v3420
    %v5048 = vunpack.c.h.b16 %v3420
    %v5049 = vunpack.c.l.b16 %v3421
    %v5050 = vunpack.c.h.b16 %v3421
    %v5051 = vunpack.c.l.b16 %v3422
    %v5052 = vunpack.c.h.b16 %v3422
    %v5053 = vunpack.c.l.b16 %v3423
    %v5054 = vunpack.c.h.b16 %v3423
    %v5055 = vunpack.c.l.b16 %v3424
    %v5056 = vunpack.c.h.b16 %v3424
    %v5057 = vunpack.c.l.b16 %v3425
    %v5058 = vunpack.c.h.b16 %v3425
    %v5059 = vunpack.c.l.b16 %v3426
    %v5060 = vunpack.c.h.b16 %v3426
    %v5061 = vunpack.c.l.b16 %v3427
    %v5062 = vunpack.c.h.b16 %v3427
    %v5063 = vunpack.c.l.b16 %v3428
    %v5064 = vunpack.c.h.b16 %v3428
    %v5065 = vunpack.c.l.b16 %v3429
    %v5066 = vunpack.c.h.b16 %v3429
    %v5067 = vunpack.c.l.b16 %v3430
    %v5068 = vunpack.c.h.b16 %v3430
    %v5069 = vunpack.c.l.b16 %v3431
    %v5070 = vunpack.c.h.b16 %v3431
    %v5071 = vunpack.c.l.b16 %v3432
    %v5072 = vunpack.c.h.b16 %v3432
    %v5073 = vunpack.c.l.b16 %v3433
    %v5074 = vunpack.c.h.b16 %v3433
    %v5075 = vunpack.c.l.b16 %v3434
    %v5076 = vunpack.c.h.b16 %v3434
    %v5077 = vunpack.c.l.b16 %v3435
    %v5078 = vunpack.c.h.b16 %v3435
    %v5079 = vunpack.c.l.b16 %v3436
    %v5080 = vunpack.c.h.b16 %v3436
    %v5081 = vunpack.c.l.b16 %v3437
    %v5082 = vunpack.c.h.b16 %v3437
    %v5083 = vunpack.c.l.b16 %v3438
    %v5084 = vunpack.c.h.b16 %v3438
    %v5085 = vunpack.c.l.b16 %v3439
    %v5086 = vunpack.c.h.b16 %v3439
    %v5087 = vunpack.c.l.b16 %v3440
    %v5088 = vunpack.c.h.b16 %v3440
    %v5089 = vunpack.c.l.b16 %v3441
    %v5090 = vunpack.c.h.b16 %v3441
    %v5091 = vunpack.c.l.b16 %v3442
    %v5092 = vunpack.c.h.b16 %v3442
    %v5093 = vunpack.c.l.b16 %v3443
    %v5094 = vunpack.c.h.b16 %v3443
    %v5095 = vunpack.c.l.b16 %v3444
    %v5096 = vunpack.c.h.b16 %v3444
    %v5097 = vunpack.c.l.b16 %v3445
    %v5098 = vunpack.c.h.b16 %v3445
    %v5099 = vunpack.c.l.b16 %v3446
    %v5100 = vunpack.c.h.b16 %v3446
    %v5101 = vunpack.c.l.b16 %v3447
    %v5102 = vunpack.c.h.b16 %v3447
    %v5103 = vunpack.c.l.b16 %v3448
    %v5104 = vunpack.c.h.b16 %v3448
    %v5105 = vunpack.c.l.b16 %v3449
    %v5106 = vunpack.c.h.b16 %v3449
    %v5107 = vunpack.c.l.b16 %v3450
    %v5108 = vunpack.c.h.b16 %v3450
    %v5109 = vunpack.c.l.b16 %v3451
    %v5110 = vunpack.c.h.b16 %v3451
    %v5111 = vunpack.c.l.b16 %v3452
    %v5112 = vunpack.c.h.b16 %v3452
    %v5113 = vunpack.c.l.b16 %v3453
    %v5114 = vunpack.c.h.b16 %v3453
    %v5115 = vunpack.c.l.b16 %v3454
    %v5116 = vunpack.c.h.b16 %v3454
    %v5117 = vunpack.c.l.b16 %v3455
    %v5118 = vunpack.c.h.b16 %v3455
    %v5119 = vunpack.c.l.b16 %v3456
    %v5120 = vunpack.c.h.b16 %v3456
    %v5121 = vunpack.c.l.b16 %v3457
    %v5122 = vunpack.c.h.b16 %v3457
    %v5123 = vunpack.c.l.b16 %v3458
    %v5124 = vunpack.c.h.b16 %v3458
    %v5125 = vunpack.c.l.b16 %v3459
    %v5126 = vunpack.c.h.b16 %v3459
    %v5127 = vunpack.c.l.b16 %v3460
    %v5128 = vunpack.c.h.b16 %v3460
    %v5129 = vunpack.c.l.b16 %v3461
    %v5130 = vunpack.c.h.b16 %v3461
    %v5131 = vunpack.c.l.b16 %v3462
    %v5132 = vunpack.c.h.b16 %v3462
    %v5133 = vunpack.c.l.b16 %v3463
    %v5134 = vunpack.c.h.b16 %v3463
    %v5135 = vunpack.c.l.b16 %v3464
    %v5136 = vunpack.c.h.b16 %v3464
    %v5137 = vunpack.c.l.b16 %v3465
    %v5138 = vunpack.c.h.b16 %v3465
    %v5139 = vunpack.c.l.b16 %v3466
    %v5140 = vunpack.c.h.b16 %v3466
    %v5141 = vunpack.c.l.b16 %v3467
    %v5142 = vunpack.c.h.b16 %v3467
    %v5143 = vunpack.c.l.b16 %v3468
    %v5144 = vunpack.c.h.b16 %v3468
    %v5145 = vunpack.c.l.b16 %v3469
    %v5146 = vunpack.c.h.b16 %v3469
    %v5147 = vunpack.c.l.b16 %v3470
    %v5148 = vunpack.c.h.b16 %v3470
    %v5149 = vunpack.c.l.b16 %v3471
    %v5150 = vunpack.c.h.b16 %v3471
    %v5151 = vunpack.c.l.b16 %v3472
    %v5152 = vunpack.c.h.b16 %v3472
    %v5153 = vunpack.c.l.b16 %v3473
    %v5154 = vunpack.c.h.b16 %v3473
    %v5155 = vunpack.c.l.b16 %v3474
    %v5156 = vunpack.c.h.b16 %v3474
    %v5157 = vunpack.c.l.b16 %v3475
    %v5158 = vunpack.c.h.b16 %v3475
    %v5159 = vunpack.c.l.b16 %v3476
    %v5160 = vunpack.c.h.b16 %v3476
    %v5161 = vunpack.c.l.b16 %v3477
    %v5162 = vunpack.c.h.b16 %v3477
    %v5163 = vunpack.c.l.b16 %v3478
    %v5164 = vunpack.c.h.b16 %v3478
    %v5165 = vunpack.c.l.b16 %v3479
    %v5166 = vunpack.c.h.b16 %v3479
    %v5167 = vunpack.c.l.b16 %v3480
    %v5168 = vunpack.c.h.b16 %v3480
    %v5169 = vunpack.c.l.b16 %v3481
    %v5170 = vunpack.c.h.b16 %v3481
    %v5171 = vunpack.c.l.b16 %v3482
    %v5172 = vunpack.c.h.b16 %v3482
    %v5173 = vunpack.c.l.b16 %v3483
    %v5174 = vunpack.c.h.b16 %v3483
    %v5175 = vunpack.c.l.b16 %v3484
    %v5176 = vunpack.c.h.b16 %v3484
    %v5177 = vunpack.c.l.b16 %v3485
    %v5178 = vunpack.c.h.b16 %v3485
    %v5179 = vunpack.c.l.b16 %v3486
    %v5180 = vunpack.c.h.b16 %v3486
    %v5181 = vunpack.c.l.b16 %v3487
    %v5182 = vunpack.c.h.b16 %v3487
    %v5183 = vunpack.c.l.b16 %v3488
    %v5184 = vunpack.c.h.b16 %v3488
    %v5185 = vunpack.c.l.b16 %v3489
    %v5186 = vunpack.c.h.b16 %v3489
    %v5187 = vunpack.c.l.b16 %v3490
    %v5188 = vunpack.c.h.b16 %v3490
    %v5189 = vunpack.c.l.b16 %v3491
    %v5190 = vunpack.c.h.b16 %v3491
    %v5191 = vunpack.c.l.b16 %v3492
    %v5192 = vunpack.c.h.b16 %v3492
    %v5193 = vunpack.c.l.b16 %v3493
    %v5194 = vunpack.c.h.b16 %v3493
    %v5195 = vunpack.c.l.b16 %v3494
    %v5196 = vunpack.c.h.b16 %v3494
    %v5197 = vunpack.c.l.b16 %v3495
    %v5198 = vunpack.c.h.b16 %v3495
    %v5199 = vunpack.c.l.b16 %v3496
    %v5200 = vunpack.c.h.b16 %v3496
    %v5201 = vunpack.c.l.b16 %v3497
    %v5202 = vunpack.c.h.b16 %v3497
    %v5203 = vunpack.c.l.b16 %v3498
    %v5204 = vunpack.c.h.b16 %v3498
    %v5205 = vunpack.c.l.b16 %v3499
    %v5206 = vunpack.c.h.b16 %v3499
    %v5207 = vunpack.c.l.b16 %v3500
    %v5208 = vunpack.c.h.b16 %v3500
    %v5209 = vunpack.c.l.b16 %v3501
    %v5210 = vunpack.c.h.b16 %v3501
    %v5211 = vunpack.c.l.b16 %v3502
    %v5212 = vunpack.c.h.b16 %v3502
    %v5213 = vunpack.c.l.b16 %v3503
    %v5214 = vunpack.c.h.b16 %v3503
    %v5215 = vunpack.c.l.b16 %v3504
    %v5216 = vunpack.c.h.b16 %v3504
    %v5217 = vunpack.c.l.b16 %v3505
    %v5218 = vunpack.c.h.b16 %v3505
    %v5219 = vunpack.c.l.b16 %v3506
    %v5220 = vunpack.c.h.b16 %v3506
    %v5221 = vunpack.c.l.b16 %v3507
    %v5222 = vunpack.c.h.b16 %v3507
    %v5223 = vunpack.c.l.b16 %v3508
    %v5224 = vunpack.c.h.b16 %v3508
    %v5225 = vunpack.c.l.b16 %v3509
    %v5226 = vunpack.c.h.b16 %v3509
    %v5227 = vunpack.c.l.b16 %v3510
    %v5228 = vunpack.c.h.b16 %v3510
    %v5229 = vunpack.c.l.b16 %v3511
    %v5230 = vunpack.c.h.b16 %v3511
    %v5231 = vunpack.c.l.b16 %v3512
    %v5232 = vunpack.c.h.b16 %v3512
    %v5233 = vunpack.c.l.b16 %v3513
    %v5234 = vunpack.c.h.b16 %v3513
    %v5235 = vunpack.c.l.b16 %v3514
    %v5236 = vunpack.c.h.b16 %v3514
    %v5237 = vunpack.c.l.b16 %v3515
    %v5238 = vunpack.c.h.b16 %v3515
    %v5239 = vunpack.c.l.b16 %v3516
    %v5240 = vunpack.c.h.b16 %v3516
    %v5241 = vunpack.c.l.b16 %v3517
    %v5242 = vunpack.c.h.b16 %v3517
    %v5243 = vunpack.c.l.b16 %v3518
    %v5244 = vunpack.c.h.b16 %v3518
    %v5245 = vunpack.c.l.b16 %v3519
    %v5246 = vunpack.c.h.b16 %v3519
    %v5247 = vunpack.c.l.b16 %v3520
    %v5248 = vunpack.c.h.b16 %v3520
    %v5249 = vpack.c.b16 %v4109, %v4097
    %v5250 = vpack.c.b16 %v4110, %v4098
    %v5251 = vpack.c.b16 %v4111, %v4099
    %v5252 = vpack.c.b16 %v4112, %v4100
    %v5253 = vpack.c.b16 %v4113, %v4101
    %v5254 = vpack.c.b16 %v4114, %v4102
    %v5255 = vpack.c.b16 %v4115, %v4103
    %v5256 = vpack.c.b16 %v4116, %v4104
    %v5257 = vpack.c.b16 %v4117, %v4105
    %v5258 = vpack.c.b16 %v4118, %v4106
    %v5259 = vpack.c.b16 %v4119, %v4107
    %v5260 = vpack.c.b16 %v4120, %v4108
    %v5261 = vpack.c.b16 %v4133, %v4121
    %v5262 = vpack.c.b16 %v4134, %v4122
    %v5263 = vpack.c.b16 %v4135, %v4123
    %v5264 = vpack.c.b16 %v4136, %v4124
    %v5265 = vpack.c.b16 %v4137, %v4125
    %v5266 = vpack.c.b16 %v4138, %v4126
    %v5267 = vpack.c.b16 %v4139, %v4127
    %v5268 = vpack.c.b16 %v4140, %v4128
    %v5269 = vpack.c.b16 %v4141, %v4129
    %v5270 = vpack.c.b16 %v4142, %v4130
    %v5271 = vpack.c.b16 %v4143, %v4131
    %v5272 = vpack.c.b16 %v4144, %v4132
    %v5273 = vpack.c.b16 %v4157, %v4145
    %v5274 = vpack.c.b16 %v4158, %v4146
    %v5275 = vpack.c.b16 %v4159, %v4147
    %v5276 = vpack.c.b16 %v4160, %v4148
    %v5277 = vpack.c.b16 %v4161, %v4149
    %v5278 = vpack.c.b16 %v4162, %v4150
    %v5279 = vpack.c.b16 %v4163, %v4151
    %v5280 = vpack.c.b16 %v4164, %v4152
    %v5281 = vpack.c.b16 %v4165, %v4153
    %v5282 = vpack.c.b16 %v4166, %v4154
    %v5283 = vpack.c.b16 %v4167, %v4155
    %v5284 = vpack.c.b16 %v4168, %v4156
    %v5285 = vpack.c.b16 %v4181, %v4169
    %v5286 = vpack.c.b16 %v4182, %v4170
    %v5287 = vpack.c.b16 %v4183, %v4171
    %v5288 = vpack.c.b16 %v4184, %v4172
    %v5289 = vpack.c.b16 %v4185, %v4173
    %v5290 = vpack.c.b16 %v4186, %v4174
    %v5291 = vpack.c.b16 %v4187, %v4175
    %v5292 = vpack.c.b16 %v4188, %v4176
    %v5293 = vpack.c.b16 %v4189, %v4177
    %v5294 = vpack.c.b16 %v4190, %v4178
    %v5295 = vpack.c.b16 %v4191, %v4179
    %v5296 = vpack.c.b16 %v4192, %v4180
    %v5297 = vpack.c.b16 %v4205, %v4193
    %v5298 = vpack.c.b16 %v4206, %v4194
    %v5299 = vpack.c.b16 %v4207, %v4195
    %v5300 = vpack.c.b16 %v4208, %v4196
    %v5301 = vpack.c.b16 %v4209, %v4197
    %v5302 = vpack.c.b16 %v4210, %v4198
    %v5303 = vpack.c.b16 %v4211, %v4199
    %v5304 = vpack.c.b16 %v4212, %v4200
    %v5305 = vpack.c.b16 %v4213, %v4201
    %v5306 = vpack.c.b16 %v4214, %v4202
    %v5307 = vpack.c.b16 %v4215, %v4203
    %v5308 = vpack.c.b16 %v4216, %v4204
    %v5309 = vpack.c.b16 %v4229, %v4217
    %v5310 = vpack.c.b16 %v4230, %v4218
    %v5311 = vpack.c.b16 %v4231, %v4219
    %v5312 = vpack.c.b16 %v4232, %v4220
    %v5313 = vpack.c.b16 %v4233, %v4221
    %v5314 = vpack.c.b16 %v4234, %v4222
    %v5315 = vpack.c.b16 %v4235, %v4223
    %v5316 = vpack.c.b16 %v4236, %v4224
    %v5317 = vpack.c.b16 %v4237, %v4225
    %v5318 = vpack.c.b16 %v4238, %v4226
    %v5319 = vpack.c.b16 %v4239, %v4227
    %v5320 = vpack.c.b16 %v4240, %v4228
    %v5321 = vpack.c.b16 %v4253, %v4241
    %v5322 = vpack.c.b16 %v4254, %v4242
    %v5323 = vpack.c.b16 %v4255, %v4243
    %v5324 = vpack.c.b16 %v4256, %v4244
    %v5325 = vpack.c.b16 %v4257, %v4245
    %v5326 = vpack.c.b16 %v4258, %v4246
    %v5327 = vpack.c.b16 %v4259, %v4247
    %v5328 = vpack.c.b16 %v4260, %v4248
    %v5329 = vpack.c.b16 %v4261, %v4249
    %v5330 = vpack.c.b16 %v4262, %v4250
    %v5331 = vpack.c.b16 %v4263, %v4251
    %v5332 = vpack.c.b16 %v4264, %v4252
    %v5333 = vpack.c.b16 %v4277, %v4265
    %v5334 = vpack.c.b16 %v4278, %v4266
    %v5335 = vpack.c.b16 %v4279, %v4267
    %v5336 = vpack.c.b16 %v4280, %v4268
    %v5337 = vpack.c.b16 %v4281, %v4269
    %v5338 = vpack.c.b16 %v4282, %v4270
    %v5339 = vpack.c.b16 %v4283, %v4271
    %v5340 = vpack.c.b16 %v4284, %v4272
    %v5341 = vpack.c.b16 %v4285, %v4273
    %v5342 = vpack.c.b16 %v4286, %v4274
    %v5343 = vpack.c.b16 %v4287, %v4275
    %v5344 = vpack.c.b16 %v4288, %v4276
    %v5345 = vpack.c.b16 %v4301, %v4289
    %v5346 = vpack.c.b16 %v4302, %v4290
    %v5347 = vpack.c.b16 %v4303, %v4291
    %v5348 = vpack.c.b16 %v4304, %v4292
    %v5349 = vpack.c.b16 %v4305, %v4293
    %v5350 = vpack.c.b16 %v4306, %v4294
    %v5351 = vpack.c.b16 %v4307, %v4295
    %v5352 = vpack.c.b16 %v4308, %v4296
    %v5353 = vpack.c.b16 %v4309, %v4297
    %v5354 = vpack.c.b16 %v4310, %v4298
    %v5355 = vpack.c.b16 %v4311, %v4299
    %v5356 = vpack.c.b16 %v4312, %v4300
    %v5357 = vpack.c.b16 %v4325, %v4313
    %v5358 = vpack.c.b16 %v4326, %v4314
    %v5359 = vpack.c.b16 %v4327, %v4315
    %v5360 = vpack.c.b16 %v4328, %v4316
    %v5361 = vpack.c.b16 %v4329, %v4317
    %v5362 = vpack.c.b16 %v4330, %v4318
    %v5363 = vpack.c.b16 %v4331, %v4319
    %v5364 = vpack.c.b16 %v4332, %v4320
    %v5365 = vpack.c.b16 %v4333, %v4321
    %v5366 = vpack.c.b16 %v4334, %v4322
    %v5367 = vpack.c.b16 %v4335, %v4323
    %v5368 = vpack.c.b16 %v4336, %v4324
    %v5369 = vpack.c.b16 %v4349, %v4337
    %v5370 = vpack.c.b16 %v4350, %v4338
    %v5371 = vpack.c.b16 %v4351, %v4339
    %v5372 = vpack.c.b16 %v4352, %v4340
    %v5373 = vpack.c.b16 %v4353, %v4341
    %v5374 = vpack.c.b16 %v4354, %v4342
    %v5375 = vpack.c.b16 %v4355, %v4343
    %v5376 = vpack.c.b16 %v4356, %v4344
    %v5377 = vpack.c.b16 %v4357, %v4345
    %v5378 = vpack.c.b16 %v4358, %v4346
    %v5379 = vpack.c.b16 %v4359, %v4347
    %v5380 = vpack.c.b16 %v4360, %v4348
    %v5381 = vpack.c.b16 %v4373, %v4361
    %v5382 = vpack.c.b16 %v4374, %v4362
    %v5383 = vpack.c.b16 %v4375, %v4363
    %v5384 = vpack.c.b16 %v4376, %v4364
    %v5385 = vpack.c.b16 %v4377, %v4365
    %v5386 = vpack.c.b16 %v4378, %v4366
    %v5387 = vpack.c.b16 %v4379, %v4367
    %v5388 = vpack.c.b16 %v4380, %v4368
    %v5389 = vpack.c.b16 %v4381, %v4369
    %v5390 = vpack.c.b16 %v4382, %v4370
    %v5391 = vpack.c.b16 %v4383, %v4371
    %v5392 = vpack.c.b16 %v4384, %v4372
    %v5393 = vpack.c.b16 %v4397, %v4385
    %v5394 = vpack.c.b16 %v4398, %v4386
    %v5395 = vpack.c.b16 %v4399, %v4387
    %v5396 = vpack.c.b16 %v4400, %v4388
    %v5397 = vpack.c.b16 %v4401, %v4389
    %v5398 = vpack.c.b16 %v4402, %v4390
    %v5399 = vpack.c.b16 %v4403, %v4391
    %v5400 = vpack.c.b16 %v4404, %v4392
    %v5401 = vpack.c.b16 %v4405, %v4393
    %v5402 = vpack.c.b16 %v4406, %v4394
    %v5403 = vpack.c.b16 %v4407, %v4395
    %v5404 = vpack.c.b16 %v4408, %v4396
    %v5405 = vpack.c.b16 %v4421, %v4409
    %v5406 = vpack.c.b16 %v4422, %v4410
    %v5407 = vpack.c.b16 %v4423, %v4411
    %v5408 = vpack.c.b16 %v4424, %v4412
    %v5409 = vpack.c.b16 %v4425, %v4413
    %v5410 = vpack.c.b16 %v4426, %v4414
    %v5411 = vpack.c.b16 %v4427, %v4415
    %v5412 = vpack.c.b16 %v4428, %v4416
    %v5413 = vpack.c.b16 %v4429, %v4417
    %v5414 = vpack.c.b16 %v4430, %v4418
    %v5415 = vpack.c.b16 %v4431, %v4419
    %v5416 = vpack.c.b16 %v4432, %v4420
    %v5417 = vpack.c.b16 %v4445, %v4433
    %v5418 = vpack.c.b16 %v4446, %v4434
    %v5419 = vpack.c.b16 %v4447, %v4435
    %v5420 = vpack.c.b16 %v4448, %v4436
    %v5421 = vpack.c.b16 %v4449, %v4437
    %v5422 = vpack.c.b16 %v4450, %v4438
    %v5423 = vpack.c.b16 %v4451, %v4439
    %v5424 = vpack.c.b16 %v4452, %v4440
    %v5425 = vpack.c.b16 %v4453, %v4441
    %v5426 = vpack.c.b16 %v4454, %v4442
    %v5427 = vpack.c.b16 %v4455, %v4443
    %v5428 = vpack.c.b16 %v4456, %v4444
    %v5429 = vpack.c.b16 %v4469, %v4457
    %v5430 = vpack.c.b16 %v4470, %v4458
    %v5431 = vpack.c.b16 %v4471, %v4459
    %v5432 = vpack.c.b16 %v4472, %v4460
    %v5433 = vpack.c.b16 %v4473, %v4461
    %v5434 = vpack.c.b16 %v4474, %v4462
    %v5435 = vpack.c.b16 %v4475, %v4463
    %v5436 = vpack.c.b16 %v4476, %v4464
    %v5437 = vpack.c.b16 %v4477, %v4465
    %v5438 = vpack.c.b16 %v4478, %v4466
    %v5439 = vpack.c.b16 %v4479, %v4467
    %v5440 = vpack.c.b16 %v4480, %v4468
    %v5441 = vpack.c.b16 %v4493, %v4481
    %v5442 = vpack.c.b16 %v4494, %v4482
    %v5443 = vpack.c.b16 %v4495, %v4483
    %v5444 = vpack.c.b16 %v4496, %v4484
    %v5445 = vpack.c.b16 %v4497, %v4485
    %v5446 = vpack.c.b16 %v4498, %v4486
    %v5447 = vpack.c.b16 %v4499, %v4487
    %v5448 = vpack.c.b16 %v4500, %v4488
    %v5449 = vpack.c.b16 %v4501, %v4489
    %v5450 = vpack.c.b16 %v4502, %v4490
    %v5451 = vpack.c.b16 %v4503, %v4491
    %v5452 = vpack.c.b16 %v4504, %v4492
    %v5453 = vpack.c.b16 %v4517, %v4505
    %v5454 = vpack.c.b16 %v4518, %v4506
    %v5455 = vpack.c.b16 %v4519, %v4507
    %v5456 = vpack.c.b16 %v4520, %v4508
    %v5457 = vpack.c.b16 %v4521, %v4509
    %v5458 = vpack.c.b16 %v4522, %v4510
    %v5459 = vpack.c.b16 %v4523, %v4511
    %v5460 = vpack.c.b16 %v4524, %v4512
    %v5461 = vpack.c.b16 %v4525, %v4513
    %v5462 = vpack.c.b16 %v4526, %v4514
    %v5463 = vpack.c.b16 %v4527, %v4515
    %v5464 = vpack.c.b16 %v4528, %v4516
    %v5465 = vpack.c.b16 %v4541, %v4529
    %v5466 = vpack.c.b16 %v4542, %v4530
    %v5467 = vpack.c.b16 %v4543, %v4531
    %v5468 = vpack.c.b16 %v4544, %v4532
    %v5469 = vpack.c.b16 %v4545, %v4533
    %v5470 = vpack.c.b16 %v4546, %v4534
    %v5471 = vpack.c.b16 %v4547, %v4535
    %v5472 = vpack.c.b16 %v4548, %v4536
    %v5473 = vpack.c.b16 %v4549, %v4537
    %v5474 = vpack.c.b16 %v4550, %v4538
    %v5475 = vpack.c.b16 %v4551, %v4539
    %v5476 = vpack.c.b16 %v4552, %v4540
    %v5477 = vpack.c.b16 %v4565, %v4553
    %v5478 = vpack.c.b16 %v4566, %v4554
    %v5479 = vpack.c.b16 %v4567, %v4555
    %v5480 = vpack.c.b16 %v4568, %v4556
    %v5481 = vpack.c.b16 %v4569, %v4557
    %v5482 = vpack.c.b16 %v4570, %v4558
    %v5483 = vpack.c.b16 %v4571, %v4559
    %v5484 = vpack.c.b16 %v4572, %v4560
    %v5485 = vpack.c.b16 %v4573, %v4561
    %v5486 = vpack.c.b16 %v4574, %v4562
    %v5487 = vpack.c.b16 %v4575, %v4563
    %v5488 = vpack.c.b16 %v4576, %v4564
    %v5489 = vpack.c.b16 %v4589, %v4577
    %v5490 = vpack.c.b16 %v4590, %v4578
    %v5491 = vpack.c.b16 %v4591, %v4579
    %v5492 = vpack.c.b16 %v4592, %v4580
    %v5493 = vpack.c.b16 %v4593, %v4581
    %v5494 = vpack.c.b16 %v4594, %v4582
    %v5495 = vpack.c.b16 %v4595, %v4583
    %v5496 = vpack.c.b16 %v4596, %v4584
    %v5497 = vpack.c.b16 %v4597, %v4585
    %v5498 = vpack.c.b16 %v4598, %v4586
    %v5499 = vpack.c.b16 %v4599, %v4587
    %v5500 = vpack.c.b16 %v4600, %v4588
    %v5501 = vpack.c.b16 %v4613, %v4601
    %v5502 = vpack.c.b16 %v4614, %v4602
    %v5503 = vpack.c.b16 %v4615, %v4603
    %v5504 = vpack.c.b16 %v4616, %v4604
    %v5505 = vpack.c.b16 %v4617, %v4605
    %v5506 = vpack.c.b16 %v4618, %v4606
    %v5507 = vpack.c.b16 %v4619, %v4607
    %v5508 = vpack.c.b16 %v4620, %v4608
    %v5509 = vpack.c.b16 %v4621, %v4609
    %v5510 = vpack.c.b16 %v4622, %v4610
    %v5511 = vpack.c.b16 %v4623, %v4611
    %v5512 = vpack.c.b16 %v4624, %v4612
    %v5513 = vpack.c.b16 %v4637, %v4625
    %v5514 = vpack.c.b16 %v4638, %v4626
    %v5515 = vpack.c.b16 %v4639, %v4627
    %v5516 = vpack.c.b16 %v4640, %v4628
    %v5517 = vpack.c.b16 %v4641, %v4629
    %v5518 = vpack.c.b16 %v4642, %v4630
    %v5519 = vpack.c.b16 %v4643, %v4631
    %v5520 = vpack.c.b16 %v4644, %v4632
    %v5521 = vpack.c.b16 %v4645, %v4633
    %v5522 = vpack.c.b16 %v4646, %v4634
    %v5523 = vpack.c.b16 %v4647, %v4635
    %v5524 = vpack.c.b16 %v4648, %v4636
    %v5525 = vpack.c.b16 %v4661, %v4649
    %v5526 = vpack.c.b16 %v4662, %v4650
    %v5527 = vpack.c.b16 %v4663, %v4651
    %v5528 = vpack.c.b16 %v4664, %v4652
    %v5529 = vpack.c.b16 %v4665, %v4653
    %v5530 = vpack.c.b16 %v4666, %v4654
    %v5531 = vpack.c.b16 %v4667, %v4655
    %v5532 = vpack.c.b16 %v4668, %v4656
    %v5533 = vpack.c.b16 %v4669, %v4657
    %v5534 = vpack.c.b16 %v4670, %v4658
    %v5535 = vpack.c.b16 %v4671, %v4659
    %v5536 = vpack.c.b16 %v4672, %v4660
    %v5537 = vpack.c.b16 %v4685, %v4673
    %v5538 = vpack.c.b16 %v4686, %v4674
    %v5539 = vpack.c.b16 %v4687, %v4675
    %v5540 = vpack.c.b16 %v4688, %v4676
    %v5541 = vpack.c.b16 %v4689, %v4677
    %v5542 = vpack.c.b16 %v4690, %v4678
    %v5543 = vpack.c.b16 %v4691, %v4679
    %v5544 = vpack.c.b16 %v4692, %v4680
    %v5545 = vpack.c.b16 %v4693, %v4681
    %v5546 = vpack.c.b16 %v4694, %v4682
    %v5547 = vpack.c.b16 %v4695, %v4683
    %v5548 = vpack.c.b16 %v4696, %v4684
    %v5549 = vpack.c.b16 %v4709, %v4697
    %v5550 = vpack.c.b16 %v4710, %v4698
    %v5551 = vpack.c.b16 %v4711, %v4699
    %v5552 = vpack.c.b16 %v4712, %v4700
    %v5553 = vpack.c.b16 %v4713, %v4701
    %v5554 = vpack.c.b16 %v4714, %v4702
    %v5555 = vpack.c.b16 %v4715, %v4703
    %v5556 = vpack.c.b16 %v4716, %v4704
    %v5557 = vpack.c.b16 %v4717, %v4705
    %v5558 = vpack.c.b16 %v4718, %v4706
    %v5559 = vpack.c.b16 %v4719, %v4707
    %v5560 = vpack.c.b16 %v4720, %v4708
    %v5561 = vpack.c.b16 %v4733, %v4721
    %v5562 = vpack.c.b16 %v4734, %v4722
    %v5563 = vpack.c.b16 %v4735, %v4723
    %v5564 = vpack.c.b16 %v4736, %v4724
    %v5565 = vpack.c.b16 %v4737, %v4725
    %v5566 = vpack.c.b16 %v4738, %v4726
    %v5567 = vpack.c.b16 %v4739, %v4727
    %v5568 = vpack.c.b16 %v4740, %v4728
    %v5569 = vpack.c.b16 %v4741, %v4729
    %v5570 = vpack.c.b16 %v4742, %v4730
    %v5571 = vpack.c.b16 %v4743, %v4731
    %v5572 = vpack.c.b16 %v4744, %v4732
    %v5573 = vpack.c.b16 %v4757, %v4745
    %v5574 = vpack.c.b16 %v4758, %v4746
    %v5575 = vpack.c.b16 %v4759, %v4747
    %v5576 = vpack.c.b16 %v4760, %v4748
    %v5577 = vpack.c.b16 %v4761, %v4749
    %v5578 = vpack.c.b16 %v4762, %v4750
    %v5579 = vpack.c.b16 %v4763, %v4751
    %v5580 = vpack.c.b16 %v4764, %v4752
    %v5581 = vpack.c.b16 %v4765, %v4753
    %v5582 = vpack.c.b16 %v4766, %v4754
    %v5583 = vpack.c.b16 %v4767, %v4755
    %v5584 = vpack.c.b16 %v4768, %v4756
    %v5585 = vpack.c.b16 %v4781, %v4769
    %v5586 = vpack.c.b16 %v4782, %v4770
    %v5587 = vpack.c.b16 %v4783, %v4771
    %v5588 = vpack.c.b16 %v4784, %v4772
    %v5589 = vpack.c.b16 %v4785, %v4773
    %v5590 = vpack.c.b16 %v4786, %v4774
    %v5591 = vpack.c.b16 %v4787, %v4775
    %v5592 = vpack.c.b16 %v4788, %v4776
    %v5593 = vpack.c.b16 %v4789, %v4777
    %v5594 = vpack.c.b16 %v4790, %v4778
    %v5595 = vpack.c.b16 %v4791, %v4779
    %v5596 = vpack.c.b16 %v4792, %v4780
    %v5597 = vpack.c.b16 %v4805, %v4793
    %v5598 = vpack.c.b16 %v4806, %v4794
    %v5599 = vpack.c.b16 %v4807, %v4795
    %v5600 = vpack.c.b16 %v4808, %v4796
    %v5601 = vpack.c.b16 %v4809, %v4797
    %v5602 = vpack.c.b16 %v4810, %v4798
    %v5603 = vpack.c.b16 %v4811, %v4799
    %v5604 = vpack.c.b16 %v4812, %v4800
    %v5605 = vpack.c.b16 %v4813, %v4801
    %v5606 = vpack.c.b16 %v4814, %v4802
    %v5607 = vpack.c.b16 %v4815, %v4803
    %v5608 = vpack.c.b16 %v4816, %v4804
    %v5609 = vpack.c.b16 %v4829, %v4817
    %v5610 = vpack.c.b16 %v4830, %v4818
    %v5611 = vpack.c.b16 %v4831, %v4819
    %v5612 = vpack.c.b16 %v4832, %v4820
    %v5613 = vpack.c.b16 %v4833, %v4821
    %v5614 = vpack.c.b16 %v4834, %v4822
    %v5615 = vpack.c.b16 %v4835, %v4823
    %v5616 = vpack.c.b16 %v4836, %v4824
    %v5617 = vpack.c.b16 %v4837, %v4825
    %v5618 = vpack.c.b16 %v4838, %v4826
    %v5619 = vpack.c.b16 %v4839, %v4827
    %v5620 = vpack.c.b16 %v4840, %v4828
    %v5621 = vpack.c.b16 %v4853, %v4841
    %v5622 = vpack.c.b16 %v4854, %v4842
    %v5623 = vpack.c.b16 %v4855, %v4843
    %v5624 = vpack.c.b16 %v4856, %v4844
    %v5625 = vpack.c.b16 %v4857, %v4845
    %v5626 = vpack.c.b16 %v4858, %v4846
    %v5627 = vpack.c.b16 %v4859, %v4847
    %v5628 = vpack.c.b16 %v4860, %v4848
    %v5629 = vpack.c.b16 %v4861, %v4849
    %v5630 = vpack.c.b16 %v4862, %v4850
    %v5631 = vpack.c.b16 %v4863, %v4851
    %v5632 = vpack.c.b16 %v4864, %v4852
    %v5633 = vpack.c.b16 %v4877, %v4865
    %v5634 = vpack.c.b16 %v4878, %v4866
    %v5635 = vpack.c.b16 %v4879, %v4867
    %v5636 = vpack.c.b16 %v4880, %v4868
    %v5637 = vpack.c.b16 %v4881, %v4869
    %v5638 = vpack.c.b16 %v4882, %v4870
    %v5639 = vpack.c.b16 %v4883, %v4871
    %v5640 = vpack.c.b16 %v4884, %v4872
    %v5641 = vpack.c.b16 %v4885, %v4873
    %v5642 = vpack.c.b16 %v4886, %v4874
    %v5643 = vpack.c.b16 %v4887, %v4875
    %v5644 = vpack.c.b16 %v4888, %v4876
    %v5645 = vpack.c.b16 %v4901, %v4889
    %v5646 = vpack.c.b16 %v4902, %v4890
    %v5647 = vpack.c.b16 %v4903, %v4891
    %v5648 = vpack.c.b16 %v4904, %v4892
    %v5649 = vpack.c.b16 %v4905, %v4893
    %v5650 = vpack.c.b16 %v4906, %v4894
    %v5651 = vpack.c.b16 %v4907, %v4895
    %v5652 = vpack.c.b16 %v4908, %v4896
    %v5653 = vpack.c.b16 %v4909, %v4897
    %v5654 = vpack.c.b16 %v4910, %v4898
    %v5655 = vpack.c.b16 %v4911, %v4899
    %v5656 = vpack.c.b16 %v4912, %v4900
    %v5657 = vpack.c.b16 %v4925, %v4913
    %v5658 = vpack.c.b16 %v4926, %v4914
    %v5659 = vpack.c.b16 %v4927, %v4915
    %v5660 = vpack.c.b16 %v4928, %v4916
    %v5661 = vpack.c.b16 %v4929, %v4917
    %v5662 = vpack.c.b16 %v4930, %v4918
    %v5663 = vpack.c.b16 %v4931, %v4919
    %v5664 = vpack.c.b16 %v4932, %v4920
    %v5665 = vpack.c.b16 %v4933, %v4921
    %v5666 = vpack.c.b16 %v4934, %v4922
    %v5667 = vpack.c.b16 %v4935, %v4923
    %v5668 = vpack.c.b16 %v4936, %v4924
    %v5669 = vpack.c.b16 %v4949, %v4937
    %v5670 = vpack.c.b16 %v4950, %v4938
    %v5671 = vpack.c.b16 %v4951, %v4939
    %v5672 = vpack.c.b16 %v4952, %v4940
    %v5673 = vpack.c.b16 %v4953, %v4941
    %v5674 = vpack.c.b16 %v4954, %v4942
    %v5675 = vpack.c.b16 %v4955, %v4943
    %v5676 = vpack.c.b16 %v4956, %v4944
    %v5677 = vpack.c.b16 %v4957, %v4945
    %v5678 = vpack.c.b16 %v4958, %v4946
    %v5679 = vpack.c.b16 %v4959, %v4947
    %v5680 = vpack.c.b16 %v4960, %v4948
    %v5681 = vpack.c.b16 %v4973, %v4961
    %v5682 = vpack.c.b16 %v4974, %v4962
    %v5683 = vpack.c.b16 %v4975, %v4963
    %v5684 = vpack.c.b16 %v4976, %v4964
    %v5685 = vpack.c.b16 %v4977, %v4965
    %v5686 = vpack.c.b16 %v4978, %v4966
    %v5687 = vpack.c.b16 %v4979, %v4967
    %v5688 = vpack.c.b16 %v4980, %v4968
    %v5689 = vpack.c.b16 %v4981, %v4969
    %v5690 = vpack.c.b16 %v4982, %v4970
    %v5691 = vpack.c.b16 %v4983, %v4971
    %v5692 = vpack.c.b16 %v4984, %v4972
    %v5693 = vpack.c.b16 %v4997, %v4985
    %v5694 = vpack.c.b16 %v4998, %v4986
    %v5695 = vpack.c.b16 %v4999, %v4987
    %v5696 = vpack.c.b16 %v5000, %v4988
    %v5697 = vpack.c.b16 %v5001, %v4989
    %v5698 = vpack.c.b16 %v5002, %v4990
    %v5699 = vpack.c.b16 %v5003, %v4991
    %v5700 = vpack.c.b16 %v5004, %v4992
    %v5701 = vpack.c.b16 %v5005, %v4993
    %v5702 = vpack.c.b16 %v5006, %v4994
    %v5703 = vpack.c.b16 %v5007, %v4995
    %v5704 = vpack.c.b16 %v5008, %v4996
    %v5705 = vpack.c.b16 %v5021, %v5009
    %v5706 = vpack.c.b16 %v5022, %v5010
    %v5707 = vpack.c.b16 %v5023, %v5011
    %v5708 = vpack.c.b16 %v5024, %v5012
    %v5709 = vpack.c.b16 %v5025, %v5013
    %v5710 = vpack.c.b16 %v5026, %v5014
    %v5711 = vpack.c.b16 %v5027, %v5015
    %v5712 = vpack.c.b16 %v5028, %v5016
    %v5713 = vpack.c.b16 %v5029, %v5017
    %v5714 = vpack.c.b16 %v5030, %v5018
    %v5715 = vpack.c.b16 %v5031, %v5019
    %v5716 = vpack.c.b16 %v5032, %v5020
    %v5717 = vpack.c.b16 %v5045, %v5033
    %v5718 = vpack.c.b16 %v5046, %v5034
    %v5719 = vpack.c.b16 %v5047, %v5035
    %v5720 = vpack.c.b16 %v5048, %v5036
    %v5721 = vpack.c.b16 %v5049, %v5037
    %v5722 = vpack.c.b16 %v5050, %v5038
    %v5723 = vpack.c.b16 %v5051, %v5039
    %v5724 = vpack.c.b16 %v5052, %v5040
    %v5725 = vpack.c.b16 %v5053, %v5041
    %v5726 = vpack.c.b16 %v5054, %v5042
    %v5727 = vpack.c.b16 %v5055, %v5043
    %v5728 = vpack.c.b16 %v5056, %v5044
    %v5729 = vpack.c.b16 %v5069, %v5057
    %v5730 = vpack.c.b16 %v5070, %v5058
    %v5731 = vpack.c.b16 %v5071, %v5059
    %v5732 = vpack.c.b16 %v5072, %v5060
    %v5733 = vpack.c.b16 %v5073, %v5061
    %v5734 = vpack.c.b16 %v5074, %v5062
    %v5735 = vpack.c.b16 %v5075, %v5063
    %v5736 = vpack.c.b16 %v5076, %v5064
    %v5737 = vpack.c.b16 %v5077, %v5065
    %v5738 = vpack.c.b16 %v5078, %v5066
    %v5739 = vpack.c.b16 %v5079, %v5067
    %v5740 = vpack.c.b16 %v5080, %v5068
    %v5741 = vpack.c.b16 %v5093, %v5081
    %v5742 = vpack.c.b16 %v5094, %v5082
    %v5743 = vpack.c.b16 %v5095, %v5083
    %v5744 = vpack.c.b16 %v5096, %v5084
    %v5745 = vpack.c.b16 %v5097, %v5085
    %v5746 = vpack.c.b16 %v5098, %v5086
    %v5747 = vpack.c.b16 %v5099, %v5087
    %v5748 = vpack.c.b16 %v5100, %v5088
    %v5749 = vpack.c.b16 %v5101, %v5089
    %v5750 = vpack.c.b16 %v5102, %v5090
    %v5751 = vpack.c.b16 %v5103, %v5091
    %v5752 = vpack.c.b16 %v5104, %v5092
    %v5753 = vpack.c.b16 %v5117, %v5105
    %v5754 = vpack.c.b16 %v5118, %v5106
    %v5755 = vpack.c.b16 %v5119, %v5107
    %v5756 = vpack.c.b16 %v5120, %v5108
    %v5757 = vpack.c.b16 %v5121, %v5109
    %v5758 = vpack.c.b16 %v5122, %v5110
    %v5759 = vpack.c.b16 %v5123, %v5111
    %v5760 = vpack.c.b16 %v5124, %v5112
    %v5761 = vpack.c.b16 %v5125, %v5113
    %v5762 = vpack.c.b16 %v5126, %v5114
    %v5763 = vpack.c.b16 %v5127, %v5115
    %v5764 = vpack.c.b16 %v5128, %v5116
    %v5765 = vpack.c.b16 %v5141, %v5129
    %v5766 = vpack.c.b16 %v5142, %v5130
    %v5767 = vpack.c.b16 %v5143, %v5131
    %v5768 = vpack.c.b16 %v5144, %v5132
    %v5769 = vpack.c.b16 %v5145, %v5133
    %v5770 = vpack.c.b16 %v5146, %v5134
    %v5771 = vpack.c.b16 %v5147, %v5135
    %v5772 = vpack.c.b16 %v5148, %v5136
    %v5773 = vpack.c.b16 %v5149, %v5137
    %v5774 = vpack.c.b16 %v5150, %v5138
    %v5775 = vpack.c.b16 %v5151, %v5139
    %v5776 = vpack.c.b16 %v5152, %v5140
    %v5777 = vpack.c.b16 %v5165, %v5153
    %v5778 = vpack.c.b16 %v5166, %v5154
    %v5779 = vpack.c.b16 %v5167, %v5155
    %v5780 = vpack.c.b16 %v5168, %v5156
    %v5781 = vpack.c.b16 %v5169, %v5157
    %v5782 = vpack.c.b16 %v5170, %v5158
    %v5783 = vpack.c.b16 %v5171, %v5159
    %v5784 = vpack.c.b16 %v5172, %v5160
    %v5785 = vpack.c.b16 %v5173, %v5161
    %v5786 = vpack.c.b16 %v5174, %v5162
    %v5787 = vpack.c.b16 %v5175, %v5163
    %v5788 = vpack.c.b16 %v5176, %v5164
    %v5789 = vpack.c.b16 %v5189, %v5177
    %v5790 = vpack.c.b16 %v5190, %v5178
    %v5791 = vpack.c.b16 %v5191, %v5179
    %v5792 = vpack.c.b16 %v5192, %v5180
    %v5793 = vpack.c.b16 %v5193, %v5181
    %v5794 = vpack.c.b16 %v5194, %v5182
    %v5795 = vpack.c.b16 %v5195, %v5183
    %v5796 = vpack.c.b16 %v5196, %v5184
    %v5797 = vpack.c.b16 %v5197, %v5185
    %v5798 = vpack.c.b16 %v5198, %v5186
    %v5799 = vpack.c.b16 %v5199, %v5187
    %v5800 = vpack.c.b16 %v5200, %v5188
    %v5801 = vpack.c.b16 %v5213, %v5201
    %v5802 = vpack.c.b16 %v5214, %v5202
    %v5803 = vpack.c.b16 %v5215, %v5203
    %v5804 = vpack.c.b16 %v5216, %v5204
    %v5805 = vpack.c.b16 %v5217, %v5205
    %v5806 = vpack.c.b16 %v5218, %v5206
    %v5807 = vpack.c.b16 %v5219, %v5207
    %v5808 = vpack.c.b16 %v5220, %v5208
    %v5809 = vpack.c.b16 %v5221, %v5209
    %v5810 = vpack.c.b16 %v5222, %v5210
    %v5811 = vpack.c.b16 %v5223, %v5211
    %v5812 = vpack.c.b16 %v5224, %v5212
    %v5813 = vpack.c.b16 %v5237, %v5225
    %v5814 = vpack.c.b16 %v5238, %v5226
    %v5815 = vpack.c.b16 %v5239, %v5227
    %v5816 = vpack.c.b16 %v5240, %v5228
    %v5817 = vpack.c.b16 %v5241, %v5229
    %v5818 = vpack.c.b16 %v5242, %v5230
    %v5819 = vpack.c.b16 %v5243, %v5231
    %v5820 = vpack.c.b16 %v5244, %v5232
    %v5821 = vpack.c.b16 %v5245, %v5233
    %v5822 = vpack.c.b16 %v5246, %v5234
    %v5823 = vpack.c.b16 %v5247, %v5235
    %v5824 = vpack.c.b16 %v5248, %v5236
    %6401 = vmatpush.bf16.msra.mxu0 %v5333
    %6402 = vmatpush.bf16.msra.mxu0 %v5321
    %6403 = vmatpush.bf16.msra.mxu0 %v5309
    %6404 = vmatpush.bf16.msra.mxu0 %v5297
    %6405 = vmatpush.bf16.msra.mxu0 %v5285
    %6406 = vmatpush.bf16.msra.mxu0 %v5273
    %6407 = vmatpush.bf16.msra.mxu0 %v5261
    %6408 = vmatpush.bf16.msra.mxu0 %v5249
    %6409 = vmatmul.bf16.gmra.mxu0 %v2939
    %v6410 = vpop.f32.mrf.mxu0
    %v6411 = vadd.f32 0.0, %v6410
    %v6412 = vpop.f32.mrf.mxu0
    %6413 = vdwg.mxu0
    %6414 = vmatpush.bf16.msra.mxu0 %v5429
    %6415 = vmatpush.bf16.msra.mxu0 %v5417
    %6416 = vmatpush.bf16.msra.mxu0 %v5405
    %6417 = vmatpush.bf16.msra.mxu0 %v5393
    %6418 = vmatpush.bf16.msra.mxu0 %v5381
    %6419 = vmatpush.bf16.msra.mxu0 %v5369
    %6420 = vmatpush.bf16.msra.mxu0 %v5357
    %6421 = vmatpush.bf16.msra.mxu0 %v5345
    %6422 = vmatmul.bf16.gmra.mxu0 %v2940
    %v6423 = vpop.f32.mrf.mxu0
    %v6424 = vadd.f32 %v6411, %v6423
    %v6425 = vpop.f32.mrf.mxu0
    %6426 = vdwg.mxu0
    %6427 = vmatpush.bf16.msra.mxu0 %v5525
    %6428 = vmatpush.bf16.msra.mxu0 %v5513
    %6429 = vmatpush.bf16.msra.mxu0 %v5501
    %6430 = vmatpush.bf16.msra.mxu0 %v5489
    %6431 = vmatpush.bf16.msra.mxu0 %v5477
    %6432 = vmatpush.bf16.msra.mxu0 %v5465
    %6433 = vmatpush.bf16.msra.mxu0 %v5453
    %6434 = vmatpush.bf16.msra.mxu0 %v5441
    %6435 = vmatmul.bf16.gmra.mxu0 %v2941
    %v6436 = vpop.f32.mrf.mxu0
    %v6437 = vadd.f32 %v6424, %v6436
    %v6438 = vpop.f32.mrf.mxu0
    %6439 = vdwg.mxu0
    %6440 = vmatpush.bf16.msra.mxu0 %v5621
    %6441 = vmatpush.bf16.msra.mxu0 %v5609
    %6442 = vmatpush.bf16.msra.mxu0 %v5597
    %6443 = vmatpush.bf16.msra.mxu0 %v5585
    %6444 = vmatpush.bf16.msra.mxu0 %v5573
    %6445 = vmatpush.bf16.msra.mxu0 %v5561
    %6446 = vmatpush.bf16.msra.mxu0 %v5549
    %6447 = vmatpush.bf16.msra.mxu0 %v5537
    %6448 = vmatmul.bf16.gmra.mxu0 %v2942
    %v6449 = vpop.f32.mrf.mxu0
    %v6450 = vadd.f32 %v6437, %v6449
    %v6451 = vpop.f32.mrf.mxu0
    %6452 = vdwg.mxu0
    %6453 = vmatpush.bf16.msra.mxu0 %v5717
    %6454 = vmatpush.bf16.msra.mxu0 %v5705
    %6455 = vmatpush.bf16.msra.mxu0 %v5693
    %6456 = vmatpush.bf16.msra.mxu0 %v5681
    %6457 = vmatpush.bf16.msra.mxu0 %v5669
    %6458 = vmatpush.bf16.msra.mxu0 %v5657
    %6459 = vmatpush.bf16.msra.mxu0 %v5645
    %6460 = vmatpush.bf16.msra.mxu0 %v5633
    %6461 = vmatmul.bf16.gmra.mxu0 %v2943
    %v6462 = vpop.f32.mrf.mxu0
    %v6463 = vadd.f32 %v6450, %v6462
    %v6464 = vpop.f32.mrf.mxu0
    %6465 = vdwg.mxu0
    %6466 = vmatpush.bf16.msra.mxu0 %v5813
    %6467 = vmatpush.bf16.msra.mxu0 %v5801
    %6468 = vmatpush.bf16.msra.mxu0 %v5789
    %6469 = vmatpush.bf16.msra.mxu0 %v5777
    %6470 = vmatpush.bf16.msra.mxu0 %v5765
    %6471 = vmatpush.bf16.msra.mxu0 %v5753
    %6472 = vmatpush.bf16.msra.mxu0 %v5741
    %6473 = vmatpush.bf16.msra.mxu0 %v5729
    %6474 = vmatmul.bf16.gmra.mxu0 %v2944
    %v6475 = vpop.f32.mrf.mxu0
    %v6476 = vadd.f32 %v6463, %v6475
    %v6477 = vpop.f32.mrf.mxu0
    %6478 = vdwg.mxu0
    %6479 = vmatpush.bf16.msra.mxu0 %v5334
    %6480 = vmatpush.bf16.msra.mxu0 %v5322
    %6481 = vmatpush.bf16.msra.mxu0 %v5310
    %6482 = vmatpush.bf16.msra.mxu0 %v5298
    %6483 = vmatpush.bf16.msra.mxu0 %v5286
    %6484 = vmatpush.bf16.msra.mxu0 %v5274
    %6485 = vmatpush.bf16.msra.mxu0 %v5262
    %6486 = vmatpush.bf16.msra.mxu0 %v5250
    %6487 = vmatmul.bf16.gmra.mxu0 %v2939
    %v6488 = vpop.f32.mrf.mxu0
    %v6489 = vadd.f32 0.0, %v6488
    %v6490 = vpop.f32.mrf.mxu0
    %6491 = vdwg.mxu0
    %6492 = vmatpush.bf16.msra.mxu0 %v5430
    %6493 = vmatpush.bf16.msra.mxu0 %v5418
    %6494 = vmatpush.bf16.msra.mxu0 %v5406
    %6495 = vmatpush.bf16.msra.mxu0 %v5394
    %6496 = vmatpush.bf16.msra.mxu0 %v5382
    %6497 = vmatpush.bf16.msra.mxu0 %v5370
    %6498 = vmatpush.bf16.msra.mxu0 %v5358
    %6499 = vmatpush.bf16.msra.mxu0 %v5346
    %6500 = vmatmul.bf16.gmra.mxu0 %v2940
    %v6501 = vpop.f32.mrf.mxu0
    %v6502 = vadd.f32 %v6489, %v6501
    %v6503 = vpop.f32.mrf.mxu0
    %6504 = vdwg.mxu0
    %6505 = vmatpush.bf16.msra.mxu0 %v5526
    %6506 = vmatpush.bf16.msra.mxu0 %v5514
    %6507 = vmatpush.bf16.msra.mxu0 %v5502
    %6508 = vmatpush.bf16.msra.mxu0 %v5490
    %6509 = vmatpush.bf16.msra.mxu0 %v5478
    %6510 = vmatpush.bf16.msra.mxu0 %v5466
    %6511 = vmatpush.bf16.msra.mxu0 %v5454
    %6512 = vmatpush.bf16.msra.mxu0 %v5442
    %6513 = vmatmul.bf16.gmra.mxu0 %v2941
    %v6514 = vpop.f32.mrf.mxu0
    %v6515 = vadd.f32 %v6502, %v6514
    %v6516 = vpop.f32.mrf.mxu0
    %6517 = vdwg.mxu0
    %6518 = vmatpush.bf16.msra.mxu0 %v5622
    %6519 = vmatpush.bf16.msra.mxu0 %v5610
    %6520 = vmatpush.bf16.msra.mxu0 %v5598
    %6521 = vmatpush.bf16.msra.mxu0 %v5586
    %6522 = vmatpush.bf16.msra.mxu0 %v5574
    %6523 = vmatpush.bf16.msra.mxu0 %v5562
    %6524 = vmatpush.bf16.msra.mxu0 %v5550
    %6525 = vmatpush.bf16.msra.mxu0 %v5538
    %6526 = vmatmul.bf16.gmra.mxu0 %v2942
    %v6527 = vpop.f32.mrf.mxu0
    %v6528 = vadd.f32 %v6515, %v6527
    %v6529 = vpop.f32.mrf.mxu0
    %6530 = vdwg.mxu0
    %6531 = vmatpush.bf16.msra.mxu0 %v5718
    %6532 = vmatpush.bf16.msra.mxu0 %v5706
    %6533 = vmatpush.bf16.msra.mxu0 %v5694
    %6534 = vmatpush.bf16.msra.mxu0 %v5682
    %6535 = vmatpush.bf16.msra.mxu0 %v5670
    %6536 = vmatpush.bf16.msra.mxu0 %v5658
    %6537 = vmatpush.bf16.msra.mxu0 %v5646
    %6538 = vmatpush.bf16.msra.mxu0 %v5634
    %6539 = vmatmul.bf16.gmra.mxu0 %v2943
    %v6540 = vpop.f32.mrf.mxu0
    %v6541 = vadd.f32 %v6528, %v6540
    %v6542 = vpop.f32.mrf.mxu0
    %6543 = vdwg.mxu0
    %6544 = vmatpush.bf16.msra.mxu0 %v5814
    %6545 = vmatpush.bf16.msra.mxu0 %v5802
    %6546 = vmatpush.bf16.msra.mxu0 %v5790
    %6547 = vmatpush.bf16.msra.mxu0 %v5778
    %6548 = vmatpush.bf16.msra.mxu0 %v5766
    %6549 = vmatpush.bf16.msra.mxu0 %v5754
    %6550 = vmatpush.bf16.msra.mxu0 %v5742
    %6551 = vmatpush.bf16.msra.mxu0 %v5730
    %6552 = vmatmul.bf16.gmra.mxu0 %v2944
    %v6553 = vpop.f32.mrf.mxu0
    %v6554 = vadd.f32 %v6541, %v6553
    %v6555 = vpop.f32.mrf.mxu0
    %6556 = vdwg.mxu0
    %6557 = vmatpush.bf16.msra.mxu0 %v5335
    %6558 = vmatpush.bf16.msra.mxu0 %v5323
    %6559 = vmatpush.bf16.msra.mxu0 %v5311
    %6560 = vmatpush.bf16.msra.mxu0 %v5299
    %6561 = vmatpush.bf16.msra.mxu0 %v5287
    %6562 = vmatpush.bf16.msra.mxu0 %v5275
    %6563 = vmatpush.bf16.msra.mxu0 %v5263
    %6564 = vmatpush.bf16.msra.mxu0 %v5251
    %6565 = vmatmul.bf16.gmra.mxu0 %v2939
    %v6566 = vpop.f32.mrf.mxu0
    %v6567 = vadd.f32 0.0, %v6566
    %v6568 = vpop.f32.mrf.mxu0
    %6569 = vdwg.mxu0
    %6570 = vmatpush.bf16.msra.mxu0 %v5431
    %6571 = vmatpush.bf16.msra.mxu0 %v5419
    %6572 = vmatpush.bf16.msra.mxu0 %v5407
    %6573 = vmatpush.bf16.msra.mxu0 %v5395
    %6574 = vmatpush.bf16.msra.mxu0 %v5383
    %6575 = vmatpush.bf16.msra.mxu0 %v5371
    %6576 = vmatpush.bf16.msra.mxu0 %v5359
    %6577 = vmatpush.bf16.msra.mxu0 %v5347
    %6578 = vmatmul.bf16.gmra.mxu0 %v2940
    %v6579 = vpop.f32.mrf.mxu0
    %v6580 = vadd.f32 %v6567, %v6579
    %v6581 = vpop.f32.mrf.mxu0
    %6582 = vdwg.mxu0
    %6583 = vmatpush.bf16.msra.mxu0 %v5527
    %6584 = vmatpush.bf16.msra.mxu0 %v5515
    %6585 = vmatpush.bf16.msra.mxu0 %v5503
    %6586 = vmatpush.bf16.msra.mxu0 %v5491
    %6587 = vmatpush.bf16.msra.mxu0 %v5479
    %6588 = vmatpush.bf16.msra.mxu0 %v5467
    %6589 = vmatpush.bf16.msra.mxu0 %v5455
    %6590 = vmatpush.bf16.msra.mxu0 %v5443
    %6591 = vmatmul.bf16.gmra.mxu0 %v2941
    %v6592 = vpop.f32.mrf.mxu0
    %v6593 = vadd.f32 %v6580, %v6592
    %v6594 = vpop.f32.mrf.mxu0
    %6595 = vdwg.mxu0
    %6596 = vmatpush.bf16.msra.mxu0 %v5623
    %6597 = vmatpush.bf16.msra.mxu0 %v5611
    %6598 = vmatpush.bf16.msra.mxu0 %v5599
    %6599 = vmatpush.bf16.msra.mxu0 %v5587
    %6600 = vmatpush.bf16.msra.mxu0 %v5575
    %6601 = vmatpush.bf16.msra.mxu0 %v5563
    %6602 = vmatpush.bf16.msra.mxu0 %v5551
    %6603 = vmatpush.bf16.msra.mxu0 %v5539
    %6604 = vmatmul.bf16.gmra.mxu0 %v2942
    %v6605 = vpop.f32.mrf.mxu0
    %v6606 = vadd.f32 %v6593, %v6605
    %v6607 = vpop.f32.mrf.mxu0
    %6608 = vdwg.mxu0
    %6609 = vmatpush.bf16.msra.mxu0 %v5719
    %6610 = vmatpush.bf16.msra.mxu0 %v5707
    %6611 = vmatpush.bf16.msra.mxu0 %v5695
    %6612 = vmatpush.bf16.msra.mxu0 %v5683
    %6613 = vmatpush.bf16.msra.mxu0 %v5671
    %6614 = vmatpush.bf16.msra.mxu0 %v5659
    %6615 = vmatpush.bf16.msra.mxu0 %v5647
    %6616 = vmatpush.bf16.msra.mxu0 %v5635
    %6617 = vmatmul.bf16.gmra.mxu0 %v2943
    %v6618 = vpop.f32.mrf.mxu0
    %v6619 = vadd.f32 %v6606, %v6618
    %v6620 = vpop.f32.mrf.mxu0
    %6621 = vdwg.mxu0
    %6622 = vmatpush.bf16.msra.mxu0 %v5815
    %6623 = vmatpush.bf16.msra.mxu0 %v5803
    %6624 = vmatpush.bf16.msra.mxu0 %v5791
    %6625 = vmatpush.bf16.msra.mxu0 %v5779
    %6626 = vmatpush.bf16.msra.mxu0 %v5767
    %6627 = vmatpush.bf16.msra.mxu0 %v5755
    %6628 = vmatpush.bf16.msra.mxu0 %v5743
    %6629 = vmatpush.bf16.msra.mxu0 %v5731
    %6630 = vmatmul.bf16.gmra.mxu0 %v2944
    %v6631 = vpop.f32.mrf.mxu0
    %v6632 = vadd.f32 %v6619, %v6631
    %v6633 = vpop.f32.mrf.mxu0
    %6634 = vdwg.mxu0
    %6635 = vmatpush.bf16.msra.mxu0 %v5336
    %6636 = vmatpush.bf16.msra.mxu0 %v5324
    %6637 = vmatpush.bf16.msra.mxu0 %v5312
    %6638 = vmatpush.bf16.msra.mxu0 %v5300
    %6639 = vmatpush.bf16.msra.mxu0 %v5288
    %6640 = vmatpush.bf16.msra.mxu0 %v5276
    %6641 = vmatpush.bf16.msra.mxu0 %v5264
    %6642 = vmatpush.bf16.msra.mxu0 %v5252
    %6643 = vmatmul.bf16.gmra.mxu0 %v2939
    %v6644 = vpop.f32.mrf.mxu0
    %v6645 = vadd.f32 0.0, %v6644
    %v6646 = vpop.f32.mrf.mxu0
    %6647 = vdwg.mxu0
    %6648 = vmatpush.bf16.msra.mxu0 %v5432
    %6649 = vmatpush.bf16.msra.mxu0 %v5420
    %6650 = vmatpush.bf16.msra.mxu0 %v5408
    %6651 = vmatpush.bf16.msra.mxu0 %v5396
    %6652 = vmatpush.bf16.msra.mxu0 %v5384
    %6653 = vmatpush.bf16.msra.mxu0 %v5372
    %6654 = vmatpush.bf16.msra.mxu0 %v5360
    %6655 = vmatpush.bf16.msra.mxu0 %v5348
    %6656 = vmatmul.bf16.gmra.mxu0 %v2940
    %v6657 = vpop.f32.mrf.mxu0
    %v6658 = vadd.f32 %v6645, %v6657
    %v6659 = vpop.f32.mrf.mxu0
    %6660 = vdwg.mxu0
    %6661 = vmatpush.bf16.msra.mxu0 %v5528
    %6662 = vmatpush.bf16.msra.mxu0 %v5516
    %6663 = vmatpush.bf16.msra.mxu0 %v5504
    %6664 = vmatpush.bf16.msra.mxu0 %v5492
    %6665 = vmatpush.bf16.msra.mxu0 %v5480
    %6666 = vmatpush.bf16.msra.mxu0 %v5468
    %6667 = vmatpush.bf16.msra.mxu0 %v5456
    %6668 = vmatpush.bf16.msra.mxu0 %v5444
    %6669 = vmatmul.bf16.gmra.mxu0 %v2941
    %v6670 = vpop.f32.mrf.mxu0
    %v6671 = vadd.f32 %v6658, %v6670
    %v6672 = vpop.f32.mrf.mxu0
    %6673 = vdwg.mxu0
    %6674 = vmatpush.bf16.msra.mxu0 %v5624
    %6675 = vmatpush.bf16.msra.mxu0 %v5612
    %6676 = vmatpush.bf16.msra.mxu0 %v5600
    %6677 = vmatpush.bf16.msra.mxu0 %v5588
    %6678 = vmatpush.bf16.msra.mxu0 %v5576
    %6679 = vmatpush.bf16.msra.mxu0 %v5564
    %6680 = vmatpush.bf16.msra.mxu0 %v5552
    %6681 = vmatpush.bf16.msra.mxu0 %v5540
    %6682 = vmatmul.bf16.gmra.mxu0 %v2942
    %v6683 = vpop.f32.mrf.mxu0
    %v6684 = vadd.f32 %v6671, %v6683
    %v6685 = vpop.f32.mrf.mxu0
    %6686 = vdwg.mxu0
    %6687 = vmatpush.bf16.msra.mxu0 %v5720
    %6688 = vmatpush.bf16.msra.mxu0 %v5708
    %6689 = vmatpush.bf16.msra.mxu0 %v5696
    %6690 = vmatpush.bf16.msra.mxu0 %v5684
    %6691 = vmatpush.bf16.msra.mxu0 %v5672
    %6692 = vmatpush.bf16.msra.mxu0 %v5660
    %6693 = vmatpush.bf16.msra.mxu0 %v5648
    %6694 = vmatpush.bf16.msra.mxu0 %v5636
    %6695 = vmatmul.bf16.gmra.mxu0 %v2943
    %v6696 = vpop.f32.mrf.mxu0
    %v6697 = vadd.f32 %v6684, %v6696
    %v6698 = vpop.f32.mrf.mxu0
    %6699 = vdwg.mxu0
    %6700 = vmatpush.bf16.msra.mxu0 %v5816
    %6701 = vmatpush.bf16.msra.mxu0 %v5804
    %6702 = vmatpush.bf16.msra.mxu0 %v5792
    %6703 = vmatpush.bf16.msra.mxu0 %v5780
    %6704 = vmatpush.bf16.msra.mxu0 %v5768
    %6705 = vmatpush.bf16.msra.mxu0 %v5756
    %6706 = vmatpush.bf16.msra.mxu0 %v5744
    %6707 = vmatpush.bf16.msra.mxu0 %v5732
    %6708 = vmatmul.bf16.gmra.mxu0 %v2944
    %v6709 = vpop.f32.mrf.mxu0
    %v6710 = vadd.f32 %v6697, %v6709
    %v6711 = vpop.f32.mrf.mxu0
    %6712 = vdwg.mxu0
    %6713 = vmatpush.bf16.msra.mxu0 %v5337
    %6714 = vmatpush.bf16.msra.mxu0 %v5325
    %6715 = vmatpush.bf16.msra.mxu0 %v5313
    %6716 = vmatpush.bf16.msra.mxu0 %v5301
    %6717 = vmatpush.bf16.msra.mxu0 %v5289
    %6718 = vmatpush.bf16.msra.mxu0 %v5277
    %6719 = vmatpush.bf16.msra.mxu0 %v5265
    %6720 = vmatpush.bf16.msra.mxu0 %v5253
    %6721 = vmatmul.bf16.gmra.mxu0 %v2939
    %v6722 = vpop.f32.mrf.mxu0
    %v6723 = vadd.f32 0.0, %v6722
    %v6724 = vpop.f32.mrf.mxu0
    %6725 = vdwg.mxu0
    %6726 = vmatpush.bf16.msra.mxu0 %v5433
    %6727 = vmatpush.bf16.msra.mxu0 %v5421
    %6728 = vmatpush.bf16.msra.mxu0 %v5409
    %6729 = vmatpush.bf16.msra.mxu0 %v5397
    %6730 = vmatpush.bf16.msra.mxu0 %v5385
    %6731 = vmatpush.bf16.msra.mxu0 %v5373
    %6732 = vmatpush.bf16.msra.mxu0 %v5361
    %6733 = vmatpush.bf16.msra.mxu0 %v5349
    %6734 = vmatmul.bf16.gmra.mxu0 %v2940
    %v6735 = vpop.f32.mrf.mxu0
    %v6736 = vadd.f32 %v6723, %v6735
    %v6737 = vpop.f32.mrf.mxu0
    %6738 = vdwg.mxu0
    %6739 = vmatpush.bf16.msra.mxu0 %v5529
    %6740 = vmatpush.bf16.msra.mxu0 %v5517
    %6741 = vmatpush.bf16.msra.mxu0 %v5505
    %6742 = vmatpush.bf16.msra.mxu0 %v5493
    %6743 = vmatpush.bf16.msra.mxu0 %v5481
    %6744 = vmatpush.bf16.msra.mxu0 %v5469
    %6745 = vmatpush.bf16.msra.mxu0 %v5457
    %6746 = vmatpush.bf16.msra.mxu0 %v5445
    %6747 = vmatmul.bf16.gmra.mxu0 %v2941
    %v6748 = vpop.f32.mrf.mxu0
    %v6749 = vadd.f32 %v6736, %v6748
    %v6750 = vpop.f32.mrf.mxu0
    %6751 = vdwg.mxu0
    %6752 = vmatpush.bf16.msra.mxu0 %v5625
    %6753 = vmatpush.bf16.msra.mxu0 %v5613
    %6754 = vmatpush.bf16.msra.mxu0 %v5601
    %6755 = vmatpush.bf16.msra.mxu0 %v5589
    %6756 = vmatpush.bf16.msra.mxu0 %v5577
    %6757 = vmatpush.bf16.msra.mxu0 %v5565
    %6758 = vmatpush.bf16.msra.mxu0 %v5553
    %6759 = vmatpush.bf16.msra.mxu0 %v5541
    %6760 = vmatmul.bf16.gmra.mxu0 %v2942
    %v6761 = vpop.f32.mrf.mxu0
    %v6762 = vadd.f32 %v6749, %v6761
    %v6763 = vpop.f32.mrf.mxu0
    %6764 = vdwg.mxu0
    %6765 = vmatpush.bf16.msra.mxu0 %v5721
    %6766 = vmatpush.bf16.msra.mxu0 %v5709
    %6767 = vmatpush.bf16.msra.mxu0 %v5697
    %6768 = vmatpush.bf16.msra.mxu0 %v5685
    %6769 = vmatpush.bf16.msra.mxu0 %v5673
    %6770 = vmatpush.bf16.msra.mxu0 %v5661
    %6771 = vmatpush.bf16.msra.mxu0 %v5649
    %6772 = vmatpush.bf16.msra.mxu0 %v5637
    %6773 = vmatmul.bf16.gmra.mxu0 %v2943
    %v6774 = vpop.f32.mrf.mxu0
    %v6775 = vadd.f32 %v6762, %v6774
    %v6776 = vpop.f32.mrf.mxu0
    %6777 = vdwg.mxu0
    %6778 = vmatpush.bf16.msra.mxu0 %v5817
    %6779 = vmatpush.bf16.msra.mxu0 %v5805
    %6780 = vmatpush.bf16.msra.mxu0 %v5793
    %6781 = vmatpush.bf16.msra.mxu0 %v5781
    %6782 = vmatpush.bf16.msra.mxu0 %v5769
    %6783 = vmatpush.bf16.msra.mxu0 %v5757
    %6784 = vmatpush.bf16.msra.mxu0 %v5745
    %6785 = vmatpush.bf16.msra.mxu0 %v5733
    %6786 = vmatmul.bf16.gmra.mxu0 %v2944
    %v6787 = vpop.f32.mrf.mxu0
    %v6788 = vadd.f32 %v6775, %v6787
    %v6789 = vpop.f32.mrf.mxu0
    %6790 = vdwg.mxu0
    %6791 = vmatpush.bf16.msra.mxu0 %v5338
    %6792 = vmatpush.bf16.msra.mxu0 %v5326
    %6793 = vmatpush.bf16.msra.mxu0 %v5314
    %6794 = vmatpush.bf16.msra.mxu0 %v5302
    %6795 = vmatpush.bf16.msra.mxu0 %v5290
    %6796 = vmatpush.bf16.msra.mxu0 %v5278
    %6797 = vmatpush.bf16.msra.mxu0 %v5266
    %6798 = vmatpush.bf16.msra.mxu0 %v5254
    %6799 = vmatmul.bf16.gmra.mxu0 %v2939
    %v6800 = vpop.f32.mrf.mxu0
    %v6801 = vadd.f32 0.0, %v6800
    %v6802 = vpop.f32.mrf.mxu0
    %6803 = vdwg.mxu0
    %6804 = vmatpush.bf16.msra.mxu0 %v5434
    %6805 = vmatpush.bf16.msra.mxu0 %v5422
    %6806 = vmatpush.bf16.msra.mxu0 %v5410
    %6807 = vmatpush.bf16.msra.mxu0 %v5398
    %6808 = vmatpush.bf16.msra.mxu0 %v5386
    %6809 = vmatpush.bf16.msra.mxu0 %v5374
    %6810 = vmatpush.bf16.msra.mxu0 %v5362
    %6811 = vmatpush.bf16.msra.mxu0 %v5350
    %6812 = vmatmul.bf16.gmra.mxu0 %v2940
    %v6813 = vpop.f32.mrf.mxu0
    %v6814 = vadd.f32 %v6801, %v6813
    %v6815 = vpop.f32.mrf.mxu0
    %6816 = vdwg.mxu0
    %6817 = vmatpush.bf16.msra.mxu0 %v5530
    %6818 = vmatpush.bf16.msra.mxu0 %v5518
    %6819 = vmatpush.bf16.msra.mxu0 %v5506
    %6820 = vmatpush.bf16.msra.mxu0 %v5494
    %6821 = vmatpush.bf16.msra.mxu0 %v5482
    %6822 = vmatpush.bf16.msra.mxu0 %v5470
    %6823 = vmatpush.bf16.msra.mxu0 %v5458
    %6824 = vmatpush.bf16.msra.mxu0 %v5446
    %6825 = vmatmul.bf16.gmra.mxu0 %v2941
    %v6826 = vpop.f32.mrf.mxu0
    %v6827 = vadd.f32 %v6814, %v6826
    %v6828 = vpop.f32.mrf.mxu0
    %6829 = vdwg.mxu0
    %6830 = vmatpush.bf16.msra.mxu0 %v5626
    %6831 = vmatpush.bf16.msra.mxu0 %v5614
    %6832 = vmatpush.bf16.msra.mxu0 %v5602
    %6833 = vmatpush.bf16.msra.mxu0 %v5590
    %6834 = vmatpush.bf16.msra.mxu0 %v5578
    %6835 = vmatpush.bf16.msra.mxu0 %v5566
    %6836 = vmatpush.bf16.msra.mxu0 %v5554
    %6837 = vmatpush.bf16.msra.mxu0 %v5542
    %6838 = vmatmul.bf16.gmra.mxu0 %v2942
    %v6839 = vpop.f32.mrf.mxu0
    %v6840 = vadd.f32 %v6827, %v6839
    %v6841 = vpop.f32.mrf.mxu0
    %6842 = vdwg.mxu0
    %6843 = vmatpush.bf16.msra.mxu0 %v5722
    %6844 = vmatpush.bf16.msra.mxu0 %v5710
    %6845 = vmatpush.bf16.msra.mxu0 %v5698
    %6846 = vmatpush.bf16.msra.mxu0 %v5686
    %6847 = vmatpush.bf16.msra.mxu0 %v5674
    %6848 = vmatpush.bf16.msra.mxu0 %v5662
    %6849 = vmatpush.bf16.msra.mxu0 %v5650
    %6850 = vmatpush.bf16.msra.mxu0 %v5638
    %6851 = vmatmul.bf16.gmra.mxu0 %v2943
    %v6852 = vpop.f32.mrf.mxu0
    %v6853 = vadd.f32 %v6840, %v6852
    %v6854 = vpop.f32.mrf.mxu0
    %6855 = vdwg.mxu0
    %6856 = vmatpush.bf16.msra.mxu0 %v5818
    %6857 = vmatpush.bf16.msra.mxu0 %v5806
    %6858 = vmatpush.bf16.msra.mxu0 %v5794
    %6859 = vmatpush.bf16.msra.mxu0 %v5782
    %6860 = vmatpush.bf16.msra.mxu0 %v5770
    %6861 = vmatpush.bf16.msra.mxu0 %v5758
    %6862 = vmatpush.bf16.msra.mxu0 %v5746
    %6863 = vmatpush.bf16.msra.mxu0 %v5734
    %6864 = vmatmul.bf16.gmra.mxu0 %v2944
    %v6865 = vpop.f32.mrf.mxu0
    %v6866 = vadd.f32 %v6853, %v6865
    %v6867 = vpop.f32.mrf.mxu0
    %6868 = vdwg.mxu0
    %6869 = vmatpush.bf16.msra.mxu0 %v5339
    %6870 = vmatpush.bf16.msra.mxu0 %v5327
    %6871 = vmatpush.bf16.msra.mxu0 %v5315
    %6872 = vmatpush.bf16.msra.mxu0 %v5303
    %6873 = vmatpush.bf16.msra.mxu0 %v5291
    %6874 = vmatpush.bf16.msra.mxu0 %v5279
    %6875 = vmatpush.bf16.msra.mxu0 %v5267
    %6876 = vmatpush.bf16.msra.mxu0 %v5255
    %6877 = vmatmul.bf16.gmra.mxu0 %v2939
    %v6878 = vpop.f32.mrf.mxu0
    %v6879 = vadd.f32 0.0, %v6878
    %v6880 = vpop.f32.mrf.mxu0
    %6881 = vdwg.mxu0
    %6882 = vmatpush.bf16.msra.mxu0 %v5435
    %6883 = vmatpush.bf16.msra.mxu0 %v5423
    %6884 = vmatpush.bf16.msra.mxu0 %v5411
    %6885 = vmatpush.bf16.msra.mxu0 %v5399
    %6886 = vmatpush.bf16.msra.mxu0 %v5387
    %6887 = vmatpush.bf16.msra.mxu0 %v5375
    %6888 = vmatpush.bf16.msra.mxu0 %v5363
    %6889 = vmatpush.bf16.msra.mxu0 %v5351
    %6890 = vmatmul.bf16.gmra.mxu0 %v2940
    %v6891 = vpop.f32.mrf.mxu0
    %v6892 = vadd.f32 %v6879, %v6891
    %v6893 = vpop.f32.mrf.mxu0
    %6894 = vdwg.mxu0
    %6895 = vmatpush.bf16.msra.mxu0 %v5531
    %6896 = vmatpush.bf16.msra.mxu0 %v5519
    %6897 = vmatpush.bf16.msra.mxu0 %v5507
    %6898 = vmatpush.bf16.msra.mxu0 %v5495
    %6899 = vmatpush.bf16.msra.mxu0 %v5483
    %6900 = vmatpush.bf16.msra.mxu0 %v5471
    %6901 = vmatpush.bf16.msra.mxu0 %v5459
    %6902 = vmatpush.bf16.msra.mxu0 %v5447
    %6903 = vmatmul.bf16.gmra.mxu0 %v2941
    %v6904 = vpop.f32.mrf.mxu0
    %v6905 = vadd.f32 %v6892, %v6904
    %v6906 = vpop.f32.mrf.mxu0
    %6907 = vdwg.mxu0
    %6908 = vmatpush.bf16.msra.mxu0 %v5627
    %6909 = vmatpush.bf16.msra.mxu0 %v5615
    %6910 = vmatpush.bf16.msra.mxu0 %v5603
    %6911 = vmatpush.bf16.msra.mxu0 %v5591
    %6912 = vmatpush.bf16.msra.mxu0 %v5579
    %6913 = vmatpush.bf16.msra.mxu0 %v5567
    %6914 = vmatpush.bf16.msra.mxu0 %v5555
    %6915 = vmatpush.bf16.msra.mxu0 %v5543
    %6916 = vmatmul.bf16.gmra.mxu0 %v2942
    %v6917 = vpop.f32.mrf.mxu0
    %v6918 = vadd.f32 %v6905, %v6917
    %v6919 = vpop.f32.mrf.mxu0
    %6920 = vdwg.mxu0
    %6921 = vmatpush.bf16.msra.mxu0 %v5723
    %6922 = vmatpush.bf16.msra.mxu0 %v5711
    %6923 = vmatpush.bf16.msra.mxu0 %v5699
    %6924 = vmatpush.bf16.msra.mxu0 %v5687
    %6925 = vmatpush.bf16.msra.mxu0 %v5675
    %6926 = vmatpush.bf16.msra.mxu0 %v5663
    %6927 = vmatpush.bf16.msra.mxu0 %v5651
    %6928 = vmatpush.bf16.msra.mxu0 %v5639
    %6929 = vmatmul.bf16.gmra.mxu0 %v2943
    %v6930 = vpop.f32.mrf.mxu0
    %v6931 = vadd.f32 %v6918, %v6930
    %v6932 = vpop.f32.mrf.mxu0
    %6933 = vdwg.mxu0
    %6934 = vmatpush.bf16.msra.mxu0 %v5819
    %6935 = vmatpush.bf16.msra.mxu0 %v5807
    %6936 = vmatpush.bf16.msra.mxu0 %v5795
    %6937 = vmatpush.bf16.msra.mxu0 %v5783
    %6938 = vmatpush.bf16.msra.mxu0 %v5771
    %6939 = vmatpush.bf16.msra.mxu0 %v5759
    %6940 = vmatpush.bf16.msra.mxu0 %v5747
    %6941 = vmatpush.bf16.msra.mxu0 %v5735
    %6942 = vmatmul.bf16.gmra.mxu0 %v2944
    %v6943 = vpop.f32.mrf.mxu0
    %v6944 = vadd.f32 %v6931, %v6943
    %v6945 = vpop.f32.mrf.mxu0
    %6946 = vdwg.mxu0
    %6947 = vmatpush.bf16.msra.mxu0 %v5340
    %6948 = vmatpush.bf16.msra.mxu0 %v5328
    %6949 = vmatpush.bf16.msra.mxu0 %v5316
    %6950 = vmatpush.bf16.msra.mxu0 %v5304
    %6951 = vmatpush.bf16.msra.mxu0 %v5292
    %6952 = vmatpush.bf16.msra.mxu0 %v5280
    %6953 = vmatpush.bf16.msra.mxu0 %v5268
    %6954 = vmatpush.bf16.msra.mxu0 %v5256
    %6955 = vmatmul.bf16.gmra.mxu0 %v2939
    %v6956 = vpop.f32.mrf.mxu0
    %v6957 = vadd.f32 0.0, %v6956
    %v6958 = vpop.f32.mrf.mxu0
    %6959 = vdwg.mxu0
    %6960 = vmatpush.bf16.msra.mxu0 %v5436
    %6961 = vmatpush.bf16.msra.mxu0 %v5424
    %6962 = vmatpush.bf16.msra.mxu0 %v5412
    %6963 = vmatpush.bf16.msra.mxu0 %v5400
    %6964 = vmatpush.bf16.msra.mxu0 %v5388
    %6965 = vmatpush.bf16.msra.mxu0 %v5376
    %6966 = vmatpush.bf16.msra.mxu0 %v5364
    %6967 = vmatpush.bf16.msra.mxu0 %v5352
    %6968 = vmatmul.bf16.gmra.mxu0 %v2940
    %v6969 = vpop.f32.mrf.mxu0
    %v6970 = vadd.f32 %v6957, %v6969
    %v6971 = vpop.f32.mrf.mxu0
    %6972 = vdwg.mxu0
    %6973 = vmatpush.bf16.msra.mxu0 %v5532
    %6974 = vmatpush.bf16.msra.mxu0 %v5520
    %6975 = vmatpush.bf16.msra.mxu0 %v5508
    %6976 = vmatpush.bf16.msra.mxu0 %v5496
    %6977 = vmatpush.bf16.msra.mxu0 %v5484
    %6978 = vmatpush.bf16.msra.mxu0 %v5472
    %6979 = vmatpush.bf16.msra.mxu0 %v5460
    %6980 = vmatpush.bf16.msra.mxu0 %v5448
    %6981 = vmatmul.bf16.gmra.mxu0 %v2941
    %v6982 = vpop.f32.mrf.mxu0
    %v6983 = vadd.f32 %v6970, %v6982
    %v6984 = vpop.f32.mrf.mxu0
    %6985 = vdwg.mxu0
    %6986 = vmatpush.bf16.msra.mxu0 %v5628
    %6987 = vmatpush.bf16.msra.mxu0 %v5616
    %6988 = vmatpush.bf16.msra.mxu0 %v5604
    %6989 = vmatpush.bf16.msra.mxu0 %v5592
    %6990 = vmatpush.bf16.msra.mxu0 %v5580
    %6991 = vmatpush.bf16.msra.mxu0 %v5568
    %6992 = vmatpush.bf16.msra.mxu0 %v5556
    %6993 = vmatpush.bf16.msra.mxu0 %v5544
    %6994 = vmatmul.bf16.gmra.mxu0 %v2942
    %v6995 = vpop.f32.mrf.mxu0
    %v6996 = vadd.f32 %v6983, %v6995
    %v6997 = vpop.f32.mrf.mxu0
    %6998 = vdwg.mxu0
    %6999 = vmatpush.bf16.msra.mxu0 %v5724
    %7000 = vmatpush.bf16.msra.mxu0 %v5712
    %7001 = vmatpush.bf16.msra.mxu0 %v5700
    %7002 = vmatpush.bf16.msra.mxu0 %v5688
    %7003 = vmatpush.bf16.msra.mxu0 %v5676
    %7004 = vmatpush.bf16.msra.mxu0 %v5664
    %7005 = vmatpush.bf16.msra.mxu0 %v5652
    %7006 = vmatpush.bf16.msra.mxu0 %v5640
    %7007 = vmatmul.bf16.gmra.mxu0 %v2943
    %v7008 = vpop.f32.mrf.mxu0
    %v7009 = vadd.f32 %v6996, %v7008
    %v7010 = vpop.f32.mrf.mxu0
    %7011 = vdwg.mxu0
    %7012 = vmatpush.bf16.msra.mxu0 %v5820
    %7013 = vmatpush.bf16.msra.mxu0 %v5808
    %7014 = vmatpush.bf16.msra.mxu0 %v5796
    %7015 = vmatpush.bf16.msra.mxu0 %v5784
    %7016 = vmatpush.bf16.msra.mxu0 %v5772
    %7017 = vmatpush.bf16.msra.mxu0 %v5760
    %7018 = vmatpush.bf16.msra.mxu0 %v5748
    %7019 = vmatpush.bf16.msra.mxu0 %v5736
    %7020 = vmatmul.bf16.gmra.mxu0 %v2944
    %v7021 = vpop.f32.mrf.mxu0
    %v7022 = vadd.f32 %v7009, %v7021
    %v7023 = vpop.f32.mrf.mxu0
    %7024 = vdwg.mxu0
    %7025 = vmatpush.bf16.msra.mxu0 %v5341
    %7026 = vmatpush.bf16.msra.mxu0 %v5329
    %7027 = vmatpush.bf16.msra.mxu0 %v5317
    %7028 = vmatpush.bf16.msra.mxu0 %v5305
    %7029 = vmatpush.bf16.msra.mxu0 %v5293
    %7030 = vmatpush.bf16.msra.mxu0 %v5281
    %7031 = vmatpush.bf16.msra.mxu0 %v5269
    %7032 = vmatpush.bf16.msra.mxu0 %v5257
    %7033 = vmatmul.bf16.gmra.mxu0 %v2939
    %v7034 = vpop.f32.mrf.mxu0
    %v7035 = vadd.f32 0.0, %v7034
    %v7036 = vpop.f32.mrf.mxu0
    %7037 = vdwg.mxu0
    %7038 = vmatpush.bf16.msra.mxu0 %v5437
    %7039 = vmatpush.bf16.msra.mxu0 %v5425
    %7040 = vmatpush.bf16.msra.mxu0 %v5413
    %7041 = vmatpush.bf16.msra.mxu0 %v5401
    %7042 = vmatpush.bf16.msra.mxu0 %v5389
    %7043 = vmatpush.bf16.msra.mxu0 %v5377
    %7044 = vmatpush.bf16.msra.mxu0 %v5365
    %7045 = vmatpush.bf16.msra.mxu0 %v5353
    %7046 = vmatmul.bf16.gmra.mxu0 %v2940
    %v7047 = vpop.f32.mrf.mxu0
    %v7048 = vadd.f32 %v7035, %v7047
    %v7049 = vpop.f32.mrf.mxu0
    %7050 = vdwg.mxu0
    %7051 = vmatpush.bf16.msra.mxu0 %v5533
    %7052 = vmatpush.bf16.msra.mxu0 %v5521
    %7053 = vmatpush.bf16.msra.mxu0 %v5509
    %7054 = vmatpush.bf16.msra.mxu0 %v5497
    %7055 = vmatpush.bf16.msra.mxu0 %v5485
    %7056 = vmatpush.bf16.msra.mxu0 %v5473
    %7057 = vmatpush.bf16.msra.mxu0 %v5461
    %7058 = vmatpush.bf16.msra.mxu0 %v5449
    %7059 = vmatmul.bf16.gmra.mxu0 %v2941
    %v7060 = vpop.f32.mrf.mxu0
    %v7061 = vadd.f32 %v7048, %v7060
    %v7062 = vpop.f32.mrf.mxu0
    %7063 = vdwg.mxu0
    %7064 = vmatpush.bf16.msra.mxu0 %v5629
    %7065 = vmatpush.bf16.msra.mxu0 %v5617
    %7066 = vmatpush.bf16.msra.mxu0 %v5605
    %7067 = vmatpush.bf16.msra.mxu0 %v5593
    %7068 = vmatpush.bf16.msra.mxu0 %v5581
    %7069 = vmatpush.bf16.msra.mxu0 %v5569
    %7070 = vmatpush.bf16.msra.mxu0 %v5557
    %7071 = vmatpush.bf16.msra.mxu0 %v5545
    %7072 = vmatmul.bf16.gmra.mxu0 %v2942
    %v7073 = vpop.f32.mrf.mxu0
    %v7074 = vadd.f32 %v7061, %v7073
    %v7075 = vpop.f32.mrf.mxu0
    %7076 = vdwg.mxu0
    %7077 = vmatpush.bf16.msra.mxu0 %v5725
    %7078 = vmatpush.bf16.msra.mxu0 %v5713
    %7079 = vmatpush.bf16.msra.mxu0 %v5701
    %7080 = vmatpush.bf16.msra.mxu0 %v5689
    %7081 = vmatpush.bf16.msra.mxu0 %v5677
    %7082 = vmatpush.bf16.msra.mxu0 %v5665
    %7083 = vmatpush.bf16.msra.mxu0 %v5653
    %7084 = vmatpush.bf16.msra.mxu0 %v5641
    %7085 = vmatmul.bf16.gmra.mxu0 %v2943
    %v7086 = vpop.f32.mrf.mxu0
    %v7087 = vadd.f32 %v7074, %v7086
    %v7088 = vpop.f32.mrf.mxu0
    %7089 = vdwg.mxu0
    %7090 = vmatpush.bf16.msra.mxu0 %v5821
    %7091 = vmatpush.bf16.msra.mxu0 %v5809
    %7092 = vmatpush.bf16.msra.mxu0 %v5797
    %7093 = vmatpush.bf16.msra.mxu0 %v5785
    %7094 = vmatpush.bf16.msra.mxu0 %v5773
    %7095 = vmatpush.bf16.msra.mxu0 %v5761
    %7096 = vmatpush.bf16.msra.mxu0 %v5749
    %7097 = vmatpush.bf16.msra.mxu0 %v5737
    %7098 = vmatmul.bf16.gmra.mxu0 %v2944
    %v7099 = vpop.f32.mrf.mxu0
    %v7100 = vadd.f32 %v7087, %v7099
    %v7101 = vpop.f32.mrf.mxu0
    %7102 = vdwg.mxu0
    %7103 = vmatpush.bf16.msra.mxu0 %v5342
    %7104 = vmatpush.bf16.msra.mxu0 %v5330
    %7105 = vmatpush.bf16.msra.mxu0 %v5318
    %7106 = vmatpush.bf16.msra.mxu0 %v5306
    %7107 = vmatpush.bf16.msra.mxu0 %v5294
    %7108 = vmatpush.bf16.msra.mxu0 %v5282
    %7109 = vmatpush.bf16.msra.mxu0 %v5270
    %7110 = vmatpush.bf16.msra.mxu0 %v5258
    %7111 = vmatmul.bf16.gmra.mxu0 %v2939
    %v7112 = vpop.f32.mrf.mxu0
    %v7113 = vadd.f32 0.0, %v7112
    %v7114 = vpop.f32.mrf.mxu0
    %7115 = vdwg.mxu0
    %7116 = vmatpush.bf16.msra.mxu0 %v5438
    %7117 = vmatpush.bf16.msra.mxu0 %v5426
    %7118 = vmatpush.bf16.msra.mxu0 %v5414
    %7119 = vmatpush.bf16.msra.mxu0 %v5402
    %7120 = vmatpush.bf16.msra.mxu0 %v5390
    %7121 = vmatpush.bf16.msra.mxu0 %v5378
    %7122 = vmatpush.bf16.msra.mxu0 %v5366
    %7123 = vmatpush.bf16.msra.mxu0 %v5354
    %7124 = vmatmul.bf16.gmra.mxu0 %v2940
    %v7125 = vpop.f32.mrf.mxu0
    %v7126 = vadd.f32 %v7113, %v7125
    %v7127 = vpop.f32.mrf.mxu0
    %7128 = vdwg.mxu0
    %7129 = vmatpush.bf16.msra.mxu0 %v5534
    %7130 = vmatpush.bf16.msra.mxu0 %v5522
    %7131 = vmatpush.bf16.msra.mxu0 %v5510
    %7132 = vmatpush.bf16.msra.mxu0 %v5498
    %7133 = vmatpush.bf16.msra.mxu0 %v5486
    %7134 = vmatpush.bf16.msra.mxu0 %v5474
    %7135 = vmatpush.bf16.msra.mxu0 %v5462
    %7136 = vmatpush.bf16.msra.mxu0 %v5450
    %7137 = vmatmul.bf16.gmra.mxu0 %v2941
    %v7138 = vpop.f32.mrf.mxu0
    %v7139 = vadd.f32 %v7126, %v7138
    %v7140 = vpop.f32.mrf.mxu0
    %7141 = vdwg.mxu0
    %7142 = vmatpush.bf16.msra.mxu0 %v5630
    %7143 = vmatpush.bf16.msra.mxu0 %v5618
    %7144 = vmatpush.bf16.msra.mxu0 %v5606
    %7145 = vmatpush.bf16.msra.mxu0 %v5594
    %7146 = vmatpush.bf16.msra.mxu0 %v5582
    %7147 = vmatpush.bf16.msra.mxu0 %v5570
    %7148 = vmatpush.bf16.msra.mxu0 %v5558
    %7149 = vmatpush.bf16.msra.mxu0 %v5546
    %7150 = vmatmul.bf16.gmra.mxu0 %v2942
    %v7151 = vpop.f32.mrf.mxu0
    %v7152 = vadd.f32 %v7139, %v7151
    %v7153 = vpop.f32.mrf.mxu0
    %7154 = vdwg.mxu0
    %7155 = vmatpush.bf16.msra.mxu0 %v5726
    %7156 = vmatpush.bf16.msra.mxu0 %v5714
    %7157 = vmatpush.bf16.msra.mxu0 %v5702
    %7158 = vmatpush.bf16.msra.mxu0 %v5690
    %7159 = vmatpush.bf16.msra.mxu0 %v5678
    %7160 = vmatpush.bf16.msra.mxu0 %v5666
    %7161 = vmatpush.bf16.msra.mxu0 %v5654
    %7162 = vmatpush.bf16.msra.mxu0 %v5642
    %7163 = vmatmul.bf16.gmra.mxu0 %v2943
    %v7164 = vpop.f32.mrf.mxu0
    %v7165 = vadd.f32 %v7152, %v7164
    %v7166 = vpop.f32.mrf.mxu0
    %7167 = vdwg.mxu0
    %7168 = vmatpush.bf16.msra.mxu0 %v5822
    %7169 = vmatpush.bf16.msra.mxu0 %v5810
    %7170 = vmatpush.bf16.msra.mxu0 %v5798
    %7171 = vmatpush.bf16.msra.mxu0 %v5786
    %7172 = vmatpush.bf16.msra.mxu0 %v5774
    %7173 = vmatpush.bf16.msra.mxu0 %v5762
    %7174 = vmatpush.bf16.msra.mxu0 %v5750
    %7175 = vmatpush.bf16.msra.mxu0 %v5738
    %7176 = vmatmul.bf16.gmra.mxu0 %v2944
    %v7177 = vpop.f32.mrf.mxu0
    %v7178 = vadd.f32 %v7165, %v7177
    %v7179 = vpop.f32.mrf.mxu0
    %7180 = vdwg.mxu0
    %7181 = vmatpush.bf16.msra.mxu0 %v5343
    %7182 = vmatpush.bf16.msra.mxu0 %v5331
    %7183 = vmatpush.bf16.msra.mxu0 %v5319
    %7184 = vmatpush.bf16.msra.mxu0 %v5307
    %7185 = vmatpush.bf16.msra.mxu0 %v5295
    %7186 = vmatpush.bf16.msra.mxu0 %v5283
    %7187 = vmatpush.bf16.msra.mxu0 %v5271
    %7188 = vmatpush.bf16.msra.mxu0 %v5259
    %7189 = vmatmul.bf16.gmra.mxu0 %v2939
    %v7190 = vpop.f32.mrf.mxu0
    %v7191 = vadd.f32 0.0, %v7190
    %v7192 = vpop.f32.mrf.mxu0
    %7193 = vdwg.mxu0
    %7194 = vmatpush.bf16.msra.mxu0 %v5439
    %7195 = vmatpush.bf16.msra.mxu0 %v5427
    %7196 = vmatpush.bf16.msra.mxu0 %v5415
    %7197 = vmatpush.bf16.msra.mxu0 %v5403
    %7198 = vmatpush.bf16.msra.mxu0 %v5391
    %7199 = vmatpush.bf16.msra.mxu0 %v5379
    %7200 = vmatpush.bf16.msra.mxu0 %v5367
    %7201 = vmatpush.bf16.msra.mxu0 %v5355
    %7202 = vmatmul.bf16.gmra.mxu0 %v2940
    %v7203 = vpop.f32.mrf.mxu0
    %v7204 = vadd.f32 %v7191, %v7203
    %v7205 = vpop.f32.mrf.mxu0
    %7206 = vdwg.mxu0
    %7207 = vmatpush.bf16.msra.mxu0 %v5535
    %7208 = vmatpush.bf16.msra.mxu0 %v5523
    %7209 = vmatpush.bf16.msra.mxu0 %v5511
    %7210 = vmatpush.bf16.msra.mxu0 %v5499
    %7211 = vmatpush.bf16.msra.mxu0 %v5487
    %7212 = vmatpush.bf16.msra.mxu0 %v5475
    %7213 = vmatpush.bf16.msra.mxu0 %v5463
    %7214 = vmatpush.bf16.msra.mxu0 %v5451
    %7215 = vmatmul.bf16.gmra.mxu0 %v2941
    %v7216 = vpop.f32.mrf.mxu0
    %v7217 = vadd.f32 %v7204, %v7216
    %v7218 = vpop.f32.mrf.mxu0
    %7219 = vdwg.mxu0
    %7220 = vmatpush.bf16.msra.mxu0 %v5631
    %7221 = vmatpush.bf16.msra.mxu0 %v5619
    %7222 = vmatpush.bf16.msra.mxu0 %v5607
    %7223 = vmatpush.bf16.msra.mxu0 %v5595
    %7224 = vmatpush.bf16.msra.mxu0 %v5583
    %7225 = vmatpush.bf16.msra.mxu0 %v5571
    %7226 = vmatpush.bf16.msra.mxu0 %v5559
    %7227 = vmatpush.bf16.msra.mxu0 %v5547
    %7228 = vmatmul.bf16.gmra.mxu0 %v2942
    %v7229 = vpop.f32.mrf.mxu0
    %v7230 = vadd.f32 %v7217, %v7229
    %v7231 = vpop.f32.mrf.mxu0
    %7232 = vdwg.mxu0
    %7233 = vmatpush.bf16.msra.mxu0 %v5727
    %7234 = vmatpush.bf16.msra.mxu0 %v5715
    %7235 = vmatpush.bf16.msra.mxu0 %v5703
    %7236 = vmatpush.bf16.msra.mxu0 %v5691
    %7237 = vmatpush.bf16.msra.mxu0 %v5679
    %7238 = vmatpush.bf16.msra.mxu0 %v5667
    %7239 = vmatpush.bf16.msra.mxu0 %v5655
    %7240 = vmatpush.bf16.msra.mxu0 %v5643
    %7241 = vmatmul.bf16.gmra.mxu0 %v2943
    %v7242 = vpop.f32.mrf.mxu0
    %v7243 = vadd.f32 %v7230, %v7242
    %v7244 = vpop.f32.mrf.mxu0
    %7245 = vdwg.mxu0
    %7246 = vmatpush.bf16.msra.mxu0 %v5823
    %7247 = vmatpush.bf16.msra.mxu0 %v5811
    %7248 = vmatpush.bf16.msra.mxu0 %v5799
    %7249 = vmatpush.bf16.msra.mxu0 %v5787
    %7250 = vmatpush.bf16.msra.mxu0 %v5775
    %7251 = vmatpush.bf16.msra.mxu0 %v5763
    %7252 = vmatpush.bf16.msra.mxu0 %v5751
    %7253 = vmatpush.bf16.msra.mxu0 %v5739
    %7254 = vmatmul.bf16.gmra.mxu0 %v2944
    %v7255 = vpop.f32.mrf.mxu0
    %v7256 = vadd.f32 %v7243, %v7255
    %v7257 = vpop.f32.mrf.mxu0
    %7258 = vdwg.mxu0
    %7259 = vmatpush.bf16.msra.mxu0 %v5344
    %7260 = vmatpush.bf16.msra.mxu0 %v5332
    %7261 = vmatpush.bf16.msra.mxu0 %v5320
    %7262 = vmatpush.bf16.msra.mxu0 %v5308
    %7263 = vmatpush.bf16.msra.mxu0 %v5296
    %7264 = vmatpush.bf16.msra.mxu0 %v5284
    %7265 = vmatpush.bf16.msra.mxu0 %v5272
    %7266 = vmatpush.bf16.msra.mxu0 %v5260
    %7267 = vmatmul.bf16.gmra.mxu0 %v2939
    %v7268 = vpop.f32.mrf.mxu0
    %v7269 = vadd.f32 0.0, %v7268
    %v7270 = vpop.f32.mrf.mxu0
    %7271 = vdwg.mxu0
    %7272 = vmatpush.bf16.msra.mxu0 %v5440
    %7273 = vmatpush.bf16.msra.mxu0 %v5428
    %7274 = vmatpush.bf16.msra.mxu0 %v5416
    %7275 = vmatpush.bf16.msra.mxu0 %v5404
    %7276 = vmatpush.bf16.msra.mxu0 %v5392
    %7277 = vmatpush.bf16.msra.mxu0 %v5380
    %7278 = vmatpush.bf16.msra.mxu0 %v5368
    %7279 = vmatpush.bf16.msra.mxu0 %v5356
    %7280 = vmatmul.bf16.gmra.mxu0 %v2940
    %v7281 = vpop.f32.mrf.mxu0
    %v7282 = vadd.f32 %v7269, %v7281
    %v7283 = vpop.f32.mrf.mxu0
    %7284 = vdwg.mxu0
    %7285 = vmatpush.bf16.msra.mxu0 %v5536
    %7286 = vmatpush.bf16.msra.mxu0 %v5524
    %7287 = vmatpush.bf16.msra.mxu0 %v5512
    %7288 = vmatpush.bf16.msra.mxu0 %v5500
    %7289 = vmatpush.bf16.msra.mxu0 %v5488
    %7290 = vmatpush.bf16.msra.mxu0 %v5476
    %7291 = vmatpush.bf16.msra.mxu0 %v5464
    %7292 = vmatpush.bf16.msra.mxu0 %v5452
    %7293 = vmatmul.bf16.gmra.mxu0 %v2941
    %v7294 = vpop.f32.mrf.mxu0
    %v7295 = vadd.f32 %v7282, %v7294
    %v7296 = vpop.f32.mrf.mxu0
    %7297 = vdwg.mxu0
    %7298 = vmatpush.bf16.msra.mxu0 %v5632
    %7299 = vmatpush.bf16.msra.mxu0 %v5620
    %7300 = vmatpush.bf16.msra.mxu0 %v5608
    %7301 = vmatpush.bf16.msra.mxu0 %v5596
    %7302 = vmatpush.bf16.msra.mxu0 %v5584
    %7303 = vmatpush.bf16.msra.mxu0 %v5572
    %7304 = vmatpush.bf16.msra.mxu0 %v5560
    %7305 = vmatpush.bf16.msra.mxu0 %v5548
    %7306 = vmatmul.bf16.gmra.mxu0 %v2942
    %v7307 = vpop.f32.mrf.mxu0
    %v7308 = vadd.f32 %v7295, %v7307
    %v7309 = vpop.f32.mrf.mxu0
    %7310 = vdwg.mxu0
    %7311 = vmatpush.bf16.msra.mxu0 %v5728
    %7312 = vmatpush.bf16.msra.mxu0 %v5716
    %7313 = vmatpush.bf16.msra.mxu0 %v5704
    %7314 = vmatpush.bf16.msra.mxu0 %v5692
    %7315 = vmatpush.bf16.msra.mxu0 %v5680
    %7316 = vmatpush.bf16.msra.mxu0 %v5668
    %7317 = vmatpush.bf16.msra.mxu0 %v5656
    %7318 = vmatpush.bf16.msra.mxu0 %v5644
    %7319 = vmatmul.bf16.gmra.mxu0 %v2943
    %v7320 = vpop.f32.mrf.mxu0
    %v7321 = vadd.f32 %v7308, %v7320
    %v7322 = vpop.f32.mrf.mxu0
    %7323 = vdwg.mxu0
    %7324 = vmatpush.bf16.msra.mxu0 %v5824
    %7325 = vmatpush.bf16.msra.mxu0 %v5812
    %7326 = vmatpush.bf16.msra.mxu0 %v5800
    %7327 = vmatpush.bf16.msra.mxu0 %v5788
    %7328 = vmatpush.bf16.msra.mxu0 %v5776
    %7329 = vmatpush.bf16.msra.mxu0 %v5764
    %7330 = vmatpush.bf16.msra.mxu0 %v5752
    %7331 = vmatpush.bf16.msra.mxu0 %v5740
    %7332 = vmatmul.bf16.gmra.mxu0 %v2944
    %v7333 = vpop.f32.mrf.mxu0
    %v7334 = vadd.f32 %v7321, %v7333
    %v7335 = vpop.f32.mrf.mxu0
    %7336 = vdwg.mxu0
    %v7913 = vunpack.c.l.b16 %v2363
    %v7914 = vunpack.c.h.b16 %v2363
    %v7915 = vunpack.c.l.b16 %v2364
    %v7916 = vunpack.c.h.b16 %v2364
    %v7917 = vunpack.c.l.b16 %v2365
    %v7918 = vunpack.c.h.b16 %v2365
    %v7919 = vunpack.c.l.b16 %v2366
    %v7920 = vunpack.c.h.b16 %v2366
    %v7921 = vunpack.c.l.b16 %v2367
    %v7922 = vunpack.c.h.b16 %v2367
    %v7923 = vunpack.c.l.b16 %v2368
    %v7924 = vunpack.c.h.b16 %v2368
    %v7925 = vunpack.c.l.b16 %v2369
    %v7926 = vunpack.c.h.b16 %v2369
    %v7927 = vunpack.c.l.b16 %v2370
    %v7928 = vunpack.c.h.b16 %v2370
    %v7929 = vunpack.c.l.b16 %v2371
    %v7930 = vunpack.c.h.b16 %v2371
    %v7931 = vunpack.c.l.b16 %v2372
    %v7932 = vunpack.c.h.b16 %v2372
    %v7933 = vunpack.c.l.b16 %v2373
    %v7934 = vunpack.c.h.b16 %v2373
    %v7935 = vunpack.c.l.b16 %v2374
    %v7936 = vunpack.c.h.b16 %v2374
    %v7937 = vunpack.c.l.b16 %v2375
    %v7938 = vunpack.c.h.b16 %v2375
    %v7939 = vunpack.c.l.b16 %v2376
    %v7940 = vunpack.c.h.b16 %v2376
    %v7941 = vunpack.c.l.b16 %v2377
    %v7942 = vunpack.c.h.b16 %v2377
    %v7943 = vunpack.c.l.b16 %v2378
    %v7944 = vunpack.c.h.b16 %v2378
    %v7945 = vunpack.c.l.b16 %v2379
    %v7946 = vunpack.c.h.b16 %v2379
    %v7947 = vunpack.c.l.b16 %v2380
    %v7948 = vunpack.c.h.b16 %v2380
    %v7949 = vunpack.c.l.b16 %v2381
    %v7950 = vunpack.c.h.b16 %v2381
    %v7951 = vunpack.c.l.b16 %v2382
    %v7952 = vunpack.c.h.b16 %v2382
    %v7953 = vunpack.c.l.b16 %v2383
    %v7954 = vunpack.c.h.b16 %v2383
    %v7955 = vunpack.c.l.b16 %v2384
    %v7956 = vunpack.c.h.b16 %v2384
    %v7957 = vunpack.c.l.b16 %v2385
    %v7958 = vunpack.c.h.b16 %v2385
    %v7959 = vunpack.c.l.b16 %v2386
    %v7960 = vunpack.c.h.b16 %v2386
    %v7961 = vunpack.c.l.b16 %v2387
    %v7962 = vunpack.c.h.b16 %v2387
    %v7963 = vunpack.c.l.b16 %v2388
    %v7964 = vunpack.c.h.b16 %v2388
    %v7965 = vunpack.c.l.b16 %v2389
    %v7966 = vunpack.c.h.b16 %v2389
    %v7967 = vunpack.c.l.b16 %v2390
    %v7968 = vunpack.c.h.b16 %v2390
    %v7969 = vunpack.c.l.b16 %v2391
    %v7970 = vunpack.c.h.b16 %v2391
    %v7971 = vunpack.c.l.b16 %v2392
    %v7972 = vunpack.c.h.b16 %v2392
    %v7973 = vunpack.c.l.b16 %v2393
    %v7974 = vunpack.c.h.b16 %v2393
    %v7975 = vunpack.c.l.b16 %v2394
    %v7976 = vunpack.c.h.b16 %v2394
    %v7977 = vunpack.c.l.b16 %v2395
    %v7978 = vunpack.c.h.b16 %v2395
    %v7979 = vunpack.c.l.b16 %v2396
    %v7980 = vunpack.c.h.b16 %v2396
    %v7981 = vunpack.c.l.b16 %v2397
    %v7982 = vunpack.c.h.b16 %v2397
    %v7983 = vunpack.c.l.b16 %v2398
    %v7984 = vunpack.c.h.b16 %v2398
    %v7985 = vunpack.c.l.b16 %v2399
    %v7986 = vunpack.c.h.b16 %v2399
    %v7987 = vunpack.c.l.b16 %v2400
    %v7988 = vunpack.c.h.b16 %v2400
    %v7989 = vunpack.c.l.b16 %v2401
    %v7990 = vunpack.c.h.b16 %v2401
    %v7991 = vunpack.c.l.b16 %v2402
    %v7992 = vunpack.c.h.b16 %v2402
    %v7993 = vunpack.c.l.b16 %v2403
    %v7994 = vunpack.c.h.b16 %v2403
    %v7995 = vunpack.c.l.b16 %v2404
    %v7996 = vunpack.c.h.b16 %v2404
    %v7997 = vunpack.c.l.b16 %v2405
    %v7998 = vunpack.c.h.b16 %v2405
    %v7999 = vunpack.c.l.b16 %v2406
    %v8000 = vunpack.c.h.b16 %v2406
    %v8001 = vunpack.c.l.b16 %v2407
    %v8002 = vunpack.c.h.b16 %v2407
    %v8003 = vunpack.c.l.b16 %v2408
    %v8004 = vunpack.c.h.b16 %v2408
    %v8005 = vunpack.c.l.b16 %v2409
    %v8006 = vunpack.c.h.b16 %v2409
    %v8007 = vunpack.c.l.b16 %v2410
    %v8008 = vunpack.c.h.b16 %v2410
    %v8009 = vunpack.c.l.b16 %v2411
    %v8010 = vunpack.c.h.b16 %v2411
    %v8011 = vunpack.c.l.b16 %v2412
    %v8012 = vunpack.c.h.b16 %v2412
    %v8013 = vunpack.c.l.b16 %v2413
    %v8014 = vunpack.c.h.b16 %v2413
    %v8015 = vunpack.c.l.b16 %v2414
    %v8016 = vunpack.c.h.b16 %v2414
    %v8017 = vunpack.c.l.b16 %v2415
    %v8018 = vunpack.c.h.b16 %v2415
    %v8019 = vunpack.c.l.b16 %v2416
    %v8020 = vunpack.c.h.b16 %v2416
    %v8021 = vunpack.c.l.b16 %v2417
    %v8022 = vunpack.c.h.b16 %v2417
    %v8023 = vunpack.c.l.b16 %v2418
    %v8024 = vunpack.c.h.b16 %v2418
    %v8025 = vunpack.c.l.b16 %v2419
    %v8026 = vunpack.c.h.b16 %v2419
    %v8027 = vunpack.c.l.b16 %v2420
    %v8028 = vunpack.c.h.b16 %v2420
    %v8029 = vunpack.c.l.b16 %v2421
    %v8030 = vunpack.c.h.b16 %v2421
    %v8031 = vunpack.c.l.b16 %v2422
    %v8032 = vunpack.c.h.b16 %v2422
    %v8033 = vunpack.c.l.b16 %v2423
    %v8034 = vunpack.c.h.b16 %v2423
    %v8035 = vunpack.c.l.b16 %v2424
    %v8036 = vunpack.c.h.b16 %v2424
    %v8037 = vunpack.c.l.b16 %v2425
    %v8038 = vunpack.c.h.b16 %v2425
    %v8039 = vunpack.c.l.b16 %v2426
    %v8040 = vunpack.c.h.b16 %v2426
    %v8041 = vunpack.c.l.b16 %v2427
    %v8042 = vunpack.c.h.b16 %v2427
    %v8043 = vunpack.c.l.b16 %v2428
    %v8044 = vunpack.c.h.b16 %v2428
    %v8045 = vunpack.c.l.b16 %v2429
    %v8046 = vunpack.c.h.b16 %v2429
    %v8047 = vunpack.c.l.b16 %v2430
    %v8048 = vunpack.c.h.b16 %v2430
    %v8049 = vunpack.c.l.b16 %v2431
    %v8050 = vunpack.c.h.b16 %v2431
    %v8051 = vunpack.c.l.b16 %v2432
    %v8052 = vunpack.c.h.b16 %v2432
    %v8053 = vunpack.c.l.b16 %v2433
    %v8054 = vunpack.c.h.b16 %v2433
    %v8055 = vunpack.c.l.b16 %v2434
    %v8056 = vunpack.c.h.b16 %v2434
    %v8057 = vunpack.c.l.b16 %v2435
    %v8058 = vunpack.c.h.b16 %v2435
    %v8059 = vunpack.c.l.b16 %v2436
    %v8060 = vunpack.c.h.b16 %v2436
    %v8061 = vunpack.c.l.b16 %v2437
    %v8062 = vunpack.c.h.b16 %v2437
    %v8063 = vunpack.c.l.b16 %v2438
    %v8064 = vunpack.c.h.b16 %v2438
    %v8065 = vunpack.c.l.b16 %v2439
    %v8066 = vunpack.c.h.b16 %v2439
    %v8067 = vunpack.c.l.b16 %v2440
    %v8068 = vunpack.c.h.b16 %v2440
    %v8069 = vunpack.c.l.b16 %v2441
    %v8070 = vunpack.c.h.b16 %v2441
    %v8071 = vunpack.c.l.b16 %v2442
    %v8072 = vunpack.c.h.b16 %v2442
    %v8073 = vunpack.c.l.b16 %v2443
    %v8074 = vunpack.c.h.b16 %v2443
    %v8075 = vunpack.c.l.b16 %v2444
    %v8076 = vunpack.c.h.b16 %v2444
    %v8077 = vunpack.c.l.b16 %v2445
    %v8078 = vunpack.c.h.b16 %v2445
    %v8079 = vunpack.c.l.b16 %v2446
    %v8080 = vunpack.c.h.b16 %v2446
    %v8081 = vunpack.c.l.b16 %v2447
    %v8082 = vunpack.c.h.b16 %v2447
    %v8083 = vunpack.c.l.b16 %v2448
    %v8084 = vunpack.c.h.b16 %v2448
    %v8085 = vunpack.c.l.b16 %v2449
    %v8086 = vunpack.c.h.b16 %v2449
    %v8087 = vunpack.c.l.b16 %v2450
    %v8088 = vunpack.c.h.b16 %v2450
    %v8089 = vunpack.c.l.b16 %v2451
    %v8090 = vunpack.c.h.b16 %v2451
    %v8091 = vunpack.c.l.b16 %v2452
    %v8092 = vunpack.c.h.b16 %v2452
    %v8093 = vunpack.c.l.b16 %v2453
    %v8094 = vunpack.c.h.b16 %v2453
    %v8095 = vunpack.c.l.b16 %v2454
    %v8096 = vunpack.c.h.b16 %v2454
    %v8097 = vunpack.c.l.b16 %v2455
    %v8098 = vunpack.c.h.b16 %v2455
    %v8099 = vunpack.c.l.b16 %v2456
    %v8100 = vunpack.c.h.b16 %v2456
    %v8101 = vunpack.c.l.b16 %v2457
    %v8102 = vunpack.c.h.b16 %v2457
    %v8103 = vunpack.c.l.b16 %v2458
    %v8104 = vunpack.c.h.b16 %v2458
    %v8105 = vunpack.c.l.b16 %v2459
    %v8106 = vunpack.c.h.b16 %v2459
    %v8107 = vunpack.c.l.b16 %v2460
    %v8108 = vunpack.c.h.b16 %v2460
    %v8109 = vunpack.c.l.b16 %v2461
    %v8110 = vunpack.c.h.b16 %v2461
    %v8111 = vunpack.c.l.b16 %v2462
    %v8112 = vunpack.c.h.b16 %v2462
    %v8113 = vunpack.c.l.b16 %v2463
    %v8114 = vunpack.c.h.b16 %v2463
    %v8115 = vunpack.c.l.b16 %v2464
    %v8116 = vunpack.c.h.b16 %v2464
    %v8117 = vunpack.c.l.b16 %v2465
    %v8118 = vunpack.c.h.b16 %v2465
    %v8119 = vunpack.c.l.b16 %v2466
    %v8120 = vunpack.c.h.b16 %v2466
    %v8121 = vunpack.c.l.b16 %v2467
    %v8122 = vunpack.c.h.b16 %v2467
    %v8123 = vunpack.c.l.b16 %v2468
    %v8124 = vunpack.c.h.b16 %v2468
    %v8125 = vunpack.c.l.b16 %v2469
    %v8126 = vunpack.c.h.b16 %v2469
    %v8127 = vunpack.c.l.b16 %v2470
    %v8128 = vunpack.c.h.b16 %v2470
    %v8129 = vunpack.c.l.b16 %v2471
    %v8130 = vunpack.c.h.b16 %v2471
    %v8131 = vunpack.c.l.b16 %v2472
    %v8132 = vunpack.c.h.b16 %v2472
    %v8133 = vunpack.c.l.b16 %v2473
    %v8134 = vunpack.c.h.b16 %v2473
    %v8135 = vunpack.c.l.b16 %v2474
    %v8136 = vunpack.c.h.b16 %v2474
    %v8137 = vunpack.c.l.b16 %v2475
    %v8138 = vunpack.c.h.b16 %v2475
    %v8139 = vunpack.c.l.b16 %v2476
    %v8140 = vunpack.c.h.b16 %v2476
    %v8141 = vunpack.c.l.b16 %v2477
    %v8142 = vunpack.c.h.b16 %v2477
    %v8143 = vunpack.c.l.b16 %v2478
    %v8144 = vunpack.c.h.b16 %v2478
    %v8145 = vunpack.c.l.b16 %v2479
    %v8146 = vunpack.c.h.b16 %v2479
    %v8147 = vunpack.c.l.b16 %v2480
    %v8148 = vunpack.c.h.b16 %v2480
    %v8149 = vunpack.c.l.b16 %v2481
    %v8150 = vunpack.c.h.b16 %v2481
    %v8151 = vunpack.c.l.b16 %v2482
    %v8152 = vunpack.c.h.b16 %v2482
    %v8153 = vunpack.c.l.b16 %v2483
    %v8154 = vunpack.c.h.b16 %v2483
    %v8155 = vunpack.c.l.b16 %v2484
    %v8156 = vunpack.c.h.b16 %v2484
    %v8157 = vunpack.c.l.b16 %v2485
    %v8158 = vunpack.c.h.b16 %v2485
    %v8159 = vunpack.c.l.b16 %v2486
    %v8160 = vunpack.c.h.b16 %v2486
    %v8161 = vunpack.c.l.b16 %v2487
    %v8162 = vunpack.c.h.b16 %v2487
    %v8163 = vunpack.c.l.b16 %v2488
    %v8164 = vunpack.c.h.b16 %v2488
    %v8165 = vunpack.c.l.b16 %v2489
    %v8166 = vunpack.c.h.b16 %v2489
    %v8167 = vunpack.c.l.b16 %v2490
    %v8168 = vunpack.c.h.b16 %v2490
    %v8169 = vunpack.c.l.b16 %v2491
    %v8170 = vunpack.c.h.b16 %v2491
    %v8171 = vunpack.c.l.b16 %v2492
    %v8172 = vunpack.c.h.b16 %v2492
    %v8173 = vunpack.c.l.b16 %v2493
    %v8174 = vunpack.c.h.b16 %v2493
    %v8175 = vunpack.c.l.b16 %v2494
    %v8176 = vunpack.c.h.b16 %v2494
    %v8177 = vunpack.c.l.b16 %v2495
    %v8178 = vunpack.c.h.b16 %v2495
    %v8179 = vunpack.c.l.b16 %v2496
    %v8180 = vunpack.c.h.b16 %v2496
    %v8181 = vunpack.c.l.b16 %v2497
    %v8182 = vunpack.c.h.b16 %v2497
    %v8183 = vunpack.c.l.b16 %v2498
    %v8184 = vunpack.c.h.b16 %v2498
    %v8185 = vunpack.c.l.b16 %v2499
    %v8186 = vunpack.c.h.b16 %v2499
    %v8187 = vunpack.c.l.b16 %v2500
    %v8188 = vunpack.c.h.b16 %v2500
    %v8189 = vunpack.c.l.b16 %v2501
    %v8190 = vunpack.c.h.b16 %v2501
    %v8191 = vunpack.c.l.b16 %v2502
    %v8192 = vunpack.c.h.b16 %v2502
    %v8193 = vunpack.c.l.b16 %v2503
    %v8194 = vunpack.c.h.b16 %v2503
    %v8195 = vunpack.c.l.b16 %v2504
    %v8196 = vunpack.c.h.b16 %v2504
    %v8197 = vunpack.c.l.b16 %v2505
    %v8198 = vunpack.c.h.b16 %v2505
    %v8199 = vunpack.c.l.b16 %v2506
    %v8200 = vunpack.c.h.b16 %v2506
    %v8201 = vunpack.c.l.b16 %v2507
    %v8202 = vunpack.c.h.b16 %v2507
    %v8203 = vunpack.c.l.b16 %v2508
    %v8204 = vunpack.c.h.b16 %v2508
    %v8205 = vunpack.c.l.b16 %v2509
    %v8206 = vunpack.c.h.b16 %v2509
    %v8207 = vunpack.c.l.b16 %v2510
    %v8208 = vunpack.c.h.b16 %v2510
    %v8209 = vunpack.c.l.b16 %v2511
    %v8210 = vunpack.c.h.b16 %v2511
    %v8211 = vunpack.c.l.b16 %v2512
    %v8212 = vunpack.c.h.b16 %v2512
    %v8213 = vunpack.c.l.b16 %v2513
    %v8214 = vunpack.c.h.b16 %v2513
    %v8215 = vunpack.c.l.b16 %v2514
    %v8216 = vunpack.c.h.b16 %v2514
    %v8217 = vunpack.c.l.b16 %v2515
    %v8218 = vunpack.c.h.b16 %v2515
    %v8219 = vunpack.c.l.b16 %v2516
    %v8220 = vunpack.c.h.b16 %v2516
    %v8221 = vunpack.c.l.b16 %v2517
    %v8222 = vunpack.c.h.b16 %v2517
    %v8223 = vunpack.c.l.b16 %v2518
    %v8224 = vunpack.c.h.b16 %v2518
    %v8225 = vunpack.c.l.b16 %v2519
    %v8226 = vunpack.c.h.b16 %v2519
    %v8227 = vunpack.c.l.b16 %v2520
    %v8228 = vunpack.c.h.b16 %v2520
    %v8229 = vunpack.c.l.b16 %v2521
    %v8230 = vunpack.c.h.b16 %v2521
    %v8231 = vunpack.c.l.b16 %v2522
    %v8232 = vunpack.c.h.b16 %v2522
    %v8233 = vunpack.c.l.b16 %v2523
    %v8234 = vunpack.c.h.b16 %v2523
    %v8235 = vunpack.c.l.b16 %v2524
    %v8236 = vunpack.c.h.b16 %v2524
    %v8237 = vunpack.c.l.b16 %v2525
    %v8238 = vunpack.c.h.b16 %v2525
    %v8239 = vunpack.c.l.b16 %v2526
    %v8240 = vunpack.c.h.b16 %v2526
    %v8241 = vunpack.c.l.b16 %v2527
    %v8242 = vunpack.c.h.b16 %v2527
    %v8243 = vunpack.c.l.b16 %v2528
    %v8244 = vunpack.c.h.b16 %v2528
    %v8245 = vunpack.c.l.b16 %v2529
    %v8246 = vunpack.c.h.b16 %v2529
    %v8247 = vunpack.c.l.b16 %v2530
    %v8248 = vunpack.c.h.b16 %v2530
    %v8249 = vunpack.c.l.b16 %v2531
    %v8250 = vunpack.c.h.b16 %v2531
    %v8251 = vunpack.c.l.b16 %v2532
    %v8252 = vunpack.c.h.b16 %v2532
    %v8253 = vunpack.c.l.b16 %v2533
    %v8254 = vunpack.c.h.b16 %v2533
    %v8255 = vunpack.c.l.b16 %v2534
    %v8256 = vunpack.c.h.b16 %v2534
    %v8257 = vunpack.c.l.b16 %v2535
    %v8258 = vunpack.c.h.b16 %v2535
    %v8259 = vunpack.c.l.b16 %v2536
    %v8260 = vunpack.c.h.b16 %v2536
    %v8261 = vunpack.c.l.b16 %v2537
    %v8262 = vunpack.c.h.b16 %v2537
    %v8263 = vunpack.c.l.b16 %v2538
    %v8264 = vunpack.c.h.b16 %v2538
    %v8265 = vunpack.c.l.b16 %v2539
    %v8266 = vunpack.c.h.b16 %v2539
    %v8267 = vunpack.c.l.b16 %v2540
    %v8268 = vunpack.c.h.b16 %v2540
    %v8269 = vunpack.c.l.b16 %v2541
    %v8270 = vunpack.c.h.b16 %v2541
    %v8271 = vunpack.c.l.b16 %v2542
    %v8272 = vunpack.c.h.b16 %v2542
    %v8273 = vunpack.c.l.b16 %v2543
    %v8274 = vunpack.c.h.b16 %v2543
    %v8275 = vunpack.c.l.b16 %v2544
    %v8276 = vunpack.c.h.b16 %v2544
    %v8277 = vunpack.c.l.b16 %v2545
    %v8278 = vunpack.c.h.b16 %v2545
    %v8279 = vunpack.c.l.b16 %v2546
    %v8280 = vunpack.c.h.b16 %v2546
    %v8281 = vunpack.c.l.b16 %v2547
    %v8282 = vunpack.c.h.b16 %v2547
    %v8283 = vunpack.c.l.b16 %v2548
    %v8284 = vunpack.c.h.b16 %v2548
    %v8285 = vunpack.c.l.b16 %v2549
    %v8286 = vunpack.c.h.b16 %v2549
    %v8287 = vunpack.c.l.b16 %v2550
    %v8288 = vunpack.c.h.b16 %v2550
    %v8289 = vunpack.c.l.b16 %v2551
    %v8290 = vunpack.c.h.b16 %v2551
    %v8291 = vunpack.c.l.b16 %v2552
    %v8292 = vunpack.c.h.b16 %v2552
    %v8293 = vunpack.c.l.b16 %v2553
    %v8294 = vunpack.c.h.b16 %v2553
    %v8295 = vunpack.c.l.b16 %v2554
    %v8296 = vunpack.c.h.b16 %v2554
    %v8297 = vunpack.c.l.b16 %v2555
    %v8298 = vunpack.c.h.b16 %v2555
    %v8299 = vunpack.c.l.b16 %v2556
    %v8300 = vunpack.c.h.b16 %v2556
    %v8301 = vunpack.c.l.b16 %v2557
    %v8302 = vunpack.c.h.b16 %v2557
    %v8303 = vunpack.c.l.b16 %v2558
    %v8304 = vunpack.c.h.b16 %v2558
    %v8305 = vunpack.c.l.b16 %v2559
    %v8306 = vunpack.c.h.b16 %v2559
    %v8307 = vunpack.c.l.b16 %v2560
    %v8308 = vunpack.c.h.b16 %v2560
    %v8309 = vunpack.c.l.b16 %v2561
    %v8310 = vunpack.c.h.b16 %v2561
    %v8311 = vunpack.c.l.b16 %v2562
    %v8312 = vunpack.c.h.b16 %v2562
    %v8313 = vunpack.c.l.b16 %v2563
    %v8314 = vunpack.c.h.b16 %v2563
    %v8315 = vunpack.c.l.b16 %v2564
    %v8316 = vunpack.c.h.b16 %v2564
    %v8317 = vunpack.c.l.b16 %v2565
    %v8318 = vunpack.c.h.b16 %v2565
    %v8319 = vunpack.c.l.b16 %v2566
    %v8320 = vunpack.c.h.b16 %v2566
    %v8321 = vunpack.c.l.b16 %v2567
    %v8322 = vunpack.c.h.b16 %v2567
    %v8323 = vunpack.c.l.b16 %v2568
    %v8324 = vunpack.c.h.b16 %v2568
    %v8325 = vunpack.c.l.b16 %v2569
    %v8326 = vunpack.c.h.b16 %v2569
    %v8327 = vunpack.c.l.b16 %v2570
    %v8328 = vunpack.c.h.b16 %v2570
    %v8329 = vunpack.c.l.b16 %v2571
    %v8330 = vunpack.c.h.b16 %v2571
    %v8331 = vunpack.c.l.b16 %v2572
    %v8332 = vunpack.c.h.b16 %v2572
    %v8333 = vunpack.c.l.b16 %v2573
    %v8334 = vunpack.c.h.b16 %v2573
    %v8335 = vunpack.c.l.b16 %v2574
    %v8336 = vunpack.c.h.b16 %v2574
    %v8337 = vunpack.c.l.b16 %v2575
    %v8338 = vunpack.c.h.b16 %v2575
    %v8339 = vunpack.c.l.b16 %v2576
    %v8340 = vunpack.c.h.b16 %v2576
    %v8341 = vunpack.c.l.b16 %v2577
    %v8342 = vunpack.c.h.b16 %v2577
    %v8343 = vunpack.c.l.b16 %v2578
    %v8344 = vunpack.c.h.b16 %v2578
    %v8345 = vunpack.c.l.b16 %v2579
    %v8346 = vunpack.c.h.b16 %v2579
    %v8347 = vunpack.c.l.b16 %v2580
    %v8348 = vunpack.c.h.b16 %v2580
    %v8349 = vunpack.c.l.b16 %v2581
    %v8350 = vunpack.c.h.b16 %v2581
    %v8351 = vunpack.c.l.b16 %v2582
    %v8352 = vunpack.c.h.b16 %v2582
    %v8353 = vunpack.c.l.b16 %v2583
    %v8354 = vunpack.c.h.b16 %v2583
    %v8355 = vunpack.c.l.b16 %v2584
    %v8356 = vunpack.c.h.b16 %v2584
    %v8357 = vunpack.c.l.b16 %v2585
    %v8358 = vunpack.c.h.b16 %v2585
    %v8359 = vunpack.c.l.b16 %v2586
    %v8360 = vunpack.c.h.b16 %v2586
    %v8361 = vunpack.c.l.b16 %v2587
    %v8362 = vunpack.c.h.b16 %v2587
    %v8363 = vunpack.c.l.b16 %v2588
    %v8364 = vunpack.c.h.b16 %v2588
    %v8365 = vunpack.c.l.b16 %v2589
    %v8366 = vunpack.c.h.b16 %v2589
    %v8367 = vunpack.c.l.b16 %v2590
    %v8368 = vunpack.c.h.b16 %v2590
    %v8369 = vunpack.c.l.b16 %v2591
    %v8370 = vunpack.c.h.b16 %v2591
    %v8371 = vunpack.c.l.b16 %v2592
    %v8372 = vunpack.c.h.b16 %v2592
    %v8373 = vunpack.c.l.b16 %v2593
    %v8374 = vunpack.c.h.b16 %v2593
    %v8375 = vunpack.c.l.b16 %v2594
    %v8376 = vunpack.c.h.b16 %v2594
    %v8377 = vunpack.c.l.b16 %v2595
    %v8378 = vunpack.c.h.b16 %v2595
    %v8379 = vunpack.c.l.b16 %v2596
    %v8380 = vunpack.c.h.b16 %v2596
    %v8381 = vunpack.c.l.b16 %v2597
    %v8382 = vunpack.c.h.b16 %v2597
    %v8383 = vunpack.c.l.b16 %v2598
    %v8384 = vunpack.c.h.b16 %v2598
    %v8385 = vunpack.c.l.b16 %v2599
    %v8386 = vunpack.c.h.b16 %v2599
    %v8387 = vunpack.c.l.b16 %v2600
    %v8388 = vunpack.c.h.b16 %v2600
    %v8389 = vunpack.c.l.b16 %v2601
    %v8390 = vunpack.c.h.b16 %v2601
    %v8391 = vunpack.c.l.b16 %v2602
    %v8392 = vunpack.c.h.b16 %v2602
    %v8393 = vunpack.c.l.b16 %v2603
    %v8394 = vunpack.c.h.b16 %v2603
    %v8395 = vunpack.c.l.b16 %v2604
    %v8396 = vunpack.c.h.b16 %v2604
    %v8397 = vunpack.c.l.b16 %v2605
    %v8398 = vunpack.c.h.b16 %v2605
    %v8399 = vunpack.c.l.b16 %v2606
    %v8400 = vunpack.c.h.b16 %v2606
    %v8401 = vunpack.c.l.b16 %v2607
    %v8402 = vunpack.c.h.b16 %v2607
    %v8403 = vunpack.c.l.b16 %v2608
    %v8404 = vunpack.c.h.b16 %v2608
    %v8405 = vunpack.c.l.b16 %v2609
    %v8406 = vunpack.c.h.b16 %v2609
    %v8407 = vunpack.c.l.b16 %v2610
    %v8408 = vunpack.c.h.b16 %v2610
    %v8409 = vunpack.c.l.b16 %v2611
    %v8410 = vunpack.c.h.b16 %v2611
    %v8411 = vunpack.c.l.b16 %v2612
    %v8412 = vunpack.c.h.b16 %v2612
    %v8413 = vunpack.c.l.b16 %v2613
    %v8414 = vunpack.c.h.b16 %v2613
    %v8415 = vunpack.c.l.b16 %v2614
    %v8416 = vunpack.c.h.b16 %v2614
    %v8417 = vunpack.c.l.b16 %v2615
    %v8418 = vunpack.c.h.b16 %v2615
    %v8419 = vunpack.c.l.b16 %v2616
    %v8420 = vunpack.c.h.b16 %v2616
    %v8421 = vunpack.c.l.b16 %v2617
    %v8422 = vunpack.c.h.b16 %v2617
    %v8423 = vunpack.c.l.b16 %v2618
    %v8424 = vunpack.c.h.b16 %v2618
    %v8425 = vunpack.c.l.b16 %v2619
    %v8426 = vunpack.c.h.b16 %v2619
    %v8427 = vunpack.c.l.b16 %v2620
    %v8428 = vunpack.c.h.b16 %v2620
    %v8429 = vunpack.c.l.b16 %v2621
    %v8430 = vunpack.c.h.b16 %v2621
    %v8431 = vunpack.c.l.b16 %v2622
    %v8432 = vunpack.c.h.b16 %v2622
    %v8433 = vunpack.c.l.b16 %v2623
    %v8434 = vunpack.c.h.b16 %v2623
    %v8435 = vunpack.c.l.b16 %v2624
    %v8436 = vunpack.c.h.b16 %v2624
    %v8437 = vunpack.c.l.b16 %v2625
    %v8438 = vunpack.c.h.b16 %v2625
    %v8439 = vunpack.c.l.b16 %v2626
    %v8440 = vunpack.c.h.b16 %v2626
    %v8441 = vunpack.c.l.b16 %v2627
    %v8442 = vunpack.c.h.b16 %v2627
    %v8443 = vunpack.c.l.b16 %v2628
    %v8444 = vunpack.c.h.b16 %v2628
    %v8445 = vunpack.c.l.b16 %v2629
    %v8446 = vunpack.c.h.b16 %v2629
    %v8447 = vunpack.c.l.b16 %v2630
    %v8448 = vunpack.c.h.b16 %v2630
    %v8449 = vunpack.c.l.b16 %v2631
    %v8450 = vunpack.c.h.b16 %v2631
    %v8451 = vunpack.c.l.b16 %v2632
    %v8452 = vunpack.c.h.b16 %v2632
    %v8453 = vunpack.c.l.b16 %v2633
    %v8454 = vunpack.c.h.b16 %v2633
    %v8455 = vunpack.c.l.b16 %v2634
    %v8456 = vunpack.c.h.b16 %v2634
    %v8457 = vunpack.c.l.b16 %v2635
    %v8458 = vunpack.c.h.b16 %v2635
    %v8459 = vunpack.c.l.b16 %v2636
    %v8460 = vunpack.c.h.b16 %v2636
    %v8461 = vunpack.c.l.b16 %v2637
    %v8462 = vunpack.c.h.b16 %v2637
    %v8463 = vunpack.c.l.b16 %v2638
    %v8464 = vunpack.c.h.b16 %v2638
    %v8465 = vunpack.c.l.b16 %v2639
    %v8466 = vunpack.c.h.b16 %v2639
    %v8467 = vunpack.c.l.b16 %v2640
    %v8468 = vunpack.c.h.b16 %v2640
    %v8469 = vunpack.c.l.b16 %v2641
    %v8470 = vunpack.c.h.b16 %v2641
    %v8471 = vunpack.c.l.b16 %v2642
    %v8472 = vunpack.c.h.b16 %v2642
    %v8473 = vunpack.c.l.b16 %v2643
    %v8474 = vunpack.c.h.b16 %v2643
    %v8475 = vunpack.c.l.b16 %v2644
    %v8476 = vunpack.c.h.b16 %v2644
    %v8477 = vunpack.c.l.b16 %v2645
    %v8478 = vunpack.c.h.b16 %v2645
    %v8479 = vunpack.c.l.b16 %v2646
    %v8480 = vunpack.c.h.b16 %v2646
    %v8481 = vunpack.c.l.b16 %v2647
    %v8482 = vunpack.c.h.b16 %v2647
    %v8483 = vunpack.c.l.b16 %v2648
    %v8484 = vunpack.c.h.b16 %v2648
    %v8485 = vunpack.c.l.b16 %v2649
    %v8486 = vunpack.c.h.b16 %v2649
    %v8487 = vunpack.c.l.b16 %v2650
    %v8488 = vunpack.c.h.b16 %v2650
    %v8489 = vunpack.c.l.b16 %v2651
    %v8490 = vunpack.c.h.b16 %v2651
    %v8491 = vunpack.c.l.b16 %v2652
    %v8492 = vunpack.c.h.b16 %v2652
    %v8493 = vunpack.c.l.b16 %v2653
    %v8494 = vunpack.c.h.b16 %v2653
    %v8495 = vunpack.c.l.b16 %v2654
    %v8496 = vunpack.c.h.b16 %v2654
    %v8497 = vunpack.c.l.b16 %v2655
    %v8498 = vunpack.c.h.b16 %v2655
    %v8499 = vunpack.c.l.b16 %v2656
    %v8500 = vunpack.c.h.b16 %v2656
    %v8501 = vunpack.c.l.b16 %v2657
    %v8502 = vunpack.c.h.b16 %v2657
    %v8503 = vunpack.c.l.b16 %v2658
    %v8504 = vunpack.c.h.b16 %v2658
    %v8505 = vunpack.c.l.b16 %v2659
    %v8506 = vunpack.c.h.b16 %v2659
    %v8507 = vunpack.c.l.b16 %v2660
    %v8508 = vunpack.c.h.b16 %v2660
    %v8509 = vunpack.c.l.b16 %v2661
    %v8510 = vunpack.c.h.b16 %v2661
    %v8511 = vunpack.c.l.b16 %v2662
    %v8512 = vunpack.c.h.b16 %v2662
    %v8513 = vunpack.c.l.b16 %v2663
    %v8514 = vunpack.c.h.b16 %v2663
    %v8515 = vunpack.c.l.b16 %v2664
    %v8516 = vunpack.c.h.b16 %v2664
    %v8517 = vunpack.c.l.b16 %v2665
    %v8518 = vunpack.c.h.b16 %v2665
    %v8519 = vunpack.c.l.b16 %v2666
    %v8520 = vunpack.c.h.b16 %v2666
    %v8521 = vunpack.c.l.b16 %v2667
    %v8522 = vunpack.c.h.b16 %v2667
    %v8523 = vunpack.c.l.b16 %v2668
    %v8524 = vunpack.c.h.b16 %v2668
    %v8525 = vunpack.c.l.b16 %v2669
    %v8526 = vunpack.c.h.b16 %v2669
    %v8527 = vunpack.c.l.b16 %v2670
    %v8528 = vunpack.c.h.b16 %v2670
    %v8529 = vunpack.c.l.b16 %v2671
    %v8530 = vunpack.c.h.b16 %v2671
    %v8531 = vunpack.c.l.b16 %v2672
    %v8532 = vunpack.c.h.b16 %v2672
    %v8533 = vunpack.c.l.b16 %v2673
    %v8534 = vunpack.c.h.b16 %v2673
    %v8535 = vunpack.c.l.b16 %v2674
    %v8536 = vunpack.c.h.b16 %v2674
    %v8537 = vunpack.c.l.b16 %v2675
    %v8538 = vunpack.c.h.b16 %v2675
    %v8539 = vunpack.c.l.b16 %v2676
    %v8540 = vunpack.c.h.b16 %v2676
    %v8541 = vunpack.c.l.b16 %v2677
    %v8542 = vunpack.c.h.b16 %v2677
    %v8543 = vunpack.c.l.b16 %v2678
    %v8544 = vunpack.c.h.b16 %v2678
    %v8545 = vunpack.c.l.b16 %v2679
    %v8546 = vunpack.c.h.b16 %v2679
    %v8547 = vunpack.c.l.b16 %v2680
    %v8548 = vunpack.c.h.b16 %v2680
    %v8549 = vunpack.c.l.b16 %v2681
    %v8550 = vunpack.c.h.b16 %v2681
    %v8551 = vunpack.c.l.b16 %v2682
    %v8552 = vunpack.c.h.b16 %v2682
    %v8553 = vunpack.c.l.b16 %v2683
    %v8554 = vunpack.c.h.b16 %v2683
    %v8555 = vunpack.c.l.b16 %v2684
    %v8556 = vunpack.c.h.b16 %v2684
    %v8557 = vunpack.c.l.b16 %v2685
    %v8558 = vunpack.c.h.b16 %v2685
    %v8559 = vunpack.c.l.b16 %v2686
    %v8560 = vunpack.c.h.b16 %v2686
    %v8561 = vunpack.c.l.b16 %v2687
    %v8562 = vunpack.c.h.b16 %v2687
    %v8563 = vunpack.c.l.b16 %v2688
    %v8564 = vunpack.c.h.b16 %v2688
    %v8565 = vunpack.c.l.b16 %v2689
    %v8566 = vunpack.c.h.b16 %v2689
    %v8567 = vunpack.c.l.b16 %v2690
    %v8568 = vunpack.c.h.b16 %v2690
    %v8569 = vunpack.c.l.b16 %v2691
    %v8570 = vunpack.c.h.b16 %v2691
    %v8571 = vunpack.c.l.b16 %v2692
    %v8572 = vunpack.c.h.b16 %v2692
    %v8573 = vunpack.c.l.b16 %v2693
    %v8574 = vunpack.c.h.b16 %v2693
    %v8575 = vunpack.c.l.b16 %v2694
    %v8576 = vunpack.c.h.b16 %v2694
    %v8577 = vunpack.c.l.b16 %v2695
    %v8578 = vunpack.c.h.b16 %v2695
    %v8579 = vunpack.c.l.b16 %v2696
    %v8580 = vunpack.c.h.b16 %v2696
    %v8581 = vunpack.c.l.b16 %v2697
    %v8582 = vunpack.c.h.b16 %v2697
    %v8583 = vunpack.c.l.b16 %v2698
    %v8584 = vunpack.c.h.b16 %v2698
    %v8585 = vunpack.c.l.b16 %v2699
    %v8586 = vunpack.c.h.b16 %v2699
    %v8587 = vunpack.c.l.b16 %v2700
    %v8588 = vunpack.c.h.b16 %v2700
    %v8589 = vunpack.c.l.b16 %v2701
    %v8590 = vunpack.c.h.b16 %v2701
    %v8591 = vunpack.c.l.b16 %v2702
    %v8592 = vunpack.c.h.b16 %v2702
    %v8593 = vunpack.c.l.b16 %v2703
    %v8594 = vunpack.c.h.b16 %v2703
    %v8595 = vunpack.c.l.b16 %v2704
    %v8596 = vunpack.c.h.b16 %v2704
    %v8597 = vunpack.c.l.b16 %v2705
    %v8598 = vunpack.c.h.b16 %v2705
    %v8599 = vunpack.c.l.b16 %v2706
    %v8600 = vunpack.c.h.b16 %v2706
    %v8601 = vunpack.c.l.b16 %v2707
    %v8602 = vunpack.c.h.b16 %v2707
    %v8603 = vunpack.c.l.b16 %v2708
    %v8604 = vunpack.c.h.b16 %v2708
    %v8605 = vunpack.c.l.b16 %v2709
    %v8606 = vunpack.c.h.b16 %v2709
    %v8607 = vunpack.c.l.b16 %v2710
    %v8608 = vunpack.c.h.b16 %v2710
    %v8609 = vunpack.c.l.b16 %v2711
    %v8610 = vunpack.c.h.b16 %v2711
    %v8611 = vunpack.c.l.b16 %v2712
    %v8612 = vunpack.c.h.b16 %v2712
    %v8613 = vunpack.c.l.b16 %v2713
    %v8614 = vunpack.c.h.b16 %v2713
    %v8615 = vunpack.c.l.b16 %v2714
    %v8616 = vunpack.c.h.b16 %v2714
    %v8617 = vunpack.c.l.b16 %v2715
    %v8618 = vunpack.c.h.b16 %v2715
    %v8619 = vunpack.c.l.b16 %v2716
    %v8620 = vunpack.c.h.b16 %v2716
    %v8621 = vunpack.c.l.b16 %v2717
    %v8622 = vunpack.c.h.b16 %v2717
    %v8623 = vunpack.c.l.b16 %v2718
    %v8624 = vunpack.c.h.b16 %v2718
    %v8625 = vunpack.c.l.b16 %v2719
    %v8626 = vunpack.c.h.b16 %v2719
    %v8627 = vunpack.c.l.b16 %v2720
    %v8628 = vunpack.c.h.b16 %v2720
    %v8629 = vunpack.c.l.b16 %v2721
    %v8630 = vunpack.c.h.b16 %v2721
    %v8631 = vunpack.c.l.b16 %v2722
    %v8632 = vunpack.c.h.b16 %v2722
    %v8633 = vunpack.c.l.b16 %v2723
    %v8634 = vunpack.c.h.b16 %v2723
    %v8635 = vunpack.c.l.b16 %v2724
    %v8636 = vunpack.c.h.b16 %v2724
    %v8637 = vunpack.c.l.b16 %v2725
    %v8638 = vunpack.c.h.b16 %v2725
    %v8639 = vunpack.c.l.b16 %v2726
    %v8640 = vunpack.c.h.b16 %v2726
    %v8641 = vunpack.c.l.b16 %v2727
    %v8642 = vunpack.c.h.b16 %v2727
    %v8643 = vunpack.c.l.b16 %v2728
    %v8644 = vunpack.c.h.b16 %v2728
    %v8645 = vunpack.c.l.b16 %v2729
    %v8646 = vunpack.c.h.b16 %v2729
    %v8647 = vunpack.c.l.b16 %v2730
    %v8648 = vunpack.c.h.b16 %v2730
    %v8649 = vunpack.c.l.b16 %v2731
    %v8650 = vunpack.c.h.b16 %v2731
    %v8651 = vunpack.c.l.b16 %v2732
    %v8652 = vunpack.c.h.b16 %v2732
    %v8653 = vunpack.c.l.b16 %v2733
    %v8654 = vunpack.c.h.b16 %v2733
    %v8655 = vunpack.c.l.b16 %v2734
    %v8656 = vunpack.c.h.b16 %v2734
    %v8657 = vunpack.c.l.b16 %v2735
    %v8658 = vunpack.c.h.b16 %v2735
    %v8659 = vunpack.c.l.b16 %v2736
    %v8660 = vunpack.c.h.b16 %v2736
    %v8661 = vunpack.c.l.b16 %v2737
    %v8662 = vunpack.c.h.b16 %v2737
    %v8663 = vunpack.c.l.b16 %v2738
    %v8664 = vunpack.c.h.b16 %v2738
    %v8665 = vunpack.c.l.b16 %v2739
    %v8666 = vunpack.c.h.b16 %v2739
    %v8667 = vunpack.c.l.b16 %v2740
    %v8668 = vunpack.c.h.b16 %v2740
    %v8669 = vunpack.c.l.b16 %v2741
    %v8670 = vunpack.c.h.b16 %v2741
    %v8671 = vunpack.c.l.b16 %v2742
    %v8672 = vunpack.c.h.b16 %v2742
    %v8673 = vunpack.c.l.b16 %v2743
    %v8674 = vunpack.c.h.b16 %v2743
    %v8675 = vunpack.c.l.b16 %v2744
    %v8676 = vunpack.c.h.b16 %v2744
    %v8677 = vunpack.c.l.b16 %v2745
    %v8678 = vunpack.c.h.b16 %v2745
    %v8679 = vunpack.c.l.b16 %v2746
    %v8680 = vunpack.c.h.b16 %v2746
    %v8681 = vunpack.c.l.b16 %v2747
    %v8682 = vunpack.c.h.b16 %v2747
    %v8683 = vunpack.c.l.b16 %v2748
    %v8684 = vunpack.c.h.b16 %v2748
    %v8685 = vunpack.c.l.b16 %v2749
    %v8686 = vunpack.c.h.b16 %v2749
    %v8687 = vunpack.c.l.b16 %v2750
    %v8688 = vunpack.c.h.b16 %v2750
    %v8689 = vunpack.c.l.b16 %v2751
    %v8690 = vunpack.c.h.b16 %v2751
    %v8691 = vunpack.c.l.b16 %v2752
    %v8692 = vunpack.c.h.b16 %v2752
    %v8693 = vunpack.c.l.b16 %v2753
    %v8694 = vunpack.c.h.b16 %v2753
    %v8695 = vunpack.c.l.b16 %v2754
    %v8696 = vunpack.c.h.b16 %v2754
    %v8697 = vunpack.c.l.b16 %v2755
    %v8698 = vunpack.c.h.b16 %v2755
    %v8699 = vunpack.c.l.b16 %v2756
    %v8700 = vunpack.c.h.b16 %v2756
    %v8701 = vunpack.c.l.b16 %v2757
    %v8702 = vunpack.c.h.b16 %v2757
    %v8703 = vunpack.c.l.b16 %v2758
    %v8704 = vunpack.c.h.b16 %v2758
    %v8705 = vunpack.c.l.b16 %v2759
    %v8706 = vunpack.c.h.b16 %v2759
    %v8707 = vunpack.c.l.b16 %v2760
    %v8708 = vunpack.c.h.b16 %v2760
    %v8709 = vunpack.c.l.b16 %v2761
    %v8710 = vunpack.c.h.b16 %v2761
    %v8711 = vunpack.c.l.b16 %v2762
    %v8712 = vunpack.c.h.b16 %v2762
    %v8713 = vunpack.c.l.b16 %v2763
    %v8714 = vunpack.c.h.b16 %v2763
    %v8715 = vunpack.c.l.b16 %v2764
    %v8716 = vunpack.c.h.b16 %v2764
    %v8717 = vunpack.c.l.b16 %v2765
    %v8718 = vunpack.c.h.b16 %v2765
    %v8719 = vunpack.c.l.b16 %v2766
    %v8720 = vunpack.c.h.b16 %v2766
    %v8721 = vunpack.c.l.b16 %v2767
    %v8722 = vunpack.c.h.b16 %v2767
    %v8723 = vunpack.c.l.b16 %v2768
    %v8724 = vunpack.c.h.b16 %v2768
    %v8725 = vunpack.c.l.b16 %v2769
    %v8726 = vunpack.c.h.b16 %v2769
    %v8727 = vunpack.c.l.b16 %v2770
    %v8728 = vunpack.c.h.b16 %v2770
    %v8729 = vunpack.c.l.b16 %v2771
    %v8730 = vunpack.c.h.b16 %v2771
    %v8731 = vunpack.c.l.b16 %v2772
    %v8732 = vunpack.c.h.b16 %v2772
    %v8733 = vunpack.c.l.b16 %v2773
    %v8734 = vunpack.c.h.b16 %v2773
    %v8735 = vunpack.c.l.b16 %v2774
    %v8736 = vunpack.c.h.b16 %v2774
    %v8737 = vunpack.c.l.b16 %v2775
    %v8738 = vunpack.c.h.b16 %v2775
    %v8739 = vunpack.c.l.b16 %v2776
    %v8740 = vunpack.c.h.b16 %v2776
    %v8741 = vunpack.c.l.b16 %v2777
    %v8742 = vunpack.c.h.b16 %v2777
    %v8743 = vunpack.c.l.b16 %v2778
    %v8744 = vunpack.c.h.b16 %v2778
    %v8745 = vunpack.c.l.b16 %v2779
    %v8746 = vunpack.c.h.b16 %v2779
    %v8747 = vunpack.c.l.b16 %v2780
    %v8748 = vunpack.c.h.b16 %v2780
    %v8749 = vunpack.c.l.b16 %v2781
    %v8750 = vunpack.c.h.b16 %v2781
    %v8751 = vunpack.c.l.b16 %v2782
    %v8752 = vunpack.c.h.b16 %v2782
    %v8753 = vunpack.c.l.b16 %v2783
    %v8754 = vunpack.c.h.b16 %v2783
    %v8755 = vunpack.c.l.b16 %v2784
    %v8756 = vunpack.c.h.b16 %v2784
    %v8757 = vunpack.c.l.b16 %v2785
    %v8758 = vunpack.c.h.b16 %v2785
    %v8759 = vunpack.c.l.b16 %v2786
    %v8760 = vunpack.c.h.b16 %v2786
    %v8761 = vunpack.c.l.b16 %v2787
    %v8762 = vunpack.c.h.b16 %v2787
    %v8763 = vunpack.c.l.b16 %v2788
    %v8764 = vunpack.c.h.b16 %v2788
    %v8765 = vunpack.c.l.b16 %v2789
    %v8766 = vunpack.c.h.b16 %v2789
    %v8767 = vunpack.c.l.b16 %v2790
    %v8768 = vunpack.c.h.b16 %v2790
    %v8769 = vunpack.c.l.b16 %v2791
    %v8770 = vunpack.c.h.b16 %v2791
    %v8771 = vunpack.c.l.b16 %v2792
    %v8772 = vunpack.c.h.b16 %v2792
    %v8773 = vunpack.c.l.b16 %v2793
    %v8774 = vunpack.c.h.b16 %v2793
    %v8775 = vunpack.c.l.b16 %v2794
    %v8776 = vunpack.c.h.b16 %v2794
    %v8777 = vunpack.c.l.b16 %v2795
    %v8778 = vunpack.c.h.b16 %v2795
    %v8779 = vunpack.c.l.b16 %v2796
    %v8780 = vunpack.c.h.b16 %v2796
    %v8781 = vunpack.c.l.b16 %v2797
    %v8782 = vunpack.c.h.b16 %v2797
    %v8783 = vunpack.c.l.b16 %v2798
    %v8784 = vunpack.c.h.b16 %v2798
    %v8785 = vunpack.c.l.b16 %v2799
    %v8786 = vunpack.c.h.b16 %v2799
    %v8787 = vunpack.c.l.b16 %v2800
    %v8788 = vunpack.c.h.b16 %v2800
    %v8789 = vunpack.c.l.b16 %v2801
    %v8790 = vunpack.c.h.b16 %v2801
    %v8791 = vunpack.c.l.b16 %v2802
    %v8792 = vunpack.c.h.b16 %v2802
    %v8793 = vunpack.c.l.b16 %v2803
    %v8794 = vunpack.c.h.b16 %v2803
    %v8795 = vunpack.c.l.b16 %v2804
    %v8796 = vunpack.c.h.b16 %v2804
    %v8797 = vunpack.c.l.b16 %v2805
    %v8798 = vunpack.c.h.b16 %v2805
    %v8799 = vunpack.c.l.b16 %v2806
    %v8800 = vunpack.c.h.b16 %v2806
    %v8801 = vunpack.c.l.b16 %v2807
    %v8802 = vunpack.c.h.b16 %v2807
    %v8803 = vunpack.c.l.b16 %v2808
    %v8804 = vunpack.c.h.b16 %v2808
    %v8805 = vunpack.c.l.b16 %v2809
    %v8806 = vunpack.c.h.b16 %v2809
    %v8807 = vunpack.c.l.b16 %v2810
    %v8808 = vunpack.c.h.b16 %v2810
    %v8809 = vunpack.c.l.b16 %v2811
    %v8810 = vunpack.c.h.b16 %v2811
    %v8811 = vunpack.c.l.b16 %v2812
    %v8812 = vunpack.c.h.b16 %v2812
    %v8813 = vunpack.c.l.b16 %v2813
    %v8814 = vunpack.c.h.b16 %v2813
    %v8815 = vunpack.c.l.b16 %v2814
    %v8816 = vunpack.c.h.b16 %v2814
    %v8817 = vunpack.c.l.b16 %v2815
    %v8818 = vunpack.c.h.b16 %v2815
    %v8819 = vunpack.c.l.b16 %v2816
    %v8820 = vunpack.c.h.b16 %v2816
    %v8821 = vunpack.c.l.b16 %v2817
    %v8822 = vunpack.c.h.b16 %v2817
    %v8823 = vunpack.c.l.b16 %v2818
    %v8824 = vunpack.c.h.b16 %v2818
    %v8825 = vunpack.c.l.b16 %v2819
    %v8826 = vunpack.c.h.b16 %v2819
    %v8827 = vunpack.c.l.b16 %v2820
    %v8828 = vunpack.c.h.b16 %v2820
    %v8829 = vunpack.c.l.b16 %v2821
    %v8830 = vunpack.c.h.b16 %v2821
    %v8831 = vunpack.c.l.b16 %v2822
    %v8832 = vunpack.c.h.b16 %v2822
    %v8833 = vunpack.c.l.b16 %v2823
    %v8834 = vunpack.c.h.b16 %v2823
    %v8835 = vunpack.c.l.b16 %v2824
    %v8836 = vunpack.c.h.b16 %v2824
    %v8837 = vunpack.c.l.b16 %v2825
    %v8838 = vunpack.c.h.b16 %v2825
    %v8839 = vunpack.c.l.b16 %v2826
    %v8840 = vunpack.c.h.b16 %v2826
    %v8841 = vunpack.c.l.b16 %v2827
    %v8842 = vunpack.c.h.b16 %v2827
    %v8843 = vunpack.c.l.b16 %v2828
    %v8844 = vunpack.c.h.b16 %v2828
    %v8845 = vunpack.c.l.b16 %v2829
    %v8846 = vunpack.c.h.b16 %v2829
    %v8847 = vunpack.c.l.b16 %v2830
    %v8848 = vunpack.c.h.b16 %v2830
    %v8849 = vunpack.c.l.b16 %v2831
    %v8850 = vunpack.c.h.b16 %v2831
    %v8851 = vunpack.c.l.b16 %v2832
    %v8852 = vunpack.c.h.b16 %v2832
    %v8853 = vunpack.c.l.b16 %v2833
    %v8854 = vunpack.c.h.b16 %v2833
    %v8855 = vunpack.c.l.b16 %v2834
    %v8856 = vunpack.c.h.b16 %v2834
    %v8857 = vunpack.c.l.b16 %v2835
    %v8858 = vunpack.c.h.b16 %v2835
    %v8859 = vunpack.c.l.b16 %v2836
    %v8860 = vunpack.c.h.b16 %v2836
    %v8861 = vunpack.c.l.b16 %v2837
    %v8862 = vunpack.c.h.b16 %v2837
    %v8863 = vunpack.c.l.b16 %v2838
    %v8864 = vunpack.c.h.b16 %v2838
    %v8865 = vunpack.c.l.b16 %v2839
    %v8866 = vunpack.c.h.b16 %v2839
    %v8867 = vunpack.c.l.b16 %v2840
    %v8868 = vunpack.c.h.b16 %v2840
    %v8869 = vunpack.c.l.b16 %v2841
    %v8870 = vunpack.c.h.b16 %v2841
    %v8871 = vunpack.c.l.b16 %v2842
    %v8872 = vunpack.c.h.b16 %v2842
    %v8873 = vunpack.c.l.b16 %v2843
    %v8874 = vunpack.c.h.b16 %v2843
    %v8875 = vunpack.c.l.b16 %v2844
    %v8876 = vunpack.c.h.b16 %v2844
    %v8877 = vunpack.c.l.b16 %v2845
    %v8878 = vunpack.c.h.b16 %v2845
    %v8879 = vunpack.c.l.b16 %v2846
    %v8880 = vunpack.c.h.b16 %v2846
    %v8881 = vunpack.c.l.b16 %v2847
    %v8882 = vunpack.c.h.b16 %v2847
    %v8883 = vunpack.c.l.b16 %v2848
    %v8884 = vunpack.c.h.b16 %v2848
    %v8885 = vunpack.c.l.b16 %v2849
    %v8886 = vunpack.c.h.b16 %v2849
    %v8887 = vunpack.c.l.b16 %v2850
    %v8888 = vunpack.c.h.b16 %v2850
    %v8889 = vunpack.c.l.b16 %v2851
    %v8890 = vunpack.c.h.b16 %v2851
    %v8891 = vunpack.c.l.b16 %v2852
    %v8892 = vunpack.c.h.b16 %v2852
    %v8893 = vunpack.c.l.b16 %v2853
    %v8894 = vunpack.c.h.b16 %v2853
    %v8895 = vunpack.c.l.b16 %v2854
    %v8896 = vunpack.c.h.b16 %v2854
    %v8897 = vunpack.c.l.b16 %v2855
    %v8898 = vunpack.c.h.b16 %v2855
    %v8899 = vunpack.c.l.b16 %v2856
    %v8900 = vunpack.c.h.b16 %v2856
    %v8901 = vunpack.c.l.b16 %v2857
    %v8902 = vunpack.c.h.b16 %v2857
    %v8903 = vunpack.c.l.b16 %v2858
    %v8904 = vunpack.c.h.b16 %v2858
    %v8905 = vunpack.c.l.b16 %v2859
    %v8906 = vunpack.c.h.b16 %v2859
    %v8907 = vunpack.c.l.b16 %v2860
    %v8908 = vunpack.c.h.b16 %v2860
    %v8909 = vunpack.c.l.b16 %v2861
    %v8910 = vunpack.c.h.b16 %v2861
    %v8911 = vunpack.c.l.b16 %v2862
    %v8912 = vunpack.c.h.b16 %v2862
    %v8913 = vunpack.c.l.b16 %v2863
    %v8914 = vunpack.c.h.b16 %v2863
    %v8915 = vunpack.c.l.b16 %v2864
    %v8916 = vunpack.c.h.b16 %v2864
    %v8917 = vunpack.c.l.b16 %v2865
    %v8918 = vunpack.c.h.b16 %v2865
    %v8919 = vunpack.c.l.b16 %v2866
    %v8920 = vunpack.c.h.b16 %v2866
    %v8921 = vunpack.c.l.b16 %v2867
    %v8922 = vunpack.c.h.b16 %v2867
    %v8923 = vunpack.c.l.b16 %v2868
    %v8924 = vunpack.c.h.b16 %v2868
    %v8925 = vunpack.c.l.b16 %v2869
    %v8926 = vunpack.c.h.b16 %v2869
    %v8927 = vunpack.c.l.b16 %v2870
    %v8928 = vunpack.c.h.b16 %v2870
    %v8929 = vunpack.c.l.b16 %v2871
    %v8930 = vunpack.c.h.b16 %v2871
    %v8931 = vunpack.c.l.b16 %v2872
    %v8932 = vunpack.c.h.b16 %v2872
    %v8933 = vunpack.c.l.b16 %v2873
    %v8934 = vunpack.c.h.b16 %v2873
    %v8935 = vunpack.c.l.b16 %v2874
    %v8936 = vunpack.c.h.b16 %v2874
    %v8937 = vunpack.c.l.b16 %v2875
    %v8938 = vunpack.c.h.b16 %v2875
    %v8939 = vunpack.c.l.b16 %v2876
    %v8940 = vunpack.c.h.b16 %v2876
    %v8941 = vunpack.c.l.b16 %v2877
    %v8942 = vunpack.c.h.b16 %v2877
    %v8943 = vunpack.c.l.b16 %v2878
    %v8944 = vunpack.c.h.b16 %v2878
    %v8945 = vunpack.c.l.b16 %v2879
    %v8946 = vunpack.c.h.b16 %v2879
    %v8947 = vunpack.c.l.b16 %v2880
    %v8948 = vunpack.c.h.b16 %v2880
    %v8949 = vunpack.c.l.b16 %v2881
    %v8950 = vunpack.c.h.b16 %v2881
    %v8951 = vunpack.c.l.b16 %v2882
    %v8952 = vunpack.c.h.b16 %v2882
    %v8953 = vunpack.c.l.b16 %v2883
    %v8954 = vunpack.c.h.b16 %v2883
    %v8955 = vunpack.c.l.b16 %v2884
    %v8956 = vunpack.c.h.b16 %v2884
    %v8957 = vunpack.c.l.b16 %v2885
    %v8958 = vunpack.c.h.b16 %v2885
    %v8959 = vunpack.c.l.b16 %v2886
    %v8960 = vunpack.c.h.b16 %v2886
    %v8961 = vunpack.c.l.b16 %v2887
    %v8962 = vunpack.c.h.b16 %v2887
    %v8963 = vunpack.c.l.b16 %v2888
    %v8964 = vunpack.c.h.b16 %v2888
    %v8965 = vunpack.c.l.b16 %v2889
    %v8966 = vunpack.c.h.b16 %v2889
    %v8967 = vunpack.c.l.b16 %v2890
    %v8968 = vunpack.c.h.b16 %v2890
    %v8969 = vunpack.c.l.b16 %v2891
    %v8970 = vunpack.c.h.b16 %v2891
    %v8971 = vunpack.c.l.b16 %v2892
    %v8972 = vunpack.c.h.b16 %v2892
    %v8973 = vunpack.c.l.b16 %v2893
    %v8974 = vunpack.c.h.b16 %v2893
    %v8975 = vunpack.c.l.b16 %v2894
    %v8976 = vunpack.c.h.b16 %v2894
    %v8977 = vunpack.c.l.b16 %v2895
    %v8978 = vunpack.c.h.b16 %v2895
    %v8979 = vunpack.c.l.b16 %v2896
    %v8980 = vunpack.c.h.b16 %v2896
    %v8981 = vunpack.c.l.b16 %v2897
    %v8982 = vunpack.c.h.b16 %v2897
    %v8983 = vunpack.c.l.b16 %v2898
    %v8984 = vunpack.c.h.b16 %v2898
    %v8985 = vunpack.c.l.b16 %v2899
    %v8986 = vunpack.c.h.b16 %v2899
    %v8987 = vunpack.c.l.b16 %v2900
    %v8988 = vunpack.c.h.b16 %v2900
    %v8989 = vunpack.c.l.b16 %v2901
    %v8990 = vunpack.c.h.b16 %v2901
    %v8991 = vunpack.c.l.b16 %v2902
    %v8992 = vunpack.c.h.b16 %v2902
    %v8993 = vunpack.c.l.b16 %v2903
    %v8994 = vunpack.c.h.b16 %v2903
    %v8995 = vunpack.c.l.b16 %v2904
    %v8996 = vunpack.c.h.b16 %v2904
    %v8997 = vunpack.c.l.b16 %v2905
    %v8998 = vunpack.c.h.b16 %v2905
    %v8999 = vunpack.c.l.b16 %v2906
    %v9000 = vunpack.c.h.b16 %v2906
    %v9001 = vunpack.c.l.b16 %v2907
    %v9002 = vunpack.c.h.b16 %v2907
    %v9003 = vunpack.c.l.b16 %v2908
    %v9004 = vunpack.c.h.b16 %v2908
    %v9005 = vunpack.c.l.b16 %v2909
    %v9006 = vunpack.c.h.b16 %v2909
    %v9007 = vunpack.c.l.b16 %v2910
    %v9008 = vunpack.c.h.b16 %v2910
    %v9009 = vunpack.c.l.b16 %v2911
    %v9010 = vunpack.c.h.b16 %v2911
    %v9011 = vunpack.c.l.b16 %v2912
    %v9012 = vunpack.c.h.b16 %v2912
    %v9013 = vunpack.c.l.b16 %v2913
    %v9014 = vunpack.c.h.b16 %v2913
    %v9015 = vunpack.c.l.b16 %v2914
    %v9016 = vunpack.c.h.b16 %v2914
    %v9017 = vunpack.c.l.b16 %v2915
    %v9018 = vunpack.c.h.b16 %v2915
    %v9019 = vunpack.c.l.b16 %v2916
    %v9020 = vunpack.c.h.b16 %v2916
    %v9021 = vunpack.c.l.b16 %v2917
    %v9022 = vunpack.c.h.b16 %v2917
    %v9023 = vunpack.c.l.b16 %v2918
    %v9024 = vunpack.c.h.b16 %v2918
    %v9025 = vunpack.c.l.b16 %v2919
    %v9026 = vunpack.c.h.b16 %v2919
    %v9027 = vunpack.c.l.b16 %v2920
    %v9028 = vunpack.c.h.b16 %v2920
    %v9029 = vunpack.c.l.b16 %v2921
    %v9030 = vunpack.c.h.b16 %v2921
    %v9031 = vunpack.c.l.b16 %v2922
    %v9032 = vunpack.c.h.b16 %v2922
    %v9033 = vunpack.c.l.b16 %v2923
    %v9034 = vunpack.c.h.b16 %v2923
    %v9035 = vunpack.c.l.b16 %v2924
    %v9036 = vunpack.c.h.b16 %v2924
    %v9037 = vunpack.c.l.b16 %v2925
    %v9038 = vunpack.c.h.b16 %v2925
    %v9039 = vunpack.c.l.b16 %v2926
    %v9040 = vunpack.c.h.b16 %v2926
    %v9041 = vunpack.c.l.b16 %v2927
    %v9042 = vunpack.c.h.b16 %v2927
    %v9043 = vunpack.c.l.b16 %v2928
    %v9044 = vunpack.c.h.b16 %v2928
    %v9045 = vunpack.c.l.b16 %v2929
    %v9046 = vunpack.c.h.b16 %v2929
    %v9047 = vunpack.c.l.b16 %v2930
    %v9048 = vunpack.c.h.b16 %v2930
    %v9049 = vunpack.c.l.b16 %v2931
    %v9050 = vunpack.c.h.b16 %v2931
    %v9051 = vunpack.c.l.b16 %v2932
    %v9052 = vunpack.c.h.b16 %v2932
    %v9053 = vunpack.c.l.b16 %v2933
    %v9054 = vunpack.c.h.b16 %v2933
    %v9055 = vunpack.c.l.b16 %v2934
    %v9056 = vunpack.c.h.b16 %v2934
    %v9057 = vunpack.c.l.b16 %v2935
    %v9058 = vunpack.c.h.b16 %v2935
    %v9059 = vunpack.c.l.b16 %v2936
    %v9060 = vunpack.c.h.b16 %v2936
    %v9061 = vunpack.c.l.b16 %v2937
    %v9062 = vunpack.c.h.b16 %v2937
    %v9063 = vunpack.c.l.b16 %v2938
    %v9064 = vunpack.c.h.b16 %v2938
    %v9065 = vpack.c.b16 %v7925, %v7913
    %v9066 = vpack.c.b16 %v7926, %v7914
    %v9067 = vpack.c.b16 %v7927, %v7915
    %v9068 = vpack.c.b16 %v7928, %v7916
    %v9069 = vpack.c.b16 %v7929, %v7917
    %v9070 = vpack.c.b16 %v7930, %v7918
    %v9071 = vpack.c.b16 %v7931, %v7919
    %v9072 = vpack.c.b16 %v7932, %v7920
    %v9073 = vpack.c.b16 %v7933, %v7921
    %v9074 = vpack.c.b16 %v7934, %v7922
    %v9075 = vpack.c.b16 %v7935, %v7923
    %v9076 = vpack.c.b16 %v7936, %v7924
    %v9077 = vpack.c.b16 %v7949, %v7937
    %v9078 = vpack.c.b16 %v7950, %v7938
    %v9079 = vpack.c.b16 %v7951, %v7939
    %v9080 = vpack.c.b16 %v7952, %v7940
    %v9081 = vpack.c.b16 %v7953, %v7941
    %v9082 = vpack.c.b16 %v7954, %v7942
    %v9083 = vpack.c.b16 %v7955, %v7943
    %v9084 = vpack.c.b16 %v7956, %v7944
    %v9085 = vpack.c.b16 %v7957, %v7945
    %v9086 = vpack.c.b16 %v7958, %v7946
    %v9087 = vpack.c.b16 %v7959, %v7947
    %v9088 = vpack.c.b16 %v7960, %v7948
    %v9089 = vpack.c.b16 %v7973, %v7961
    %v9090 = vpack.c.b16 %v7974, %v7962
    %v9091 = vpack.c.b16 %v7975, %v7963
    %v9092 = vpack.c.b16 %v7976, %v7964
    %v9093 = vpack.c.b16 %v7977, %v7965
    %v9094 = vpack.c.b16 %v7978, %v7966
    %v9095 = vpack.c.b16 %v7979, %v7967
    %v9096 = vpack.c.b16 %v7980, %v7968
    %v9097 = vpack.c.b16 %v7981, %v7969
    %v9098 = vpack.c.b16 %v7982, %v7970
    %v9099 = vpack.c.b16 %v7983, %v7971
    %v9100 = vpack.c.b16 %v7984, %v7972
    %v9101 = vpack.c.b16 %v7997, %v7985
    %v9102 = vpack.c.b16 %v7998, %v7986
    %v9103 = vpack.c.b16 %v7999, %v7987
    %v9104 = vpack.c.b16 %v8000, %v7988
    %v9105 = vpack.c.b16 %v8001, %v7989
    %v9106 = vpack.c.b16 %v8002, %v7990
    %v9107 = vpack.c.b16 %v8003, %v7991
    %v9108 = vpack.c.b16 %v8004, %v7992
    %v9109 = vpack.c.b16 %v8005, %v7993
    %v9110 = vpack.c.b16 %v8006, %v7994
    %v9111 = vpack.c.b16 %v8007, %v7995
    %v9112 = vpack.c.b16 %v8008, %v7996
    %v9113 = vpack.c.b16 %v8021, %v8009
    %v9114 = vpack.c.b16 %v8022, %v8010
    %v9115 = vpack.c.b16 %v8023, %v8011
    %v9116 = vpack.c.b16 %v8024, %v8012
    %v9117 = vpack.c.b16 %v8025, %v8013
    %v9118 = vpack.c.b16 %v8026, %v8014
    %v9119 = vpack.c.b16 %v8027, %v8015
    %v9120 = vpack.c.b16 %v8028, %v8016
    %v9121 = vpack.c.b16 %v8029, %v8017
    %v9122 = vpack.c.b16 %v8030, %v8018
    %v9123 = vpack.c.b16 %v8031, %v8019
    %v9124 = vpack.c.b16 %v8032, %v8020
    %v9125 = vpack.c.b16 %v8045, %v8033
    %v9126 = vpack.c.b16 %v8046, %v8034
    %v9127 = vpack.c.b16 %v8047, %v8035
    %v9128 = vpack.c.b16 %v8048, %v8036
    %v9129 = vpack.c.b16 %v8049, %v8037
    %v9130 = vpack.c.b16 %v8050, %v8038
    %v9131 = vpack.c.b16 %v8051, %v8039
    %v9132 = vpack.c.b16 %v8052, %v8040
    %v9133 = vpack.c.b16 %v8053, %v8041
    %v9134 = vpack.c.b16 %v8054, %v8042
    %v9135 = vpack.c.b16 %v8055, %v8043
    %v9136 = vpack.c.b16 %v8056, %v8044
    %v9137 = vpack.c.b16 %v8069, %v8057
    %v9138 = vpack.c.b16 %v8070, %v8058
    %v9139 = vpack.c.b16 %v8071, %v8059
    %v9140 = vpack.c.b16 %v8072, %v8060
    %v9141 = vpack.c.b16 %v8073, %v8061
    %v9142 = vpack.c.b16 %v8074, %v8062
    %v9143 = vpack.c.b16 %v8075, %v8063
    %v9144 = vpack.c.b16 %v8076, %v8064
    %v9145 = vpack.c.b16 %v8077, %v8065
    %v9146 = vpack.c.b16 %v8078, %v8066
    %v9147 = vpack.c.b16 %v8079, %v8067
    %v9148 = vpack.c.b16 %v8080, %v8068
    %v9149 = vpack.c.b16 %v8093, %v8081
    %v9150 = vpack.c.b16 %v8094, %v8082
    %v9151 = vpack.c.b16 %v8095, %v8083
    %v9152 = vpack.c.b16 %v8096, %v8084
    %v9153 = vpack.c.b16 %v8097, %v8085
    %v9154 = vpack.c.b16 %v8098, %v8086
    %v9155 = vpack.c.b16 %v8099, %v8087
    %v9156 = vpack.c.b16 %v8100, %v8088
    %v9157 = vpack.c.b16 %v8101, %v8089
    %v9158 = vpack.c.b16 %v8102, %v8090
    %v9159 = vpack.c.b16 %v8103, %v8091
    %v9160 = vpack.c.b16 %v8104, %v8092
    %v9161 = vpack.c.b16 %v8117, %v8105
    %v9162 = vpack.c.b16 %v8118, %v8106
    %v9163 = vpack.c.b16 %v8119, %v8107
    %v9164 = vpack.c.b16 %v8120, %v8108
    %v9165 = vpack.c.b16 %v8121, %v8109
    %v9166 = vpack.c.b16 %v8122, %v8110
    %v9167 = vpack.c.b16 %v8123, %v8111
    %v9168 = vpack.c.b16 %v8124, %v8112
    %v9169 = vpack.c.b16 %v8125, %v8113
    %v9170 = vpack.c.b16 %v8126, %v8114
    %v9171 = vpack.c.b16 %v8127, %v8115
    %v9172 = vpack.c.b16 %v8128, %v8116
    %v9173 = vpack.c.b16 %v8141, %v8129
    %v9174 = vpack.c.b16 %v8142, %v8130
    %v9175 = vpack.c.b16 %v8143, %v8131
    %v9176 = vpack.c.b16 %v8144, %v8132
    %v9177 = vpack.c.b16 %v8145, %v8133
    %v9178 = vpack.c.b16 %v8146, %v8134
    %v9179 = vpack.c.b16 %v8147, %v8135
    %v9180 = vpack.c.b16 %v8148, %v8136
    %v9181 = vpack.c.b16 %v8149, %v8137
    %v9182 = vpack.c.b16 %v8150, %v8138
    %v9183 = vpack.c.b16 %v8151, %v8139
    %v9184 = vpack.c.b16 %v8152, %v8140
    %v9185 = vpack.c.b16 %v8165, %v8153
    %v9186 = vpack.c.b16 %v8166, %v8154
    %v9187 = vpack.c.b16 %v8167, %v8155
    %v9188 = vpack.c.b16 %v8168, %v8156
    %v9189 = vpack.c.b16 %v8169, %v8157
    %v9190 = vpack.c.b16 %v8170, %v8158
    %v9191 = vpack.c.b16 %v8171, %v8159
    %v9192 = vpack.c.b16 %v8172, %v8160
    %v9193 = vpack.c.b16 %v8173, %v8161
    %v9194 = vpack.c.b16 %v8174, %v8162
    %v9195 = vpack.c.b16 %v8175, %v8163
    %v9196 = vpack.c.b16 %v8176, %v8164
    %v9197 = vpack.c.b16 %v8189, %v8177
    %v9198 = vpack.c.b16 %v8190, %v8178
    %v9199 = vpack.c.b16 %v8191, %v8179
    %v9200 = vpack.c.b16 %v8192, %v8180
    %v9201 = vpack.c.b16 %v8193, %v8181
    %v9202 = vpack.c.b16 %v8194, %v8182
    %v9203 = vpack.c.b16 %v8195, %v8183
    %v9204 = vpack.c.b16 %v8196, %v8184
    %v9205 = vpack.c.b16 %v8197, %v8185
    %v9206 = vpack.c.b16 %v8198, %v8186
    %v9207 = vpack.c.b16 %v8199, %v8187
    %v9208 = vpack.c.b16 %v8200, %v8188
    %v9209 = vpack.c.b16 %v8213, %v8201
    %v9210 = vpack.c.b16 %v8214, %v8202
    %v9211 = vpack.c.b16 %v8215, %v8203
    %v9212 = vpack.c.b16 %v8216, %v8204
    %v9213 = vpack.c.b16 %v8217, %v8205
    %v9214 = vpack.c.b16 %v8218, %v8206
    %v9215 = vpack.c.b16 %v8219, %v8207
    %v9216 = vpack.c.b16 %v8220, %v8208
    %v9217 = vpack.c.b16 %v8221, %v8209
    %v9218 = vpack.c.b16 %v8222, %v8210
    %v9219 = vpack.c.b16 %v8223, %v8211
    %v9220 = vpack.c.b16 %v8224, %v8212
    %v9221 = vpack.c.b16 %v8237, %v8225
    %v9222 = vpack.c.b16 %v8238, %v8226
    %v9223 = vpack.c.b16 %v8239, %v8227
    %v9224 = vpack.c.b16 %v8240, %v8228
    %v9225 = vpack.c.b16 %v8241, %v8229
    %v9226 = vpack.c.b16 %v8242, %v8230
    %v9227 = vpack.c.b16 %v8243, %v8231
    %v9228 = vpack.c.b16 %v8244, %v8232
    %v9229 = vpack.c.b16 %v8245, %v8233
    %v9230 = vpack.c.b16 %v8246, %v8234
    %v9231 = vpack.c.b16 %v8247, %v8235
    %v9232 = vpack.c.b16 %v8248, %v8236
    %v9233 = vpack.c.b16 %v8261, %v8249
    %v9234 = vpack.c.b16 %v8262, %v8250
    %v9235 = vpack.c.b16 %v8263, %v8251
    %v9236 = vpack.c.b16 %v8264, %v8252
    %v9237 = vpack.c.b16 %v8265, %v8253
    %v9238 = vpack.c.b16 %v8266, %v8254
    %v9239 = vpack.c.b16 %v8267, %v8255
    %v9240 = vpack.c.b16 %v8268, %v8256
    %v9241 = vpack.c.b16 %v8269, %v8257
    %v9242 = vpack.c.b16 %v8270, %v8258
    %v9243 = vpack.c.b16 %v8271, %v8259
    %v9244 = vpack.c.b16 %v8272, %v8260
    %v9245 = vpack.c.b16 %v8285, %v8273
    %v9246 = vpack.c.b16 %v8286, %v8274
    %v9247 = vpack.c.b16 %v8287, %v8275
    %v9248 = vpack.c.b16 %v8288, %v8276
    %v9249 = vpack.c.b16 %v8289, %v8277
    %v9250 = vpack.c.b16 %v8290, %v8278
    %v9251 = vpack.c.b16 %v8291, %v8279
    %v9252 = vpack.c.b16 %v8292, %v8280
    %v9253 = vpack.c.b16 %v8293, %v8281
    %v9254 = vpack.c.b16 %v8294, %v8282
    %v9255 = vpack.c.b16 %v8295, %v8283
    %v9256 = vpack.c.b16 %v8296, %v8284
    %v9257 = vpack.c.b16 %v8309, %v8297
    %v9258 = vpack.c.b16 %v8310, %v8298
    %v9259 = vpack.c.b16 %v8311, %v8299
    %v9260 = vpack.c.b16 %v8312, %v8300
    %v9261 = vpack.c.b16 %v8313, %v8301
    %v9262 = vpack.c.b16 %v8314, %v8302
    %v9263 = vpack.c.b16 %v8315, %v8303
    %v9264 = vpack.c.b16 %v8316, %v8304
    %v9265 = vpack.c.b16 %v8317, %v8305
    %v9266 = vpack.c.b16 %v8318, %v8306
    %v9267 = vpack.c.b16 %v8319, %v8307
    %v9268 = vpack.c.b16 %v8320, %v8308
    %v9269 = vpack.c.b16 %v8333, %v8321
    %v9270 = vpack.c.b16 %v8334, %v8322
    %v9271 = vpack.c.b16 %v8335, %v8323
    %v9272 = vpack.c.b16 %v8336, %v8324
    %v9273 = vpack.c.b16 %v8337, %v8325
    %v9274 = vpack.c.b16 %v8338, %v8326
    %v9275 = vpack.c.b16 %v8339, %v8327
    %v9276 = vpack.c.b16 %v8340, %v8328
    %v9277 = vpack.c.b16 %v8341, %v8329
    %v9278 = vpack.c.b16 %v8342, %v8330
    %v9279 = vpack.c.b16 %v8343, %v8331
    %v9280 = vpack.c.b16 %v8344, %v8332
    %v9281 = vpack.c.b16 %v8357, %v8345
    %v9282 = vpack.c.b16 %v8358, %v8346
    %v9283 = vpack.c.b16 %v8359, %v8347
    %v9284 = vpack.c.b16 %v8360, %v8348
    %v9285 = vpack.c.b16 %v8361, %v8349
    %v9286 = vpack.c.b16 %v8362, %v8350
    %v9287 = vpack.c.b16 %v8363, %v8351
    %v9288 = vpack.c.b16 %v8364, %v8352
    %v9289 = vpack.c.b16 %v8365, %v8353
    %v9290 = vpack.c.b16 %v8366, %v8354
    %v9291 = vpack.c.b16 %v8367, %v8355
    %v9292 = vpack.c.b16 %v8368, %v8356
    %v9293 = vpack.c.b16 %v8381, %v8369
    %v9294 = vpack.c.b16 %v8382, %v8370
    %v9295 = vpack.c.b16 %v8383, %v8371
    %v9296 = vpack.c.b16 %v8384, %v8372
    %v9297 = vpack.c.b16 %v8385, %v8373
    %v9298 = vpack.c.b16 %v8386, %v8374
    %v9299 = vpack.c.b16 %v8387, %v8375
    %v9300 = vpack.c.b16 %v8388, %v8376
    %v9301 = vpack.c.b16 %v8389, %v8377
    %v9302 = vpack.c.b16 %v8390, %v8378
    %v9303 = vpack.c.b16 %v8391, %v8379
    %v9304 = vpack.c.b16 %v8392, %v8380
    %v9305 = vpack.c.b16 %v8405, %v8393
    %v9306 = vpack.c.b16 %v8406, %v8394
    %v9307 = vpack.c.b16 %v8407, %v8395
    %v9308 = vpack.c.b16 %v8408, %v8396
    %v9309 = vpack.c.b16 %v8409, %v8397
    %v9310 = vpack.c.b16 %v8410, %v8398
    %v9311 = vpack.c.b16 %v8411, %v8399
    %v9312 = vpack.c.b16 %v8412, %v8400
    %v9313 = vpack.c.b16 %v8413, %v8401
    %v9314 = vpack.c.b16 %v8414, %v8402
    %v9315 = vpack.c.b16 %v8415, %v8403
    %v9316 = vpack.c.b16 %v8416, %v8404
    %v9317 = vpack.c.b16 %v8429, %v8417
    %v9318 = vpack.c.b16 %v8430, %v8418
    %v9319 = vpack.c.b16 %v8431, %v8419
    %v9320 = vpack.c.b16 %v8432, %v8420
    %v9321 = vpack.c.b16 %v8433, %v8421
    %v9322 = vpack.c.b16 %v8434, %v8422
    %v9323 = vpack.c.b16 %v8435, %v8423
    %v9324 = vpack.c.b16 %v8436, %v8424
    %v9325 = vpack.c.b16 %v8437, %v8425
    %v9326 = vpack.c.b16 %v8438, %v8426
    %v9327 = vpack.c.b16 %v8439, %v8427
    %v9328 = vpack.c.b16 %v8440, %v8428
    %v9329 = vpack.c.b16 %v8453, %v8441
    %v9330 = vpack.c.b16 %v8454, %v8442
    %v9331 = vpack.c.b16 %v8455, %v8443
    %v9332 = vpack.c.b16 %v8456, %v8444
    %v9333 = vpack.c.b16 %v8457, %v8445
    %v9334 = vpack.c.b16 %v8458, %v8446
    %v9335 = vpack.c.b16 %v8459, %v8447
    %v9336 = vpack.c.b16 %v8460, %v8448
    %v9337 = vpack.c.b16 %v8461, %v8449
    %v9338 = vpack.c.b16 %v8462, %v8450
    %v9339 = vpack.c.b16 %v8463, %v8451
    %v9340 = vpack.c.b16 %v8464, %v8452
    %v9341 = vpack.c.b16 %v8477, %v8465
    %v9342 = vpack.c.b16 %v8478, %v8466
    %v9343 = vpack.c.b16 %v8479, %v8467
    %v9344 = vpack.c.b16 %v8480, %v8468
    %v9345 = vpack.c.b16 %v8481, %v8469
    %v9346 = vpack.c.b16 %v8482, %v8470
    %v9347 = vpack.c.b16 %v8483, %v8471
    %v9348 = vpack.c.b16 %v8484, %v8472
    %v9349 = vpack.c.b16 %v8485, %v8473
    %v9350 = vpack.c.b16 %v8486, %v8474
    %v9351 = vpack.c.b16 %v8487, %v8475
    %v9352 = vpack.c.b16 %v8488, %v8476
    %v9353 = vpack.c.b16 %v8501, %v8489
    %v9354 = vpack.c.b16 %v8502, %v8490
    %v9355 = vpack.c.b16 %v8503, %v8491
    %v9356 = vpack.c.b16 %v8504, %v8492
    %v9357 = vpack.c.b16 %v8505, %v8493
    %v9358 = vpack.c.b16 %v8506, %v8494
    %v9359 = vpack.c.b16 %v8507, %v8495
    %v9360 = vpack.c.b16 %v8508, %v8496
    %v9361 = vpack.c.b16 %v8509, %v8497
    %v9362 = vpack.c.b16 %v8510, %v8498
    %v9363 = vpack.c.b16 %v8511, %v8499
    %v9364 = vpack.c.b16 %v8512, %v8500
    %v9365 = vpack.c.b16 %v8525, %v8513
    %v9366 = vpack.c.b16 %v8526, %v8514
    %v9367 = vpack.c.b16 %v8527, %v8515
    %v9368 = vpack.c.b16 %v8528, %v8516
    %v9369 = vpack.c.b16 %v8529, %v8517
    %v9370 = vpack.c.b16 %v8530, %v8518
    %v9371 = vpack.c.b16 %v8531, %v8519
    %v9372 = vpack.c.b16 %v8532, %v8520
    %v9373 = vpack.c.b16 %v8533, %v8521
    %v9374 = vpack.c.b16 %v8534, %v8522
    %v9375 = vpack.c.b16 %v8535, %v8523
    %v9376 = vpack.c.b16 %v8536, %v8524
    %v9377 = vpack.c.b16 %v8549, %v8537
    %v9378 = vpack.c.b16 %v8550, %v8538
    %v9379 = vpack.c.b16 %v8551, %v8539
    %v9380 = vpack.c.b16 %v8552, %v8540
    %v9381 = vpack.c.b16 %v8553, %v8541
    %v9382 = vpack.c.b16 %v8554, %v8542
    %v9383 = vpack.c.b16 %v8555, %v8543
    %v9384 = vpack.c.b16 %v8556, %v8544
    %v9385 = vpack.c.b16 %v8557, %v8545
    %v9386 = vpack.c.b16 %v8558, %v8546
    %v9387 = vpack.c.b16 %v8559, %v8547
    %v9388 = vpack.c.b16 %v8560, %v8548
    %v9389 = vpack.c.b16 %v8573, %v8561
    %v9390 = vpack.c.b16 %v8574, %v8562
    %v9391 = vpack.c.b16 %v8575, %v8563
    %v9392 = vpack.c.b16 %v8576, %v8564
    %v9393 = vpack.c.b16 %v8577, %v8565
    %v9394 = vpack.c.b16 %v8578, %v8566
    %v9395 = vpack.c.b16 %v8579, %v8567
    %v9396 = vpack.c.b16 %v8580, %v8568
    %v9397 = vpack.c.b16 %v8581, %v8569
    %v9398 = vpack.c.b16 %v8582, %v8570
    %v9399 = vpack.c.b16 %v8583, %v8571
    %v9400 = vpack.c.b16 %v8584, %v8572
    %v9401 = vpack.c.b16 %v8597, %v8585
    %v9402 = vpack.c.b16 %v8598, %v8586
    %v9403 = vpack.c.b16 %v8599, %v8587
    %v9404 = vpack.c.b16 %v8600, %v8588
    %v9405 = vpack.c.b16 %v8601, %v8589
    %v9406 = vpack.c.b16 %v8602, %v8590
    %v9407 = vpack.c.b16 %v8603, %v8591
    %v9408 = vpack.c.b16 %v8604, %v8592
    %v9409 = vpack.c.b16 %v8605, %v8593
    %v9410 = vpack.c.b16 %v8606, %v8594
    %v9411 = vpack.c.b16 %v8607, %v8595
    %v9412 = vpack.c.b16 %v8608, %v8596
    %v9413 = vpack.c.b16 %v8621, %v8609
    %v9414 = vpack.c.b16 %v8622, %v8610
    %v9415 = vpack.c.b16 %v8623, %v8611
    %v9416 = vpack.c.b16 %v8624, %v8612
    %v9417 = vpack.c.b16 %v8625, %v8613
    %v9418 = vpack.c.b16 %v8626, %v8614
    %v9419 = vpack.c.b16 %v8627, %v8615
    %v9420 = vpack.c.b16 %v8628, %v8616
    %v9421 = vpack.c.b16 %v8629, %v8617
    %v9422 = vpack.c.b16 %v8630, %v8618
    %v9423 = vpack.c.b16 %v8631, %v8619
    %v9424 = vpack.c.b16 %v8632, %v8620
    %v9425 = vpack.c.b16 %v8645, %v8633
    %v9426 = vpack.c.b16 %v8646, %v8634
    %v9427 = vpack.c.b16 %v8647, %v8635
    %v9428 = vpack.c.b16 %v8648, %v8636
    %v9429 = vpack.c.b16 %v8649, %v8637
    %v9430 = vpack.c.b16 %v8650, %v8638
    %v9431 = vpack.c.b16 %v8651, %v8639
    %v9432 = vpack.c.b16 %v8652, %v8640
    %v9433 = vpack.c.b16 %v8653, %v8641
    %v9434 = vpack.c.b16 %v8654, %v8642
    %v9435 = vpack.c.b16 %v8655, %v8643
    %v9436 = vpack.c.b16 %v8656, %v8644
    %v9437 = vpack.c.b16 %v8669, %v8657
    %v9438 = vpack.c.b16 %v8670, %v8658
    %v9439 = vpack.c.b16 %v8671, %v8659
    %v9440 = vpack.c.b16 %v8672, %v8660
    %v9441 = vpack.c.b16 %v8673, %v8661
    %v9442 = vpack.c.b16 %v8674, %v8662
    %v9443 = vpack.c.b16 %v8675, %v8663
    %v9444 = vpack.c.b16 %v8676, %v8664
    %v9445 = vpack.c.b16 %v8677, %v8665
    %v9446 = vpack.c.b16 %v8678, %v8666
    %v9447 = vpack.c.b16 %v8679, %v8667
    %v9448 = vpack.c.b16 %v8680, %v8668
    %v9449 = vpack.c.b16 %v8693, %v8681
    %v9450 = vpack.c.b16 %v8694, %v8682
    %v9451 = vpack.c.b16 %v8695, %v8683
    %v9452 = vpack.c.b16 %v8696, %v8684
    %v9453 = vpack.c.b16 %v8697, %v8685
    %v9454 = vpack.c.b16 %v8698, %v8686
    %v9455 = vpack.c.b16 %v8699, %v8687
    %v9456 = vpack.c.b16 %v8700, %v8688
    %v9457 = vpack.c.b16 %v8701, %v8689
    %v9458 = vpack.c.b16 %v8702, %v8690
    %v9459 = vpack.c.b16 %v8703, %v8691
    %v9460 = vpack.c.b16 %v8704, %v8692
    %v9461 = vpack.c.b16 %v8717, %v8705
    %v9462 = vpack.c.b16 %v8718, %v8706
    %v9463 = vpack.c.b16 %v8719, %v8707
    %v9464 = vpack.c.b16 %v8720, %v8708
    %v9465 = vpack.c.b16 %v8721, %v8709
    %v9466 = vpack.c.b16 %v8722, %v8710
    %v9467 = vpack.c.b16 %v8723, %v8711
    %v9468 = vpack.c.b16 %v8724, %v8712
    %v9469 = vpack.c.b16 %v8725, %v8713
    %v9470 = vpack.c.b16 %v8726, %v8714
    %v9471 = vpack.c.b16 %v8727, %v8715
    %v9472 = vpack.c.b16 %v8728, %v8716
    %v9473 = vpack.c.b16 %v8741, %v8729
    %v9474 = vpack.c.b16 %v8742, %v8730
    %v9475 = vpack.c.b16 %v8743, %v8731
    %v9476 = vpack.c.b16 %v8744, %v8732
    %v9477 = vpack.c.b16 %v8745, %v8733
    %v9478 = vpack.c.b16 %v8746, %v8734
    %v9479 = vpack.c.b16 %v8747, %v8735
    %v9480 = vpack.c.b16 %v8748, %v8736
    %v9481 = vpack.c.b16 %v8749, %v8737
    %v9482 = vpack.c.b16 %v8750, %v8738
    %v9483 = vpack.c.b16 %v8751, %v8739
    %v9484 = vpack.c.b16 %v8752, %v8740
    %v9485 = vpack.c.b16 %v8765, %v8753
    %v9486 = vpack.c.b16 %v8766, %v8754
    %v9487 = vpack.c.b16 %v8767, %v8755
    %v9488 = vpack.c.b16 %v8768, %v8756
    %v9489 = vpack.c.b16 %v8769, %v8757
    %v9490 = vpack.c.b16 %v8770, %v8758
    %v9491 = vpack.c.b16 %v8771, %v8759
    %v9492 = vpack.c.b16 %v8772, %v8760
    %v9493 = vpack.c.b16 %v8773, %v8761
    %v9494 = vpack.c.b16 %v8774, %v8762
    %v9495 = vpack.c.b16 %v8775, %v8763
    %v9496 = vpack.c.b16 %v8776, %v8764
    %v9497 = vpack.c.b16 %v8789, %v8777
    %v9498 = vpack.c.b16 %v8790, %v8778
    %v9499 = vpack.c.b16 %v8791, %v8779
    %v9500 = vpack.c.b16 %v8792, %v8780
    %v9501 = vpack.c.b16 %v8793, %v8781
    %v9502 = vpack.c.b16 %v8794, %v8782
    %v9503 = vpack.c.b16 %v8795, %v8783
    %v9504 = vpack.c.b16 %v8796, %v8784
    %v9505 = vpack.c.b16 %v8797, %v8785
    %v9506 = vpack.c.b16 %v8798, %v8786
    %v9507 = vpack.c.b16 %v8799, %v8787
    %v9508 = vpack.c.b16 %v8800, %v8788
    %v9509 = vpack.c.b16 %v8813, %v8801
    %v9510 = vpack.c.b16 %v8814, %v8802
    %v9511 = vpack.c.b16 %v8815, %v8803
    %v9512 = vpack.c.b16 %v8816, %v8804
    %v9513 = vpack.c.b16 %v8817, %v8805
    %v9514 = vpack.c.b16 %v8818, %v8806
    %v9515 = vpack.c.b16 %v8819, %v8807
    %v9516 = vpack.c.b16 %v8820, %v8808
    %v9517 = vpack.c.b16 %v8821, %v8809
    %v9518 = vpack.c.b16 %v8822, %v8810
    %v9519 = vpack.c.b16 %v8823, %v8811
    %v9520 = vpack.c.b16 %v8824, %v8812
    %v9521 = vpack.c.b16 %v8837, %v8825
    %v9522 = vpack.c.b16 %v8838, %v8826
    %v9523 = vpack.c.b16 %v8839, %v8827
    %v9524 = vpack.c.b16 %v8840, %v8828
    %v9525 = vpack.c.b16 %v8841, %v8829
    %v9526 = vpack.c.b16 %v8842, %v8830
    %v9527 = vpack.c.b16 %v8843, %v8831
    %v9528 = vpack.c.b16 %v8844, %v8832
    %v9529 = vpack.c.b16 %v8845, %v8833
    %v9530 = vpack.c.b16 %v8846, %v8834
    %v9531 = vpack.c.b16 %v8847, %v8835
    %v9532 = vpack.c.b16 %v8848, %v8836
    %v9533 = vpack.c.b16 %v8861, %v8849
    %v9534 = vpack.c.b16 %v8862, %v8850
    %v9535 = vpack.c.b16 %v8863, %v8851
    %v9536 = vpack.c.b16 %v8864, %v8852
    %v9537 = vpack.c.b16 %v8865, %v8853
    %v9538 = vpack.c.b16 %v8866, %v8854
    %v9539 = vpack.c.b16 %v8867, %v8855
    %v9540 = vpack.c.b16 %v8868, %v8856
    %v9541 = vpack.c.b16 %v8869, %v8857
    %v9542 = vpack.c.b16 %v8870, %v8858
    %v9543 = vpack.c.b16 %v8871, %v8859
    %v9544 = vpack.c.b16 %v8872, %v8860
    %v9545 = vpack.c.b16 %v8885, %v8873
    %v9546 = vpack.c.b16 %v8886, %v8874
    %v9547 = vpack.c.b16 %v8887, %v8875
    %v9548 = vpack.c.b16 %v8888, %v8876
    %v9549 = vpack.c.b16 %v8889, %v8877
    %v9550 = vpack.c.b16 %v8890, %v8878
    %v9551 = vpack.c.b16 %v8891, %v8879
    %v9552 = vpack.c.b16 %v8892, %v8880
    %v9553 = vpack.c.b16 %v8893, %v8881
    %v9554 = vpack.c.b16 %v8894, %v8882
    %v9555 = vpack.c.b16 %v8895, %v8883
    %v9556 = vpack.c.b16 %v8896, %v8884
    %v9557 = vpack.c.b16 %v8909, %v8897
    %v9558 = vpack.c.b16 %v8910, %v8898
    %v9559 = vpack.c.b16 %v8911, %v8899
    %v9560 = vpack.c.b16 %v8912, %v8900
    %v9561 = vpack.c.b16 %v8913, %v8901
    %v9562 = vpack.c.b16 %v8914, %v8902
    %v9563 = vpack.c.b16 %v8915, %v8903
    %v9564 = vpack.c.b16 %v8916, %v8904
    %v9565 = vpack.c.b16 %v8917, %v8905
    %v9566 = vpack.c.b16 %v8918, %v8906
    %v9567 = vpack.c.b16 %v8919, %v8907
    %v9568 = vpack.c.b16 %v8920, %v8908
    %v9569 = vpack.c.b16 %v8933, %v8921
    %v9570 = vpack.c.b16 %v8934, %v8922
    %v9571 = vpack.c.b16 %v8935, %v8923
    %v9572 = vpack.c.b16 %v8936, %v8924
    %v9573 = vpack.c.b16 %v8937, %v8925
    %v9574 = vpack.c.b16 %v8938, %v8926
    %v9575 = vpack.c.b16 %v8939, %v8927
    %v9576 = vpack.c.b16 %v8940, %v8928
    %v9577 = vpack.c.b16 %v8941, %v8929
    %v9578 = vpack.c.b16 %v8942, %v8930
    %v9579 = vpack.c.b16 %v8943, %v8931
    %v9580 = vpack.c.b16 %v8944, %v8932
    %v9581 = vpack.c.b16 %v8957, %v8945
    %v9582 = vpack.c.b16 %v8958, %v8946
    %v9583 = vpack.c.b16 %v8959, %v8947
    %v9584 = vpack.c.b16 %v8960, %v8948
    %v9585 = vpack.c.b16 %v8961, %v8949
    %v9586 = vpack.c.b16 %v8962, %v8950
    %v9587 = vpack.c.b16 %v8963, %v8951
    %v9588 = vpack.c.b16 %v8964, %v8952
    %v9589 = vpack.c.b16 %v8965, %v8953
    %v9590 = vpack.c.b16 %v8966, %v8954
    %v9591 = vpack.c.b16 %v8967, %v8955
    %v9592 = vpack.c.b16 %v8968, %v8956
    %v9593 = vpack.c.b16 %v8981, %v8969
    %v9594 = vpack.c.b16 %v8982, %v8970
    %v9595 = vpack.c.b16 %v8983, %v8971
    %v9596 = vpack.c.b16 %v8984, %v8972
    %v9597 = vpack.c.b16 %v8985, %v8973
    %v9598 = vpack.c.b16 %v8986, %v8974
    %v9599 = vpack.c.b16 %v8987, %v8975
    %v9600 = vpack.c.b16 %v8988, %v8976
    %v9601 = vpack.c.b16 %v8989, %v8977
    %v9602 = vpack.c.b16 %v8990, %v8978
    %v9603 = vpack.c.b16 %v8991, %v8979
    %v9604 = vpack.c.b16 %v8992, %v8980
    %v9605 = vpack.c.b16 %v9005, %v8993
    %v9606 = vpack.c.b16 %v9006, %v8994
    %v9607 = vpack.c.b16 %v9007, %v8995
    %v9608 = vpack.c.b16 %v9008, %v8996
    %v9609 = vpack.c.b16 %v9009, %v8997
    %v9610 = vpack.c.b16 %v9010, %v8998
    %v9611 = vpack.c.b16 %v9011, %v8999
    %v9612 = vpack.c.b16 %v9012, %v9000
    %v9613 = vpack.c.b16 %v9013, %v9001
    %v9614 = vpack.c.b16 %v9014, %v9002
    %v9615 = vpack.c.b16 %v9015, %v9003
    %v9616 = vpack.c.b16 %v9016, %v9004
    %v9617 = vpack.c.b16 %v9029, %v9017
    %v9618 = vpack.c.b16 %v9030, %v9018
    %v9619 = vpack.c.b16 %v9031, %v9019
    %v9620 = vpack.c.b16 %v9032, %v9020
    %v9621 = vpack.c.b16 %v9033, %v9021
    %v9622 = vpack.c.b16 %v9034, %v9022
    %v9623 = vpack.c.b16 %v9035, %v9023
    %v9624 = vpack.c.b16 %v9036, %v9024
    %v9625 = vpack.c.b16 %v9037, %v9025
    %v9626 = vpack.c.b16 %v9038, %v9026
    %v9627 = vpack.c.b16 %v9039, %v9027
    %v9628 = vpack.c.b16 %v9040, %v9028
    %v9629 = vpack.c.b16 %v9053, %v9041
    %v9630 = vpack.c.b16 %v9054, %v9042
    %v9631 = vpack.c.b16 %v9055, %v9043
    %v9632 = vpack.c.b16 %v9056, %v9044
    %v9633 = vpack.c.b16 %v9057, %v9045
    %v9634 = vpack.c.b16 %v9058, %v9046
    %v9635 = vpack.c.b16 %v9059, %v9047
    %v9636 = vpack.c.b16 %v9060, %v9048
    %v9637 = vpack.c.b16 %v9061, %v9049
    %v9638 = vpack.c.b16 %v9062, %v9050
    %v9639 = vpack.c.b16 %v9063, %v9051
    %v9640 = vpack.c.b16 %v9064, %v9052
    %10217 = vmatpush.bf16.msra.mxu0 %v9149
    %10218 = vmatpush.bf16.msra.mxu0 %v9137
    %10219 = vmatpush.bf16.msra.mxu0 %v9125
    %10220 = vmatpush.bf16.msra.mxu0 %v9113
    %10221 = vmatpush.bf16.msra.mxu0 %v9101
    %10222 = vmatpush.bf16.msra.mxu0 %v9089
    %10223 = vmatpush.bf16.msra.mxu0 %v9077
    %10224 = vmatpush.bf16.msra.mxu0 %v9065
    %10225 = vmatmul.bf16.gmra.mxu0 %v2357
    %v10226 = vpop.f32.mrf.mxu0
    %v10227 = vadd.f32 %v6476, %v10226
    %v10228 = vpop.f32.mrf.mxu0
    %10229 = vdwg.mxu0
    %10230 = vmatpush.bf16.msra.mxu0 %v9245
    %10231 = vmatpush.bf16.msra.mxu0 %v9233
    %10232 = vmatpush.bf16.msra.mxu0 %v9221
    %10233 = vmatpush.bf16.msra.mxu0 %v9209
    %10234 = vmatpush.bf16.msra.mxu0 %v9197
    %10235 = vmatpush.bf16.msra.mxu0 %v9185
    %10236 = vmatpush.bf16.msra.mxu0 %v9173
    %10237 = vmatpush.bf16.msra.mxu0 %v9161
    %10238 = vmatmul.bf16.gmra.mxu0 %v2358
    %v10239 = vpop.f32.mrf.mxu0
    %v10240 = vadd.f32 %v10227, %v10239
    %v10241 = vpop.f32.mrf.mxu0
    %10242 = vdwg.mxu0
    %10243 = vmatpush.bf16.msra.mxu0 %v9341
    %10244 = vmatpush.bf16.msra.mxu0 %v9329
    %10245 = vmatpush.bf16.msra.mxu0 %v9317
    %10246 = vmatpush.bf16.msra.mxu0 %v9305
    %10247 = vmatpush.bf16.msra.mxu0 %v9293
    %10248 = vmatpush.bf16.msra.mxu0 %v9281
    %10249 = vmatpush.bf16.msra.mxu0 %v9269
    %10250 = vmatpush.bf16.msra.mxu0 %v9257
    %10251 = vmatmul.bf16.gmra.mxu0 %v2359
    %v10252 = vpop.f32.mrf.mxu0
    %v10253 = vadd.f32 %v10240, %v10252
    %v10254 = vpop.f32.mrf.mxu0
    %10255 = vdwg.mxu0
    %10256 = vmatpush.bf16.msra.mxu0 %v9437
    %10257 = vmatpush.bf16.msra.mxu0 %v9425
    %10258 = vmatpush.bf16.msra.mxu0 %v9413
    %10259 = vmatpush.bf16.msra.mxu0 %v9401
    %10260 = vmatpush.bf16.msra.mxu0 %v9389
    %10261 = vmatpush.bf16.msra.mxu0 %v9377
    %10262 = vmatpush.bf16.msra.mxu0 %v9365
    %10263 = vmatpush.bf16.msra.mxu0 %v9353
    %10264 = vmatmul.bf16.gmra.mxu0 %v2360
    %v10265 = vpop.f32.mrf.mxu0
    %v10266 = vadd.f32 %v10253, %v10265
    %v10267 = vpop.f32.mrf.mxu0
    %10268 = vdwg.mxu0
    %10269 = vmatpush.bf16.msra.mxu0 %v9533
    %10270 = vmatpush.bf16.msra.mxu0 %v9521
    %10271 = vmatpush.bf16.msra.mxu0 %v9509
    %10272 = vmatpush.bf16.msra.mxu0 %v9497
    %10273 = vmatpush.bf16.msra.mxu0 %v9485
    %10274 = vmatpush.bf16.msra.mxu0 %v9473
    %10275 = vmatpush.bf16.msra.mxu0 %v9461
    %10276 = vmatpush.bf16.msra.mxu0 %v9449
    %10277 = vmatmul.bf16.gmra.mxu0 %v2361
    %v10278 = vpop.f32.mrf.mxu0
    %v10279 = vadd.f32 %v10266, %v10278
    %v10280 = vpop.f32.mrf.mxu0
    %10281 = vdwg.mxu0
    %10282 = vmatpush.bf16.msra.mxu0 %v9629
    %10283 = vmatpush.bf16.msra.mxu0 %v9617
    %10284 = vmatpush.bf16.msra.mxu0 %v9605
    %10285 = vmatpush.bf16.msra.mxu0 %v9593
    %10286 = vmatpush.bf16.msra.mxu0 %v9581
    %10287 = vmatpush.bf16.msra.mxu0 %v9569
    %10288 = vmatpush.bf16.msra.mxu0 %v9557
    %10289 = vmatpush.bf16.msra.mxu0 %v9545
    %10290 = vmatmul.bf16.gmra.mxu0 %v2362
    %v10291 = vpop.f32.mrf.mxu0
    %v10292 = vadd.f32 %v10279, %v10291
    %v10293 = vpop.f32.mrf.mxu0
    %10294 = vdwg.mxu0
    %10295 = vmatpush.bf16.msra.mxu0 %v9150
    %10296 = vmatpush.bf16.msra.mxu0 %v9138
    %10297 = vmatpush.bf16.msra.mxu0 %v9126
    %10298 = vmatpush.bf16.msra.mxu0 %v9114
    %10299 = vmatpush.bf16.msra.mxu0 %v9102
    %10300 = vmatpush.bf16.msra.mxu0 %v9090
    %10301 = vmatpush.bf16.msra.mxu0 %v9078
    %10302 = vmatpush.bf16.msra.mxu0 %v9066
    %10303 = vmatmul.bf16.gmra.mxu0 %v2357
    %v10304 = vpop.f32.mrf.mxu0
    %v10305 = vadd.f32 %v6554, %v10304
    %v10306 = vpop.f32.mrf.mxu0
    %10307 = vdwg.mxu0
    %10308 = vmatpush.bf16.msra.mxu0 %v9246
    %10309 = vmatpush.bf16.msra.mxu0 %v9234
    %10310 = vmatpush.bf16.msra.mxu0 %v9222
    %10311 = vmatpush.bf16.msra.mxu0 %v9210
    %10312 = vmatpush.bf16.msra.mxu0 %v9198
    %10313 = vmatpush.bf16.msra.mxu0 %v9186
    %10314 = vmatpush.bf16.msra.mxu0 %v9174
    %10315 = vmatpush.bf16.msra.mxu0 %v9162
    %10316 = vmatmul.bf16.gmra.mxu0 %v2358
    %v10317 = vpop.f32.mrf.mxu0
    %v10318 = vadd.f32 %v10305, %v10317
    %v10319 = vpop.f32.mrf.mxu0
    %10320 = vdwg.mxu0
    %10321 = vmatpush.bf16.msra.mxu0 %v9342
    %10322 = vmatpush.bf16.msra.mxu0 %v9330
    %10323 = vmatpush.bf16.msra.mxu0 %v9318
    %10324 = vmatpush.bf16.msra.mxu0 %v9306
    %10325 = vmatpush.bf16.msra.mxu0 %v9294
    %10326 = vmatpush.bf16.msra.mxu0 %v9282
    %10327 = vmatpush.bf16.msra.mxu0 %v9270
    %10328 = vmatpush.bf16.msra.mxu0 %v9258
    %10329 = vmatmul.bf16.gmra.mxu0 %v2359
    %v10330 = vpop.f32.mrf.mxu0
    %v10331 = vadd.f32 %v10318, %v10330
    %v10332 = vpop.f32.mrf.mxu0
    %10333 = vdwg.mxu0
    %10334 = vmatpush.bf16.msra.mxu0 %v9438
    %10335 = vmatpush.bf16.msra.mxu0 %v9426
    %10336 = vmatpush.bf16.msra.mxu0 %v9414
    %10337 = vmatpush.bf16.msra.mxu0 %v9402
    %10338 = vmatpush.bf16.msra.mxu0 %v9390
    %10339 = vmatpush.bf16.msra.mxu0 %v9378
    %10340 = vmatpush.bf16.msra.mxu0 %v9366
    %10341 = vmatpush.bf16.msra.mxu0 %v9354
    %10342 = vmatmul.bf16.gmra.mxu0 %v2360
    %v10343 = vpop.f32.mrf.mxu0
    %v10344 = vadd.f32 %v10331, %v10343
    %v10345 = vpop.f32.mrf.mxu0
    %10346 = vdwg.mxu0
    %10347 = vmatpush.bf16.msra.mxu0 %v9534
    %10348 = vmatpush.bf16.msra.mxu0 %v9522
    %10349 = vmatpush.bf16.msra.mxu0 %v9510
    %10350 = vmatpush.bf16.msra.mxu0 %v9498
    %10351 = vmatpush.bf16.msra.mxu0 %v9486
    %10352 = vmatpush.bf16.msra.mxu0 %v9474
    %10353 = vmatpush.bf16.msra.mxu0 %v9462
    %10354 = vmatpush.bf16.msra.mxu0 %v9450
    %10355 = vmatmul.bf16.gmra.mxu0 %v2361
    %v10356 = vpop.f32.mrf.mxu0
    %v10357 = vadd.f32 %v10344, %v10356
    %v10358 = vpop.f32.mrf.mxu0
    %10359 = vdwg.mxu0
    %10360 = vmatpush.bf16.msra.mxu0 %v9630
    %10361 = vmatpush.bf16.msra.mxu0 %v9618
    %10362 = vmatpush.bf16.msra.mxu0 %v9606
    %10363 = vmatpush.bf16.msra.mxu0 %v9594
    %10364 = vmatpush.bf16.msra.mxu0 %v9582
    %10365 = vmatpush.bf16.msra.mxu0 %v9570
    %10366 = vmatpush.bf16.msra.mxu0 %v9558
    %10367 = vmatpush.bf16.msra.mxu0 %v9546
    %10368 = vmatmul.bf16.gmra.mxu0 %v2362
    %v10369 = vpop.f32.mrf.mxu0
    %v10370 = vadd.f32 %v10357, %v10369
    %v10371 = vpop.f32.mrf.mxu0
    %10372 = vdwg.mxu0
    %10373 = vmatpush.bf16.msra.mxu0 %v9151
    %10374 = vmatpush.bf16.msra.mxu0 %v9139
    %10375 = vmatpush.bf16.msra.mxu0 %v9127
    %10376 = vmatpush.bf16.msra.mxu0 %v9115
    %10377 = vmatpush.bf16.msra.mxu0 %v9103
    %10378 = vmatpush.bf16.msra.mxu0 %v9091
    %10379 = vmatpush.bf16.msra.mxu0 %v9079
    %10380 = vmatpush.bf16.msra.mxu0 %v9067
    %10381 = vmatmul.bf16.gmra.mxu0 %v2357
    %v10382 = vpop.f32.mrf.mxu0
    %v10383 = vadd.f32 %v6632, %v10382
    %v10384 = vpop.f32.mrf.mxu0
    %10385 = vdwg.mxu0
    %10386 = vmatpush.bf16.msra.mxu0 %v9247
    %10387 = vmatpush.bf16.msra.mxu0 %v9235
    %10388 = vmatpush.bf16.msra.mxu0 %v9223
    %10389 = vmatpush.bf16.msra.mxu0 %v9211
    %10390 = vmatpush.bf16.msra.mxu0 %v9199
    %10391 = vmatpush.bf16.msra.mxu0 %v9187
    %10392 = vmatpush.bf16.msra.mxu0 %v9175
    %10393 = vmatpush.bf16.msra.mxu0 %v9163
    %10394 = vmatmul.bf16.gmra.mxu0 %v2358
    %v10395 = vpop.f32.mrf.mxu0
    %v10396 = vadd.f32 %v10383, %v10395
    %v10397 = vpop.f32.mrf.mxu0
    %10398 = vdwg.mxu0
    %10399 = vmatpush.bf16.msra.mxu0 %v9343
    %10400 = vmatpush.bf16.msra.mxu0 %v9331
    %10401 = vmatpush.bf16.msra.mxu0 %v9319
    %10402 = vmatpush.bf16.msra.mxu0 %v9307
    %10403 = vmatpush.bf16.msra.mxu0 %v9295
    %10404 = vmatpush.bf16.msra.mxu0 %v9283
    %10405 = vmatpush.bf16.msra.mxu0 %v9271
    %10406 = vmatpush.bf16.msra.mxu0 %v9259
    %10407 = vmatmul.bf16.gmra.mxu0 %v2359
    %v10408 = vpop.f32.mrf.mxu0
    %v10409 = vadd.f32 %v10396, %v10408
    %v10410 = vpop.f32.mrf.mxu0
    %10411 = vdwg.mxu0
    %10412 = vmatpush.bf16.msra.mxu0 %v9439
    %10413 = vmatpush.bf16.msra.mxu0 %v9427
    %10414 = vmatpush.bf16.msra.mxu0 %v9415
    %10415 = vmatpush.bf16.msra.mxu0 %v9403
    %10416 = vmatpush.bf16.msra.mxu0 %v9391
    %10417 = vmatpush.bf16.msra.mxu0 %v9379
    %10418 = vmatpush.bf16.msra.mxu0 %v9367
    %10419 = vmatpush.bf16.msra.mxu0 %v9355
    %10420 = vmatmul.bf16.gmra.mxu0 %v2360
    %v10421 = vpop.f32.mrf.mxu0
    %v10422 = vadd.f32 %v10409, %v10421
    %v10423 = vpop.f32.mrf.mxu0
    %10424 = vdwg.mxu0
    %10425 = vmatpush.bf16.msra.mxu0 %v9535
    %10426 = vmatpush.bf16.msra.mxu0 %v9523
    %10427 = vmatpush.bf16.msra.mxu0 %v9511
    %10428 = vmatpush.bf16.msra.mxu0 %v9499
    %10429 = vmatpush.bf16.msra.mxu0 %v9487
    %10430 = vmatpush.bf16.msra.mxu0 %v9475
    %10431 = vmatpush.bf16.msra.mxu0 %v9463
    %10432 = vmatpush.bf16.msra.mxu0 %v9451
    %10433 = vmatmul.bf16.gmra.mxu0 %v2361
    %v10434 = vpop.f32.mrf.mxu0
    %v10435 = vadd.f32 %v10422, %v10434
    %v10436 = vpop.f32.mrf.mxu0
    %10437 = vdwg.mxu0
    %10438 = vmatpush.bf16.msra.mxu0 %v9631
    %10439 = vmatpush.bf16.msra.mxu0 %v9619
    %10440 = vmatpush.bf16.msra.mxu0 %v9607
    %10441 = vmatpush.bf16.msra.mxu0 %v9595
    %10442 = vmatpush.bf16.msra.mxu0 %v9583
    %10443 = vmatpush.bf16.msra.mxu0 %v9571
    %10444 = vmatpush.bf16.msra.mxu0 %v9559
    %10445 = vmatpush.bf16.msra.mxu0 %v9547
    %10446 = vmatmul.bf16.gmra.mxu0 %v2362
    %v10447 = vpop.f32.mrf.mxu0
    %v10448 = vadd.f32 %v10435, %v10447
    %v10449 = vpop.f32.mrf.mxu0
    %10450 = vdwg.mxu0
    %10451 = vmatpush.bf16.msra.mxu0 %v9152
    %10452 = vmatpush.bf16.msra.mxu0 %v9140
    %10453 = vmatpush.bf16.msra.mxu0 %v9128
    %10454 = vmatpush.bf16.msra.mxu0 %v9116
    %10455 = vmatpush.bf16.msra.mxu0 %v9104
    %10456 = vmatpush.bf16.msra.mxu0 %v9092
    %10457 = vmatpush.bf16.msra.mxu0 %v9080
    %10458 = vmatpush.bf16.msra.mxu0 %v9068
    %10459 = vmatmul.bf16.gmra.mxu0 %v2357
    %v10460 = vpop.f32.mrf.mxu0
    %v10461 = vadd.f32 %v6710, %v10460
    %v10462 = vpop.f32.mrf.mxu0
    %10463 = vdwg.mxu0
    %10464 = vmatpush.bf16.msra.mxu0 %v9248
    %10465 = vmatpush.bf16.msra.mxu0 %v9236
    %10466 = vmatpush.bf16.msra.mxu0 %v9224
    %10467 = vmatpush.bf16.msra.mxu0 %v9212
    %10468 = vmatpush.bf16.msra.mxu0 %v9200
    %10469 = vmatpush.bf16.msra.mxu0 %v9188
    %10470 = vmatpush.bf16.msra.mxu0 %v9176
    %10471 = vmatpush.bf16.msra.mxu0 %v9164
    %10472 = vmatmul.bf16.gmra.mxu0 %v2358
    %v10473 = vpop.f32.mrf.mxu0
    %v10474 = vadd.f32 %v10461, %v10473
    %v10475 = vpop.f32.mrf.mxu0
    %10476 = vdwg.mxu0
    %10477 = vmatpush.bf16.msra.mxu0 %v9344
    %10478 = vmatpush.bf16.msra.mxu0 %v9332
    %10479 = vmatpush.bf16.msra.mxu0 %v9320
    %10480 = vmatpush.bf16.msra.mxu0 %v9308
    %10481 = vmatpush.bf16.msra.mxu0 %v9296
    %10482 = vmatpush.bf16.msra.mxu0 %v9284
    %10483 = vmatpush.bf16.msra.mxu0 %v9272
    %10484 = vmatpush.bf16.msra.mxu0 %v9260
    %10485 = vmatmul.bf16.gmra.mxu0 %v2359
    %v10486 = vpop.f32.mrf.mxu0
    %v10487 = vadd.f32 %v10474, %v10486
    %v10488 = vpop.f32.mrf.mxu0
    %10489 = vdwg.mxu0
    %10490 = vmatpush.bf16.msra.mxu0 %v9440
    %10491 = vmatpush.bf16.msra.mxu0 %v9428
    %10492 = vmatpush.bf16.msra.mxu0 %v9416
    %10493 = vmatpush.bf16.msra.mxu0 %v9404
    %10494 = vmatpush.bf16.msra.mxu0 %v9392
    %10495 = vmatpush.bf16.msra.mxu0 %v9380
    %10496 = vmatpush.bf16.msra.mxu0 %v9368
    %10497 = vmatpush.bf16.msra.mxu0 %v9356
    %10498 = vmatmul.bf16.gmra.mxu0 %v2360
    %v10499 = vpop.f32.mrf.mxu0
    %v10500 = vadd.f32 %v10487, %v10499
    %v10501 = vpop.f32.mrf.mxu0
    %10502 = vdwg.mxu0
    %10503 = vmatpush.bf16.msra.mxu0 %v9536
    %10504 = vmatpush.bf16.msra.mxu0 %v9524
    %10505 = vmatpush.bf16.msra.mxu0 %v9512
    %10506 = vmatpush.bf16.msra.mxu0 %v9500
    %10507 = vmatpush.bf16.msra.mxu0 %v9488
    %10508 = vmatpush.bf16.msra.mxu0 %v9476
    %10509 = vmatpush.bf16.msra.mxu0 %v9464
    %10510 = vmatpush.bf16.msra.mxu0 %v9452
    %10511 = vmatmul.bf16.gmra.mxu0 %v2361
    %v10512 = vpop.f32.mrf.mxu0
    %v10513 = vadd.f32 %v10500, %v10512
    %v10514 = vpop.f32.mrf.mxu0
    %10515 = vdwg.mxu0
    %10516 = vmatpush.bf16.msra.mxu0 %v9632
    %10517 = vmatpush.bf16.msra.mxu0 %v9620
    %10518 = vmatpush.bf16.msra.mxu0 %v9608
    %10519 = vmatpush.bf16.msra.mxu0 %v9596
    %10520 = vmatpush.bf16.msra.mxu0 %v9584
    %10521 = vmatpush.bf16.msra.mxu0 %v9572
    %10522 = vmatpush.bf16.msra.mxu0 %v9560
    %10523 = vmatpush.bf16.msra.mxu0 %v9548
    %10524 = vmatmul.bf16.gmra.mxu0 %v2362
    %v10525 = vpop.f32.mrf.mxu0
    %v10526 = vadd.f32 %v10513, %v10525
    %v10527 = vpop.f32.mrf.mxu0
    %10528 = vdwg.mxu0
    %10529 = vmatpush.bf16.msra.mxu0 %v9153
    %10530 = vmatpush.bf16.msra.mxu0 %v9141
    %10531 = vmatpush.bf16.msra.mxu0 %v9129
    %10532 = vmatpush.bf16.msra.mxu0 %v9117
    %10533 = vmatpush.bf16.msra.mxu0 %v9105
    %10534 = vmatpush.bf16.msra.mxu0 %v9093
    %10535 = vmatpush.bf16.msra.mxu0 %v9081
    %10536 = vmatpush.bf16.msra.mxu0 %v9069
    %10537 = vmatmul.bf16.gmra.mxu0 %v2357
    %v10538 = vpop.f32.mrf.mxu0
    %v10539 = vadd.f32 %v6788, %v10538
    %v10540 = vpop.f32.mrf.mxu0
    %10541 = vdwg.mxu0
    %10542 = vmatpush.bf16.msra.mxu0 %v9249
    %10543 = vmatpush.bf16.msra.mxu0 %v9237
    %10544 = vmatpush.bf16.msra.mxu0 %v9225
    %10545 = vmatpush.bf16.msra.mxu0 %v9213
    %10546 = vmatpush.bf16.msra.mxu0 %v9201
    %10547 = vmatpush.bf16.msra.mxu0 %v9189
    %10548 = vmatpush.bf16.msra.mxu0 %v9177
    %10549 = vmatpush.bf16.msra.mxu0 %v9165
    %10550 = vmatmul.bf16.gmra.mxu0 %v2358
    %v10551 = vpop.f32.mrf.mxu0
    %v10552 = vadd.f32 %v10539, %v10551
    %v10553 = vpop.f32.mrf.mxu0
    %10554 = vdwg.mxu0
    %10555 = vmatpush.bf16.msra.mxu0 %v9345
    %10556 = vmatpush.bf16.msra.mxu0 %v9333
    %10557 = vmatpush.bf16.msra.mxu0 %v9321
    %10558 = vmatpush.bf16.msra.mxu0 %v9309
    %10559 = vmatpush.bf16.msra.mxu0 %v9297
    %10560 = vmatpush.bf16.msra.mxu0 %v9285
    %10561 = vmatpush.bf16.msra.mxu0 %v9273
    %10562 = vmatpush.bf16.msra.mxu0 %v9261
    %10563 = vmatmul.bf16.gmra.mxu0 %v2359
    %v10564 = vpop.f32.mrf.mxu0
    %v10565 = vadd.f32 %v10552, %v10564
    %v10566 = vpop.f32.mrf.mxu0
    %10567 = vdwg.mxu0
    %10568 = vmatpush.bf16.msra.mxu0 %v9441
    %10569 = vmatpush.bf16.msra.mxu0 %v9429
    %10570 = vmatpush.bf16.msra.mxu0 %v9417
    %10571 = vmatpush.bf16.msra.mxu0 %v9405
    %10572 = vmatpush.bf16.msra.mxu0 %v9393
    %10573 = vmatpush.bf16.msra.mxu0 %v9381
    %10574 = vmatpush.bf16.msra.mxu0 %v9369
    %10575 = vmatpush.bf16.msra.mxu0 %v9357
    %10576 = vmatmul.bf16.gmra.mxu0 %v2360
    %v10577 = vpop.f32.mrf.mxu0
    %v10578 = vadd.f32 %v10565, %v10577
    %v10579 = vpop.f32.mrf.mxu0
    %10580 = vdwg.mxu0
    %10581 = vmatpush.bf16.msra.mxu0 %v9537
    %10582 = vmatpush.bf16.msra.mxu0 %v9525
    %10583 = vmatpush.bf16.msra.mxu0 %v9513
    %10584 = vmatpush.bf16.msra.mxu0 %v9501
    %10585 = vmatpush.bf16.msra.mxu0 %v9489
    %10586 = vmatpush.bf16.msra.mxu0 %v9477
    %10587 = vmatpush.bf16.msra.mxu0 %v9465
    %10588 = vmatpush.bf16.msra.mxu0 %v9453
    %10589 = vmatmul.bf16.gmra.mxu0 %v2361
    %v10590 = vpop.f32.mrf.mxu0
    %v10591 = vadd.f32 %v10578, %v10590
    %v10592 = vpop.f32.mrf.mxu0
    %10593 = vdwg.mxu0
    %10594 = vmatpush.bf16.msra.mxu0 %v9633
    %10595 = vmatpush.bf16.msra.mxu0 %v9621
    %10596 = vmatpush.bf16.msra.mxu0 %v9609
    %10597 = vmatpush.bf16.msra.mxu0 %v9597
    %10598 = vmatpush.bf16.msra.mxu0 %v9585
    %10599 = vmatpush.bf16.msra.mxu0 %v9573
    %10600 = vmatpush.bf16.msra.mxu0 %v9561
    %10601 = vmatpush.bf16.msra.mxu0 %v9549
    %10602 = vmatmul.bf16.gmra.mxu0 %v2362
    %v10603 = vpop.f32.mrf.mxu0
    %v10604 = vadd.f32 %v10591, %v10603
    %v10605 = vpop.f32.mrf.mxu0
    %10606 = vdwg.mxu0
    %10607 = vmatpush.bf16.msra.mxu0 %v9154
    %10608 = vmatpush.bf16.msra.mxu0 %v9142
    %10609 = vmatpush.bf16.msra.mxu0 %v9130
    %10610 = vmatpush.bf16.msra.mxu0 %v9118
    %10611 = vmatpush.bf16.msra.mxu0 %v9106
    %10612 = vmatpush.bf16.msra.mxu0 %v9094
    %10613 = vmatpush.bf16.msra.mxu0 %v9082
    %10614 = vmatpush.bf16.msra.mxu0 %v9070
    %10615 = vmatmul.bf16.gmra.mxu0 %v2357
    %v10616 = vpop.f32.mrf.mxu0
    %v10617 = vadd.f32 %v6866, %v10616
    %v10618 = vpop.f32.mrf.mxu0
    %10619 = vdwg.mxu0
    %10620 = vmatpush.bf16.msra.mxu0 %v9250
    %10621 = vmatpush.bf16.msra.mxu0 %v9238
    %10622 = vmatpush.bf16.msra.mxu0 %v9226
    %10623 = vmatpush.bf16.msra.mxu0 %v9214
    %10624 = vmatpush.bf16.msra.mxu0 %v9202
    %10625 = vmatpush.bf16.msra.mxu0 %v9190
    %10626 = vmatpush.bf16.msra.mxu0 %v9178
    %10627 = vmatpush.bf16.msra.mxu0 %v9166
    %10628 = vmatmul.bf16.gmra.mxu0 %v2358
    %v10629 = vpop.f32.mrf.mxu0
    %v10630 = vadd.f32 %v10617, %v10629
    %v10631 = vpop.f32.mrf.mxu0
    %10632 = vdwg.mxu0
    %10633 = vmatpush.bf16.msra.mxu0 %v9346
    %10634 = vmatpush.bf16.msra.mxu0 %v9334
    %10635 = vmatpush.bf16.msra.mxu0 %v9322
    %10636 = vmatpush.bf16.msra.mxu0 %v9310
    %10637 = vmatpush.bf16.msra.mxu0 %v9298
    %10638 = vmatpush.bf16.msra.mxu0 %v9286
    %10639 = vmatpush.bf16.msra.mxu0 %v9274
    %10640 = vmatpush.bf16.msra.mxu0 %v9262
    %10641 = vmatmul.bf16.gmra.mxu0 %v2359
    %v10642 = vpop.f32.mrf.mxu0
    %v10643 = vadd.f32 %v10630, %v10642
    %v10644 = vpop.f32.mrf.mxu0
    %10645 = vdwg.mxu0
    %10646 = vmatpush.bf16.msra.mxu0 %v9442
    %10647 = vmatpush.bf16.msra.mxu0 %v9430
    %10648 = vmatpush.bf16.msra.mxu0 %v9418
    %10649 = vmatpush.bf16.msra.mxu0 %v9406
    %10650 = vmatpush.bf16.msra.mxu0 %v9394
    %10651 = vmatpush.bf16.msra.mxu0 %v9382
    %10652 = vmatpush.bf16.msra.mxu0 %v9370
    %10653 = vmatpush.bf16.msra.mxu0 %v9358
    %10654 = vmatmul.bf16.gmra.mxu0 %v2360
    %v10655 = vpop.f32.mrf.mxu0
    %v10656 = vadd.f32 %v10643, %v10655
    %v10657 = vpop.f32.mrf.mxu0
    %10658 = vdwg.mxu0
    %10659 = vmatpush.bf16.msra.mxu0 %v9538
    %10660 = vmatpush.bf16.msra.mxu0 %v9526
    %10661 = vmatpush.bf16.msra.mxu0 %v9514
    %10662 = vmatpush.bf16.msra.mxu0 %v9502
    %10663 = vmatpush.bf16.msra.mxu0 %v9490
    %10664 = vmatpush.bf16.msra.mxu0 %v9478
    %10665 = vmatpush.bf16.msra.mxu0 %v9466
    %10666 = vmatpush.bf16.msra.mxu0 %v9454
    %10667 = vmatmul.bf16.gmra.mxu0 %v2361
    %v10668 = vpop.f32.mrf.mxu0
    %v10669 = vadd.f32 %v10656, %v10668
    %v10670 = vpop.f32.mrf.mxu0
    %10671 = vdwg.mxu0
    %10672 = vmatpush.bf16.msra.mxu0 %v9634
    %10673 = vmatpush.bf16.msra.mxu0 %v9622
    %10674 = vmatpush.bf16.msra.mxu0 %v9610
    %10675 = vmatpush.bf16.msra.mxu0 %v9598
    %10676 = vmatpush.bf16.msra.mxu0 %v9586
    %10677 = vmatpush.bf16.msra.mxu0 %v9574
    %10678 = vmatpush.bf16.msra.mxu0 %v9562
    %10679 = vmatpush.bf16.msra.mxu0 %v9550
    %10680 = vmatmul.bf16.gmra.mxu0 %v2362
    %v10681 = vpop.f32.mrf.mxu0
    %v10682 = vadd.f32 %v10669, %v10681
    %v10683 = vpop.f32.mrf.mxu0
    %10684 = vdwg.mxu0
    %10685 = vmatpush.bf16.msra.mxu0 %v9155
    %10686 = vmatpush.bf16.msra.mxu0 %v9143
    %10687 = vmatpush.bf16.msra.mxu0 %v9131
    %10688 = vmatpush.bf16.msra.mxu0 %v9119
    %10689 = vmatpush.bf16.msra.mxu0 %v9107
    %10690 = vmatpush.bf16.msra.mxu0 %v9095
    %10691 = vmatpush.bf16.msra.mxu0 %v9083
    %10692 = vmatpush.bf16.msra.mxu0 %v9071
    %10693 = vmatmul.bf16.gmra.mxu0 %v2357
    %v10694 = vpop.f32.mrf.mxu0
    %v10695 = vadd.f32 %v6944, %v10694
    %v10696 = vpop.f32.mrf.mxu0
    %10697 = vdwg.mxu0
    %10698 = vmatpush.bf16.msra.mxu0 %v9251
    %10699 = vmatpush.bf16.msra.mxu0 %v9239
    %10700 = vmatpush.bf16.msra.mxu0 %v9227
    %10701 = vmatpush.bf16.msra.mxu0 %v9215
    %10702 = vmatpush.bf16.msra.mxu0 %v9203
    %10703 = vmatpush.bf16.msra.mxu0 %v9191
    %10704 = vmatpush.bf16.msra.mxu0 %v9179
    %10705 = vmatpush.bf16.msra.mxu0 %v9167
    %10706 = vmatmul.bf16.gmra.mxu0 %v2358
    %v10707 = vpop.f32.mrf.mxu0
    %v10708 = vadd.f32 %v10695, %v10707
    %v10709 = vpop.f32.mrf.mxu0
    %10710 = vdwg.mxu0
    %10711 = vmatpush.bf16.msra.mxu0 %v9347
    %10712 = vmatpush.bf16.msra.mxu0 %v9335
    %10713 = vmatpush.bf16.msra.mxu0 %v9323
    %10714 = vmatpush.bf16.msra.mxu0 %v9311
    %10715 = vmatpush.bf16.msra.mxu0 %v9299
    %10716 = vmatpush.bf16.msra.mxu0 %v9287
    %10717 = vmatpush.bf16.msra.mxu0 %v9275
    %10718 = vmatpush.bf16.msra.mxu0 %v9263
    %10719 = vmatmul.bf16.gmra.mxu0 %v2359
    %v10720 = vpop.f32.mrf.mxu0
    %v10721 = vadd.f32 %v10708, %v10720
    %v10722 = vpop.f32.mrf.mxu0
    %10723 = vdwg.mxu0
    %10724 = vmatpush.bf16.msra.mxu0 %v9443
    %10725 = vmatpush.bf16.msra.mxu0 %v9431
    %10726 = vmatpush.bf16.msra.mxu0 %v9419
    %10727 = vmatpush.bf16.msra.mxu0 %v9407
    %10728 = vmatpush.bf16.msra.mxu0 %v9395
    %10729 = vmatpush.bf16.msra.mxu0 %v9383
    %10730 = vmatpush.bf16.msra.mxu0 %v9371
    %10731 = vmatpush.bf16.msra.mxu0 %v9359
    %10732 = vmatmul.bf16.gmra.mxu0 %v2360
    %v10733 = vpop.f32.mrf.mxu0
    %v10734 = vadd.f32 %v10721, %v10733
    %v10735 = vpop.f32.mrf.mxu0
    %10736 = vdwg.mxu0
    %10737 = vmatpush.bf16.msra.mxu0 %v9539
    %10738 = vmatpush.bf16.msra.mxu0 %v9527
    %10739 = vmatpush.bf16.msra.mxu0 %v9515
    %10740 = vmatpush.bf16.msra.mxu0 %v9503
    %10741 = vmatpush.bf16.msra.mxu0 %v9491
    %10742 = vmatpush.bf16.msra.mxu0 %v9479
    %10743 = vmatpush.bf16.msra.mxu0 %v9467
    %10744 = vmatpush.bf16.msra.mxu0 %v9455
    %10745 = vmatmul.bf16.gmra.mxu0 %v2361
    %v10746 = vpop.f32.mrf.mxu0
    %v10747 = vadd.f32 %v10734, %v10746
    %v10748 = vpop.f32.mrf.mxu0
    %10749 = vdwg.mxu0
    %10750 = vmatpush.bf16.msra.mxu0 %v9635
    %10751 = vmatpush.bf16.msra.mxu0 %v9623
    %10752 = vmatpush.bf16.msra.mxu0 %v9611
    %10753 = vmatpush.bf16.msra.mxu0 %v9599
    %10754 = vmatpush.bf16.msra.mxu0 %v9587
    %10755 = vmatpush.bf16.msra.mxu0 %v9575
    %10756 = vmatpush.bf16.msra.mxu0 %v9563
    %10757 = vmatpush.bf16.msra.mxu0 %v9551
    %10758 = vmatmul.bf16.gmra.mxu0 %v2362
    %v10759 = vpop.f32.mrf.mxu0
    %v10760 = vadd.f32 %v10747, %v10759
    %v10761 = vpop.f32.mrf.mxu0
    %10762 = vdwg.mxu0
    %10763 = vmatpush.bf16.msra.mxu0 %v9156
    %10764 = vmatpush.bf16.msra.mxu0 %v9144
    %10765 = vmatpush.bf16.msra.mxu0 %v9132
    %10766 = vmatpush.bf16.msra.mxu0 %v9120
    %10767 = vmatpush.bf16.msra.mxu0 %v9108
    %10768 = vmatpush.bf16.msra.mxu0 %v9096
    %10769 = vmatpush.bf16.msra.mxu0 %v9084
    %10770 = vmatpush.bf16.msra.mxu0 %v9072
    %10771 = vmatmul.bf16.gmra.mxu0 %v2357
    %v10772 = vpop.f32.mrf.mxu0
    %v10773 = vadd.f32 %v7022, %v10772
    %v10774 = vpop.f32.mrf.mxu0
    %10775 = vdwg.mxu0
    %10776 = vmatpush.bf16.msra.mxu0 %v9252
    %10777 = vmatpush.bf16.msra.mxu0 %v9240
    %10778 = vmatpush.bf16.msra.mxu0 %v9228
    %10779 = vmatpush.bf16.msra.mxu0 %v9216
    %10780 = vmatpush.bf16.msra.mxu0 %v9204
    %10781 = vmatpush.bf16.msra.mxu0 %v9192
    %10782 = vmatpush.bf16.msra.mxu0 %v9180
    %10783 = vmatpush.bf16.msra.mxu0 %v9168
    %10784 = vmatmul.bf16.gmra.mxu0 %v2358
    %v10785 = vpop.f32.mrf.mxu0
    %v10786 = vadd.f32 %v10773, %v10785
    %v10787 = vpop.f32.mrf.mxu0
    %10788 = vdwg.mxu0
    %10789 = vmatpush.bf16.msra.mxu0 %v9348
    %10790 = vmatpush.bf16.msra.mxu0 %v9336
    %10791 = vmatpush.bf16.msra.mxu0 %v9324
    %10792 = vmatpush.bf16.msra.mxu0 %v9312
    %10793 = vmatpush.bf16.msra.mxu0 %v9300
    %10794 = vmatpush.bf16.msra.mxu0 %v9288
    %10795 = vmatpush.bf16.msra.mxu0 %v9276
    %10796 = vmatpush.bf16.msra.mxu0 %v9264
    %10797 = vmatmul.bf16.gmra.mxu0 %v2359
    %v10798 = vpop.f32.mrf.mxu0
    %v10799 = vadd.f32 %v10786, %v10798
    %v10800 = vpop.f32.mrf.mxu0
    %10801 = vdwg.mxu0
    %10802 = vmatpush.bf16.msra.mxu0 %v9444
    %10803 = vmatpush.bf16.msra.mxu0 %v9432
    %10804 = vmatpush.bf16.msra.mxu0 %v9420
    %10805 = vmatpush.bf16.msra.mxu0 %v9408
    %10806 = vmatpush.bf16.msra.mxu0 %v9396
    %10807 = vmatpush.bf16.msra.mxu0 %v9384
    %10808 = vmatpush.bf16.msra.mxu0 %v9372
    %10809 = vmatpush.bf16.msra.mxu0 %v9360
    %10810 = vmatmul.bf16.gmra.mxu0 %v2360
    %v10811 = vpop.f32.mrf.mxu0
    %v10812 = vadd.f32 %v10799, %v10811
    %v10813 = vpop.f32.mrf.mxu0
    %10814 = vdwg.mxu0
    %10815 = vmatpush.bf16.msra.mxu0 %v9540
    %10816 = vmatpush.bf16.msra.mxu0 %v9528
    %10817 = vmatpush.bf16.msra.mxu0 %v9516
    %10818 = vmatpush.bf16.msra.mxu0 %v9504
    %10819 = vmatpush.bf16.msra.mxu0 %v9492
    %10820 = vmatpush.bf16.msra.mxu0 %v9480
    %10821 = vmatpush.bf16.msra.mxu0 %v9468
    %10822 = vmatpush.bf16.msra.mxu0 %v9456
    %10823 = vmatmul.bf16.gmra.mxu0 %v2361
    %v10824 = vpop.f32.mrf.mxu0
    %v10825 = vadd.f32 %v10812, %v10824
    %v10826 = vpop.f32.mrf.mxu0
    %10827 = vdwg.mxu0
    %10828 = vmatpush.bf16.msra.mxu0 %v9636
    %10829 = vmatpush.bf16.msra.mxu0 %v9624
    %10830 = vmatpush.bf16.msra.mxu0 %v9612
    %10831 = vmatpush.bf16.msra.mxu0 %v9600
    %10832 = vmatpush.bf16.msra.mxu0 %v9588
    %10833 = vmatpush.bf16.msra.mxu0 %v9576
    %10834 = vmatpush.bf16.msra.mxu0 %v9564
    %10835 = vmatpush.bf16.msra.mxu0 %v9552
    %10836 = vmatmul.bf16.gmra.mxu0 %v2362
    %v10837 = vpop.f32.mrf.mxu0
    %v10838 = vadd.f32 %v10825, %v10837
    %v10839 = vpop.f32.mrf.mxu0
    %10840 = vdwg.mxu0
    %10841 = vmatpush.bf16.msra.mxu0 %v9157
    %10842 = vmatpush.bf16.msra.mxu0 %v9145
    %10843 = vmatpush.bf16.msra.mxu0 %v9133
    %10844 = vmatpush.bf16.msra.mxu0 %v9121
    %10845 = vmatpush.bf16.msra.mxu0 %v9109
    %10846 = vmatpush.bf16.msra.mxu0 %v9097
    %10847 = vmatpush.bf16.msra.mxu0 %v9085
    %10848 = vmatpush.bf16.msra.mxu0 %v9073
    %10849 = vmatmul.bf16.gmra.mxu0 %v2357
    %v10850 = vpop.f32.mrf.mxu0
    %v10851 = vadd.f32 %v7100, %v10850
    %v10852 = vpop.f32.mrf.mxu0
    %10853 = vdwg.mxu0
    %10854 = vmatpush.bf16.msra.mxu0 %v9253
    %10855 = vmatpush.bf16.msra.mxu0 %v9241
    %10856 = vmatpush.bf16.msra.mxu0 %v9229
    %10857 = vmatpush.bf16.msra.mxu0 %v9217
    %10858 = vmatpush.bf16.msra.mxu0 %v9205
    %10859 = vmatpush.bf16.msra.mxu0 %v9193
    %10860 = vmatpush.bf16.msra.mxu0 %v9181
    %10861 = vmatpush.bf16.msra.mxu0 %v9169
    %10862 = vmatmul.bf16.gmra.mxu0 %v2358
    %v10863 = vpop.f32.mrf.mxu0
    %v10864 = vadd.f32 %v10851, %v10863
    %v10865 = vpop.f32.mrf.mxu0
    %10866 = vdwg.mxu0
    %10867 = vmatpush.bf16.msra.mxu0 %v9349
    %10868 = vmatpush.bf16.msra.mxu0 %v9337
    %10869 = vmatpush.bf16.msra.mxu0 %v9325
    %10870 = vmatpush.bf16.msra.mxu0 %v9313
    %10871 = vmatpush.bf16.msra.mxu0 %v9301
    %10872 = vmatpush.bf16.msra.mxu0 %v9289
    %10873 = vmatpush.bf16.msra.mxu0 %v9277
    %10874 = vmatpush.bf16.msra.mxu0 %v9265
    %10875 = vmatmul.bf16.gmra.mxu0 %v2359
    %v10876 = vpop.f32.mrf.mxu0
    %v10877 = vadd.f32 %v10864, %v10876
    %v10878 = vpop.f32.mrf.mxu0
    %10879 = vdwg.mxu0
    %10880 = vmatpush.bf16.msra.mxu0 %v9445
    %10881 = vmatpush.bf16.msra.mxu0 %v9433
    %10882 = vmatpush.bf16.msra.mxu0 %v9421
    %10883 = vmatpush.bf16.msra.mxu0 %v9409
    %10884 = vmatpush.bf16.msra.mxu0 %v9397
    %10885 = vmatpush.bf16.msra.mxu0 %v9385
    %10886 = vmatpush.bf16.msra.mxu0 %v9373
    %10887 = vmatpush.bf16.msra.mxu0 %v9361
    %10888 = vmatmul.bf16.gmra.mxu0 %v2360
    %v10889 = vpop.f32.mrf.mxu0
    %v10890 = vadd.f32 %v10877, %v10889
    %v10891 = vpop.f32.mrf.mxu0
    %10892 = vdwg.mxu0
    %10893 = vmatpush.bf16.msra.mxu0 %v9541
    %10894 = vmatpush.bf16.msra.mxu0 %v9529
    %10895 = vmatpush.bf16.msra.mxu0 %v9517
    %10896 = vmatpush.bf16.msra.mxu0 %v9505
    %10897 = vmatpush.bf16.msra.mxu0 %v9493
    %10898 = vmatpush.bf16.msra.mxu0 %v9481
    %10899 = vmatpush.bf16.msra.mxu0 %v9469
    %10900 = vmatpush.bf16.msra.mxu0 %v9457
    %10901 = vmatmul.bf16.gmra.mxu0 %v2361
    %v10902 = vpop.f32.mrf.mxu0
    %v10903 = vadd.f32 %v10890, %v10902
    %v10904 = vpop.f32.mrf.mxu0
    %10905 = vdwg.mxu0
    %10906 = vmatpush.bf16.msra.mxu0 %v9637
    %10907 = vmatpush.bf16.msra.mxu0 %v9625
    %10908 = vmatpush.bf16.msra.mxu0 %v9613
    %10909 = vmatpush.bf16.msra.mxu0 %v9601
    %10910 = vmatpush.bf16.msra.mxu0 %v9589
    %10911 = vmatpush.bf16.msra.mxu0 %v9577
    %10912 = vmatpush.bf16.msra.mxu0 %v9565
    %10913 = vmatpush.bf16.msra.mxu0 %v9553
    %10914 = vmatmul.bf16.gmra.mxu0 %v2362
    %v10915 = vpop.f32.mrf.mxu0
    %v10916 = vadd.f32 %v10903, %v10915
    %v10917 = vpop.f32.mrf.mxu0
    %10918 = vdwg.mxu0
    %10919 = vmatpush.bf16.msra.mxu0 %v9158
    %10920 = vmatpush.bf16.msra.mxu0 %v9146
    %10921 = vmatpush.bf16.msra.mxu0 %v9134
    %10922 = vmatpush.bf16.msra.mxu0 %v9122
    %10923 = vmatpush.bf16.msra.mxu0 %v9110
    %10924 = vmatpush.bf16.msra.mxu0 %v9098
    %10925 = vmatpush.bf16.msra.mxu0 %v9086
    %10926 = vmatpush.bf16.msra.mxu0 %v9074
    %10927 = vmatmul.bf16.gmra.mxu0 %v2357
    %v10928 = vpop.f32.mrf.mxu0
    %v10929 = vadd.f32 %v7178, %v10928
    %v10930 = vpop.f32.mrf.mxu0
    %10931 = vdwg.mxu0
    %10932 = vmatpush.bf16.msra.mxu0 %v9254
    %10933 = vmatpush.bf16.msra.mxu0 %v9242
    %10934 = vmatpush.bf16.msra.mxu0 %v9230
    %10935 = vmatpush.bf16.msra.mxu0 %v9218
    %10936 = vmatpush.bf16.msra.mxu0 %v9206
    %10937 = vmatpush.bf16.msra.mxu0 %v9194
    %10938 = vmatpush.bf16.msra.mxu0 %v9182
    %10939 = vmatpush.bf16.msra.mxu0 %v9170
    %10940 = vmatmul.bf16.gmra.mxu0 %v2358
    %v10941 = vpop.f32.mrf.mxu0
    %v10942 = vadd.f32 %v10929, %v10941
    %v10943 = vpop.f32.mrf.mxu0
    %10944 = vdwg.mxu0
    %10945 = vmatpush.bf16.msra.mxu0 %v9350
    %10946 = vmatpush.bf16.msra.mxu0 %v9338
    %10947 = vmatpush.bf16.msra.mxu0 %v9326
    %10948 = vmatpush.bf16.msra.mxu0 %v9314
    %10949 = vmatpush.bf16.msra.mxu0 %v9302
    %10950 = vmatpush.bf16.msra.mxu0 %v9290
    %10951 = vmatpush.bf16.msra.mxu0 %v9278
    %10952 = vmatpush.bf16.msra.mxu0 %v9266
    %10953 = vmatmul.bf16.gmra.mxu0 %v2359
    %v10954 = vpop.f32.mrf.mxu0
    %v10955 = vadd.f32 %v10942, %v10954
    %v10956 = vpop.f32.mrf.mxu0
    %10957 = vdwg.mxu0
    %10958 = vmatpush.bf16.msra.mxu0 %v9446
    %10959 = vmatpush.bf16.msra.mxu0 %v9434
    %10960 = vmatpush.bf16.msra.mxu0 %v9422
    %10961 = vmatpush.bf16.msra.mxu0 %v9410
    %10962 = vmatpush.bf16.msra.mxu0 %v9398
    %10963 = vmatpush.bf16.msra.mxu0 %v9386
    %10964 = vmatpush.bf16.msra.mxu0 %v9374
    %10965 = vmatpush.bf16.msra.mxu0 %v9362
    %10966 = vmatmul.bf16.gmra.mxu0 %v2360
    %v10967 = vpop.f32.mrf.mxu0
    %v10968 = vadd.f32 %v10955, %v10967
    %v10969 = vpop.f32.mrf.mxu0
    %10970 = vdwg.mxu0
    %10971 = vmatpush.bf16.msra.mxu0 %v9542
    %10972 = vmatpush.bf16.msra.mxu0 %v9530
    %10973 = vmatpush.bf16.msra.mxu0 %v9518
    %10974 = vmatpush.bf16.msra.mxu0 %v9506
    %10975 = vmatpush.bf16.msra.mxu0 %v9494
    %10976 = vmatpush.bf16.msra.mxu0 %v9482
    %10977 = vmatpush.bf16.msra.mxu0 %v9470
    %10978 = vmatpush.bf16.msra.mxu0 %v9458
    %10979 = vmatmul.bf16.gmra.mxu0 %v2361
    %v10980 = vpop.f32.mrf.mxu0
    %v10981 = vadd.f32 %v10968, %v10980
    %v10982 = vpop.f32.mrf.mxu0
    %10983 = vdwg.mxu0
    %10984 = vmatpush.bf16.msra.mxu0 %v9638
    %10985 = vmatpush.bf16.msra.mxu0 %v9626
    %10986 = vmatpush.bf16.msra.mxu0 %v9614
    %10987 = vmatpush.bf16.msra.mxu0 %v9602
    %10988 = vmatpush.bf16.msra.mxu0 %v9590
    %10989 = vmatpush.bf16.msra.mxu0 %v9578
    %10990 = vmatpush.bf16.msra.mxu0 %v9566
    %10991 = vmatpush.bf16.msra.mxu0 %v9554
    %10992 = vmatmul.bf16.gmra.mxu0 %v2362
    %v10993 = vpop.f32.mrf.mxu0
    %v10994 = vadd.f32 %v10981, %v10993
    %v10995 = vpop.f32.mrf.mxu0
    %10996 = vdwg.mxu0
    %10997 = vmatpush.bf16.msra.mxu0 %v9159
    %10998 = vmatpush.bf16.msra.mxu0 %v9147
    %10999 = vmatpush.bf16.msra.mxu0 %v9135
    %11000 = vmatpush.bf16.msra.mxu0 %v9123
    %11001 = vmatpush.bf16.msra.mxu0 %v9111
    %11002 = vmatpush.bf16.msra.mxu0 %v9099
    %11003 = vmatpush.bf16.msra.mxu0 %v9087
    %11004 = vmatpush.bf16.msra.mxu0 %v9075
    %11005 = vmatmul.bf16.gmra.mxu0 %v2357
    %v11006 = vpop.f32.mrf.mxu0
    %v11007 = vadd.f32 %v7256, %v11006
    %v11008 = vpop.f32.mrf.mxu0
    %11009 = vdwg.mxu0
    %11010 = vmatpush.bf16.msra.mxu0 %v9255
    %11011 = vmatpush.bf16.msra.mxu0 %v9243
    %11012 = vmatpush.bf16.msra.mxu0 %v9231
    %11013 = vmatpush.bf16.msra.mxu0 %v9219
    %11014 = vmatpush.bf16.msra.mxu0 %v9207
    %11015 = vmatpush.bf16.msra.mxu0 %v9195
    %11016 = vmatpush.bf16.msra.mxu0 %v9183
    %11017 = vmatpush.bf16.msra.mxu0 %v9171
    %11018 = vmatmul.bf16.gmra.mxu0 %v2358
    %v11019 = vpop.f32.mrf.mxu0
    %v11020 = vadd.f32 %v11007, %v11019
    %v11021 = vpop.f32.mrf.mxu0
    %11022 = vdwg.mxu0
    %11023 = vmatpush.bf16.msra.mxu0 %v9351
    %11024 = vmatpush.bf16.msra.mxu0 %v9339
    %11025 = vmatpush.bf16.msra.mxu0 %v9327
    %11026 = vmatpush.bf16.msra.mxu0 %v9315
    %11027 = vmatpush.bf16.msra.mxu0 %v9303
    %11028 = vmatpush.bf16.msra.mxu0 %v9291
    %11029 = vmatpush.bf16.msra.mxu0 %v9279
    %11030 = vmatpush.bf16.msra.mxu0 %v9267
    %11031 = vmatmul.bf16.gmra.mxu0 %v2359
    %v11032 = vpop.f32.mrf.mxu0
    %v11033 = vadd.f32 %v11020, %v11032
    %v11034 = vpop.f32.mrf.mxu0
    %11035 = vdwg.mxu0
    %11036 = vmatpush.bf16.msra.mxu0 %v9447
    %11037 = vmatpush.bf16.msra.mxu0 %v9435
    %11038 = vmatpush.bf16.msra.mxu0 %v9423
    %11039 = vmatpush.bf16.msra.mxu0 %v9411
    %11040 = vmatpush.bf16.msra.mxu0 %v9399
    %11041 = vmatpush.bf16.msra.mxu0 %v9387
    %11042 = vmatpush.bf16.msra.mxu0 %v9375
    %11043 = vmatpush.bf16.msra.mxu0 %v9363
    %11044 = vmatmul.bf16.gmra.mxu0 %v2360
    %v11045 = vpop.f32.mrf.mxu0
    %v11046 = vadd.f32 %v11033, %v11045
    %v11047 = vpop.f32.mrf.mxu0
    %11048 = vdwg.mxu0
    %11049 = vmatpush.bf16.msra.mxu0 %v9543
    %11050 = vmatpush.bf16.msra.mxu0 %v9531
    %11051 = vmatpush.bf16.msra.mxu0 %v9519
    %11052 = vmatpush.bf16.msra.mxu0 %v9507
    %11053 = vmatpush.bf16.msra.mxu0 %v9495
    %11054 = vmatpush.bf16.msra.mxu0 %v9483
    %11055 = vmatpush.bf16.msra.mxu0 %v9471
    %11056 = vmatpush.bf16.msra.mxu0 %v9459
    %11057 = vmatmul.bf16.gmra.mxu0 %v2361
    %v11058 = vpop.f32.mrf.mxu0
    %v11059 = vadd.f32 %v11046, %v11058
    %v11060 = vpop.f32.mrf.mxu0
    %11061 = vdwg.mxu0
    %11062 = vmatpush.bf16.msra.mxu0 %v9639
    %11063 = vmatpush.bf16.msra.mxu0 %v9627
    %11064 = vmatpush.bf16.msra.mxu0 %v9615
    %11065 = vmatpush.bf16.msra.mxu0 %v9603
    %11066 = vmatpush.bf16.msra.mxu0 %v9591
    %11067 = vmatpush.bf16.msra.mxu0 %v9579
    %11068 = vmatpush.bf16.msra.mxu0 %v9567
    %11069 = vmatpush.bf16.msra.mxu0 %v9555
    %11070 = vmatmul.bf16.gmra.mxu0 %v2362
    %v11071 = vpop.f32.mrf.mxu0
    %v11072 = vadd.f32 %v11059, %v11071
    %v11073 = vpop.f32.mrf.mxu0
    %11074 = vdwg.mxu0
    %11075 = vmatpush.bf16.msra.mxu0 %v9160
    %11076 = vmatpush.bf16.msra.mxu0 %v9148
    %11077 = vmatpush.bf16.msra.mxu0 %v9136
    %11078 = vmatpush.bf16.msra.mxu0 %v9124
    %11079 = vmatpush.bf16.msra.mxu0 %v9112
    %11080 = vmatpush.bf16.msra.mxu0 %v9100
    %11081 = vmatpush.bf16.msra.mxu0 %v9088
    %11082 = vmatpush.bf16.msra.mxu0 %v9076
    %11083 = vmatmul.bf16.gmra.mxu0 %v2357
    %v11084 = vpop.f32.mrf.mxu0
    %v11085 = vadd.f32 %v7334, %v11084
    %v11086 = vpop.f32.mrf.mxu0
    %11087 = vdwg.mxu0
    %11088 = vmatpush.bf16.msra.mxu0 %v9256
    %11089 = vmatpush.bf16.msra.mxu0 %v9244
    %11090 = vmatpush.bf16.msra.mxu0 %v9232
    %11091 = vmatpush.bf16.msra.mxu0 %v9220
    %11092 = vmatpush.bf16.msra.mxu0 %v9208
    %11093 = vmatpush.bf16.msra.mxu0 %v9196
    %11094 = vmatpush.bf16.msra.mxu0 %v9184
    %11095 = vmatpush.bf16.msra.mxu0 %v9172
    %11096 = vmatmul.bf16.gmra.mxu0 %v2358
    %v11097 = vpop.f32.mrf.mxu0
    %v11098 = vadd.f32 %v11085, %v11097
    %v11099 = vpop.f32.mrf.mxu0
    %11100 = vdwg.mxu0
    %11101 = vmatpush.bf16.msra.mxu0 %v9352
    %11102 = vmatpush.bf16.msra.mxu0 %v9340
    %11103 = vmatpush.bf16.msra.mxu0 %v9328
    %11104 = vmatpush.bf16.msra.mxu0 %v9316
    %11105 = vmatpush.bf16.msra.mxu0 %v9304
    %11106 = vmatpush.bf16.msra.mxu0 %v9292
    %11107 = vmatpush.bf16.msra.mxu0 %v9280
    %11108 = vmatpush.bf16.msra.mxu0 %v9268
    %11109 = vmatmul.bf16.gmra.mxu0 %v2359
    %v11110 = vpop.f32.mrf.mxu0
    %v11111 = vadd.f32 %v11098, %v11110
    %v11112 = vpop.f32.mrf.mxu0
    %11113 = vdwg.mxu0
    %11114 = vmatpush.bf16.msra.mxu0 %v9448
    %11115 = vmatpush.bf16.msra.mxu0 %v9436
    %11116 = vmatpush.bf16.msra.mxu0 %v9424
    %11117 = vmatpush.bf16.msra.mxu0 %v9412
    %11118 = vmatpush.bf16.msra.mxu0 %v9400
    %11119 = vmatpush.bf16.msra.mxu0 %v9388
    %11120 = vmatpush.bf16.msra.mxu0 %v9376
    %11121 = vmatpush.bf16.msra.mxu0 %v9364
    %11122 = vmatmul.bf16.gmra.mxu0 %v2360
    %v11123 = vpop.f32.mrf.mxu0
    %v11124 = vadd.f32 %v11111, %v11123
    %v11125 = vpop.f32.mrf.mxu0
    %11126 = vdwg.mxu0
    %11127 = vmatpush.bf16.msra.mxu0 %v9544
    %11128 = vmatpush.bf16.msra.mxu0 %v9532
    %11129 = vmatpush.bf16.msra.mxu0 %v9520
    %11130 = vmatpush.bf16.msra.mxu0 %v9508
    %11131 = vmatpush.bf16.msra.mxu0 %v9496
    %11132 = vmatpush.bf16.msra.mxu0 %v9484
    %11133 = vmatpush.bf16.msra.mxu0 %v9472
    %11134 = vmatpush.bf16.msra.mxu0 %v9460
    %11135 = vmatmul.bf16.gmra.mxu0 %v2361
    %v11136 = vpop.f32.mrf.mxu0
    %v11137 = vadd.f32 %v11124, %v11136
    %v11138 = vpop.f32.mrf.mxu0
    %11139 = vdwg.mxu0
    %11140 = vmatpush.bf16.msra.mxu0 %v9640
    %11141 = vmatpush.bf16.msra.mxu0 %v9628
    %11142 = vmatpush.bf16.msra.mxu0 %v9616
    %11143 = vmatpush.bf16.msra.mxu0 %v9604
    %11144 = vmatpush.bf16.msra.mxu0 %v9592
    %11145 = vmatpush.bf16.msra.mxu0 %v9580
    %11146 = vmatpush.bf16.msra.mxu0 %v9568
    %11147 = vmatpush.bf16.msra.mxu0 %v9556
    %11148 = vmatmul.bf16.gmra.mxu0 %v2362
    %v11149 = vpop.f32.mrf.mxu0
    %v11150 = vadd.f32 %v11137, %v11149
    %v11151 = vpop.f32.mrf.mxu0
    %11152 = vdwg.mxu0
    %v11153 = vld [vmem:[#allocation20] sm:$0xff]
    %v11154 = vld [vmem:[#allocation20 + $0x8] sm:$0xf]
    %v11157 = vperm.slane %v11153, 0
    %v11158 = vperm.slane %v11153, 1
    %v11159 = vperm.slane %v11153, 2
    %v11160 = vperm.slane %v11153, 3
    %v11161 = vperm.slane %v11153, 4
    %v11162 = vperm.slane %v11153, 5
    %v11163 = vperm.slane %v11153, 6
    %v11164 = vperm.slane %v11153, 7
    %v11165 = vperm.slane %v11154, 0
    %v11166 = vperm.slane %v11154, 1
    %v11167 = vperm.slane %v11154, 2
    %v11168 = vperm.slane %v11154, 3
    %v11181 = vadd.f32 %v10292, %v11157
    %v11182 = vadd.f32 %v10370, %v11158
    %v11183 = vadd.f32 %v10448, %v11159
    %v11184 = vadd.f32 %v10526, %v11160
    %v11185 = vadd.f32 %v10604, %v11161
    %v11186 = vadd.f32 %v10682, %v11162
    %v11187 = vadd.f32 %v10760, %v11163
    %v11188 = vadd.f32 %v10838, %v11164
    %v11189 = vadd.f32 %v10916, %v11165
    %v11190 = vadd.f32 %v10994, %v11166
    %v11191 = vadd.f32 %v11072, %v11167
    %v11192 = vadd.f32 %v11150, %v11168
    %v11193 = vxor.u32 %v11181, 2147483648
    %v11194 = vxor.u32 %v11182, 2147483648
    %v11195 = vxor.u32 %v11183, 2147483648
    %v11196 = vxor.u32 %v11184, 2147483648
    %v11197 = vxor.u32 %v11185, 2147483648
    %v11198 = vxor.u32 %v11186, 2147483648
    %v11199 = vmul.f32 %v11193, 1.442695
    %v11200 = vpow.pop %v11199
    %v11201 = vmul.f32 %v11194, 1.442695
    %v11202 = vpow.pop %v11201
    %v11203 = vmul.f32 %v11195, 1.442695
    %v11204 = vpow.pop %v11203
    %v11205 = vmul.f32 %v11196, 1.442695
    %v11206 = vpow.pop %v11205
    %v11207 = vmul.f32 %v11197, 1.442695
    %v11208 = vpow.pop %v11207
    %v11209 = vmul.f32 %v11198, 1.442695
    %v11210 = vpow.pop %v11209
    %v11211 = vadd.f32 %v11200, 1.0
    %v11212 = vadd.f32 %v11202, 1.0
    %v11213 = vadd.f32 %v11204, 1.0
    %v11214 = vadd.f32 %v11206, 1.0
    %v11215 = vadd.f32 %v11208, 1.0
    %v11216 = vadd.f32 %v11210, 1.0
    %v11217 = vrcp.pop %v11211
    %v11218 = vmul.f32 %v11211, %v11217
    %v11219 = vsub.f32 1.0, %v11218
    %v11220 = vmul.f32 %v11217, %v11219
    %v11221 = vadd.f32 %v11217, %v11220
    %vm11222 = vweird.f32 %v11211
    %vm11223 = vweird.f32 %v11217
    %vm11224 = vmor %vm11222, %vm11223
    %v11225 = vsel %vm11224, %v11217, %v11221
    %v11226 = vand.u32 2147483647, %v11211
    %vm11227 = vcmp.eq.f32.partialorder %v11226, 8.507059e+37
    %v11228 = vand.u32 %v11211, 2147483648
    %v11229 = vor.u32 1.1754944e-38, %v11228
    %v11230 = vsel %vm11227, %v11229, %v11225
    %v11231 = vmul.f32 1.0, %v11230
    %v11232 = vrcp.pop %v11212
    %v11233 = vmul.f32 %v11212, %v11232
    %v11234 = vsub.f32 1.0, %v11233
    %v11235 = vmul.f32 %v11232, %v11234
    %v11236 = vadd.f32 %v11232, %v11235
    %vm11237 = vweird.f32 %v11212
    %vm11238 = vweird.f32 %v11232
    %vm11239 = vmor %vm11237, %vm11238
    %v11240 = vsel %vm11239, %v11232, %v11236
    %v11241 = vand.u32 2147483647, %v11212
    %vm11242 = vcmp.eq.f32.partialorder %v11241, 8.507059e+37
    %v11243 = vand.u32 %v11212, 2147483648
    %v11244 = vor.u32 1.1754944e-38, %v11243
    %v11245 = vsel %vm11242, %v11244, %v11240
    %v11246 = vmul.f32 1.0, %v11245
    %v11247 = vrcp.pop %v11213
    %v11248 = vmul.f32 %v11213, %v11247
    %v11249 = vsub.f32 1.0, %v11248
    %v11250 = vmul.f32 %v11247, %v11249
    %v11251 = vadd.f32 %v11247, %v11250
    %vm11252 = vweird.f32 %v11213
    %vm11253 = vweird.f32 %v11247
    %vm11254 = vmor %vm11252, %vm11253
    %v11255 = vsel %vm11254, %v11247, %v11251
    %v11256 = vand.u32 2147483647, %v11213
    %vm11257 = vcmp.eq.f32.partialorder %v11256, 8.507059e+37
    %v11258 = vand.u32 %v11213, 2147483648
    %v11259 = vor.u32 1.1754944e-38, %v11258
    %v11260 = vsel %vm11257, %v11259, %v11255
    %v11261 = vmul.f32 1.0, %v11260
    %v11262 = vrcp.pop %v11214
    %v11263 = vmul.f32 %v11214, %v11262
    %v11264 = vsub.f32 1.0, %v11263
    %v11265 = vmul.f32 %v11262, %v11264
    %v11266 = vadd.f32 %v11262, %v11265
    %vm11267 = vweird.f32 %v11214
    %vm11268 = vweird.f32 %v11262
    %vm11269 = vmor %vm11267, %vm11268
    %v11270 = vsel %vm11269, %v11262, %v11266
    %v11271 = vand.u32 2147483647, %v11214
    %vm11272 = vcmp.eq.f32.partialorder %v11271, 8.507059e+37
    %v11273 = vand.u32 %v11214, 2147483648
    %v11274 = vor.u32 1.1754944e-38, %v11273
    %v11275 = vsel %vm11272, %v11274, %v11270
    %v11276 = vmul.f32 1.0, %v11275
    %v11277 = vrcp.pop %v11215
    %v11278 = vmul.f32 %v11215, %v11277
    %v11279 = vsub.f32 1.0, %v11278
    %v11280 = vmul.f32 %v11277, %v11279
    %v11281 = vadd.f32 %v11277, %v11280
    %vm11282 = vweird.f32 %v11215
    %vm11283 = vweird.f32 %v11277
    %vm11284 = vmor %vm11282, %vm11283
    %v11285 = vsel %vm11284, %v11277, %v11281
    %v11286 = vand.u32 2147483647, %v11215
    %vm11287 = vcmp.eq.f32.partialorder %v11286, 8.507059e+37
    %v11288 = vand.u32 %v11215, 2147483648
    %v11289 = vor.u32 1.1754944e-38, %v11288
    %v11290 = vsel %vm11287, %v11289, %v11285
    %v11291 = vmul.f32 1.0, %v11290
    %v11292 = vrcp.pop %v11216
    %v11293 = vmul.f32 %v11216, %v11292
    %v11294 = vsub.f32 1.0, %v11293
    %v11295 = vmul.f32 %v11292, %v11294
    %v11296 = vadd.f32 %v11292, %v11295
    %vm11297 = vweird.f32 %v11216
    %vm11298 = vweird.f32 %v11292
    %vm11299 = vmor %vm11297, %vm11298
    %v11300 = vsel %vm11299, %v11292, %v11296
    %v11301 = vand.u32 2147483647, %v11216
    %vm11302 = vcmp.eq.f32.partialorder %v11301, 8.507059e+37
    %v11303 = vand.u32 %v11216, 2147483648
    %v11304 = vor.u32 1.1754944e-38, %v11303
    %v11305 = vsel %vm11302, %v11304, %v11300
    %v11306 = vmul.f32 1.0, %v11305
    %v11307 = vxor.u32 %v11187, 2147483648
    %v11308 = vxor.u32 %v11188, 2147483648
    %v11309 = vxor.u32 %v11189, 2147483648
    %v11310 = vxor.u32 %v11190, 2147483648
    %v11311 = vxor.u32 %v11191, 2147483648
    %v11312 = vxor.u32 %v11192, 2147483648
    %v11313 = vmul.f32 %v11307, 1.442695
    %v11314 = vpow.pop %v11313
    %v11315 = vmul.f32 %v11308, 1.442695
    %v11316 = vpow.pop %v11315
    %v11317 = vmul.f32 %v11309, 1.442695
    %v11318 = vpow.pop %v11317
    %v11319 = vmul.f32 %v11310, 1.442695
    %v11320 = vpow.pop %v11319
    %v11321 = vmul.f32 %v11311, 1.442695
    %v11322 = vpow.pop %v11321
    %v11323 = vmul.f32 %v11312, 1.442695
    %v11324 = vpow.pop %v11323
    %v11325 = vadd.f32 %v11314, 1.0
    %v11326 = vadd.f32 %v11316, 1.0
    %v11327 = vadd.f32 %v11318, 1.0
    %v11328 = vadd.f32 %v11320, 1.0
    %v11329 = vadd.f32 %v11322, 1.0
    %v11330 = vadd.f32 %v11324, 1.0
    %v11331 = vrcp.pop %v11325
    %v11332 = vmul.f32 %v11325, %v11331
    %v11333 = vsub.f32 1.0, %v11332
    %v11334 = vmul.f32 %v11331, %v11333
    %v11335 = vadd.f32 %v11331, %v11334
    %vm11336 = vweird.f32 %v11325
    %vm11337 = vweird.f32 %v11331
    %vm11338 = vmor %vm11336, %vm11337
    %v11339 = vsel %vm11338, %v11331, %v11335
    %v11340 = vand.u32 2147483647, %v11325
    %vm11341 = vcmp.eq.f32.partialorder %v11340, 8.507059e+37
    %v11342 = vand.u32 %v11325, 2147483648
    %v11343 = vor.u32 1.1754944e-38, %v11342
    %v11344 = vsel %vm11341, %v11343, %v11339
    %v11345 = vmul.f32 1.0, %v11344
    %v11346 = vrcp.pop %v11326
    %v11347 = vmul.f32 %v11326, %v11346
    %v11348 = vsub.f32 1.0, %v11347
    %v11349 = vmul.f32 %v11346, %v11348
    %v11350 = vadd.f32 %v11346, %v11349
    %vm11351 = vweird.f32 %v11326
    %vm11352 = vweird.f32 %v11346
    %vm11353 = vmor %vm11351, %vm11352
    %v11354 = vsel %vm11353, %v11346, %v11350
    %v11355 = vand.u32 2147483647, %v11326
    %vm11356 = vcmp.eq.f32.partialorder %v11355, 8.507059e+37
    %v11357 = vand.u32 %v11326, 2147483648
    %v11358 = vor.u32 1.1754944e-38, %v11357
    %v11359 = vsel %vm11356, %v11358, %v11354
    %v11360 = vmul.f32 1.0, %v11359
    %v11361 = vrcp.pop %v11327
    %v11362 = vmul.f32 %v11327, %v11361
    %v11363 = vsub.f32 1.0, %v11362
    %v11364 = vmul.f32 %v11361, %v11363
    %v11365 = vadd.f32 %v11361, %v11364
    %vm11366 = vweird.f32 %v11327
    %vm11367 = vweird.f32 %v11361
    %vm11368 = vmor %vm11366, %vm11367
    %v11369 = vsel %vm11368, %v11361, %v11365
    %v11370 = vand.u32 2147483647, %v11327
    %vm11371 = vcmp.eq.f32.partialorder %v11370, 8.507059e+37
    %v11372 = vand.u32 %v11327, 2147483648
    %v11373 = vor.u32 1.1754944e-38, %v11372
    %v11374 = vsel %vm11371, %v11373, %v11369
    %v11375 = vmul.f32 1.0, %v11374
    %v11376 = vrcp.pop %v11328
    %v11377 = vmul.f32 %v11328, %v11376
    %v11378 = vsub.f32 1.0, %v11377
    %v11379 = vmul.f32 %v11376, %v11378
    %v11380 = vadd.f32 %v11376, %v11379
    %vm11381 = vweird.f32 %v11328
    %vm11382 = vweird.f32 %v11376
    %vm11383 = vmor %vm11381, %vm11382
    %v11384 = vsel %vm11383, %v11376, %v11380
    %v11385 = vand.u32 2147483647, %v11328
    %vm11386 = vcmp.eq.f32.partialorder %v11385, 8.507059e+37
    %v11387 = vand.u32 %v11328, 2147483648
    %v11388 = vor.u32 1.1754944e-38, %v11387
    %v11389 = vsel %vm11386, %v11388, %v11384
    %v11390 = vmul.f32 1.0, %v11389
    %v11391 = vrcp.pop %v11329
    %v11392 = vmul.f32 %v11329, %v11391
    %v11393 = vsub.f32 1.0, %v11392
    %v11394 = vmul.f32 %v11391, %v11393
    %v11395 = vadd.f32 %v11391, %v11394
    %vm11396 = vweird.f32 %v11329
    %vm11397 = vweird.f32 %v11391
    %vm11398 = vmor %vm11396, %vm11397
    %v11399 = vsel %vm11398, %v11391, %v11395
    %v11400 = vand.u32 2147483647, %v11329
    %vm11401 = vcmp.eq.f32.partialorder %v11400, 8.507059e+37
    %v11402 = vand.u32 %v11329, 2147483648
    %v11403 = vor.u32 1.1754944e-38, %v11402
    %v11404 = vsel %vm11401, %v11403, %v11399
    %v11405 = vmul.f32 1.0, %v11404
    %v11406 = vrcp.pop %v11330
    %v11407 = vmul.f32 %v11330, %v11406
    %v11408 = vsub.f32 1.0, %v11407
    %v11409 = vmul.f32 %v11406, %v11408
    %v11410 = vadd.f32 %v11406, %v11409
    %vm11411 = vweird.f32 %v11330
    %vm11412 = vweird.f32 %v11406
    %vm11413 = vmor %vm11411, %vm11412
    %v11414 = vsel %vm11413, %v11406, %v11410
    %v11415 = vand.u32 2147483647, %v11330
    %vm11416 = vcmp.eq.f32.partialorder %v11415, 8.507059e+37
    %v11417 = vand.u32 %v11330, 2147483648
    %v11418 = vor.u32 1.1754944e-38, %v11417
    %v11419 = vsel %vm11416, %v11418, %v11414
    %v11420 = vmul.f32 1.0, %v11419
    %v11421 = vld [vmem:[#allocation7] sm:$0xff]
    %v11422 = vld [vmem:[#allocation7 + $0x8] sm:$0xff]
    %v11423 = vld [vmem:[#allocation7 + $0x10] sm:$0xff]
    %11426 = vst [vmem:[#allocation1] ss:$4 sm:$0xff] %v11421
    %s11427 = scalar_lea.vmem [#allocation1], 32
    %11428 = vst [vmem:[%s11427] ss:$4 sm:$0xff] %v11422
    %v11429 = vld.sshfl [vmem:[#allocation1] sm:$0xff pattern:$0x73625140]
    %v11430 = vld.sshfl [vmem:[#allocation1 + $0x8] sm:$0xff pattern:$0x73625140]
    %v11431 = vld.sshfl [vmem:[#allocation1 + $0x10] sm:$0xff pattern:$0x73625140]
    %v11432 = vld.sshfl [vmem:[#allocation1 + $0x18] sm:$0xff pattern:$0x73625140]
    %v11433 = vld.sshfl [vmem:[#allocation1 + $0x20] sm:$0xff pattern:$0x73625140]
    %v11434 = vld.sshfl [vmem:[#allocation1 + $0x28] sm:$0xff pattern:$0x73625140]
    %v11441 = vadd.f32 %v11231, %v11429
    %v11442 = vadd.f32 %v11246, %v11430
    %v11443 = vadd.f32 %v11261, %v11431
    %v11444 = vadd.f32 %v11276, %v11432
    %v11445 = vadd.f32 %v11291, %v11433
    %v11446 = vadd.f32 %v11306, %v11434
    %11448 = vst [vmem:[#allocation1] ss:$4 sm:$0xff] %v11422
    %s11449 = scalar_lea.vmem [#allocation1], 32
    %11450 = vst [vmem:[%s11449] ss:$4 sm:$0xff] %v11423
    %v11451 = vld.sshfl [vmem:[#allocation1 + $0x10] sm:$0xff pattern:$0x73625140]
    %v11452 = vld.sshfl [vmem:[#allocation1 + $0x18] sm:$0xff pattern:$0x73625140]
    %v11453 = vld.sshfl [vmem:[#allocation1 + $0x20] sm:$0xff pattern:$0x73625140]
    %v11454 = vld.sshfl [vmem:[#allocation1 + $0x28] sm:$0xff pattern:$0x73625140]
    %v11455 = vld.sshfl [vmem:[#allocation1 + $0x30] sm:$0xff pattern:$0x73625140]
    %v11456 = vld.sshfl [vmem:[#allocation1 + $0x38] sm:$0xff pattern:$0x73625140]
    %v11463 = vadd.f32 %v11345, %v11451
    %v11464 = vadd.f32 %v11360, %v11452
    %v11465 = vadd.f32 %v11375, %v11453
    %v11466 = vadd.f32 %v11390, %v11454
    %v11467 = vadd.f32 %v11405, %v11455
    %v11468 = vadd.f32 %v11420, %v11456
    %vm11469 = vcmp.ge.f32.partialorder %v11441, %v11463
    %vm11470 = vcmp.ge.f32.partialorder %v11442, %v11464
    %vm11471 = vcmp.ge.f32.partialorder %v11443, %v11465
    %vm11472 = vcmp.ge.f32.partialorder %v11444, %v11466
    %vm11473 = vcmp.ge.f32.partialorder %v11445, %v11467
    %vm11474 = vcmp.ge.f32.partialorder %v11446, %v11468
    %v11475 = vsel %vm11469, 1, 0
    %v11476 = vsel %vm11470, 1, 0
    %v11477 = vsel %vm11471, 1, 0
    %v11478 = vsel %vm11472, 1, 0
    %v11479 = vsel %vm11473, 1, 0
    %v11480 = vsel %vm11474, 1, 0
    %v11481 = vcvt.s32.f32 %v11475
    %v11482 = vcvt.s32.f32 %v11476
    %v11483 = vcvt.s32.f32 %v11477
    %v11484 = vcvt.s32.f32 %v11478
    %v11485 = vcvt.s32.f32 %v11479
    %v11486 = vcvt.s32.f32 %v11480
    %v11493 = vrot.slane %v11482, 6
    %v11494 = vrot.slane %v11483, 4
    %v11495 = vrot.slane %v11484, 2
    %v11496 = vrot.slane %v11486, 6
    %vm11497 = vcmask 1041408
    %v11498 = vsel %vm11497, %v11481, %v11493
    %vm11499 = vcmask 1045508
    %v11500 = vsel %vm11499, %v11494, %v11495
    %vm11501 = vcmask 1043456
    %v11502 = vsel %vm11501, %v11498, %v11500
    %v11503 = vsel %vm11497, %v11485, %v11496
    %v11506 = vmul.f32 %v1956, %v11502
    %v11507 = vmul.f32 %v1957, %v11503
    %v11508 = vsub.f32 1.0, %v11481
    %v11509 = vsub.f32 1.0, %v11482
    %v11510 = vsub.f32 1.0, %v11483
    %v11511 = vsub.f32 1.0, %v11484
    %v11512 = vsub.f32 1.0, %v11485
    %v11513 = vsub.f32 1.0, %v11486
    %v11514 = vmul.f32 %v2272, %v11508
    %v11515 = vmul.f32 %v2285, %v11509
    %v11516 = vmul.f32 %v2298, %v11510
    %v11517 = vmul.f32 %v2311, %v11511
    %v11518 = vmul.f32 %v2324, %v11512
    %v11519 = vmul.f32 %v2337, %v11513
    %v11526 = vrot.slane %v11515, 6
    %v11527 = vrot.slane %v11516, 4
    %v11528 = vrot.slane %v11517, 2
    %v11529 = vrot.slane %v11519, 6
    %v11530 = vsel %vm11497, %v11514, %v11526
    %v11531 = vsel %vm11499, %v11527, %v11528
    %v11532 = vsel %vm11501, %v11530, %v11531
    %v11533 = vsel %vm11497, %v11518, %v11529
    %v11536 = vadd.f32 %v11506, %v11532
    %v11537 = vadd.f32 %v11507, %v11533
    %11540 = vst [vmem:[#allocation1] ss:$4 sm:$0xff] %v11536
    %s11541 = scalar_lea.vmem [#allocation1], 32
    %11542 = vst [vmem:[%s11541] ss:$4 sm:$0xff] %v11537
    %v11543 = vld.sshfl [vmem:[#allocation1] sm:$0xff pattern:$0x73625140]
    %v11544 = vld.sshfl [vmem:[#allocation1 + $0x8] sm:$0xff pattern:$0x73625140]
    %v11545 = vld.sshfl [vmem:[#allocation1 + $0x10] sm:$0xff pattern:$0x73625140]
    %v11546 = vld.sshfl [vmem:[#allocation1 + $0x18] sm:$0xff pattern:$0x73625140]
    %v11547 = vld.sshfl [vmem:[#allocation1 + $0x20] sm:$0xff pattern:$0x73625140]
    %v11548 = vld.sshfl [vmem:[#allocation1 + $0x28] sm:$0xff pattern:$0x73625140]
    %v11555 = vpack.c.bf16 %v11543, %v11543
    %v11556 = vpack.c.bf16 %v11544, %v11544
    %v11557 = vpack.c.bf16 %v11545, %v11545
    %v11558 = vpack.c.bf16 %v11546, %v11546
    %v11559 = vpack.c.bf16 %v11547, %v11547
    %v11560 = vpack.c.bf16 %v11548, %v11548
    %v11561 = vld [vmem:[#allocation22] sm:$0xff]
    %v11562 = vld [vmem:[#allocation22 + $0x8] sm:$0xff]
    %v11563 = vld [vmem:[#allocation22 + $0x10] sm:$0xff]
    %v11564 = vld [vmem:[#allocation22 + $0x18] sm:$0xff]
    %v11565 = vld [vmem:[#allocation22 + $0x20] sm:$0xff]
    %v11566 = vld [vmem:[#allocation22 + $0x28] sm:$0xff]
    %v11567 = vld [vmem:[#allocation22 + $0x30] sm:$0xff]
    %v11568 = vld [vmem:[#allocation22 + $0x38] sm:$0xff]
    %v11569 = vld [vmem:[#allocation22 + $0x40] sm:$0xff]
    %v11570 = vld [vmem:[#allocation22 + $0x48] sm:$0xff]
    %v11571 = vld [vmem:[#allocation22 + $0x50] sm:$0xff]
    %v11572 = vld [vmem:[#allocation22 + $0x58] sm:$0xff]
    %v11573 = vld [vmem:[#allocation22 + $0x60] sm:$0xff]
    %v11574 = vld [vmem:[#allocation22 + $0x68] sm:$0xff]
    %v11575 = vld [vmem:[#allocation22 + $0x70] sm:$0xff]
    %v11576 = vld [vmem:[#allocation22 + $0x78] sm:$0xff]
    %v11577 = vld [vmem:[#allocation22 + $0x80] sm:$0xff]
    %v11578 = vld [vmem:[#allocation22 + $0x88] sm:$0xff]
    %v11579 = vld [vmem:[#allocation22 + $0x90] sm:$0xff]
    %v11580 = vld [vmem:[#allocation22 + $0x98] sm:$0xff]
    %v11581 = vld [vmem:[#allocation22 + $0xa0] sm:$0xff]
    %v11582 = vld [vmem:[#allocation22 + $0xa8] sm:$0xff]
    %v11583 = vld [vmem:[#allocation22 + $0xb0] sm:$0xff]
    %v11584 = vld [vmem:[#allocation22 + $0xb8] sm:$0xff]
    %v11585 = vld [vmem:[#allocation22 + $0xc0] sm:$0xff]
    %v11586 = vld [vmem:[#allocation22 + $0xc8] sm:$0xff]
    %v11587 = vld [vmem:[#allocation22 + $0xd0] sm:$0xff]
    %v11588 = vld [vmem:[#allocation22 + $0xd8] sm:$0xff]
    %v11589 = vld [vmem:[#allocation22 + $0xe0] sm:$0xff]
    %v11590 = vld [vmem:[#allocation22 + $0xe8] sm:$0xff]
    %v11591 = vld [vmem:[#allocation22 + $0xf0] sm:$0xff]
    %v11592 = vld [vmem:[#allocation22 + $0xf8] sm:$0xff]
    %v11593 = vld [vmem:[#allocation22 + $0x100] sm:$0xff]
    %v11594 = vld [vmem:[#allocation22 + $0x108] sm:$0xff]
    %v11595 = vld [vmem:[#allocation22 + $0x110] sm:$0xff]
    %v11596 = vld [vmem:[#allocation22 + $0x118] sm:$0xff]
    %v11597 = vld [vmem:[#allocation22 + $0x120] sm:$0xff]
    %v11598 = vld [vmem:[#allocation22 + $0x128] sm:$0xff]
    %v11599 = vld [vmem:[#allocation22 + $0x130] sm:$0xff]
    %v11600 = vld [vmem:[#allocation22 + $0x138] sm:$0xff]
    %v11601 = vld [vmem:[#allocation22 + $0x140] sm:$0xff]
    %v11602 = vld [vmem:[#allocation22 + $0x148] sm:$0xff]
    %v11603 = vld [vmem:[#allocation22 + $0x150] sm:$0xff]
    %v11604 = vld [vmem:[#allocation22 + $0x158] sm:$0xff]
    %v11605 = vld [vmem:[#allocation22 + $0x160] sm:$0xff]
    %v11606 = vld [vmem:[#allocation22 + $0x168] sm:$0xff]
    %v11607 = vld [vmem:[#allocation22 + $0x170] sm:$0xff]
    %v11608 = vld [vmem:[#allocation22 + $0x178] sm:$0xff]
    %v11609 = vld [vmem:[#allocation22 + $0x180] sm:$0xff]
    %v11610 = vld [vmem:[#allocation22 + $0x188] sm:$0xff]
    %v11611 = vld [vmem:[#allocation22 + $0x190] sm:$0xff]
    %v11612 = vld [vmem:[#allocation22 + $0x198] sm:$0xff]
    %v11613 = vld [vmem:[#allocation22 + $0x1a0] sm:$0xff]
    %v11614 = vld [vmem:[#allocation22 + $0x1a8] sm:$0xff]
    %v11615 = vld [vmem:[#allocation22 + $0x1b0] sm:$0xff]
    %v11616 = vld [vmem:[#allocation22 + $0x1b8] sm:$0xff]
    %v11617 = vld [vmem:[#allocation22 + $0x1c0] sm:$0xff]
    %v11618 = vld [vmem:[#allocation22 + $0x1c8] sm:$0xff]
    %v11619 = vld [vmem:[#allocation22 + $0x1d0] sm:$0xff]
    %v11620 = vld [vmem:[#allocation22 + $0x1d8] sm:$0xff]
    %v11621 = vld [vmem:[#allocation22 + $0x1e0] sm:$0xff]
    %v11622 = vld [vmem:[#allocation22 + $0x1e8] sm:$0xff]
    %v11623 = vld [vmem:[#allocation22 + $0x1f0] sm:$0xff]
    %v11624 = vld [vmem:[#allocation22 + $0x1f8] sm:$0xff]
    %v11625 = vld [vmem:[#allocation22 + $0x200] sm:$0xff]
    %v11626 = vld [vmem:[#allocation22 + $0x208] sm:$0xff]
    %v11627 = vld [vmem:[#allocation22 + $0x210] sm:$0xff]
    %v11628 = vld [vmem:[#allocation22 + $0x218] sm:$0xff]
    %v11629 = vld [vmem:[#allocation22 + $0x220] sm:$0xff]
    %v11630 = vld [vmem:[#allocation22 + $0x228] sm:$0xff]
    %v11631 = vld [vmem:[#allocation22 + $0x230] sm:$0xff]
    %v11632 = vld [vmem:[#allocation22 + $0x238] sm:$0xff]
    %v11633 = vld [vmem:[#allocation22 + $0x240] sm:$0xff]
    %v11634 = vld [vmem:[#allocation22 + $0x248] sm:$0xff]
    %v11635 = vld [vmem:[#allocation22 + $0x250] sm:$0xff]
    %v11636 = vld [vmem:[#allocation22 + $0x258] sm:$0xff]
    %v11637 = vld [vmem:[#allocation22 + $0x260] sm:$0xff]
    %v11638 = vld [vmem:[#allocation22 + $0x268] sm:$0xff]
    %v11639 = vld [vmem:[#allocation22 + $0x270] sm:$0xff]
    %v11640 = vld [vmem:[#allocation22 + $0x278] sm:$0xff]
    %v11641 = vld [vmem:[#allocation22 + $0x280] sm:$0xff]
    %v11642 = vld [vmem:[#allocation22 + $0x288] sm:$0xff]
    %v11643 = vld [vmem:[#allocation22 + $0x290] sm:$0xff]
    %v11644 = vld [vmem:[#allocation22 + $0x298] sm:$0xff]
    %v11645 = vld [vmem:[#allocation22 + $0x2a0] sm:$0xff]
    %v11646 = vld [vmem:[#allocation22 + $0x2a8] sm:$0xff]
    %v11647 = vld [vmem:[#allocation22 + $0x2b0] sm:$0xff]
    %v11648 = vld [vmem:[#allocation22 + $0x2b8] sm:$0xff]
    %v11649 = vld [vmem:[#allocation22 + $0x2c0] sm:$0xff]
    %v11650 = vld [vmem:[#allocation22 + $0x2c8] sm:$0xff]
    %v11651 = vld [vmem:[#allocation22 + $0x2d0] sm:$0xff]
    %v11652 = vld [vmem:[#allocation22 + $0x2d8] sm:$0xff]
    %v11653 = vld [vmem:[#allocation22 + $0x2e0] sm:$0xff]
    %v11654 = vld [vmem:[#allocation22 + $0x2e8] sm:$0xff]
    %v11655 = vld [vmem:[#allocation22 + $0x2f0] sm:$0xff]
    %v11656 = vld [vmem:[#allocation22 + $0x2f8] sm:$0xff]
    %v11657 = vld [vmem:[#allocation22 + $0x300] sm:$0xff]
    %v11658 = vld [vmem:[#allocation22 + $0x308] sm:$0xff]
    %v11659 = vld [vmem:[#allocation22 + $0x310] sm:$0xff]
    %v11660 = vld [vmem:[#allocation22 + $0x318] sm:$0xff]
    %v11661 = vld [vmem:[#allocation22 + $0x320] sm:$0xff]
    %v11662 = vld [vmem:[#allocation22 + $0x328] sm:$0xff]
    %v11663 = vld [vmem:[#allocation22 + $0x330] sm:$0xff]
    %v11664 = vld [vmem:[#allocation22 + $0x338] sm:$0xff]
    %v11665 = vld [vmem:[#allocation22 + $0x340] sm:$0xff]
    %v11666 = vld [vmem:[#allocation22 + $0x348] sm:$0xff]
    %v11667 = vld [vmem:[#allocation22 + $0x350] sm:$0xff]
    %v11668 = vld [vmem:[#allocation22 + $0x358] sm:$0xff]
    %v11669 = vld [vmem:[#allocation22 + $0x360] sm:$0xff]
    %v11670 = vld [vmem:[#allocation22 + $0x368] sm:$0xff]
    %v11671 = vld [vmem:[#allocation22 + $0x370] sm:$0xff]
    %v11672 = vld [vmem:[#allocation22 + $0x378] sm:$0xff]
    %v11673 = vld [vmem:[#allocation22 + $0x380] sm:$0xff]
    %v11674 = vld [vmem:[#allocation22 + $0x388] sm:$0xff]
    %v11675 = vld [vmem:[#allocation22 + $0x390] sm:$0xff]
    %v11676 = vld [vmem:[#allocation22 + $0x398] sm:$0xff]
    %v11677 = vld [vmem:[#allocation22 + $0x3a0] sm:$0xff]
    %v11678 = vld [vmem:[#allocation22 + $0x3a8] sm:$0xff]
    %v11679 = vld [vmem:[#allocation22 + $0x3b0] sm:$0xff]
    %v11680 = vld [vmem:[#allocation22 + $0x3b8] sm:$0xff]
    %v11681 = vld [vmem:[#allocation22 + $0x3c0] sm:$0xff]
    %v11682 = vld [vmem:[#allocation22 + $0x3c8] sm:$0xff]
    %v11683 = vld [vmem:[#allocation22 + $0x3d0] sm:$0xff]
    %v11684 = vld [vmem:[#allocation22 + $0x3d8] sm:$0xff]
    %v11685 = vld [vmem:[#allocation22 + $0x3e0] sm:$0xff]
    %v11686 = vld [vmem:[#allocation22 + $0x3e8] sm:$0xff]
    %v11687 = vld [vmem:[#allocation22 + $0x3f0] sm:$0xff]
    %v11688 = vld [vmem:[#allocation22 + $0x3f8] sm:$0xff]
    %v11689 = vld [vmem:[#allocation22 + $0x400] sm:$0xff]
    %v11690 = vld [vmem:[#allocation22 + $0x408] sm:$0xff]
    %v11691 = vld [vmem:[#allocation22 + $0x410] sm:$0xff]
    %v11692 = vld [vmem:[#allocation22 + $0x418] sm:$0xff]
    %v11693 = vld [vmem:[#allocation22 + $0x420] sm:$0xff]
    %v11694 = vld [vmem:[#allocation22 + $0x428] sm:$0xff]
    %v11695 = vld [vmem:[#allocation22 + $0x430] sm:$0xff]
    %v11696 = vld [vmem:[#allocation22 + $0x438] sm:$0xff]
    %v11697 = vld [vmem:[#allocation22 + $0x440] sm:$0xff]
    %v11698 = vld [vmem:[#allocation22 + $0x448] sm:$0xff]
    %v11699 = vld [vmem:[#allocation22 + $0x450] sm:$0xff]
    %v11700 = vld [vmem:[#allocation22 + $0x458] sm:$0xff]
    %v11701 = vld [vmem:[#allocation22 + $0x460] sm:$0xff]
    %v11702 = vld [vmem:[#allocation22 + $0x468] sm:$0xff]
    %v11703 = vld [vmem:[#allocation22 + $0x470] sm:$0xff]
    %v11704 = vld [vmem:[#allocation22 + $0x478] sm:$0xff]
    %v11705 = vld [vmem:[#allocation22 + $0x480] sm:$0xff]
    %v11706 = vld [vmem:[#allocation22 + $0x488] sm:$0xff]
    %v11707 = vld [vmem:[#allocation22 + $0x490] sm:$0xff]
    %v11708 = vld [vmem:[#allocation22 + $0x498] sm:$0xff]
    %v11709 = vld [vmem:[#allocation22 + $0x4a0] sm:$0xff]
    %v11710 = vld [vmem:[#allocation22 + $0x4a8] sm:$0xff]
    %v11711 = vld [vmem:[#allocation22 + $0x4b0] sm:$0xff]
    %v11712 = vld [vmem:[#allocation22 + $0x4b8] sm:$0xff]
    %v11713 = vld [vmem:[#allocation22 + $0x4c0] sm:$0xff]
    %v11714 = vld [vmem:[#allocation22 + $0x4c8] sm:$0xff]
    %v11715 = vld [vmem:[#allocation22 + $0x4d0] sm:$0xff]
    %v11716 = vld [vmem:[#allocation22 + $0x4d8] sm:$0xff]
    %v11717 = vld [vmem:[#allocation22 + $0x4e0] sm:$0xff]
    %v11718 = vld [vmem:[#allocation22 + $0x4e8] sm:$0xff]
    %v11719 = vld [vmem:[#allocation22 + $0x4f0] sm:$0xff]
    %v11720 = vld [vmem:[#allocation22 + $0x4f8] sm:$0xff]
    %v11721 = vld [vmem:[#allocation22 + $0x500] sm:$0xff]
    %v11722 = vld [vmem:[#allocation22 + $0x508] sm:$0xff]
    %v11723 = vld [vmem:[#allocation22 + $0x510] sm:$0xff]
    %v11724 = vld [vmem:[#allocation22 + $0x518] sm:$0xff]
    %v11725 = vld [vmem:[#allocation22 + $0x520] sm:$0xff]
    %v11726 = vld [vmem:[#allocation22 + $0x528] sm:$0xff]
    %v11727 = vld [vmem:[#allocation22 + $0x530] sm:$0xff]
    %v11728 = vld [vmem:[#allocation22 + $0x538] sm:$0xff]
    %v11729 = vld [vmem:[#allocation22 + $0x540] sm:$0xff]
    %v11730 = vld [vmem:[#allocation22 + $0x548] sm:$0xff]
    %v11731 = vld [vmem:[#allocation22 + $0x550] sm:$0xff]
    %v11732 = vld [vmem:[#allocation22 + $0x558] sm:$0xff]
    %v11733 = vld [vmem:[#allocation22 + $0x560] sm:$0xff]
    %v11734 = vld [vmem:[#allocation22 + $0x568] sm:$0xff]
    %v11735 = vld [vmem:[#allocation22 + $0x570] sm:$0xff]
    %v11736 = vld [vmem:[#allocation22 + $0x578] sm:$0xff]
    %v11737 = vld [vmem:[#allocation22 + $0x580] sm:$0xff]
    %v11738 = vld [vmem:[#allocation22 + $0x588] sm:$0xff]
    %v11739 = vld [vmem:[#allocation22 + $0x590] sm:$0xff]
    %v11740 = vld [vmem:[#allocation22 + $0x598] sm:$0xff]
    %v11741 = vld [vmem:[#allocation22 + $0x5a0] sm:$0xff]
    %v11742 = vld [vmem:[#allocation22 + $0x5a8] sm:$0xff]
    %v11743 = vld [vmem:[#allocation22 + $0x5b0] sm:$0xff]
    %v11744 = vld [vmem:[#allocation22 + $0x5b8] sm:$0xff]
    %v11745 = vld [vmem:[#allocation22 + $0x5c0] sm:$0xff]
    %v11746 = vld [vmem:[#allocation22 + $0x5c8] sm:$0xff]
    %v11747 = vld [vmem:[#allocation22 + $0x5d0] sm:$0xff]
    %v11748 = vld [vmem:[#allocation22 + $0x5d8] sm:$0xff]
    %v11749 = vld [vmem:[#allocation22 + $0x5e0] sm:$0xff]
    %v11750 = vld [vmem:[#allocation22 + $0x5e8] sm:$0xff]
    %v11751 = vld [vmem:[#allocation22 + $0x5f0] sm:$0xff]
    %v11752 = vld [vmem:[#allocation22 + $0x5f8] sm:$0xff]
    %v11753 = vld [vmem:[#allocation22 + $0x600] sm:$0xff]
    %v11754 = vld [vmem:[#allocation22 + $0x608] sm:$0xff]
    %v11755 = vld [vmem:[#allocation22 + $0x610] sm:$0xff]
    %v11756 = vld [vmem:[#allocation22 + $0x618] sm:$0xff]
    %v11757 = vld [vmem:[#allocation22 + $0x620] sm:$0xff]
    %v11758 = vld [vmem:[#allocation22 + $0x628] sm:$0xff]
    %v11759 = vld [vmem:[#allocation22 + $0x630] sm:$0xff]
    %v11760 = vld [vmem:[#allocation22 + $0x638] sm:$0xff]
    %v11761 = vld [vmem:[#allocation22 + $0x640] sm:$0xff]
    %v11762 = vld [vmem:[#allocation22 + $0x648] sm:$0xff]
    %v11763 = vld [vmem:[#allocation22 + $0x650] sm:$0xff]
    %v11764 = vld [vmem:[#allocation22 + $0x658] sm:$0xff]
    %v11765 = vld [vmem:[#allocation22 + $0x660] sm:$0xff]
    %v11766 = vld [vmem:[#allocation22 + $0x668] sm:$0xff]
    %v11767 = vld [vmem:[#allocation22 + $0x670] sm:$0xff]
    %v11768 = vld [vmem:[#allocation22 + $0x678] sm:$0xff]
    %v11769 = vld [vmem:[#allocation22 + $0x680] sm:$0xff]
    %v11770 = vld [vmem:[#allocation22 + $0x688] sm:$0xff]
    %v11771 = vld [vmem:[#allocation22 + $0x690] sm:$0xff]
    %v11772 = vld [vmem:[#allocation22 + $0x698] sm:$0xff]
    %v11773 = vld [vmem:[#allocation22 + $0x6a0] sm:$0xff]
    %v11774 = vld [vmem:[#allocation22 + $0x6a8] sm:$0xff]
    %v11775 = vld [vmem:[#allocation22 + $0x6b0] sm:$0xff]
    %v11776 = vld [vmem:[#allocation22 + $0x6b8] sm:$0xff]
    %v11777 = vld [vmem:[#allocation22 + $0x6c0] sm:$0xff]
    %v11778 = vld [vmem:[#allocation22 + $0x6c8] sm:$0xff]
    %v11779 = vld [vmem:[#allocation22 + $0x6d0] sm:$0xff]
    %v11780 = vld [vmem:[#allocation22 + $0x6d8] sm:$0xff]
    %v11781 = vld [vmem:[#allocation22 + $0x6e0] sm:$0xff]
    %v11782 = vld [vmem:[#allocation22 + $0x6e8] sm:$0xff]
    %v11783 = vld [vmem:[#allocation22 + $0x6f0] sm:$0xff]
    %v11784 = vld [vmem:[#allocation22 + $0x6f8] sm:$0xff]
    %v11785 = vld [vmem:[#allocation22 + $0x700] sm:$0xff]
    %v11786 = vld [vmem:[#allocation22 + $0x708] sm:$0xff]
    %v11787 = vld [vmem:[#allocation22 + $0x710] sm:$0xff]
    %v11788 = vld [vmem:[#allocation22 + $0x718] sm:$0xff]
    %v11789 = vld [vmem:[#allocation22 + $0x720] sm:$0xff]
    %v11790 = vld [vmem:[#allocation22 + $0x728] sm:$0xff]
    %v11791 = vld [vmem:[#allocation22 + $0x730] sm:$0xff]
    %v11792 = vld [vmem:[#allocation22 + $0x738] sm:$0xff]
    %v11793 = vld [vmem:[#allocation22 + $0x740] sm:$0xff]
    %v11794 = vld [vmem:[#allocation22 + $0x748] sm:$0xff]
    %v11795 = vld [vmem:[#allocation22 + $0x750] sm:$0xff]
    %v11796 = vld [vmem:[#allocation22 + $0x758] sm:$0xff]
    %v11797 = vld [vmem:[#allocation22 + $0x760] sm:$0xff]
    %v11798 = vld [vmem:[#allocation22 + $0x768] sm:$0xff]
    %v11799 = vld [vmem:[#allocation22 + $0x770] sm:$0xff]
    %v11800 = vld [vmem:[#allocation22 + $0x778] sm:$0xff]
    %v11801 = vld [vmem:[#allocation22 + $0x780] sm:$0xff]
    %v11802 = vld [vmem:[#allocation22 + $0x788] sm:$0xff]
    %v11803 = vld [vmem:[#allocation22 + $0x790] sm:$0xff]
    %v11804 = vld [vmem:[#allocation22 + $0x798] sm:$0xff]
    %v11805 = vld [vmem:[#allocation22 + $0x7a0] sm:$0xff]
    %v11806 = vld [vmem:[#allocation22 + $0x7a8] sm:$0xff]
    %v11807 = vld [vmem:[#allocation22 + $0x7b0] sm:$0xff]
    %v11808 = vld [vmem:[#allocation22 + $0x7b8] sm:$0xff]
    %v11809 = vld [vmem:[#allocation22 + $0x7c0] sm:$0xff]
    %v11810 = vld [vmem:[#allocation22 + $0x7c8] sm:$0xff]
    %v11811 = vld [vmem:[#allocation22 + $0x7d0] sm:$0xff]
    %v11812 = vld [vmem:[#allocation22 + $0x7d8] sm:$0xff]
    %v11813 = vld [vmem:[#allocation22 + $0x7e0] sm:$0xff]
    %v11814 = vld [vmem:[#allocation22 + $0x7e8] sm:$0xff]
    %v11815 = vld [vmem:[#allocation22 + $0x7f0] sm:$0xff]
    %v11816 = vld [vmem:[#allocation22 + $0x7f8] sm:$0xff]
    %v11817 = vld [vmem:[#allocation22 + $0x800] sm:$0xff]
    %v11818 = vld [vmem:[#allocation22 + $0x808] sm:$0xff]
    %v11819 = vld [vmem:[#allocation22 + $0x810] sm:$0xff]
    %v11820 = vld [vmem:[#allocation22 + $0x818] sm:$0xff]
    %v11821 = vld [vmem:[#allocation22 + $0x820] sm:$0xff]
    %v11822 = vld [vmem:[#allocation22 + $0x828] sm:$0xff]
    %v11823 = vld [vmem:[#allocation22 + $0x830] sm:$0xff]
    %v11824 = vld [vmem:[#allocation22 + $0x838] sm:$0xff]
    %v11825 = vld [vmem:[#allocation22 + $0x840] sm:$0xff]
    %v11826 = vld [vmem:[#allocation22 + $0x848] sm:$0xff]
    %v11827 = vld [vmem:[#allocation22 + $0x850] sm:$0xff]
    %v11828 = vld [vmem:[#allocation22 + $0x858] sm:$0xff]
    %v11829 = vld [vmem:[#allocation22 + $0x860] sm:$0xff]
    %v11830 = vld [vmem:[#allocation22 + $0x868] sm:$0xff]
    %v11831 = vld [vmem:[#allocation22 + $0x870] sm:$0xff]
    %v11832 = vld [vmem:[#allocation22 + $0x878] sm:$0xff]
    %v11833 = vld [vmem:[#allocation22 + $0x880] sm:$0xff]
    %v11834 = vld [vmem:[#allocation22 + $0x888] sm:$0xff]
    %v11835 = vld [vmem:[#allocation22 + $0x890] sm:$0xff]
    %v11836 = vld [vmem:[#allocation22 + $0x898] sm:$0xff]
    %v11837 = vld [vmem:[#allocation22 + $0x8a0] sm:$0xff]
    %v11838 = vld [vmem:[#allocation22 + $0x8a8] sm:$0xff]
    %v11839 = vld [vmem:[#allocation22 + $0x8b0] sm:$0xff]
    %v11840 = vld [vmem:[#allocation22 + $0x8b8] sm:$0xff]
    %v11841 = vld [vmem:[#allocation22 + $0x8c0] sm:$0xff]
    %v11842 = vld [vmem:[#allocation22 + $0x8c8] sm:$0xff]
    %v11843 = vld [vmem:[#allocation22 + $0x8d0] sm:$0xff]
    %v11844 = vld [vmem:[#allocation22 + $0x8d8] sm:$0xff]
    %v11845 = vld [vmem:[#allocation22 + $0x8e0] sm:$0xff]
    %v11846 = vld [vmem:[#allocation22 + $0x8e8] sm:$0xff]
    %v11847 = vld [vmem:[#allocation22 + $0x8f0] sm:$0xff]
    %v11848 = vld [vmem:[#allocation22 + $0x8f8] sm:$0xff]
    %v11849 = vld [vmem:[#allocation23] sm:$0x3f]
    %v11851 = vperm.slane %v11849, 0
    %v11852 = vperm.slane %v11849, 1
    %v11853 = vperm.slane %v11849, 2
    %v11854 = vperm.slane %v11849, 3
    %v11855 = vperm.slane %v11849, 4
    %v11856 = vperm.slane %v11849, 5
    %v12151 = vunpack.c.l.b16 %v11561
    %v12152 = vunpack.c.h.b16 %v11561
    %v12153 = vunpack.c.l.b16 %v11562
    %v12154 = vunpack.c.h.b16 %v11562
    %v12155 = vunpack.c.l.b16 %v11563
    %v12156 = vunpack.c.h.b16 %v11563
    %v12157 = vunpack.c.l.b16 %v11564
    %v12158 = vunpack.c.h.b16 %v11564
    %v12159 = vunpack.c.l.b16 %v11565
    %v12160 = vunpack.c.h.b16 %v11565
    %v12161 = vunpack.c.l.b16 %v11566
    %v12162 = vunpack.c.h.b16 %v11566
    %v12163 = vunpack.c.l.b16 %v11567
    %v12164 = vunpack.c.h.b16 %v11567
    %v12165 = vunpack.c.l.b16 %v11568
    %v12166 = vunpack.c.h.b16 %v11568
    %v12167 = vunpack.c.l.b16 %v11569
    %v12168 = vunpack.c.h.b16 %v11569
    %v12169 = vunpack.c.l.b16 %v11570
    %v12170 = vunpack.c.h.b16 %v11570
    %v12171 = vunpack.c.l.b16 %v11571
    %v12172 = vunpack.c.h.b16 %v11571
    %v12173 = vunpack.c.l.b16 %v11572
    %v12174 = vunpack.c.h.b16 %v11572
    %v12175 = vunpack.c.l.b16 %v11573
    %v12176 = vunpack.c.h.b16 %v11573
    %v12177 = vunpack.c.l.b16 %v11574
    %v12178 = vunpack.c.h.b16 %v11574
    %v12179 = vunpack.c.l.b16 %v11575
    %v12180 = vunpack.c.h.b16 %v11575
    %v12181 = vunpack.c.l.b16 %v11576
    %v12182 = vunpack.c.h.b16 %v11576
    %v12183 = vunpack.c.l.b16 %v11577
    %v12184 = vunpack.c.h.b16 %v11577
    %v12185 = vunpack.c.l.b16 %v11578
    %v12186 = vunpack.c.h.b16 %v11578
    %v12187 = vunpack.c.l.b16 %v11579
    %v12188 = vunpack.c.h.b16 %v11579
    %v12189 = vunpack.c.l.b16 %v11580
    %v12190 = vunpack.c.h.b16 %v11580
    %v12191 = vunpack.c.l.b16 %v11581
    %v12192 = vunpack.c.h.b16 %v11581
    %v12193 = vunpack.c.l.b16 %v11582
    %v12194 = vunpack.c.h.b16 %v11582
    %v12195 = vunpack.c.l.b16 %v11583
    %v12196 = vunpack.c.h.b16 %v11583
    %v12197 = vunpack.c.l.b16 %v11584
    %v12198 = vunpack.c.h.b16 %v11584
    %v12199 = vunpack.c.l.b16 %v11585
    %v12200 = vunpack.c.h.b16 %v11585
    %v12201 = vunpack.c.l.b16 %v11586
    %v12202 = vunpack.c.h.b16 %v11586
    %v12203 = vunpack.c.l.b16 %v11587
    %v12204 = vunpack.c.h.b16 %v11587
    %v12205 = vunpack.c.l.b16 %v11588
    %v12206 = vunpack.c.h.b16 %v11588
    %v12207 = vunpack.c.l.b16 %v11589
    %v12208 = vunpack.c.h.b16 %v11589
    %v12209 = vunpack.c.l.b16 %v11590
    %v12210 = vunpack.c.h.b16 %v11590
    %v12211 = vunpack.c.l.b16 %v11591
    %v12212 = vunpack.c.h.b16 %v11591
    %v12213 = vunpack.c.l.b16 %v11592
    %v12214 = vunpack.c.h.b16 %v11592
    %v12215 = vunpack.c.l.b16 %v11593
    %v12216 = vunpack.c.h.b16 %v11593
    %v12217 = vunpack.c.l.b16 %v11594
    %v12218 = vunpack.c.h.b16 %v11594
    %v12219 = vunpack.c.l.b16 %v11595
    %v12220 = vunpack.c.h.b16 %v11595
    %v12221 = vunpack.c.l.b16 %v11596
    %v12222 = vunpack.c.h.b16 %v11596
    %v12223 = vunpack.c.l.b16 %v11597
    %v12224 = vunpack.c.h.b16 %v11597
    %v12225 = vunpack.c.l.b16 %v11598
    %v12226 = vunpack.c.h.b16 %v11598
    %v12227 = vunpack.c.l.b16 %v11599
    %v12228 = vunpack.c.h.b16 %v11599
    %v12229 = vunpack.c.l.b16 %v11600
    %v12230 = vunpack.c.h.b16 %v11600
    %v12231 = vunpack.c.l.b16 %v11601
    %v12232 = vunpack.c.h.b16 %v11601
    %v12233 = vunpack.c.l.b16 %v11602
    %v12234 = vunpack.c.h.b16 %v11602
    %v12235 = vunpack.c.l.b16 %v11603
    %v12236 = vunpack.c.h.b16 %v11603
    %v12237 = vunpack.c.l.b16 %v11604
    %v12238 = vunpack.c.h.b16 %v11604
    %v12239 = vunpack.c.l.b16 %v11605
    %v12240 = vunpack.c.h.b16 %v11605
    %v12241 = vunpack.c.l.b16 %v11606
    %v12242 = vunpack.c.h.b16 %v11606
    %v12243 = vunpack.c.l.b16 %v11607
    %v12244 = vunpack.c.h.b16 %v11607
    %v12245 = vunpack.c.l.b16 %v11608
    %v12246 = vunpack.c.h.b16 %v11608
    %v12247 = vunpack.c.l.b16 %v11609
    %v12248 = vunpack.c.h.b16 %v11609
    %v12249 = vunpack.c.l.b16 %v11610
    %v12250 = vunpack.c.h.b16 %v11610
    %v12251 = vunpack.c.l.b16 %v11611
    %v12252 = vunpack.c.h.b16 %v11611
    %v12253 = vunpack.c.l.b16 %v11612
    %v12254 = vunpack.c.h.b16 %v11612
    %v12255 = vunpack.c.l.b16 %v11613
    %v12256 = vunpack.c.h.b16 %v11613
    %v12257 = vunpack.c.l.b16 %v11614
    %v12258 = vunpack.c.h.b16 %v11614
    %v12259 = vunpack.c.l.b16 %v11615
    %v12260 = vunpack.c.h.b16 %v11615
    %v12261 = vunpack.c.l.b16 %v11616
    %v12262 = vunpack.c.h.b16 %v11616
    %v12263 = vunpack.c.l.b16 %v11617
    %v12264 = vunpack.c.h.b16 %v11617
    %v12265 = vunpack.c.l.b16 %v11618
    %v12266 = vunpack.c.h.b16 %v11618
    %v12267 = vunpack.c.l.b16 %v11619
    %v12268 = vunpack.c.h.b16 %v11619
    %v12269 = vunpack.c.l.b16 %v11620
    %v12270 = vunpack.c.h.b16 %v11620
    %v12271 = vunpack.c.l.b16 %v11621
    %v12272 = vunpack.c.h.b16 %v11621
    %v12273 = vunpack.c.l.b16 %v11622
    %v12274 = vunpack.c.h.b16 %v11622
    %v12275 = vunpack.c.l.b16 %v11623
    %v12276 = vunpack.c.h.b16 %v11623
    %v12277 = vunpack.c.l.b16 %v11624
    %v12278 = vunpack.c.h.b16 %v11624
    %v12279 = vunpack.c.l.b16 %v11625
    %v12280 = vunpack.c.h.b16 %v11625
    %v12281 = vunpack.c.l.b16 %v11626
    %v12282 = vunpack.c.h.b16 %v11626
    %v12283 = vunpack.c.l.b16 %v11627
    %v12284 = vunpack.c.h.b16 %v11627
    %v12285 = vunpack.c.l.b16 %v11628
    %v12286 = vunpack.c.h.b16 %v11628
    %v12287 = vunpack.c.l.b16 %v11629
    %v12288 = vunpack.c.h.b16 %v11629
    %v12289 = vunpack.c.l.b16 %v11630
    %v12290 = vunpack.c.h.b16 %v11630
    %v12291 = vunpack.c.l.b16 %v11631
    %v12292 = vunpack.c.h.b16 %v11631
    %v12293 = vunpack.c.l.b16 %v11632
    %v12294 = vunpack.c.h.b16 %v11632
    %v12295 = vunpack.c.l.b16 %v11633
    %v12296 = vunpack.c.h.b16 %v11633
    %v12297 = vunpack.c.l.b16 %v11634
    %v12298 = vunpack.c.h.b16 %v11634
    %v12299 = vunpack.c.l.b16 %v11635
    %v12300 = vunpack.c.h.b16 %v11635
    %v12301 = vunpack.c.l.b16 %v11636
    %v12302 = vunpack.c.h.b16 %v11636
    %v12303 = vunpack.c.l.b16 %v11637
    %v12304 = vunpack.c.h.b16 %v11637
    %v12305 = vunpack.c.l.b16 %v11638
    %v12306 = vunpack.c.h.b16 %v11638
    %v12307 = vunpack.c.l.b16 %v11639
    %v12308 = vunpack.c.h.b16 %v11639
    %v12309 = vunpack.c.l.b16 %v11640
    %v12310 = vunpack.c.h.b16 %v11640
    %v12311 = vunpack.c.l.b16 %v11641
    %v12312 = vunpack.c.h.b16 %v11641
    %v12313 = vunpack.c.l.b16 %v11642
    %v12314 = vunpack.c.h.b16 %v11642
    %v12315 = vunpack.c.l.b16 %v11643
    %v12316 = vunpack.c.h.b16 %v11643
    %v12317 = vunpack.c.l.b16 %v11644
    %v12318 = vunpack.c.h.b16 %v11644
    %v12319 = vunpack.c.l.b16 %v11645
    %v12320 = vunpack.c.h.b16 %v11645
    %v12321 = vunpack.c.l.b16 %v11646
    %v12322 = vunpack.c.h.b16 %v11646
    %v12323 = vunpack.c.l.b16 %v11647
    %v12324 = vunpack.c.h.b16 %v11647
    %v12325 = vunpack.c.l.b16 %v11648
    %v12326 = vunpack.c.h.b16 %v11648
    %v12327 = vunpack.c.l.b16 %v11649
    %v12328 = vunpack.c.h.b16 %v11649
    %v12329 = vunpack.c.l.b16 %v11650
    %v12330 = vunpack.c.h.b16 %v11650
    %v12331 = vunpack.c.l.b16 %v11651
    %v12332 = vunpack.c.h.b16 %v11651
    %v12333 = vunpack.c.l.b16 %v11652
    %v12334 = vunpack.c.h.b16 %v11652
    %v12335 = vunpack.c.l.b16 %v11653
    %v12336 = vunpack.c.h.b16 %v11653
    %v12337 = vunpack.c.l.b16 %v11654
    %v12338 = vunpack.c.h.b16 %v11654
    %v12339 = vunpack.c.l.b16 %v11655
    %v12340 = vunpack.c.h.b16 %v11655
    %v12341 = vunpack.c.l.b16 %v11656
    %v12342 = vunpack.c.h.b16 %v11656
    %v12343 = vunpack.c.l.b16 %v11657
    %v12344 = vunpack.c.h.b16 %v11657
    %v12345 = vunpack.c.l.b16 %v11658
    %v12346 = vunpack.c.h.b16 %v11658
    %v12347 = vunpack.c.l.b16 %v11659
    %v12348 = vunpack.c.h.b16 %v11659
    %v12349 = vunpack.c.l.b16 %v11660
    %v12350 = vunpack.c.h.b16 %v11660
    %v12351 = vunpack.c.l.b16 %v11661
    %v12352 = vunpack.c.h.b16 %v11661
    %v12353 = vunpack.c.l.b16 %v11662
    %v12354 = vunpack.c.h.b16 %v11662
    %v12355 = vunpack.c.l.b16 %v11663
    %v12356 = vunpack.c.h.b16 %v11663
    %v12357 = vunpack.c.l.b16 %v11664
    %v12358 = vunpack.c.h.b16 %v11664
    %v12359 = vunpack.c.l.b16 %v11665
    %v12360 = vunpack.c.h.b16 %v11665
    %v12361 = vunpack.c.l.b16 %v11666
    %v12362 = vunpack.c.h.b16 %v11666
    %v12363 = vunpack.c.l.b16 %v11667
    %v12364 = vunpack.c.h.b16 %v11667
    %v12365 = vunpack.c.l.b16 %v11668
    %v12366 = vunpack.c.h.b16 %v11668
    %v12367 = vunpack.c.l.b16 %v11669
    %v12368 = vunpack.c.h.b16 %v11669
    %v12369 = vunpack.c.l.b16 %v11670
    %v12370 = vunpack.c.h.b16 %v11670
    %v12371 = vunpack.c.l.b16 %v11671
    %v12372 = vunpack.c.h.b16 %v11671
    %v12373 = vunpack.c.l.b16 %v11672
    %v12374 = vunpack.c.h.b16 %v11672
    %v12375 = vunpack.c.l.b16 %v11673
    %v12376 = vunpack.c.h.b16 %v11673
    %v12377 = vunpack.c.l.b16 %v11674
    %v12378 = vunpack.c.h.b16 %v11674
    %v12379 = vunpack.c.l.b16 %v11675
    %v12380 = vunpack.c.h.b16 %v11675
    %v12381 = vunpack.c.l.b16 %v11676
    %v12382 = vunpack.c.h.b16 %v11676
    %v12383 = vunpack.c.l.b16 %v11677
    %v12384 = vunpack.c.h.b16 %v11677
    %v12385 = vunpack.c.l.b16 %v11678
    %v12386 = vunpack.c.h.b16 %v11678
    %v12387 = vunpack.c.l.b16 %v11679
    %v12388 = vunpack.c.h.b16 %v11679
    %v12389 = vunpack.c.l.b16 %v11680
    %v12390 = vunpack.c.h.b16 %v11680
    %v12391 = vunpack.c.l.b16 %v11681
    %v12392 = vunpack.c.h.b16 %v11681
    %v12393 = vunpack.c.l.b16 %v11682
    %v12394 = vunpack.c.h.b16 %v11682
    %v12395 = vunpack.c.l.b16 %v11683
    %v12396 = vunpack.c.h.b16 %v11683
    %v12397 = vunpack.c.l.b16 %v11684
    %v12398 = vunpack.c.h.b16 %v11684
    %v12399 = vunpack.c.l.b16 %v11685
    %v12400 = vunpack.c.h.b16 %v11685
    %v12401 = vunpack.c.l.b16 %v11686
    %v12402 = vunpack.c.h.b16 %v11686
    %v12403 = vunpack.c.l.b16 %v11687
    %v12404 = vunpack.c.h.b16 %v11687
    %v12405 = vunpack.c.l.b16 %v11688
    %v12406 = vunpack.c.h.b16 %v11688
    %v12407 = vunpack.c.l.b16 %v11689
    %v12408 = vunpack.c.h.b16 %v11689
    %v12409 = vunpack.c.l.b16 %v11690
    %v12410 = vunpack.c.h.b16 %v11690
    %v12411 = vunpack.c.l.b16 %v11691
    %v12412 = vunpack.c.h.b16 %v11691
    %v12413 = vunpack.c.l.b16 %v11692
    %v12414 = vunpack.c.h.b16 %v11692
    %v12415 = vunpack.c.l.b16 %v11693
    %v12416 = vunpack.c.h.b16 %v11693
    %v12417 = vunpack.c.l.b16 %v11694
    %v12418 = vunpack.c.h.b16 %v11694
    %v12419 = vunpack.c.l.b16 %v11695
    %v12420 = vunpack.c.h.b16 %v11695
    %v12421 = vunpack.c.l.b16 %v11696
    %v12422 = vunpack.c.h.b16 %v11696
    %v12423 = vunpack.c.l.b16 %v11697
    %v12424 = vunpack.c.h.b16 %v11697
    %v12425 = vunpack.c.l.b16 %v11698
    %v12426 = vunpack.c.h.b16 %v11698
    %v12427 = vunpack.c.l.b16 %v11699
    %v12428 = vunpack.c.h.b16 %v11699
    %v12429 = vunpack.c.l.b16 %v11700
    %v12430 = vunpack.c.h.b16 %v11700
    %v12431 = vunpack.c.l.b16 %v11701
    %v12432 = vunpack.c.h.b16 %v11701
    %v12433 = vunpack.c.l.b16 %v11702
    %v12434 = vunpack.c.h.b16 %v11702
    %v12435 = vunpack.c.l.b16 %v11703
    %v12436 = vunpack.c.h.b16 %v11703
    %v12437 = vunpack.c.l.b16 %v11704
    %v12438 = vunpack.c.h.b16 %v11704
    %v12439 = vunpack.c.l.b16 %v11705
    %v12440 = vunpack.c.h.b16 %v11705
    %v12441 = vunpack.c.l.b16 %v11706
    %v12442 = vunpack.c.h.b16 %v11706
    %v12443 = vunpack.c.l.b16 %v11707
    %v12444 = vunpack.c.h.b16 %v11707
    %v12445 = vunpack.c.l.b16 %v11708
    %v12446 = vunpack.c.h.b16 %v11708
    %v12447 = vunpack.c.l.b16 %v11709
    %v12448 = vunpack.c.h.b16 %v11709
    %v12449 = vunpack.c.l.b16 %v11710
    %v12450 = vunpack.c.h.b16 %v11710
    %v12451 = vunpack.c.l.b16 %v11711
    %v12452 = vunpack.c.h.b16 %v11711
    %v12453 = vunpack.c.l.b16 %v11712
    %v12454 = vunpack.c.h.b16 %v11712
    %v12455 = vunpack.c.l.b16 %v11713
    %v12456 = vunpack.c.h.b16 %v11713
    %v12457 = vunpack.c.l.b16 %v11714
    %v12458 = vunpack.c.h.b16 %v11714
    %v12459 = vunpack.c.l.b16 %v11715
    %v12460 = vunpack.c.h.b16 %v11715
    %v12461 = vunpack.c.l.b16 %v11716
    %v12462 = vunpack.c.h.b16 %v11716
    %v12463 = vunpack.c.l.b16 %v11717
    %v12464 = vunpack.c.h.b16 %v11717
    %v12465 = vunpack.c.l.b16 %v11718
    %v12466 = vunpack.c.h.b16 %v11718
    %v12467 = vunpack.c.l.b16 %v11719
    %v12468 = vunpack.c.h.b16 %v11719
    %v12469 = vunpack.c.l.b16 %v11720
    %v12470 = vunpack.c.h.b16 %v11720
    %v12471 = vunpack.c.l.b16 %v11721
    %v12472 = vunpack.c.h.b16 %v11721
    %v12473 = vunpack.c.l.b16 %v11722
    %v12474 = vunpack.c.h.b16 %v11722
    %v12475 = vunpack.c.l.b16 %v11723
    %v12476 = vunpack.c.h.b16 %v11723
    %v12477 = vunpack.c.l.b16 %v11724
    %v12478 = vunpack.c.h.b16 %v11724
    %v12479 = vunpack.c.l.b16 %v11725
    %v12480 = vunpack.c.h.b16 %v11725
    %v12481 = vunpack.c.l.b16 %v11726
    %v12482 = vunpack.c.h.b16 %v11726
    %v12483 = vunpack.c.l.b16 %v11727
    %v12484 = vunpack.c.h.b16 %v11727
    %v12485 = vunpack.c.l.b16 %v11728
    %v12486 = vunpack.c.h.b16 %v11728
    %v12487 = vunpack.c.l.b16 %v11729
    %v12488 = vunpack.c.h.b16 %v11729
    %v12489 = vunpack.c.l.b16 %v11730
    %v12490 = vunpack.c.h.b16 %v11730
    %v12491 = vunpack.c.l.b16 %v11731
    %v12492 = vunpack.c.h.b16 %v11731
    %v12493 = vunpack.c.l.b16 %v11732
    %v12494 = vunpack.c.h.b16 %v11732
    %v12495 = vunpack.c.l.b16 %v11733
    %v12496 = vunpack.c.h.b16 %v11733
    %v12497 = vunpack.c.l.b16 %v11734
    %v12498 = vunpack.c.h.b16 %v11734
    %v12499 = vunpack.c.l.b16 %v11735
    %v12500 = vunpack.c.h.b16 %v11735
    %v12501 = vunpack.c.l.b16 %v11736
    %v12502 = vunpack.c.h.b16 %v11736
    %v12503 = vunpack.c.l.b16 %v11737
    %v12504 = vunpack.c.h.b16 %v11737
    %v12505 = vunpack.c.l.b16 %v11738
    %v12506 = vunpack.c.h.b16 %v11738
    %v12507 = vunpack.c.l.b16 %v11739
    %v12508 = vunpack.c.h.b16 %v11739
    %v12509 = vunpack.c.l.b16 %v11740
    %v12510 = vunpack.c.h.b16 %v11740
    %v12511 = vunpack.c.l.b16 %v11741
    %v12512 = vunpack.c.h.b16 %v11741
    %v12513 = vunpack.c.l.b16 %v11742
    %v12514 = vunpack.c.h.b16 %v11742
    %v12515 = vunpack.c.l.b16 %v11743
    %v12516 = vunpack.c.h.b16 %v11743
    %v12517 = vunpack.c.l.b16 %v11744
    %v12518 = vunpack.c.h.b16 %v11744
    %v12519 = vunpack.c.l.b16 %v11745
    %v12520 = vunpack.c.h.b16 %v11745
    %v12521 = vunpack.c.l.b16 %v11746
    %v12522 = vunpack.c.h.b16 %v11746
    %v12523 = vunpack.c.l.b16 %v11747
    %v12524 = vunpack.c.h.b16 %v11747
    %v12525 = vunpack.c.l.b16 %v11748
    %v12526 = vunpack.c.h.b16 %v11748
    %v12527 = vunpack.c.l.b16 %v11749
    %v12528 = vunpack.c.h.b16 %v11749
    %v12529 = vunpack.c.l.b16 %v11750
    %v12530 = vunpack.c.h.b16 %v11750
    %v12531 = vunpack.c.l.b16 %v11751
    %v12532 = vunpack.c.h.b16 %v11751
    %v12533 = vunpack.c.l.b16 %v11752
    %v12534 = vunpack.c.h.b16 %v11752
    %v12535 = vunpack.c.l.b16 %v11753
    %v12536 = vunpack.c.h.b16 %v11753
    %v12537 = vunpack.c.l.b16 %v11754
    %v12538 = vunpack.c.h.b16 %v11754
    %v12539 = vunpack.c.l.b16 %v11755
    %v12540 = vunpack.c.h.b16 %v11755
    %v12541 = vunpack.c.l.b16 %v11756
    %v12542 = vunpack.c.h.b16 %v11756
    %v12543 = vunpack.c.l.b16 %v11757
    %v12544 = vunpack.c.h.b16 %v11757
    %v12545 = vunpack.c.l.b16 %v11758
    %v12546 = vunpack.c.h.b16 %v11758
    %v12547 = vunpack.c.l.b16 %v11759
    %v12548 = vunpack.c.h.b16 %v11759
    %v12549 = vunpack.c.l.b16 %v11760
    %v12550 = vunpack.c.h.b16 %v11760
    %v12551 = vunpack.c.l.b16 %v11761
    %v12552 = vunpack.c.h.b16 %v11761
    %v12553 = vunpack.c.l.b16 %v11762
    %v12554 = vunpack.c.h.b16 %v11762
    %v12555 = vunpack.c.l.b16 %v11763
    %v12556 = vunpack.c.h.b16 %v11763
    %v12557 = vunpack.c.l.b16 %v11764
    %v12558 = vunpack.c.h.b16 %v11764
    %v12559 = vunpack.c.l.b16 %v11765
    %v12560 = vunpack.c.h.b16 %v11765
    %v12561 = vunpack.c.l.b16 %v11766
    %v12562 = vunpack.c.h.b16 %v11766
    %v12563 = vunpack.c.l.b16 %v11767
    %v12564 = vunpack.c.h.b16 %v11767
    %v12565 = vunpack.c.l.b16 %v11768
    %v12566 = vunpack.c.h.b16 %v11768
    %v12567 = vunpack.c.l.b16 %v11769
    %v12568 = vunpack.c.h.b16 %v11769
    %v12569 = vunpack.c.l.b16 %v11770
    %v12570 = vunpack.c.h.b16 %v11770
    %v12571 = vunpack.c.l.b16 %v11771
    %v12572 = vunpack.c.h.b16 %v11771
    %v12573 = vunpack.c.l.b16 %v11772
    %v12574 = vunpack.c.h.b16 %v11772
    %v12575 = vunpack.c.l.b16 %v11773
    %v12576 = vunpack.c.h.b16 %v11773
    %v12577 = vunpack.c.l.b16 %v11774
    %v12578 = vunpack.c.h.b16 %v11774
    %v12579 = vunpack.c.l.b16 %v11775
    %v12580 = vunpack.c.h.b16 %v11775
    %v12581 = vunpack.c.l.b16 %v11776
    %v12582 = vunpack.c.h.b16 %v11776
    %v12583 = vunpack.c.l.b16 %v11777
    %v12584 = vunpack.c.h.b16 %v11777
    %v12585 = vunpack.c.l.b16 %v11778
    %v12586 = vunpack.c.h.b16 %v11778
    %v12587 = vunpack.c.l.b16 %v11779
    %v12588 = vunpack.c.h.b16 %v11779
    %v12589 = vunpack.c.l.b16 %v11780
    %v12590 = vunpack.c.h.b16 %v11780
    %v12591 = vunpack.c.l.b16 %v11781
    %v12592 = vunpack.c.h.b16 %v11781
    %v12593 = vunpack.c.l.b16 %v11782
    %v12594 = vunpack.c.h.b16 %v11782
    %v12595 = vunpack.c.l.b16 %v11783
    %v12596 = vunpack.c.h.b16 %v11783
    %v12597 = vunpack.c.l.b16 %v11784
    %v12598 = vunpack.c.h.b16 %v11784
    %v12599 = vunpack.c.l.b16 %v11785
    %v12600 = vunpack.c.h.b16 %v11785
    %v12601 = vunpack.c.l.b16 %v11786
    %v12602 = vunpack.c.h.b16 %v11786
    %v12603 = vunpack.c.l.b16 %v11787
    %v12604 = vunpack.c.h.b16 %v11787
    %v12605 = vunpack.c.l.b16 %v11788
    %v12606 = vunpack.c.h.b16 %v11788
    %v12607 = vunpack.c.l.b16 %v11789
    %v12608 = vunpack.c.h.b16 %v11789
    %v12609 = vunpack.c.l.b16 %v11790
    %v12610 = vunpack.c.h.b16 %v11790
    %v12611 = vunpack.c.l.b16 %v11791
    %v12612 = vunpack.c.h.b16 %v11791
    %v12613 = vunpack.c.l.b16 %v11792
    %v12614 = vunpack.c.h.b16 %v11792
    %v12615 = vunpack.c.l.b16 %v11793
    %v12616 = vunpack.c.h.b16 %v11793
    %v12617 = vunpack.c.l.b16 %v11794
    %v12618 = vunpack.c.h.b16 %v11794
    %v12619 = vunpack.c.l.b16 %v11795
    %v12620 = vunpack.c.h.b16 %v11795
    %v12621 = vunpack.c.l.b16 %v11796
    %v12622 = vunpack.c.h.b16 %v11796
    %v12623 = vunpack.c.l.b16 %v11797
    %v12624 = vunpack.c.h.b16 %v11797
    %v12625 = vunpack.c.l.b16 %v11798
    %v12626 = vunpack.c.h.b16 %v11798
    %v12627 = vunpack.c.l.b16 %v11799
    %v12628 = vunpack.c.h.b16 %v11799
    %v12629 = vunpack.c.l.b16 %v11800
    %v12630 = vunpack.c.h.b16 %v11800
    %v12631 = vunpack.c.l.b16 %v11801
    %v12632 = vunpack.c.h.b16 %v11801
    %v12633 = vunpack.c.l.b16 %v11802
    %v12634 = vunpack.c.h.b16 %v11802
    %v12635 = vunpack.c.l.b16 %v11803
    %v12636 = vunpack.c.h.b16 %v11803
    %v12637 = vunpack.c.l.b16 %v11804
    %v12638 = vunpack.c.h.b16 %v11804
    %v12639 = vunpack.c.l.b16 %v11805
    %v12640 = vunpack.c.h.b16 %v11805
    %v12641 = vunpack.c.l.b16 %v11806
    %v12642 = vunpack.c.h.b16 %v11806
    %v12643 = vunpack.c.l.b16 %v11807
    %v12644 = vunpack.c.h.b16 %v11807
    %v12645 = vunpack.c.l.b16 %v11808
    %v12646 = vunpack.c.h.b16 %v11808
    %v12647 = vunpack.c.l.b16 %v11809
    %v12648 = vunpack.c.h.b16 %v11809
    %v12649 = vunpack.c.l.b16 %v11810
    %v12650 = vunpack.c.h.b16 %v11810
    %v12651 = vunpack.c.l.b16 %v11811
    %v12652 = vunpack.c.h.b16 %v11811
    %v12653 = vunpack.c.l.b16 %v11812
    %v12654 = vunpack.c.h.b16 %v11812
    %v12655 = vunpack.c.l.b16 %v11813
    %v12656 = vunpack.c.h.b16 %v11813
    %v12657 = vunpack.c.l.b16 %v11814
    %v12658 = vunpack.c.h.b16 %v11814
    %v12659 = vunpack.c.l.b16 %v11815
    %v12660 = vunpack.c.h.b16 %v11815
    %v12661 = vunpack.c.l.b16 %v11816
    %v12662 = vunpack.c.h.b16 %v11816
    %v12663 = vunpack.c.l.b16 %v11817
    %v12664 = vunpack.c.h.b16 %v11817
    %v12665 = vunpack.c.l.b16 %v11818
    %v12666 = vunpack.c.h.b16 %v11818
    %v12667 = vunpack.c.l.b16 %v11819
    %v12668 = vunpack.c.h.b16 %v11819
    %v12669 = vunpack.c.l.b16 %v11820
    %v12670 = vunpack.c.h.b16 %v11820
    %v12671 = vunpack.c.l.b16 %v11821
    %v12672 = vunpack.c.h.b16 %v11821
    %v12673 = vunpack.c.l.b16 %v11822
    %v12674 = vunpack.c.h.b16 %v11822
    %v12675 = vunpack.c.l.b16 %v11823
    %v12676 = vunpack.c.h.b16 %v11823
    %v12677 = vunpack.c.l.b16 %v11824
    %v12678 = vunpack.c.h.b16 %v11824
    %v12679 = vunpack.c.l.b16 %v11825
    %v12680 = vunpack.c.h.b16 %v11825
    %v12681 = vunpack.c.l.b16 %v11826
    %v12682 = vunpack.c.h.b16 %v11826
    %v12683 = vunpack.c.l.b16 %v11827
    %v12684 = vunpack.c.h.b16 %v11827
    %v12685 = vunpack.c.l.b16 %v11828
    %v12686 = vunpack.c.h.b16 %v11828
    %v12687 = vunpack.c.l.b16 %v11829
    %v12688 = vunpack.c.h.b16 %v11829
    %v12689 = vunpack.c.l.b16 %v11830
    %v12690 = vunpack.c.h.b16 %v11830
    %v12691 = vunpack.c.l.b16 %v11831
    %v12692 = vunpack.c.h.b16 %v11831
    %v12693 = vunpack.c.l.b16 %v11832
    %v12694 = vunpack.c.h.b16 %v11832
    %v12695 = vunpack.c.l.b16 %v11833
    %v12696 = vunpack.c.h.b16 %v11833
    %v12697 = vunpack.c.l.b16 %v11834
    %v12698 = vunpack.c.h.b16 %v11834
    %v12699 = vunpack.c.l.b16 %v11835
    %v12700 = vunpack.c.h.b16 %v11835
    %v12701 = vunpack.c.l.b16 %v11836
    %v12702 = vunpack.c.h.b16 %v11836
    %v12703 = vunpack.c.l.b16 %v11837
    %v12704 = vunpack.c.h.b16 %v11837
    %v12705 = vunpack.c.l.b16 %v11838
    %v12706 = vunpack.c.h.b16 %v11838
    %v12707 = vunpack.c.l.b16 %v11839
    %v12708 = vunpack.c.h.b16 %v11839
    %v12709 = vunpack.c.l.b16 %v11840
    %v12710 = vunpack.c.h.b16 %v11840
    %v12711 = vunpack.c.l.b16 %v11841
    %v12712 = vunpack.c.h.b16 %v11841
    %v12713 = vunpack.c.l.b16 %v11842
    %v12714 = vunpack.c.h.b16 %v11842
    %v12715 = vunpack.c.l.b16 %v11843
    %v12716 = vunpack.c.h.b16 %v11843
    %v12717 = vunpack.c.l.b16 %v11844
    %v12718 = vunpack.c.h.b16 %v11844
    %v12719 = vunpack.c.l.b16 %v11845
    %v12720 = vunpack.c.h.b16 %v11845
    %v12721 = vunpack.c.l.b16 %v11846
    %v12722 = vunpack.c.h.b16 %v11846
    %v12723 = vunpack.c.l.b16 %v11847
    %v12724 = vunpack.c.h.b16 %v11847
    %v12725 = vunpack.c.l.b16 %v11848
    %v12726 = vunpack.c.h.b16 %v11848
    %v12727 = vpack.c.b16 %v12157, %v12151
    %v12728 = vpack.c.b16 %v12158, %v12152
    %v12729 = vpack.c.b16 %v12159, %v12153
    %v12730 = vpack.c.b16 %v12160, %v12154
    %v12731 = vpack.c.b16 %v12161, %v12155
    %v12732 = vpack.c.b16 %v12162, %v12156
    %v12733 = vpack.c.b16 %v12169, %v12163
    %v12734 = vpack.c.b16 %v12170, %v12164
    %v12735 = vpack.c.b16 %v12171, %v12165
    %v12736 = vpack.c.b16 %v12172, %v12166
    %v12737 = vpack.c.b16 %v12173, %v12167
    %v12738 = vpack.c.b16 %v12174, %v12168
    %v12739 = vpack.c.b16 %v12181, %v12175
    %v12740 = vpack.c.b16 %v12182, %v12176
    %v12741 = vpack.c.b16 %v12183, %v12177
    %v12742 = vpack.c.b16 %v12184, %v12178
    %v12743 = vpack.c.b16 %v12185, %v12179
    %v12744 = vpack.c.b16 %v12186, %v12180
    %v12745 = vpack.c.b16 %v12193, %v12187
    %v12746 = vpack.c.b16 %v12194, %v12188
    %v12747 = vpack.c.b16 %v12195, %v12189
    %v12748 = vpack.c.b16 %v12196, %v12190
    %v12749 = vpack.c.b16 %v12197, %v12191
    %v12750 = vpack.c.b16 %v12198, %v12192
    %v12751 = vpack.c.b16 %v12205, %v12199
    %v12752 = vpack.c.b16 %v12206, %v12200
    %v12753 = vpack.c.b16 %v12207, %v12201
    %v12754 = vpack.c.b16 %v12208, %v12202
    %v12755 = vpack.c.b16 %v12209, %v12203
    %v12756 = vpack.c.b16 %v12210, %v12204
    %v12757 = vpack.c.b16 %v12217, %v12211
    %v12758 = vpack.c.b16 %v12218, %v12212
    %v12759 = vpack.c.b16 %v12219, %v12213
    %v12760 = vpack.c.b16 %v12220, %v12214
    %v12761 = vpack.c.b16 %v12221, %v12215
    %v12762 = vpack.c.b16 %v12222, %v12216
    %v12763 = vpack.c.b16 %v12229, %v12223
    %v12764 = vpack.c.b16 %v12230, %v12224
    %v12765 = vpack.c.b16 %v12231, %v12225
    %v12766 = vpack.c.b16 %v12232, %v12226
    %v12767 = vpack.c.b16 %v12233, %v12227
    %v12768 = vpack.c.b16 %v12234, %v12228
    %v12769 = vpack.c.b16 %v12241, %v12235
    %v12770 = vpack.c.b16 %v12242, %v12236
    %v12771 = vpack.c.b16 %v12243, %v12237
    %v12772 = vpack.c.b16 %v12244, %v12238
    %v12773 = vpack.c.b16 %v12245, %v12239
    %v12774 = vpack.c.b16 %v12246, %v12240
    %v12775 = vpack.c.b16 %v12253, %v12247
    %v12776 = vpack.c.b16 %v12254, %v12248
    %v12777 = vpack.c.b16 %v12255, %v12249
    %v12778 = vpack.c.b16 %v12256, %v12250
    %v12779 = vpack.c.b16 %v12257, %v12251
    %v12780 = vpack.c.b16 %v12258, %v12252
    %v12781 = vpack.c.b16 %v12265, %v12259
    %v12782 = vpack.c.b16 %v12266, %v12260
    %v12783 = vpack.c.b16 %v12267, %v12261
    %v12784 = vpack.c.b16 %v12268, %v12262
    %v12785 = vpack.c.b16 %v12269, %v12263
    %v12786 = vpack.c.b16 %v12270, %v12264
    %v12787 = vpack.c.b16 %v12277, %v12271
    %v12788 = vpack.c.b16 %v12278, %v12272
    %v12789 = vpack.c.b16 %v12279, %v12273
    %v12790 = vpack.c.b16 %v12280, %v12274
    %v12791 = vpack.c.b16 %v12281, %v12275
    %v12792 = vpack.c.b16 %v12282, %v12276
    %v12793 = vpack.c.b16 %v12289, %v12283
    %v12794 = vpack.c.b16 %v12290, %v12284
    %v12795 = vpack.c.b16 %v12291, %v12285
    %v12796 = vpack.c.b16 %v12292, %v12286
    %v12797 = vpack.c.b16 %v12293, %v12287
    %v12798 = vpack.c.b16 %v12294, %v12288
    %v12799 = vpack.c.b16 %v12301, %v12295
    %v12800 = vpack.c.b16 %v12302, %v12296
    %v12801 = vpack.c.b16 %v12303, %v12297
    %v12802 = vpack.c.b16 %v12304, %v12298
    %v12803 = vpack.c.b16 %v12305, %v12299
    %v12804 = vpack.c.b16 %v12306, %v12300
    %v12805 = vpack.c.b16 %v12313, %v12307
    %v12806 = vpack.c.b16 %v12314, %v12308
    %v12807 = vpack.c.b16 %v12315, %v12309
    %v12808 = vpack.c.b16 %v12316, %v12310
    %v12809 = vpack.c.b16 %v12317, %v12311
    %v12810 = vpack.c.b16 %v12318, %v12312
    %v12811 = vpack.c.b16 %v12325, %v12319
    %v12812 = vpack.c.b16 %v12326, %v12320
    %v12813 = vpack.c.b16 %v12327, %v12321
    %v12814 = vpack.c.b16 %v12328, %v12322
    %v12815 = vpack.c.b16 %v12329, %v12323
    %v12816 = vpack.c.b16 %v12330, %v12324
    %v12817 = vpack.c.b16 %v12337, %v12331
    %v12818 = vpack.c.b16 %v12338, %v12332
    %v12819 = vpack.c.b16 %v12339, %v12333
    %v12820 = vpack.c.b16 %v12340, %v12334
    %v12821 = vpack.c.b16 %v12341, %v12335
    %v12822 = vpack.c.b16 %v12342, %v12336
    %v12823 = vpack.c.b16 %v12349, %v12343
    %v12824 = vpack.c.b16 %v12350, %v12344
    %v12825 = vpack.c.b16 %v12351, %v12345
    %v12826 = vpack.c.b16 %v12352, %v12346
    %v12827 = vpack.c.b16 %v12353, %v12347
    %v12828 = vpack.c.b16 %v12354, %v12348
    %v12829 = vpack.c.b16 %v12361, %v12355
    %v12830 = vpack.c.b16 %v12362, %v12356
    %v12831 = vpack.c.b16 %v12363, %v12357
    %v12832 = vpack.c.b16 %v12364, %v12358
    %v12833 = vpack.c.b16 %v12365, %v12359
    %v12834 = vpack.c.b16 %v12366, %v12360
    %v12835 = vpack.c.b16 %v12373, %v12367
    %v12836 = vpack.c.b16 %v12374, %v12368
    %v12837 = vpack.c.b16 %v12375, %v12369
    %v12838 = vpack.c.b16 %v12376, %v12370
    %v12839 = vpack.c.b16 %v12377, %v12371
    %v12840 = vpack.c.b16 %v12378, %v12372
    %v12841 = vpack.c.b16 %v12385, %v12379
    %v12842 = vpack.c.b16 %v12386, %v12380
    %v12843 = vpack.c.b16 %v12387, %v12381
    %v12844 = vpack.c.b16 %v12388, %v12382
    %v12845 = vpack.c.b16 %v12389, %v12383
    %v12846 = vpack.c.b16 %v12390, %v12384
    %v12847 = vpack.c.b16 %v12397, %v12391
    %v12848 = vpack.c.b16 %v12398, %v12392
    %v12849 = vpack.c.b16 %v12399, %v12393
    %v12850 = vpack.c.b16 %v12400, %v12394
    %v12851 = vpack.c.b16 %v12401, %v12395
    %v12852 = vpack.c.b16 %v12402, %v12396
    %v12853 = vpack.c.b16 %v12409, %v12403
    %v12854 = vpack.c.b16 %v12410, %v12404
    %v12855 = vpack.c.b16 %v12411, %v12405
    %v12856 = vpack.c.b16 %v12412, %v12406
    %v12857 = vpack.c.b16 %v12413, %v12407
    %v12858 = vpack.c.b16 %v12414, %v12408
    %v12859 = vpack.c.b16 %v12421, %v12415
    %v12860 = vpack.c.b16 %v12422, %v12416
    %v12861 = vpack.c.b16 %v12423, %v12417
    %v12862 = vpack.c.b16 %v12424, %v12418
    %v12863 = vpack.c.b16 %v12425, %v12419
    %v12864 = vpack.c.b16 %v12426, %v12420
    %v12865 = vpack.c.b16 %v12433, %v12427
    %v12866 = vpack.c.b16 %v12434, %v12428
    %v12867 = vpack.c.b16 %v12435, %v12429
    %v12868 = vpack.c.b16 %v12436, %v12430
    %v12869 = vpack.c.b16 %v12437, %v12431
    %v12870 = vpack.c.b16 %v12438, %v12432
    %v12871 = vpack.c.b16 %v12445, %v12439
    %v12872 = vpack.c.b16 %v12446, %v12440
    %v12873 = vpack.c.b16 %v12447, %v12441
    %v12874 = vpack.c.b16 %v12448, %v12442
    %v12875 = vpack.c.b16 %v12449, %v12443
    %v12876 = vpack.c.b16 %v12450, %v12444
    %v12877 = vpack.c.b16 %v12457, %v12451
    %v12878 = vpack.c.b16 %v12458, %v12452
    %v12879 = vpack.c.b16 %v12459, %v12453
    %v12880 = vpack.c.b16 %v12460, %v12454
    %v12881 = vpack.c.b16 %v12461, %v12455
    %v12882 = vpack.c.b16 %v12462, %v12456
    %v12883 = vpack.c.b16 %v12469, %v12463
    %v12884 = vpack.c.b16 %v12470, %v12464
    %v12885 = vpack.c.b16 %v12471, %v12465
    %v12886 = vpack.c.b16 %v12472, %v12466
    %v12887 = vpack.c.b16 %v12473, %v12467
    %v12888 = vpack.c.b16 %v12474, %v12468
    %v12889 = vpack.c.b16 %v12481, %v12475
    %v12890 = vpack.c.b16 %v12482, %v12476
    %v12891 = vpack.c.b16 %v12483, %v12477
    %v12892 = vpack.c.b16 %v12484, %v12478
    %v12893 = vpack.c.b16 %v12485, %v12479
    %v12894 = vpack.c.b16 %v12486, %v12480
    %v12895 = vpack.c.b16 %v12493, %v12487
    %v12896 = vpack.c.b16 %v12494, %v12488
    %v12897 = vpack.c.b16 %v12495, %v12489
    %v12898 = vpack.c.b16 %v12496, %v12490
    %v12899 = vpack.c.b16 %v12497, %v12491
    %v12900 = vpack.c.b16 %v12498, %v12492
    %v12901 = vpack.c.b16 %v12505, %v12499
    %v12902 = vpack.c.b16 %v12506, %v12500
    %v12903 = vpack.c.b16 %v12507, %v12501
    %v12904 = vpack.c.b16 %v12508, %v12502
    %v12905 = vpack.c.b16 %v12509, %v12503
    %v12906 = vpack.c.b16 %v12510, %v12504
    %v12907 = vpack.c.b16 %v12517, %v12511
    %v12908 = vpack.c.b16 %v12518, %v12512
    %v12909 = vpack.c.b16 %v12519, %v12513
    %v12910 = vpack.c.b16 %v12520, %v12514
    %v12911 = vpack.c.b16 %v12521, %v12515
    %v12912 = vpack.c.b16 %v12522, %v12516
    %v12913 = vpack.c.b16 %v12529, %v12523
    %v12914 = vpack.c.b16 %v12530, %v12524
    %v12915 = vpack.c.b16 %v12531, %v12525
    %v12916 = vpack.c.b16 %v12532, %v12526
    %v12917 = vpack.c.b16 %v12533, %v12527
    %v12918 = vpack.c.b16 %v12534, %v12528
    %v12919 = vpack.c.b16 %v12541, %v12535
    %v12920 = vpack.c.b16 %v12542, %v12536
    %v12921 = vpack.c.b16 %v12543, %v12537
    %v12922 = vpack.c.b16 %v12544, %v12538
    %v12923 = vpack.c.b16 %v12545, %v12539
    %v12924 = vpack.c.b16 %v12546, %v12540
    %v12925 = vpack.c.b16 %v12553, %v12547
    %v12926 = vpack.c.b16 %v12554, %v12548
    %v12927 = vpack.c.b16 %v12555, %v12549
    %v12928 = vpack.c.b16 %v12556, %v12550
    %v12929 = vpack.c.b16 %v12557, %v12551
    %v12930 = vpack.c.b16 %v12558, %v12552
    %v12931 = vpack.c.b16 %v12565, %v12559
    %v12932 = vpack.c.b16 %v12566, %v12560
    %v12933 = vpack.c.b16 %v12567, %v12561
    %v12934 = vpack.c.b16 %v12568, %v12562
    %v12935 = vpack.c.b16 %v12569, %v12563
    %v12936 = vpack.c.b16 %v12570, %v12564
    %v12937 = vpack.c.b16 %v12577, %v12571
    %v12938 = vpack.c.b16 %v12578, %v12572
    %v12939 = vpack.c.b16 %v12579, %v12573
    %v12940 = vpack.c.b16 %v12580, %v12574
    %v12941 = vpack.c.b16 %v12581, %v12575
    %v12942 = vpack.c.b16 %v12582, %v12576
    %v12943 = vpack.c.b16 %v12589, %v12583
    %v12944 = vpack.c.b16 %v12590, %v12584
    %v12945 = vpack.c.b16 %v12591, %v12585
    %v12946 = vpack.c.b16 %v12592, %v12586
    %v12947 = vpack.c.b16 %v12593, %v12587
    %v12948 = vpack.c.b16 %v12594, %v12588
    %v12949 = vpack.c.b16 %v12601, %v12595
    %v12950 = vpack.c.b16 %v12602, %v12596
    %v12951 = vpack.c.b16 %v12603, %v12597
    %v12952 = vpack.c.b16 %v12604, %v12598
    %v12953 = vpack.c.b16 %v12605, %v12599
    %v12954 = vpack.c.b16 %v12606, %v12600
    %v12955 = vpack.c.b16 %v12613, %v12607
    %v12956 = vpack.c.b16 %v12614, %v12608
    %v12957 = vpack.c.b16 %v12615, %v12609
    %v12958 = vpack.c.b16 %v12616, %v12610
    %v12959 = vpack.c.b16 %v12617, %v12611
    %v12960 = vpack.c.b16 %v12618, %v12612
    %v12961 = vpack.c.b16 %v12625, %v12619
    %v12962 = vpack.c.b16 %v12626, %v12620
    %v12963 = vpack.c.b16 %v12627, %v12621
    %v12964 = vpack.c.b16 %v12628, %v12622
    %v12965 = vpack.c.b16 %v12629, %v12623
    %v12966 = vpack.c.b16 %v12630, %v12624
    %v12967 = vpack.c.b16 %v12637, %v12631
    %v12968 = vpack.c.b16 %v12638, %v12632
    %v12969 = vpack.c.b16 %v12639, %v12633
    %v12970 = vpack.c.b16 %v12640, %v12634
    %v12971 = vpack.c.b16 %v12641, %v12635
    %v12972 = vpack.c.b16 %v12642, %v12636
    %v12973 = vpack.c.b16 %v12649, %v12643
    %v12974 = vpack.c.b16 %v12650, %v12644
    %v12975 = vpack.c.b16 %v12651, %v12645
    %v12976 = vpack.c.b16 %v12652, %v12646
    %v12977 = vpack.c.b16 %v12653, %v12647
    %v12978 = vpack.c.b16 %v12654, %v12648
    %v12979 = vpack.c.b16 %v12661, %v12655
    %v12980 = vpack.c.b16 %v12662, %v12656
    %v12981 = vpack.c.b16 %v12663, %v12657
    %v12982 = vpack.c.b16 %v12664, %v12658
    %v12983 = vpack.c.b16 %v12665, %v12659
    %v12984 = vpack.c.b16 %v12666, %v12660
    %v12985 = vpack.c.b16 %v12673, %v12667
    %v12986 = vpack.c.b16 %v12674, %v12668
    %v12987 = vpack.c.b16 %v12675, %v12669
    %v12988 = vpack.c.b16 %v12676, %v12670
    %v12989 = vpack.c.b16 %v12677, %v12671
    %v12990 = vpack.c.b16 %v12678, %v12672
    %v12991 = vpack.c.b16 %v12685, %v12679
    %v12992 = vpack.c.b16 %v12686, %v12680
    %v12993 = vpack.c.b16 %v12687, %v12681
    %v12994 = vpack.c.b16 %v12688, %v12682
    %v12995 = vpack.c.b16 %v12689, %v12683
    %v12996 = vpack.c.b16 %v12690, %v12684
    %v12997 = vpack.c.b16 %v12697, %v12691
    %v12998 = vpack.c.b16 %v12698, %v12692
    %v12999 = vpack.c.b16 %v12699, %v12693
    %v13000 = vpack.c.b16 %v12700, %v12694
    %v13001 = vpack.c.b16 %v12701, %v12695
    %v13002 = vpack.c.b16 %v12702, %v12696
    %v13003 = vpack.c.b16 %v12709, %v12703
    %v13004 = vpack.c.b16 %v12710, %v12704
    %v13005 = vpack.c.b16 %v12711, %v12705
    %v13006 = vpack.c.b16 %v12712, %v12706
    %v13007 = vpack.c.b16 %v12713, %v12707
    %v13008 = vpack.c.b16 %v12714, %v12708
    %v13009 = vpack.c.b16 %v12721, %v12715
    %v13010 = vpack.c.b16 %v12722, %v12716
    %v13011 = vpack.c.b16 %v12723, %v12717
    %v13012 = vpack.c.b16 %v12724, %v12718
    %v13013 = vpack.c.b16 %v12725, %v12719
    %v13014 = vpack.c.b16 %v12726, %v12720
    %13303 = vmatpush.bf16.msra.mxu0 %v12769
    %13304 = vmatpush.bf16.msra.mxu0 %v12763
    %13305 = vmatpush.bf16.msra.mxu0 %v12757
    %13306 = vmatpush.bf16.msra.mxu0 %v12751
    %13307 = vmatpush.bf16.msra.mxu0 %v12745
    %13308 = vmatpush.bf16.msra.mxu0 %v12739
    %13309 = vmatpush.bf16.msra.mxu0 %v12733
    %13310 = vmatpush.bf16.msra.mxu0 %v12727
    %13311 = vmatmul.bf16.gmra.mxu0 %v11555
    %v13312 = vpop.f32.mrf.mxu0
    %v13313 = vadd.f32 %v11851, %v13312
    %v13314 = vpop.f32.mrf.mxu0
    %13315 = vdwg.mxu0
    %13316 = vmatpush.bf16.msra.mxu0 %v12817
    %13317 = vmatpush.bf16.msra.mxu0 %v12811
    %13318 = vmatpush.bf16.msra.mxu0 %v12805
    %13319 = vmatpush.bf16.msra.mxu0 %v12799
    %13320 = vmatpush.bf16.msra.mxu0 %v12793
    %13321 = vmatpush.bf16.msra.mxu0 %v12787
    %13322 = vmatpush.bf16.msra.mxu0 %v12781
    %13323 = vmatpush.bf16.msra.mxu0 %v12775
    %13324 = vmatmul.bf16.gmra.mxu0 %v11556
    %v13325 = vpop.f32.mrf.mxu0
    %v13326 = vadd.f32 %v13313, %v13325
    %v13327 = vpop.f32.mrf.mxu0
    %13328 = vdwg.mxu0
    %13329 = vmatpush.bf16.msra.mxu0 %v12865
    %13330 = vmatpush.bf16.msra.mxu0 %v12859
    %13331 = vmatpush.bf16.msra.mxu0 %v12853
    %13332 = vmatpush.bf16.msra.mxu0 %v12847
    %13333 = vmatpush.bf16.msra.mxu0 %v12841
    %13334 = vmatpush.bf16.msra.mxu0 %v12835
    %13335 = vmatpush.bf16.msra.mxu0 %v12829
    %13336 = vmatpush.bf16.msra.mxu0 %v12823
    %13337 = vmatmul.bf16.gmra.mxu0 %v11557
    %v13338 = vpop.f32.mrf.mxu0
    %v13339 = vadd.f32 %v13326, %v13338
    %v13340 = vpop.f32.mrf.mxu0
    %13341 = vdwg.mxu0
    %13342 = vmatpush.bf16.msra.mxu0 %v12913
    %13343 = vmatpush.bf16.msra.mxu0 %v12907
    %13344 = vmatpush.bf16.msra.mxu0 %v12901
    %13345 = vmatpush.bf16.msra.mxu0 %v12895
    %13346 = vmatpush.bf16.msra.mxu0 %v12889
    %13347 = vmatpush.bf16.msra.mxu0 %v12883
    %13348 = vmatpush.bf16.msra.mxu0 %v12877
    %13349 = vmatpush.bf16.msra.mxu0 %v12871
    %13350 = vmatmul.bf16.gmra.mxu0 %v11558
    %v13351 = vpop.f32.mrf.mxu0
    %v13352 = vadd.f32 %v13339, %v13351
    %v13353 = vpop.f32.mrf.mxu0
    %13354 = vdwg.mxu0
    %13355 = vmatpush.bf16.msra.mxu0 %v12961
    %13356 = vmatpush.bf16.msra.mxu0 %v12955
    %13357 = vmatpush.bf16.msra.mxu0 %v12949
    %13358 = vmatpush.bf16.msra.mxu0 %v12943
    %13359 = vmatpush.bf16.msra.mxu0 %v12937
    %13360 = vmatpush.bf16.msra.mxu0 %v12931
    %13361 = vmatpush.bf16.msra.mxu0 %v12925
    %13362 = vmatpush.bf16.msra.mxu0 %v12919
    %13363 = vmatmul.bf16.gmra.mxu0 %v11559
    %v13364 = vpop.f32.mrf.mxu0
    %v13365 = vadd.f32 %v13352, %v13364
    %v13366 = vpop.f32.mrf.mxu0
    %13367 = vdwg.mxu0
    %13368 = vmatpush.bf16.msra.mxu0 %v13009
    %13369 = vmatpush.bf16.msra.mxu0 %v13003
    %13370 = vmatpush.bf16.msra.mxu0 %v12997
    %13371 = vmatpush.bf16.msra.mxu0 %v12991
    %13372 = vmatpush.bf16.msra.mxu0 %v12985
    %13373 = vmatpush.bf16.msra.mxu0 %v12979
    %13374 = vmatpush.bf16.msra.mxu0 %v12973
    %13375 = vmatpush.bf16.msra.mxu0 %v12967
    %13376 = vmatmul.bf16.gmra.mxu0 %v11560
    %v13377 = vpop.f32.mrf.mxu0
    %v13378 = vadd.f32 %v13365, %v13377
    %v13379 = vpop.f32.mrf.mxu0
    %13380 = vdwg.mxu0
    %13381 = vmatpush.bf16.msra.mxu0 %v12770
    %13382 = vmatpush.bf16.msra.mxu0 %v12764
    %13383 = vmatpush.bf16.msra.mxu0 %v12758
    %13384 = vmatpush.bf16.msra.mxu0 %v12752
    %13385 = vmatpush.bf16.msra.mxu0 %v12746
    %13386 = vmatpush.bf16.msra.mxu0 %v12740
    %13387 = vmatpush.bf16.msra.mxu0 %v12734
    %13388 = vmatpush.bf16.msra.mxu0 %v12728
    %13389 = vmatmul.bf16.gmra.mxu0 %v11555
    %v13390 = vpop.f32.mrf.mxu0
    %v13391 = vadd.f32 %v11852, %v13390
    %v13392 = vpop.f32.mrf.mxu0
    %13393 = vdwg.mxu0
    %13394 = vmatpush.bf16.msra.mxu0 %v12818
    %13395 = vmatpush.bf16.msra.mxu0 %v12812
    %13396 = vmatpush.bf16.msra.mxu0 %v12806
    %13397 = vmatpush.bf16.msra.mxu0 %v12800
    %13398 = vmatpush.bf16.msra.mxu0 %v12794
    %13399 = vmatpush.bf16.msra.mxu0 %v12788
    %13400 = vmatpush.bf16.msra.mxu0 %v12782
    %13401 = vmatpush.bf16.msra.mxu0 %v12776
    %13402 = vmatmul.bf16.gmra.mxu0 %v11556
    %v13403 = vpop.f32.mrf.mxu0
    %v13404 = vadd.f32 %v13391, %v13403
    %v13405 = vpop.f32.mrf.mxu0
    %13406 = vdwg.mxu0
    %13407 = vmatpush.bf16.msra.mxu0 %v12866
    %13408 = vmatpush.bf16.msra.mxu0 %v12860
    %13409 = vmatpush.bf16.msra.mxu0 %v12854
    %13410 = vmatpush.bf16.msra.mxu0 %v12848
    %13411 = vmatpush.bf16.msra.mxu0 %v12842
    %13412 = vmatpush.bf16.msra.mxu0 %v12836
    %13413 = vmatpush.bf16.msra.mxu0 %v12830
    %13414 = vmatpush.bf16.msra.mxu0 %v12824
    %13415 = vmatmul.bf16.gmra.mxu0 %v11557
    %v13416 = vpop.f32.mrf.mxu0
    %v13417 = vadd.f32 %v13404, %v13416
    %v13418 = vpop.f32.mrf.mxu0
    %13419 = vdwg.mxu0
    %13420 = vmatpush.bf16.msra.mxu0 %v12914
    %13421 = vmatpush.bf16.msra.mxu0 %v12908
    %13422 = vmatpush.bf16.msra.mxu0 %v12902
    %13423 = vmatpush.bf16.msra.mxu0 %v12896
    %13424 = vmatpush.bf16.msra.mxu0 %v12890
    %13425 = vmatpush.bf16.msra.mxu0 %v12884
    %13426 = vmatpush.bf16.msra.mxu0 %v12878
    %13427 = vmatpush.bf16.msra.mxu0 %v12872
    %13428 = vmatmul.bf16.gmra.mxu0 %v11558
    %v13429 = vpop.f32.mrf.mxu0
    %v13430 = vadd.f32 %v13417, %v13429
    %v13431 = vpop.f32.mrf.mxu0
    %13432 = vdwg.mxu0
    %13433 = vmatpush.bf16.msra.mxu0 %v12962
    %13434 = vmatpush.bf16.msra.mxu0 %v12956
    %13435 = vmatpush.bf16.msra.mxu0 %v12950
    %13436 = vmatpush.bf16.msra.mxu0 %v12944
    %13437 = vmatpush.bf16.msra.mxu0 %v12938
    %13438 = vmatpush.bf16.msra.mxu0 %v12932
    %13439 = vmatpush.bf16.msra.mxu0 %v12926
    %13440 = vmatpush.bf16.msra.mxu0 %v12920
    %13441 = vmatmul.bf16.gmra.mxu0 %v11559
    %v13442 = vpop.f32.mrf.mxu0
    %v13443 = vadd.f32 %v13430, %v13442
    %v13444 = vpop.f32.mrf.mxu0
    %13445 = vdwg.mxu0
    %13446 = vmatpush.bf16.msra.mxu0 %v13010
    %13447 = vmatpush.bf16.msra.mxu0 %v13004
    %13448 = vmatpush.bf16.msra.mxu0 %v12998
    %13449 = vmatpush.bf16.msra.mxu0 %v12992
    %13450 = vmatpush.bf16.msra.mxu0 %v12986
    %13451 = vmatpush.bf16.msra.mxu0 %v12980
    %13452 = vmatpush.bf16.msra.mxu0 %v12974
    %13453 = vmatpush.bf16.msra.mxu0 %v12968
    %13454 = vmatmul.bf16.gmra.mxu0 %v11560
    %v13455 = vpop.f32.mrf.mxu0
    %v13456 = vadd.f32 %v13443, %v13455
    %v13457 = vpop.f32.mrf.mxu0
    %13458 = vdwg.mxu0
    %13459 = vmatpush.bf16.msra.mxu0 %v12771
    %13460 = vmatpush.bf16.msra.mxu0 %v12765
    %13461 = vmatpush.bf16.msra.mxu0 %v12759
    %13462 = vmatpush.bf16.msra.mxu0 %v12753
    %13463 = vmatpush.bf16.msra.mxu0 %v12747
    %13464 = vmatpush.bf16.msra.mxu0 %v12741
    %13465 = vmatpush.bf16.msra.mxu0 %v12735
    %13466 = vmatpush.bf16.msra.mxu0 %v12729
    %13467 = vmatmul.bf16.gmra.mxu0 %v11555
    %v13468 = vpop.f32.mrf.mxu0
    %v13469 = vadd.f32 %v11853, %v13468
    %v13470 = vpop.f32.mrf.mxu0
    %13471 = vdwg.mxu0
    %13472 = vmatpush.bf16.msra.mxu0 %v12819
    %13473 = vmatpush.bf16.msra.mxu0 %v12813
    %13474 = vmatpush.bf16.msra.mxu0 %v12807
    %13475 = vmatpush.bf16.msra.mxu0 %v12801
    %13476 = vmatpush.bf16.msra.mxu0 %v12795
    %13477 = vmatpush.bf16.msra.mxu0 %v12789
    %13478 = vmatpush.bf16.msra.mxu0 %v12783
    %13479 = vmatpush.bf16.msra.mxu0 %v12777
    %13480 = vmatmul.bf16.gmra.mxu0 %v11556
    %v13481 = vpop.f32.mrf.mxu0
    %v13482 = vadd.f32 %v13469, %v13481
    %v13483 = vpop.f32.mrf.mxu0
    %13484 = vdwg.mxu0
    %13485 = vmatpush.bf16.msra.mxu0 %v12867
    %13486 = vmatpush.bf16.msra.mxu0 %v12861
    %13487 = vmatpush.bf16.msra.mxu0 %v12855
    %13488 = vmatpush.bf16.msra.mxu0 %v12849
    %13489 = vmatpush.bf16.msra.mxu0 %v12843
    %13490 = vmatpush.bf16.msra.mxu0 %v12837
    %13491 = vmatpush.bf16.msra.mxu0 %v12831
    %13492 = vmatpush.bf16.msra.mxu0 %v12825
    %13493 = vmatmul.bf16.gmra.mxu0 %v11557
    %v13494 = vpop.f32.mrf.mxu0
    %v13495 = vadd.f32 %v13482, %v13494
    %v13496 = vpop.f32.mrf.mxu0
    %13497 = vdwg.mxu0
    %13498 = vmatpush.bf16.msra.mxu0 %v12915
    %13499 = vmatpush.bf16.msra.mxu0 %v12909
    %13500 = vmatpush.bf16.msra.mxu0 %v12903
    %13501 = vmatpush.bf16.msra.mxu0 %v12897
    %13502 = vmatpush.bf16.msra.mxu0 %v12891
    %13503 = vmatpush.bf16.msra.mxu0 %v12885
    %13504 = vmatpush.bf16.msra.mxu0 %v12879
    %13505 = vmatpush.bf16.msra.mxu0 %v12873
    %13506 = vmatmul.bf16.gmra.mxu0 %v11558
    %v13507 = vpop.f32.mrf.mxu0
    %v13508 = vadd.f32 %v13495, %v13507
    %v13509 = vpop.f32.mrf.mxu0
    %13510 = vdwg.mxu0
    %13511 = vmatpush.bf16.msra.mxu0 %v12963
    %13512 = vmatpush.bf16.msra.mxu0 %v12957
    %13513 = vmatpush.bf16.msra.mxu0 %v12951
    %13514 = vmatpush.bf16.msra.mxu0 %v12945
    %13515 = vmatpush.bf16.msra.mxu0 %v12939
    %13516 = vmatpush.bf16.msra.mxu0 %v12933
    %13517 = vmatpush.bf16.msra.mxu0 %v12927
    %13518 = vmatpush.bf16.msra.mxu0 %v12921
    %13519 = vmatmul.bf16.gmra.mxu0 %v11559
    %v13520 = vpop.f32.mrf.mxu0
    %v13521 = vadd.f32 %v13508, %v13520
    %v13522 = vpop.f32.mrf.mxu0
    %13523 = vdwg.mxu0
    %13524 = vmatpush.bf16.msra.mxu0 %v13011
    %13525 = vmatpush.bf16.msra.mxu0 %v13005
    %13526 = vmatpush.bf16.msra.mxu0 %v12999
    %13527 = vmatpush.bf16.msra.mxu0 %v12993
    %13528 = vmatpush.bf16.msra.mxu0 %v12987
    %13529 = vmatpush.bf16.msra.mxu0 %v12981
    %13530 = vmatpush.bf16.msra.mxu0 %v12975
    %13531 = vmatpush.bf16.msra.mxu0 %v12969
    %13532 = vmatmul.bf16.gmra.mxu0 %v11560
    %v13533 = vpop.f32.mrf.mxu0
    %v13534 = vadd.f32 %v13521, %v13533
    %v13535 = vpop.f32.mrf.mxu0
    %13536 = vdwg.mxu0
    %13537 = vmatpush.bf16.msra.mxu0 %v12772
    %13538 = vmatpush.bf16.msra.mxu0 %v12766
    %13539 = vmatpush.bf16.msra.mxu0 %v12760
    %13540 = vmatpush.bf16.msra.mxu0 %v12754
    %13541 = vmatpush.bf16.msra.mxu0 %v12748
    %13542 = vmatpush.bf16.msra.mxu0 %v12742
    %13543 = vmatpush.bf16.msra.mxu0 %v12736
    %13544 = vmatpush.bf16.msra.mxu0 %v12730
    %13545 = vmatmul.bf16.gmra.mxu0 %v11555
    %v13546 = vpop.f32.mrf.mxu0
    %v13547 = vadd.f32 %v11854, %v13546
    %v13548 = vpop.f32.mrf.mxu0
    %13549 = vdwg.mxu0
    %13550 = vmatpush.bf16.msra.mxu0 %v12820
    %13551 = vmatpush.bf16.msra.mxu0 %v12814
    %13552 = vmatpush.bf16.msra.mxu0 %v12808
    %13553 = vmatpush.bf16.msra.mxu0 %v12802
    %13554 = vmatpush.bf16.msra.mxu0 %v12796
    %13555 = vmatpush.bf16.msra.mxu0 %v12790
    %13556 = vmatpush.bf16.msra.mxu0 %v12784
    %13557 = vmatpush.bf16.msra.mxu0 %v12778
    %13558 = vmatmul.bf16.gmra.mxu0 %v11556
    %v13559 = vpop.f32.mrf.mxu0
    %v13560 = vadd.f32 %v13547, %v13559
    %v13561 = vpop.f32.mrf.mxu0
    %13562 = vdwg.mxu0
    %13563 = vmatpush.bf16.msra.mxu0 %v12868
    %13564 = vmatpush.bf16.msra.mxu0 %v12862
    %13565 = vmatpush.bf16.msra.mxu0 %v12856
    %13566 = vmatpush.bf16.msra.mxu0 %v12850
    %13567 = vmatpush.bf16.msra.mxu0 %v12844
    %13568 = vmatpush.bf16.msra.mxu0 %v12838
    %13569 = vmatpush.bf16.msra.mxu0 %v12832
    %13570 = vmatpush.bf16.msra.mxu0 %v12826
    %13571 = vmatmul.bf16.gmra.mxu0 %v11557
    %v13572 = vpop.f32.mrf.mxu0
    %v13573 = vadd.f32 %v13560, %v13572
    %v13574 = vpop.f32.mrf.mxu0
    %13575 = vdwg.mxu0
    %13576 = vmatpush.bf16.msra.mxu0 %v12916
    %13577 = vmatpush.bf16.msra.mxu0 %v12910
    %13578 = vmatpush.bf16.msra.mxu0 %v12904
    %13579 = vmatpush.bf16.msra.mxu0 %v12898
    %13580 = vmatpush.bf16.msra.mxu0 %v12892
    %13581 = vmatpush.bf16.msra.mxu0 %v12886
    %13582 = vmatpush.bf16.msra.mxu0 %v12880
    %13583 = vmatpush.bf16.msra.mxu0 %v12874
    %13584 = vmatmul.bf16.gmra.mxu0 %v11558
    %v13585 = vpop.f32.mrf.mxu0
    %v13586 = vadd.f32 %v13573, %v13585
    %v13587 = vpop.f32.mrf.mxu0
    %13588 = vdwg.mxu0
    %13589 = vmatpush.bf16.msra.mxu0 %v12964
    %13590 = vmatpush.bf16.msra.mxu0 %v12958
    %13591 = vmatpush.bf16.msra.mxu0 %v12952
    %13592 = vmatpush.bf16.msra.mxu0 %v12946
    %13593 = vmatpush.bf16.msra.mxu0 %v12940
    %13594 = vmatpush.bf16.msra.mxu0 %v12934
    %13595 = vmatpush.bf16.msra.mxu0 %v12928
    %13596 = vmatpush.bf16.msra.mxu0 %v12922
    %13597 = vmatmul.bf16.gmra.mxu0 %v11559
    %v13598 = vpop.f32.mrf.mxu0
    %v13599 = vadd.f32 %v13586, %v13598
    %v13600 = vpop.f32.mrf.mxu0
    %13601 = vdwg.mxu0
    %13602 = vmatpush.bf16.msra.mxu0 %v13012
    %13603 = vmatpush.bf16.msra.mxu0 %v13006
    %13604 = vmatpush.bf16.msra.mxu0 %v13000
    %13605 = vmatpush.bf16.msra.mxu0 %v12994
    %13606 = vmatpush.bf16.msra.mxu0 %v12988
    %13607 = vmatpush.bf16.msra.mxu0 %v12982
    %13608 = vmatpush.bf16.msra.mxu0 %v12976
    %13609 = vmatpush.bf16.msra.mxu0 %v12970
    %13610 = vmatmul.bf16.gmra.mxu0 %v11560
    %v13611 = vpop.f32.mrf.mxu0
    %v13612 = vadd.f32 %v13599, %v13611
    %v13613 = vpop.f32.mrf.mxu0
    %13614 = vdwg.mxu0
    %13615 = vmatpush.bf16.msra.mxu0 %v12773
    %13616 = vmatpush.bf16.msra.mxu0 %v12767
    %13617 = vmatpush.bf16.msra.mxu0 %v12761
    %13618 = vmatpush.bf16.msra.mxu0 %v12755
    %13619 = vmatpush.bf16.msra.mxu0 %v12749
    %13620 = vmatpush.bf16.msra.mxu0 %v12743
    %13621 = vmatpush.bf16.msra.mxu0 %v12737
    %13622 = vmatpush.bf16.msra.mxu0 %v12731
    %13623 = vmatmul.bf16.gmra.mxu0 %v11555
    %v13624 = vpop.f32.mrf.mxu0
    %v13625 = vadd.f32 %v11855, %v13624
    %v13626 = vpop.f32.mrf.mxu0
    %13627 = vdwg.mxu0
    %13628 = vmatpush.bf16.msra.mxu0 %v12821
    %13629 = vmatpush.bf16.msra.mxu0 %v12815
    %13630 = vmatpush.bf16.msra.mxu0 %v12809
    %13631 = vmatpush.bf16.msra.mxu0 %v12803
    %13632 = vmatpush.bf16.msra.mxu0 %v12797
    %13633 = vmatpush.bf16.msra.mxu0 %v12791
    %13634 = vmatpush.bf16.msra.mxu0 %v12785
    %13635 = vmatpush.bf16.msra.mxu0 %v12779
    %13636 = vmatmul.bf16.gmra.mxu0 %v11556
    %v13637 = vpop.f32.mrf.mxu0
    %v13638 = vadd.f32 %v13625, %v13637
    %v13639 = vpop.f32.mrf.mxu0
    %13640 = vdwg.mxu0
    %13641 = vmatpush.bf16.msra.mxu0 %v12869
    %13642 = vmatpush.bf16.msra.mxu0 %v12863
    %13643 = vmatpush.bf16.msra.mxu0 %v12857
    %13644 = vmatpush.bf16.msra.mxu0 %v12851
    %13645 = vmatpush.bf16.msra.mxu0 %v12845
    %13646 = vmatpush.bf16.msra.mxu0 %v12839
    %13647 = vmatpush.bf16.msra.mxu0 %v12833
    %13648 = vmatpush.bf16.msra.mxu0 %v12827
    %13649 = vmatmul.bf16.gmra.mxu0 %v11557
    %v13650 = vpop.f32.mrf.mxu0
    %v13651 = vadd.f32 %v13638, %v13650
    %v13652 = vpop.f32.mrf.mxu0
    %13653 = vdwg.mxu0
    %13654 = vmatpush.bf16.msra.mxu0 %v12917
    %13655 = vmatpush.bf16.msra.mxu0 %v12911
    %13656 = vmatpush.bf16.msra.mxu0 %v12905
    %13657 = vmatpush.bf16.msra.mxu0 %v12899
    %13658 = vmatpush.bf16.msra.mxu0 %v12893
    %13659 = vmatpush.bf16.msra.mxu0 %v12887
    %13660 = vmatpush.bf16.msra.mxu0 %v12881
    %13661 = vmatpush.bf16.msra.mxu0 %v12875
    %13662 = vmatmul.bf16.gmra.mxu0 %v11558
    %v13663 = vpop.f32.mrf.mxu0
    %v13664 = vadd.f32 %v13651, %v13663
    %v13665 = vpop.f32.mrf.mxu0
    %13666 = vdwg.mxu0
    %13667 = vmatpush.bf16.msra.mxu0 %v12965
    %13668 = vmatpush.bf16.msra.mxu0 %v12959
    %13669 = vmatpush.bf16.msra.mxu0 %v12953
    %13670 = vmatpush.bf16.msra.mxu0 %v12947
    %13671 = vmatpush.bf16.msra.mxu0 %v12941
    %13672 = vmatpush.bf16.msra.mxu0 %v12935
    %13673 = vmatpush.bf16.msra.mxu0 %v12929
    %13674 = vmatpush.bf16.msra.mxu0 %v12923
    %13675 = vmatmul.bf16.gmra.mxu0 %v11559
    %v13676 = vpop.f32.mrf.mxu0
    %v13677 = vadd.f32 %v13664, %v13676
    %v13678 = vpop.f32.mrf.mxu0
    %13679 = vdwg.mxu0
    %13680 = vmatpush.bf16.msra.mxu0 %v13013
    %13681 = vmatpush.bf16.msra.mxu0 %v13007
    %13682 = vmatpush.bf16.msra.mxu0 %v13001
    %13683 = vmatpush.bf16.msra.mxu0 %v12995
    %13684 = vmatpush.bf16.msra.mxu0 %v12989
    %13685 = vmatpush.bf16.msra.mxu0 %v12983
    %13686 = vmatpush.bf16.msra.mxu0 %v12977
    %13687 = vmatpush.bf16.msra.mxu0 %v12971
    %13688 = vmatmul.bf16.gmra.mxu0 %v11560
    %v13689 = vpop.f32.mrf.mxu0
    %v13690 = vadd.f32 %v13677, %v13689
    %v13691 = vpop.f32.mrf.mxu0
    %13692 = vdwg.mxu0
    %13693 = vmatpush.bf16.msra.mxu0 %v12774
    %13694 = vmatpush.bf16.msra.mxu0 %v12768
    %13695 = vmatpush.bf16.msra.mxu0 %v12762
    %13696 = vmatpush.bf16.msra.mxu0 %v12756
    %13697 = vmatpush.bf16.msra.mxu0 %v12750
    %13698 = vmatpush.bf16.msra.mxu0 %v12744
    %13699 = vmatpush.bf16.msra.mxu0 %v12738
    %13700 = vmatpush.bf16.msra.mxu0 %v12732
    %13701 = vmatmul.bf16.gmra.mxu0 %v11555
    %v13702 = vpop.f32.mrf.mxu0
    %v13703 = vadd.f32 %v11856, %v13702
    %v13704 = vpop.f32.mrf.mxu0
    %13705 = vdwg.mxu0
    %13706 = vmatpush.bf16.msra.mxu0 %v12822
    %13707 = vmatpush.bf16.msra.mxu0 %v12816
    %13708 = vmatpush.bf16.msra.mxu0 %v12810
    %13709 = vmatpush.bf16.msra.mxu0 %v12804
    %13710 = vmatpush.bf16.msra.mxu0 %v12798
    %13711 = vmatpush.bf16.msra.mxu0 %v12792
    %13712 = vmatpush.bf16.msra.mxu0 %v12786
    %13713 = vmatpush.bf16.msra.mxu0 %v12780
    %13714 = vmatmul.bf16.gmra.mxu0 %v11556
    %v13715 = vpop.f32.mrf.mxu0
    %v13716 = vadd.f32 %v13703, %v13715
    %v13717 = vpop.f32.mrf.mxu0
    %13718 = vdwg.mxu0
    %13719 = vmatpush.bf16.msra.mxu0 %v12870
    %13720 = vmatpush.bf16.msra.mxu0 %v12864
    %13721 = vmatpush.bf16.msra.mxu0 %v12858
    %13722 = vmatpush.bf16.msra.mxu0 %v12852
    %13723 = vmatpush.bf16.msra.mxu0 %v12846
    %13724 = vmatpush.bf16.msra.mxu0 %v12840
    %13725 = vmatpush.bf16.msra.mxu0 %v12834
    %13726 = vmatpush.bf16.msra.mxu0 %v12828
    %13727 = vmatmul.bf16.gmra.mxu0 %v11557
    %v13728 = vpop.f32.mrf.mxu0
    %v13729 = vadd.f32 %v13716, %v13728
    %v13730 = vpop.f32.mrf.mxu0
    %13731 = vdwg.mxu0
    %13732 = vmatpush.bf16.msra.mxu0 %v12918
    %13733 = vmatpush.bf16.msra.mxu0 %v12912
    %13734 = vmatpush.bf16.msra.mxu0 %v12906
    %13735 = vmatpush.bf16.msra.mxu0 %v12900
    %13736 = vmatpush.bf16.msra.mxu0 %v12894
    %13737 = vmatpush.bf16.msra.mxu0 %v12888
    %13738 = vmatpush.bf16.msra.mxu0 %v12882
    %13739 = vmatpush.bf16.msra.mxu0 %v12876
    %13740 = vmatmul.bf16.gmra.mxu0 %v11558
    %v13741 = vpop.f32.mrf.mxu0
    %v13742 = vadd.f32 %v13729, %v13741
    %v13743 = vpop.f32.mrf.mxu0
    %13744 = vdwg.mxu0
    %13745 = vmatpush.bf16.msra.mxu0 %v12966
    %13746 = vmatpush.bf16.msra.mxu0 %v12960
    %13747 = vmatpush.bf16.msra.mxu0 %v12954
    %13748 = vmatpush.bf16.msra.mxu0 %v12948
    %13749 = vmatpush.bf16.msra.mxu0 %v12942
    %13750 = vmatpush.bf16.msra.mxu0 %v12936
    %13751 = vmatpush.bf16.msra.mxu0 %v12930
    %13752 = vmatpush.bf16.msra.mxu0 %v12924
    %13753 = vmatmul.bf16.gmra.mxu0 %v11559
    %v13754 = vpop.f32.mrf.mxu0
    %v13755 = vadd.f32 %v13742, %v13754
    %v13756 = vpop.f32.mrf.mxu0
    %13757 = vdwg.mxu0
    %13758 = vmatpush.bf16.msra.mxu0 %v13014
    %13759 = vmatpush.bf16.msra.mxu0 %v13008
    %13760 = vmatpush.bf16.msra.mxu0 %v13002
    %13761 = vmatpush.bf16.msra.mxu0 %v12996
    %13762 = vmatpush.bf16.msra.mxu0 %v12990
    %13763 = vmatpush.bf16.msra.mxu0 %v12984
    %13764 = vmatpush.bf16.msra.mxu0 %v12978
    %13765 = vmatpush.bf16.msra.mxu0 %v12972
    %13766 = vmatmul.bf16.gmra.mxu0 %v11560
    %v13767 = vpop.f32.mrf.mxu0
    %v13768 = vadd.f32 %v13755, %v13767
    %v13769 = vpop.f32.mrf.mxu0
    %13770 = vdwg.mxu0
    %v13771 = vmax.f32 %v13378, 0.0
    %v13772 = vmax.f32 %v13456, 0.0
    %v13773 = vmax.f32 %v13534, 0.0
    %v13774 = vmax.f32 %v13612, 0.0
    %v13775 = vmax.f32 %v13690, 0.0
    %v13776 = vmax.f32 %v13768, 0.0
    %v13777 = vpack.c.bf16 %v13771, %v13771
    %v13778 = vpack.c.bf16 %v13772, %v13772
    %v13779 = vpack.c.bf16 %v13773, %v13773
    %v13780 = vpack.c.bf16 %v13774, %v13774
    %v13781 = vpack.c.bf16 %v13775, %v13775
    %v13782 = vpack.c.bf16 %v13776, %v13776
    %v13783 = vld [vmem:[#allocation25] sm:$0xf]
    %v13784 = vld [vmem:[#allocation25 + $0x4] sm:$0xf]
    %v13785 = vld [vmem:[#allocation25 + $0x8] sm:$0xf]
    %v13786 = vld [vmem:[#allocation25 + $0xc] sm:$0xf]
    %v13787 = vld [vmem:[#allocation25 + $0x10] sm:$0xf]
    %v13788 = vld [vmem:[#allocation25 + $0x14] sm:$0xf]
    %v13789 = vld [vmem:[#allocation25 + $0x18] sm:$0xf]
    %v13790 = vld [vmem:[#allocation25 + $0x1c] sm:$0xf]
    %v13791 = vld [vmem:[#allocation25 + $0x20] sm:$0xf]
    %v13792 = vld [vmem:[#allocation25 + $0x24] sm:$0xf]
    %v13793 = vld [vmem:[#allocation25 + $0x28] sm:$0xf]
    %v13794 = vld [vmem:[#allocation25 + $0x2c] sm:$0xf]
    %v13795 = vld [vmem:[#allocation25 + $0x30] sm:$0xf]
    %v13796 = vld [vmem:[#allocation25 + $0x34] sm:$0xf]
    %v13797 = vld [vmem:[#allocation25 + $0x38] sm:$0xf]
    %v13798 = vld [vmem:[#allocation25 + $0x3c] sm:$0xf]
    %v13799 = vld [vmem:[#allocation25 + $0x40] sm:$0xf]
    %v13800 = vld [vmem:[#allocation25 + $0x44] sm:$0xf]
    %v13801 = vld [vmem:[#allocation25 + $0x48] sm:$0xf]
    %v13802 = vld [vmem:[#allocation25 + $0x4c] sm:$0xf]
    %v13803 = vld [vmem:[#allocation25 + $0x50] sm:$0xf]
    %v13804 = vld [vmem:[#allocation25 + $0x54] sm:$0xf]
    %v13805 = vld [vmem:[#allocation25 + $0x58] sm:$0xf]
    %v13806 = vld [vmem:[#allocation25 + $0x5c] sm:$0xf]
    %v13807 = vld [vmem:[#allocation25 + $0x60] sm:$0xf]
    %v13808 = vld [vmem:[#allocation25 + $0x64] sm:$0xf]
    %v13809 = vld [vmem:[#allocation25 + $0x68] sm:$0xf]
    %v13810 = vld [vmem:[#allocation25 + $0x6c] sm:$0xf]
    %v13811 = vld [vmem:[#allocation25 + $0x70] sm:$0xf]
    %v13812 = vld [vmem:[#allocation25 + $0x74] sm:$0xf]
    %v13813 = vld [vmem:[#allocation25 + $0x78] sm:$0xf]
    %v13814 = vld [vmem:[#allocation25 + $0x7c] sm:$0xf]
    %v13815 = vld [vmem:[#allocation25 + $0x80] sm:$0xf]
    %v13816 = vld [vmem:[#allocation25 + $0x84] sm:$0xf]
    %v13817 = vld [vmem:[#allocation25 + $0x88] sm:$0xf]
    %v13818 = vld [vmem:[#allocation25 + $0x8c] sm:$0xf]
    %v13819 = vld [vmem:[#allocation25 + $0x90] sm:$0xf]
    %v13820 = vld [vmem:[#allocation25 + $0x94] sm:$0xf]
    %v13821 = vld [vmem:[#allocation25 + $0x98] sm:$0xf]
    %v13822 = vld [vmem:[#allocation25 + $0x9c] sm:$0xf]
    %v13823 = vld [vmem:[#allocation25 + $0xa0] sm:$0xf]
    %v13824 = vld [vmem:[#allocation25 + $0xa4] sm:$0xf]
    %v13825 = vld [vmem:[#allocation25 + $0xa8] sm:$0xf]
    %v13826 = vld [vmem:[#allocation25 + $0xac] sm:$0xf]
    %v13827 = vld [vmem:[#allocation25 + $0xb0] sm:$0xf]
    %v13828 = vld [vmem:[#allocation25 + $0xb4] sm:$0xf]
    %v13829 = vld [vmem:[#allocation25 + $0xb8] sm:$0xf]
    %v13830 = vld [vmem:[#allocation25 + $0xbc] sm:$0xf]
    %v13831 = vld [vmem:[#allocation25 + $0xc0] sm:$0xf]
    %v13832 = vld [vmem:[#allocation25 + $0xc4] sm:$0xf]
    %v13833 = vld [vmem:[#allocation25 + $0xc8] sm:$0xf]
    %v13834 = vld [vmem:[#allocation25 + $0xcc] sm:$0xf]
    %v13835 = vld [vmem:[#allocation25 + $0xd0] sm:$0xf]
    %v13836 = vld [vmem:[#allocation25 + $0xd4] sm:$0xf]
    %v13837 = vld [vmem:[#allocation25 + $0xd8] sm:$0xf]
    %v13838 = vld [vmem:[#allocation25 + $0xdc] sm:$0xf]
    %v13839 = vld [vmem:[#allocation25 + $0xe0] sm:$0xf]
    %v13840 = vld [vmem:[#allocation25 + $0xe4] sm:$0xf]
    %v13841 = vld [vmem:[#allocation25 + $0xe8] sm:$0xf]
    %v13842 = vld [vmem:[#allocation25 + $0xec] sm:$0xf]
    %v13843 = vld [vmem:[#allocation25 + $0xf0] sm:$0xf]
    %v13844 = vld [vmem:[#allocation25 + $0xf4] sm:$0xf]
    %v13845 = vld [vmem:[#allocation25 + $0xf8] sm:$0xf]
    %v13846 = vld [vmem:[#allocation25 + $0xfc] sm:$0xf]
    %v13847 = vld [vmem:[#allocation25 + $0x100] sm:$0xf]
    %v13848 = vld [vmem:[#allocation25 + $0x104] sm:$0xf]
    %v13849 = vld [vmem:[#allocation25 + $0x108] sm:$0xf]
    %v13850 = vld [vmem:[#allocation25 + $0x10c] sm:$0xf]
    %v13851 = vld [vmem:[#allocation25 + $0x110] sm:$0xf]
    %v13852 = vld [vmem:[#allocation25 + $0x114] sm:$0xf]
    %v13853 = vld [vmem:[#allocation25 + $0x118] sm:$0xf]
    %v13854 = vld [vmem:[#allocation25 + $0x11c] sm:$0xf]
    %v13855 = vld [vmem:[#allocation25 + $0x120] sm:$0xf]
    %v13856 = vld [vmem:[#allocation25 + $0x124] sm:$0xf]
    %v13857 = vld [vmem:[#allocation25 + $0x128] sm:$0xf]
    %v13858 = vld [vmem:[#allocation25 + $0x12c] sm:$0xf]
    %v13859 = vld [vmem:[#allocation25 + $0x130] sm:$0xf]
    %v13860 = vld [vmem:[#allocation25 + $0x134] sm:$0xf]
    %v13861 = vld [vmem:[#allocation25 + $0x138] sm:$0xf]
    %v13862 = vld [vmem:[#allocation25 + $0x13c] sm:$0xf]
    %v13863 = vld [vmem:[#allocation25 + $0x140] sm:$0xf]
    %v13864 = vld [vmem:[#allocation25 + $0x144] sm:$0xf]
    %v13865 = vld [vmem:[#allocation25 + $0x148] sm:$0xf]
    %v13866 = vld [vmem:[#allocation25 + $0x14c] sm:$0xf]
    %v13867 = vld [vmem:[#allocation25 + $0x150] sm:$0xf]
    %v13868 = vld [vmem:[#allocation25 + $0x154] sm:$0xf]
    %v13869 = vld [vmem:[#allocation25 + $0x158] sm:$0xf]
    %v13870 = vld [vmem:[#allocation25 + $0x15c] sm:$0xf]
    %v13871 = vld [vmem:[#allocation25 + $0x160] sm:$0xf]
    %v13872 = vld [vmem:[#allocation25 + $0x164] sm:$0xf]
    %v13873 = vld [vmem:[#allocation25 + $0x168] sm:$0xf]
    %v13874 = vld [vmem:[#allocation25 + $0x16c] sm:$0xf]
    %v13875 = vld [vmem:[#allocation25 + $0x170] sm:$0xf]
    %v13876 = vld [vmem:[#allocation25 + $0x174] sm:$0xf]
    %v13877 = vld [vmem:[#allocation25 + $0x178] sm:$0xf]
    %v13878 = vld [vmem:[#allocation25 + $0x17c] sm:$0xf]
    %v13879 = vld [vmem:[#allocation26] sm:$0x1]
    %v13881 = vperm.slane %v13879, 0
    %v13979 = vunpack.c.l.b16 %v13783
    %v13980 = vunpack.c.l.b16 %v13784
    %v13981 = vunpack.c.l.b16 %v13785
    %v13982 = vunpack.c.l.b16 %v13786
    %v13983 = vunpack.c.l.b16 %v13787
    %v13984 = vunpack.c.l.b16 %v13788
    %v13985 = vunpack.c.l.b16 %v13789
    %v13986 = vunpack.c.l.b16 %v13790
    %v13987 = vunpack.c.l.b16 %v13791
    %v13988 = vunpack.c.l.b16 %v13792
    %v13989 = vunpack.c.l.b16 %v13793
    %v13990 = vunpack.c.l.b16 %v13794
    %v13991 = vunpack.c.l.b16 %v13795
    %v13992 = vunpack.c.l.b16 %v13796
    %v13993 = vunpack.c.l.b16 %v13797
    %v13994 = vunpack.c.l.b16 %v13798
    %v13995 = vunpack.c.l.b16 %v13799
    %v13996 = vunpack.c.l.b16 %v13800
    %v13997 = vunpack.c.l.b16 %v13801
    %v13998 = vunpack.c.l.b16 %v13802
    %v13999 = vunpack.c.l.b16 %v13803
    %v14000 = vunpack.c.l.b16 %v13804
    %v14001 = vunpack.c.l.b16 %v13805
    %v14002 = vunpack.c.l.b16 %v13806
    %v14003 = vunpack.c.l.b16 %v13807
    %v14004 = vunpack.c.l.b16 %v13808
    %v14005 = vunpack.c.l.b16 %v13809
    %v14006 = vunpack.c.l.b16 %v13810
    %v14007 = vunpack.c.l.b16 %v13811
    %v14008 = vunpack.c.l.b16 %v13812
    %v14009 = vunpack.c.l.b16 %v13813
    %v14010 = vunpack.c.l.b16 %v13814
    %v14011 = vunpack.c.l.b16 %v13815
    %v14012 = vunpack.c.l.b16 %v13816
    %v14013 = vunpack.c.l.b16 %v13817
    %v14014 = vunpack.c.l.b16 %v13818
    %v14015 = vunpack.c.l.b16 %v13819
    %v14016 = vunpack.c.l.b16 %v13820
    %v14017 = vunpack.c.l.b16 %v13821
    %v14018 = vunpack.c.l.b16 %v13822
    %v14019 = vunpack.c.l.b16 %v13823
    %v14020 = vunpack.c.l.b16 %v13824
    %v14021 = vunpack.c.l.b16 %v13825
    %v14022 = vunpack.c.l.b16 %v13826
    %v14023 = vunpack.c.l.b16 %v13827
    %v14024 = vunpack.c.l.b16 %v13828
    %v14025 = vunpack.c.l.b16 %v13829
    %v14026 = vunpack.c.l.b16 %v13830
    %v14027 = vunpack.c.l.b16 %v13831
    %v14028 = vunpack.c.l.b16 %v13832
    %v14029 = vunpack.c.l.b16 %v13833
    %v14030 = vunpack.c.l.b16 %v13834
    %v14031 = vunpack.c.l.b16 %v13835
    %v14032 = vunpack.c.l.b16 %v13836
    %v14033 = vunpack.c.l.b16 %v13837
    %v14034 = vunpack.c.l.b16 %v13838
    %v14035 = vunpack.c.l.b16 %v13839
    %v14036 = vunpack.c.l.b16 %v13840
    %v14037 = vunpack.c.l.b16 %v13841
    %v14038 = vunpack.c.l.b16 %v13842
    %v14039 = vunpack.c.l.b16 %v13843
    %v14040 = vunpack.c.l.b16 %v13844
    %v14041 = vunpack.c.l.b16 %v13845
    %v14042 = vunpack.c.l.b16 %v13846
    %v14043 = vunpack.c.l.b16 %v13847
    %v14044 = vunpack.c.l.b16 %v13848
    %v14045 = vunpack.c.l.b16 %v13849
    %v14046 = vunpack.c.l.b16 %v13850
    %v14047 = vunpack.c.l.b16 %v13851
    %v14048 = vunpack.c.l.b16 %v13852
    %v14049 = vunpack.c.l.b16 %v13853
    %v14050 = vunpack.c.l.b16 %v13854
    %v14051 = vunpack.c.l.b16 %v13855
    %v14052 = vunpack.c.l.b16 %v13856
    %v14053 = vunpack.c.l.b16 %v13857
    %v14054 = vunpack.c.l.b16 %v13858
    %v14055 = vunpack.c.l.b16 %v13859
    %v14056 = vunpack.c.l.b16 %v13860
    %v14057 = vunpack.c.l.b16 %v13861
    %v14058 = vunpack.c.l.b16 %v13862
    %v14059 = vunpack.c.l.b16 %v13863
    %v14060 = vunpack.c.l.b16 %v13864
    %v14061 = vunpack.c.l.b16 %v13865
    %v14062 = vunpack.c.l.b16 %v13866
    %v14063 = vunpack.c.l.b16 %v13867
    %v14064 = vunpack.c.l.b16 %v13868
    %v14065 = vunpack.c.l.b16 %v13869
    %v14066 = vunpack.c.l.b16 %v13870
    %v14067 = vunpack.c.l.b16 %v13871
    %v14068 = vunpack.c.l.b16 %v13872
    %v14069 = vunpack.c.l.b16 %v13873
    %v14070 = vunpack.c.l.b16 %v13874
    %v14071 = vunpack.c.l.b16 %v13875
    %v14072 = vunpack.c.l.b16 %v13876
    %v14073 = vunpack.c.l.b16 %v13877
    %v14074 = vunpack.c.l.b16 %v13878
    %v14075 = vpack.c.b16 %v13980, %v13979
    %v14076 = vpack.c.b16 %v13982, %v13981
    %v14077 = vpack.c.b16 %v13984, %v13983
    %v14078 = vpack.c.b16 %v13986, %v13985
    %v14079 = vpack.c.b16 %v13988, %v13987
    %v14080 = vpack.c.b16 %v13990, %v13989
    %v14081 = vpack.c.b16 %v13992, %v13991
    %v14082 = vpack.c.b16 %v13994, %v13993
    %v14083 = vpack.c.b16 %v13996, %v13995
    %v14084 = vpack.c.b16 %v13998, %v13997
    %v14085 = vpack.c.b16 %v14000, %v13999
    %v14086 = vpack.c.b16 %v14002, %v14001
    %v14087 = vpack.c.b16 %v14004, %v14003
    %v14088 = vpack.c.b16 %v14006, %v14005
    %v14089 = vpack.c.b16 %v14008, %v14007
    %v14090 = vpack.c.b16 %v14010, %v14009
    %v14091 = vpack.c.b16 %v14012, %v14011
    %v14092 = vpack.c.b16 %v14014, %v14013
    %v14093 = vpack.c.b16 %v14016, %v14015
    %v14094 = vpack.c.b16 %v14018, %v14017
    %v14095 = vpack.c.b16 %v14020, %v14019
    %v14096 = vpack.c.b16 %v14022, %v14021
    %v14097 = vpack.c.b16 %v14024, %v14023
    %v14098 = vpack.c.b16 %v14026, %v14025
    %v14099 = vpack.c.b16 %v14028, %v14027
    %v14100 = vpack.c.b16 %v14030, %v14029
    %v14101 = vpack.c.b16 %v14032, %v14031
    %v14102 = vpack.c.b16 %v14034, %v14033
    %v14103 = vpack.c.b16 %v14036, %v14035
    %v14104 = vpack.c.b16 %v14038, %v14037
    %v14105 = vpack.c.b16 %v14040, %v14039
    %v14106 = vpack.c.b16 %v14042, %v14041
    %v14107 = vpack.c.b16 %v14044, %v14043
    %v14108 = vpack.c.b16 %v14046, %v14045
    %v14109 = vpack.c.b16 %v14048, %v14047
    %v14110 = vpack.c.b16 %v14050, %v14049
    %v14111 = vpack.c.b16 %v14052, %v14051
    %v14112 = vpack.c.b16 %v14054, %v14053
    %v14113 = vpack.c.b16 %v14056, %v14055
    %v14114 = vpack.c.b16 %v14058, %v14057
    %v14115 = vpack.c.b16 %v14060, %v14059
    %v14116 = vpack.c.b16 %v14062, %v14061
    %v14117 = vpack.c.b16 %v14064, %v14063
    %v14118 = vpack.c.b16 %v14066, %v14065
    %v14119 = vpack.c.b16 %v14068, %v14067
    %v14120 = vpack.c.b16 %v14070, %v14069
    %v14121 = vpack.c.b16 %v14072, %v14071
    %v14122 = vpack.c.b16 %v14074, %v14073
    %14171 = vmatpush.bf16.msra.mxu0 %v14082
    %14172 = vmatpush.bf16.msra.mxu0 %v14081
    %14173 = vmatpush.bf16.msra.mxu0 %v14080
    %14174 = vmatpush.bf16.msra.mxu0 %v14079
    %14175 = vmatpush.bf16.msra.mxu0 %v14078
    %14176 = vmatpush.bf16.msra.mxu0 %v14077
    %14177 = vmatpush.bf16.msra.mxu0 %v14076
    %14178 = vmatpush.bf16.msra.mxu0 %v14075
    %14179 = vmatmul.bf16.gmra.mxu0 %v13777
    %v14180 = vpop.f32.mrf.mxu0
    %v14181 = vadd.f32 %v13881, %v14180
    %v14182 = vpop.f32.mrf.mxu0
    %14183 = vdwg.mxu0
    %14184 = vmatpush.bf16.msra.mxu0 %v14090
    %14185 = vmatpush.bf16.msra.mxu0 %v14089
    %14186 = vmatpush.bf16.msra.mxu0 %v14088
    %14187 = vmatpush.bf16.msra.mxu0 %v14087
    %14188 = vmatpush.bf16.msra.mxu0 %v14086
    %14189 = vmatpush.bf16.msra.mxu0 %v14085
    %14190 = vmatpush.bf16.msra.mxu0 %v14084
    %14191 = vmatpush.bf16.msra.mxu0 %v14083
    %14192 = vmatmul.bf16.gmra.mxu0 %v13778
    %v14193 = vpop.f32.mrf.mxu0
    %v14194 = vadd.f32 %v14181, %v14193
    %v14195 = vpop.f32.mrf.mxu0
    %14196 = vdwg.mxu0
    %14197 = vmatpush.bf16.msra.mxu0 %v14098
    %14198 = vmatpush.bf16.msra.mxu0 %v14097
    %14199 = vmatpush.bf16.msra.mxu0 %v14096
    %14200 = vmatpush.bf16.msra.mxu0 %v14095
    %14201 = vmatpush.bf16.msra.mxu0 %v14094
    %14202 = vmatpush.bf16.msra.mxu0 %v14093
    %14203 = vmatpush.bf16.msra.mxu0 %v14092
    %14204 = vmatpush.bf16.msra.mxu0 %v14091
    %14205 = vmatmul.bf16.gmra.mxu0 %v13779
    %v14206 = vpop.f32.mrf.mxu0
    %v14207 = vadd.f32 %v14194, %v14206
    %v14208 = vpop.f32.mrf.mxu0
    %14209 = vdwg.mxu0
    %14210 = vmatpush.bf16.msra.mxu0 %v14106
    %14211 = vmatpush.bf16.msra.mxu0 %v14105
    %14212 = vmatpush.bf16.msra.mxu0 %v14104
    %14213 = vmatpush.bf16.msra.mxu0 %v14103
    %14214 = vmatpush.bf16.msra.mxu0 %v14102
    %14215 = vmatpush.bf16.msra.mxu0 %v14101
    %14216 = vmatpush.bf16.msra.mxu0 %v14100
    %14217 = vmatpush.bf16.msra.mxu0 %v14099
    %14218 = vmatmul.bf16.gmra.mxu0 %v13780
    %v14219 = vpop.f32.mrf.mxu0
    %v14220 = vadd.f32 %v14207, %v14219
    %v14221 = vpop.f32.mrf.mxu0
    %14222 = vdwg.mxu0
    %14223 = vmatpush.bf16.msra.mxu0 %v14114
    %14224 = vmatpush.bf16.msra.mxu0 %v14113
    %14225 = vmatpush.bf16.msra.mxu0 %v14112
    %14226 = vmatpush.bf16.msra.mxu0 %v14111
    %14227 = vmatpush.bf16.msra.mxu0 %v14110
    %14228 = vmatpush.bf16.msra.mxu0 %v14109
    %14229 = vmatpush.bf16.msra.mxu0 %v14108
    %14230 = vmatpush.bf16.msra.mxu0 %v14107
    %14231 = vmatmul.bf16.gmra.mxu0 %v13781
    %v14232 = vpop.f32.mrf.mxu0
    %v14233 = vadd.f32 %v14220, %v14232
    %v14234 = vpop.f32.mrf.mxu0
    %14235 = vdwg.mxu0
    %14236 = vmatpush.bf16.msra.mxu0 %v14122
    %14237 = vmatpush.bf16.msra.mxu0 %v14121
    %14238 = vmatpush.bf16.msra.mxu0 %v14120
    %14239 = vmatpush.bf16.msra.mxu0 %v14119
    %14240 = vmatpush.bf16.msra.mxu0 %v14118
    %14241 = vmatpush.bf16.msra.mxu0 %v14117
    %14242 = vmatpush.bf16.msra.mxu0 %v14116
    %14243 = vmatpush.bf16.msra.mxu0 %v14115
    %14244 = vmatmul.bf16.gmra.mxu0 %v13782
    %v14245 = vpop.f32.mrf.mxu0
    %v14246 = vadd.f32 %v14233, %v14245
    %v14247 = vpop.f32.mrf.mxu0
    %14248 = vdwg.mxu0
    %14249 = vst [vmem:[#allocation28] sm:$0x3] %v14246
    // Predicated region
    $region130: #{tpu_custom_call.1} parent=1 // pred_check
      _
    $region131: #{tpu_custom_call.1} parent=1 // pred_check_branch
      %14251 = sbr.rel (0) target = $region133
    $region132: #{tpu_custom_call.1} parent=1 // pred_region
      %14253 = vsyncadd [#allocation4], 0
      %s14255 = sshll.u32 [#allocation28], 4
      %s14256 = int_to_ptr.vmem [resolvable:$true] %s14255
      %s14257 = sshll.u32 %s16, 4
      %s14258 = int_to_ptr.hbm [resolvable:$true] %s14257
      %14260 = dma.vmem_to_hbm [thread:$0]  %s14256, 32, %s14258, [#allocation4]
    $region133: #{tpu_custom_call.1} parent=1 // pred_fallthru
      _
    // Predicated region
    $region134: #{tpu_custom_call.1} parent=1 // pred_check
      _
    $region135: #{tpu_custom_call.1} parent=1 // pred_check_branch
      %14262 = sbr.rel (0) target = $region137
    $region136: #{tpu_custom_call.1} parent=1 // pred_region
      %14264 = dma.done [#allocation4], 32
    $region137: #{tpu_custom_call.1} parent=1 // pred_fallthru
      _
    %14265 = vsyncpa [#allocation3], 1
    %14266 = vsyncpa [#allocation6], 1
    %14267 = vsyncpa [#allocation9], 1
    %14268 = vsyncpa [#allocation12], 1
    %14269 = vsyncpa [#allocation15], 1
    %14270 = vsyncpa [#allocation18], 1
    %14271 = vsyncpa [#allocation21], 1
    %14272 = vsyncpa [#allocation24], 1
    %14273 = vsyncpa [#allocation27], 1
    %14274 = vsyncpa [#allocation4], 1

</llo_original>
